<compile_context>
chip_gen: v5e
topology: v5e:2x2
jax: 0.10.0
libtpu: 0.0.40
codegen_flags: <defaults>
</compile_context>

<pallas_src>
import jax
import jax.numpy as jnp
from jax.experimental import pallas as pl
from jax.experimental.pallas import tpu as pltpu

INPUT_SIZE = 2548
F_PAD = 2560                 # 20 * 128, lane-aligned K dimension
HIDDEN = 256
OUTPUT_SIZE = 3
PROJ_PAD = 128               # lane-dense projection output width


# --------------------- Fused LSTM + projection kernel -----------------------
# One grid step per timestep; h/c carried in VMEM scratch. Gate order follows
# PyTorch (i, f, g, o). On the final step the projection head + ReLU + softmax
# runs on the last hidden state and writes the (B, PROJ_PAD) output.
def fused_lstm_proj_kernel(x_ref, wih_ref, whh_ref, b_ref, wp_ref, bp_ref,
                           out_ref, h_sc, c_sc):
    t = pl.program_id(0)

    @pl.when(t == 0)
    def _():
        h_sc[...] = jnp.zeros_like(h_sc)
        c_sc[...] = jnp.zeros_like(c_sc)

    x = x_ref[0]                       # (B, F_PAD) bf16
    h_prev = h_sc[...]                 # (B, H) f32 carry

    gates = (
        jnp.dot(x, wih_ref[...], preferred_element_type=jnp.float32)
        + jnp.dot(h_prev.astype(jnp.bfloat16), whh_ref[...],
                  preferred_element_type=jnp.float32)
        + b_ref[...]
    )                                  # (B, 4H) f32

    i_g = jax.nn.sigmoid(gates[:, 0 * HIDDEN:1 * HIDDEN])
    f_g = jax.nn.sigmoid(gates[:, 1 * HIDDEN:2 * HIDDEN])
    g_g = jnp.tanh(gates[:, 2 * HIDDEN:3 * HIDDEN])
    o_g = jax.nn.sigmoid(gates[:, 3 * HIDDEN:4 * HIDDEN])

    c = f_g * c_sc[...] + i_g * g_g
    h = o_g * jnp.tanh(c)

    c_sc[...] = c
    h_sc[...] = h

    @pl.when(t == pl.num_programs(0) - 1)
    def _():
        logits = (
            jnp.dot(h, wp_ref[...], preferred_element_type=jnp.float32)
            + bp_ref[...]
        )                                              # (B, PROJ_PAD)
        act = jnp.maximum(logits, 0.0)                 # ReLU
        col = jax.lax.broadcasted_iota(jnp.int32, act.shape, 1)
        act = jnp.where(col < OUTPUT_SIZE, act, -1e30)  # mask padded lanes
        m = jnp.max(act, axis=-1, keepdims=True)        # stable softmax
        e = jnp.exp(act - m)
        out_ref[...] = (e / jnp.sum(e, axis=-1, keepdims=True)).astype(
            out_ref.dtype)


# ------------------------ One-time parameter prep ----------------------------
def prepare_params(params):
    """Transpose / pad / cast weights once, outside the forward path."""
    wih_t = jnp.pad(params["w_ih"].T,
                    ((0, F_PAD - INPUT_SIZE), (0, 0))).astype(jnp.bfloat16)
    whh_t = params["w_hh"].T.astype(jnp.bfloat16)                  # (H, 4H)
    bias = (params["b_ih"] + params["b_hh"]).reshape(
        1, 4 * HIDDEN).astype(jnp.float32)
    wp = jnp.pad(params["w_proj"].T,
                 ((0, 0), (0, PROJ_PAD - OUTPUT_SIZE))).astype(jnp.float32)
    bp = jnp.pad(params["b_proj"],
                 (0, PROJ_PAD - OUTPUT_SIZE)).reshape(
        1, PROJ_PAD).astype(jnp.float32)
    return {"wih_t": wih_t, "whh_t": whh_t, "bias": bias, "wp": wp, "bp": bp}


# ------------------------------- Forward -------------------------------------
def model_forward(eeg_samples, prepped):
    T, B, F = eeg_samples.shape
    assert F == INPUT_SIZE
    # h1.view(batch, -1) -> Linear(256, 3) is only valid when T == 1 (as in the
    # original PyTorch forward).
    assert T == 1

    # Pad lanes to a multiple of 128 and cast activations to bf16 (cheap, tiny).
    x = jnp.pad(eeg_samples,
                ((0, 0), (0, 0), (0, F_PAD - F))).astype(jnp.bfloat16)

    out_pad = pl.pallas_call(
        fused_lstm_proj_kernel,
        out_shape=jax.ShapeDtypeStruct((B, PROJ_PAD), jnp.float32),
        grid_spec=pltpu.PrefetchScalarGridSpec(
            num_scalar_prefetch=0,
            grid=(T,),
            in_specs=[
                pl.BlockSpec((1, B, F_PAD), lambda t: (t, 0, 0)),       # x_t
                pl.BlockSpec((F_PAD, 4 * HIDDEN), lambda t: (0, 0)),    # W_ih^T
                pl.BlockSpec((HIDDEN, 4 * HIDDEN), lambda t: (0, 0)),   # W_hh^T
                pl.BlockSpec((1, 4 * HIDDEN), lambda t: (0, 0)),        # bias
                pl.BlockSpec((HIDDEN, PROJ_PAD), lambda t: (0, 0)),     # W_proj^T
                pl.BlockSpec((1, PROJ_PAD), lambda t: (0, 0)),          # b_proj
            ],
            out_specs=pl.BlockSpec((B, PROJ_PAD), lambda t: (0, 0)),
            scratch_shapes=[
                pltpu.VMEM((B, HIDDEN), jnp.float32),   # h carry
                pltpu.VMEM((B, HIDDEN), jnp.float32),   # c carry
            ],
        ),
        compiler_params=pltpu.CompilerParams(
            dimension_semantics=("arbitrary",),   # recurrence: sequential grid
            vmem_limit_bytes=32 << 20,            # real footprint ~12 MB
        ),
    )(x, prepped["wih_t"], prepped["whh_t"], prepped["bias"],
      prepped["wp"], prepped["bp"])

    return out_pad[:, :OUTPUT_SIZE]


if __name__ == "__main__":
    key = jax.random.PRNGKey(0)
    ks = jax.random.split(key, 7)

    T, B = 1, 8  # T must be 1 (PyTorch forward constraint); B=8 fills a sublane

    k_lstm = 1.0 / jnp.sqrt(jnp.float32(HIDDEN))
    k_proj = 1.0 / jnp.sqrt(jnp.float32(HIDDEN))
    params = {
        "w_ih": jax.random.uniform(ks[0], (4 * HIDDEN, INPUT_SIZE), jnp.float32,
                                   -k_lstm, k_lstm),
        "w_hh": jax.random.uniform(ks[1], (4 * HIDDEN, HIDDEN), jnp.float32,
                                   -k_lstm, k_lstm),
        "b_ih": jax.random.uniform(ks[2], (4 * HIDDEN,), jnp.float32,
                                   -k_lstm, k_lstm),
        "b_hh": jax.random.uniform(ks[3], (4 * HIDDEN,), jnp.float32,
                                   -k_lstm, k_lstm),
        "w_proj": jax.random.uniform(ks[4], (OUTPUT_SIZE, HIDDEN), jnp.float32,
                                     -k_proj, k_proj),
        "b_proj": jax.random.uniform(ks[5], (OUTPUT_SIZE,), jnp.float32,
                                     -k_proj, k_proj),
    }

    prepped = prepare_params(params)
    x = jax.random.normal(ks[6], (T, B, INPUT_SIZE), jnp.float32)

    out = model_forward(x, prepped)
    out = jax.block_until_ready(out)
    assert out.shape == (B, OUTPUT_SIZE)
    assert bool(jnp.allclose(jnp.sum(out, axis=-1), 1.0, atol=1e-5))
    print("KERNEL_OK")
</pallas_src>

<mosaic_0001>
module attributes {stable_mosaic.version = 11 : i64} {
  func.func @fused_lstm_proj_kernel(%arg0: i32, %arg1: memref<1x8x2560xbf16, #tpu.memory_space<vmem>>, %arg2: memref<2560x1024xbf16, #tpu.memory_space<vmem>>, %arg3: memref<256x1024xbf16, #tpu.memory_space<vmem>>, %arg4: memref<1x1024xf32, #tpu.memory_space<vmem>>, %arg5: memref<256x128xf32, #tpu.memory_space<vmem>>, %arg6: memref<1x128xf32, #tpu.memory_space<vmem>>, %arg7: memref<8x128xf32, #tpu.memory_space<vmem>>, %arg8: memref<8x256xf32, #tpu.memory_space<vmem>>, %arg9: memref<8x256xf32, #tpu.memory_space<vmem>>) attributes {dimension_semantics = [#tpu.dimension_semantics<arbitrary>], iteration_bounds = array<i64: 1>, scalar_prefetch = 0 : i64, scratch_operands = 2 : i64, tpu.core_type = #tpu.core_type<tc>, window_params = [{transform_indices = @transform_0, window_bounds = array<i64: 1, 8, 2560>}, {pipeline_mode = #tpu.pipeline_mode<synchronous>, transform_indices = @transform_1, window_bounds = array<i64: 2560, 1024>}, {pipeline_mode = #tpu.pipeline_mode<synchronous>, transform_indices = @transform_2, window_bounds = array<i64: 256, 1024>}, {pipeline_mode = #tpu.pipeline_mode<synchronous>, transform_indices = @transform_3, window_bounds = array<i64: 1, 1024>}, {pipeline_mode = #tpu.pipeline_mode<synchronous>, transform_indices = @transform_4, window_bounds = array<i64: 256, 128>}, {pipeline_mode = #tpu.pipeline_mode<synchronous>, transform_indices = @transform_5, window_bounds = array<i64: 1, 128>}, {pipeline_mode = #tpu.pipeline_mode<synchronous>, transform_indices = @transform_6, window_bounds = array<i64: 8, 128>}]} {
    %c0_i32 = arith.constant 0 : i32
    %0 = arith.cmpi eq, %arg0, %c0_i32 : i32
    %1 = arith.extui %0 : i1 to i32
    %c0_i32_0 = arith.constant 0 : i32
    %2 = arith.cmpi ne, %1, %c0_i32_0 : i32
    scf.if %2 {
      %cst_23 = arith.constant 0.000000e+00 : f32
      %46 = vector.broadcast %cst_23 : f32 to vector<8x256xf32>
      %c0_24 = arith.constant 0 : index
      %c0_25 = arith.constant 0 : index
      %47 = vector.load %arg8[%c0_24, %c0_25] : memref<8x256xf32, #tpu.memory_space<vmem>>, vector<8x256xf32>
      tpu.vector_store %arg8[%c0_24, %c0_25], %46 {strides = array<i32>} : memref<8x256xf32, #tpu.memory_space<vmem>>, vector<8x256xf32>,
      %cst_26 = arith.constant 0.000000e+00 : f32
      %48 = vector.broadcast %cst_26 : f32 to vector<8x256xf32>
      %c0_27 = arith.constant 0 : index
      %c0_28 = arith.constant 0 : index
      %49 = vector.load %arg9[%c0_27, %c0_28] : memref<8x256xf32, #tpu.memory_space<vmem>>, vector<8x256xf32>
      tpu.vector_store %arg9[%c0_27, %c0_28], %48 {strides = array<i32>} : memref<8x256xf32, #tpu.memory_space<vmem>>, vector<8x256xf32>,
    } else {
    }
    %c0 = arith.constant 0 : index
    %c0_1 = arith.constant 0 : index
    %c0_2 = arith.constant 0 : index
    %3 = vector.load %arg1[%c0, %c0_1, %c0_2] : memref<1x8x2560xbf16, #tpu.memory_space<vmem>>, vector<1x8x2560xbf16>
    %4 = vector.shape_cast %3 : vector<1x8x2560xbf16> to vector<8x2560xbf16>
    %c0_3 = arith.constant 0 : index
    %c0_4 = arith.constant 0 : index
    %5 = vector.load %arg8[%c0_3, %c0_4] : memref<8x256xf32, #tpu.memory_space<vmem>>, vector<8x256xf32>
    %c0_5 = arith.constant 0 : index
    %c0_6 = arith.constant 0 : index
    %6 = vector.load %arg2[%c0_5, %c0_6] : memref<2560x1024xbf16, #tpu.memory_space<vmem>>, vector<2560x1024xbf16>
    %cst = arith.constant dense<0.000000e+00> : vector<8x1024xf32>
    %7 = tpu.matmul %4, %6, %cst {dimension_numbers = #tpu.dot_dimension_numbers<[1], [0], [0], [1], [0, 0, 1, 1], [], []>} : vector<8x2560xbf16>, vector<2560x1024xbf16>, vector<8x1024xf32> -> vector<8x1024xf32>
    %8 = arith.truncf %5 : vector<8x256xf32> to vector<8x256xbf16>
    %c0_7 = arith.constant 0 : index
    %c0_8 = arith.constant 0 : index
    %9 = vector.load %arg3[%c0_7, %c0_8] : memref<256x1024xbf16, #tpu.memory_space<vmem>>, vector<256x1024xbf16>
    %cst_9 = arith.constant dense<0.000000e+00> : vector<8x1024xf32>
    %10 = tpu.matmul %8, %9, %cst_9 {dimension_numbers = #tpu.dot_dimension_numbers<[1], [0], [0], [1], [0, 0, 1, 1], [], []>} : vector<8x256xbf16>, vector<256x1024xbf16>, vector<8x1024xf32> -> vector<8x1024xf32>
    %11 = arith.addf %7, %10 : vector<8x1024xf32>
    %c0_10 = arith.constant 0 : index
    %c0_11 = arith.constant 0 : index
    %12 = vector.load %arg4[%c0_10, %c0_11] : memref<1x1024xf32, #tpu.memory_space<vmem>>, vector<1x1024xf32>
    %13 = vector.broadcast %12 : vector<1x1024xf32> to vector<8x1024xf32>
    %14 = arith.addf %11, %13 : vector<8x1024xf32>
    %15 = vector.extract_strided_slice %14 {offsets = [0, 0], sizes = [8, 256], strides = [1, 1]} : vector<8x1024xf32> to vector<8x256xf32>
    %16 = arith.negf %15 : vector<8x256xf32>
    %17 = math.exp %16 : vector<8x256xf32>
    %cst_12 = arith.constant 1.000000e+00 : f32
    %18 = vector.broadcast %cst_12 : f32 to vector<8x256xf32>
    %19 = arith.addf %18, %17 : vector<8x256xf32>
    %20 = arith.divf %18, %19 : vector<8x256xf32>
    %21 = vector.extract_strided_slice %14 {offsets = [0, 256], sizes = [8, 256], strides = [1, 1]} : vector<8x1024xf32> to vector<8x256xf32>
    %22 = arith.negf %21 : vector<8x256xf32>
    %23 = math.exp %22 : vector<8x256xf32>
    %cst_13 = arith.constant 1.000000e+00 : f32
    %24 = vector.broadcast %cst_13 : f32 to vector<8x256xf32>
    %25 = arith.addf %24, %23 : vector<8x256xf32>
    %26 = arith.divf %24, %25 : vector<8x256xf32>
    %27 = vector.extract_strided_slice %14 {offsets = [0, 512], sizes = [8, 256], strides = [1, 1]} : vector<8x1024xf32> to vector<8x256xf32>
    %28 = math.tanh %27 : vector<8x256xf32>
    %29 = vector.extract_strided_slice %14 {offsets = [0, 768], sizes = [8, 256], strides = [1, 1]} : vector<8x1024xf32> to vector<8x256xf32>
    %30 = arith.negf %29 : vector<8x256xf32>
    %31 = math.exp %30 : vector<8x256xf32>
    %cst_14 = arith.constant 1.000000e+00 : f32
    %32 = vector.broadcast %cst_14 : f32 to vector<8x256xf32>
    %33 = arith.addf %32, %31 : vector<8x256xf32>
    %34 = arith.divf %32, %33 : vector<8x256xf32>
    %c0_15 = arith.constant 0 : index
    %c0_16 = arith.constant 0 : index
    %35 = vector.load %arg9[%c0_15, %c0_16] : memref<8x256xf32, #tpu.memory_space<vmem>>, vector<8x256xf32>
    %36 = arith.mulf %26, %35 : vector<8x256xf32>
    %37 = arith.mulf %20, %28 : vector<8x256xf32>
    %38 = arith.addf %36, %37 : vector<8x256xf32>
    %39 = math.tanh %38 : vector<8x256xf32>
    %40 = arith.mulf %34, %39 : vector<8x256xf32>
    %c0_17 = arith.constant 0 : index
    %c0_18 = arith.constant 0 : index
    %41 = vector.load %arg9[%c0_17, %c0_18] : memref<8x256xf32, #tpu.memory_space<vmem>>, vector<8x256xf32>
    tpu.vector_store %arg9[%c0_17, %c0_18], %38 {strides = array<i32>} : memref<8x256xf32, #tpu.memory_space<vmem>>, vector<8x256xf32>,
    %c0_19 = arith.constant 0 : index
    %c0_20 = arith.constant 0 : index
    %42 = vector.load %arg8[%c0_19, %c0_20] : memref<8x256xf32, #tpu.memory_space<vmem>>, vector<8x256xf32>
    tpu.vector_store %arg8[%c0_19, %c0_20], %40 {strides = array<i32>} : memref<8x256xf32, #tpu.memory_space<vmem>>, vector<8x256xf32>,
    %c0_i32_21 = arith.constant 0 : i32
    %43 = arith.cmpi eq, %arg0, %c0_i32_21 : i32
    %44 = arith.extui %43 : i1 to i32
    %c0_i32_22 = arith.constant 0 : i32
    %45 = arith.cmpi ne, %44, %c0_i32_22 : i32
    scf.if %45 {
      %c0_23 = arith.constant 0 : index
      %c0_24 = arith.constant 0 : index
      %46 = vector.load %arg5[%c0_23, %c0_24] : memref<256x128xf32, #tpu.memory_space<vmem>>, vector<256x128xf32>
      %cst_25 = arith.constant dense<0.000000e+00> : vector<8x128xf32>
      %47 = tpu.matmul %40, %46, %cst_25 {dimension_numbers = #tpu.dot_dimension_numbers<[1], [0], [0], [1], [0, 0, 1, 1], [], []>} : vector<8x256xf32>, vector<256x128xf32>, vector<8x128xf32> -> vector<8x128xf32>
      %c0_26 = arith.constant 0 : index
      %c0_27 = arith.constant 0 : index
      %48 = vector.load %arg6[%c0_26, %c0_27] : memref<1x128xf32, #tpu.memory_space<vmem>>, vector<1x128xf32>
      %49 = vector.broadcast %48 : vector<1x128xf32> to vector<8x128xf32>
      %50 = arith.addf %47, %49 : vector<8x128xf32>
      %cst_28 = arith.constant 0.000000e+00 : f32
      %51 = vector.broadcast %cst_28 : f32 to vector<8x128xf32>
      %52 = arith.maximumf %50, %51 : vector<8x128xf32>
      %53 = tpu.iota {dimensions = array<i32: 1>} : vector<8x128xi32>
      %c3_i32 = arith.constant 3 : i32
      %54 = vector.broadcast %c3_i32 : i32 to vector<8x128xi32>
      %55 = arith.cmpi slt, %53, %54 : vector<8x128xi32>
      %cst_29 = arith.constant -1.000000e+30 : f32
      %56 = vector.broadcast %cst_29 : f32 to vector<8x128xf32>
      %57 = arith.select %55, %52, %56 : vector<8x128xi1>, vector<8x128xf32>
      %cst_30 = arith.constant dense<0xFF800000> : vector<8xf32>
      %58 = vector.multi_reduction <maximumf>, %57, %cst_30 [1] : vector<8x128xf32> to vector<8xf32>
      %59 = vector.shape_cast %58 : vector<8xf32> to vector<8x1xf32>
      %60 = vector.broadcast %59 : vector<8x1xf32> to vector<8x128xf32>
      %61 = arith.subf %57, %60 : vector<8x128xf32>
      %62 = math.exp %61 : vector<8x128xf32>
      %cst_31 = arith.constant dense<0.000000e+00> : vector<8xf32>
      %63 = vector.multi_reduction <add>, %62, %cst_31 [1] : vector<8x128xf32> to vector<8xf32>
      %64 = vector.shape_cast %63 : vector<8xf32> to vector<8x1xf32>
      %65 = vector.broadcast %64 : vector<8x1xf32> to vector<8x128xf32>
      %66 = arith.divf %62, %65 : vector<8x128xf32>
      %c0_32 = arith.constant 0 : index
      %c0_33 = arith.constant 0 : index
      %67 = vector.load %arg7[%c0_32, %c0_33] : memref<8x128xf32, #tpu.memory_space<vmem>>, vector<8x128xf32>
      tpu.vector_store %arg7[%c0_32, %c0_33], %66 {strides = array<i32>} : memref<8x128xf32, #tpu.memory_space<vmem>>, vector<8x128xf32>,
    } else {
    }
    return
  }
  func.func @transform_0(%arg0: i32) -> (i32, i32, i32) {
    %c0_i32 = arith.constant 0 : i32
    %c0_i32_0 = arith.constant 0 : i32
    %c0_i32_1 = arith.constant 0 : i32
    return %arg0, %c0_i32, %c0_i32_0 : i32, i32, i32
  }
  func.func @transform_1(%arg0: i32) -> (i32, i32) {
    %c0_i32 = arith.constant 0 : i32
    %c0_i32_0 = arith.constant 0 : i32
    %c0_i32_1 = arith.constant 0 : i32
    return %c0_i32, %c0_i32_0 : i32, i32
  }
  func.func @transform_2(%arg0: i32) -> (i32, i32) {
    %c0_i32 = arith.constant 0 : i32
    %c0_i32_0 = arith.constant 0 : i32
    %c0_i32_1 = arith.constant 0 : i32
    return %c0_i32, %c0_i32_0 : i32, i32
  }
  func.func @transform_3(%arg0: i32) -> (i32, i32) {
    %c0_i32 = arith.constant 0 : i32
    %c0_i32_0 = arith.constant 0 : i32
    %c0_i32_1 = arith.constant 0 : i32
    return %c0_i32, %c0_i32_0 : i32, i32
  }
  func.func @transform_4(%arg0: i32) -> (i32, i32) {
    %c0_i32 = arith.constant 0 : i32
    %c0_i32_0 = arith.constant 0 : i32
    %c0_i32_1 = arith.constant 0 : i32
    return %c0_i32, %c0_i32_0 : i32, i32
  }
  func.func @transform_5(%arg0: i32) -> (i32, i32) {
    %c0_i32 = arith.constant 0 : i32
    %c0_i32_0 = arith.constant 0 : i32
    %c0_i32_1 = arith.constant 0 : i32
    return %c0_i32, %c0_i32_0 : i32, i32
  }
  func.func @transform_6(%arg0: i32) -> (i32, i32) {
    %c0_i32 = arith.constant 0 : i32
    %c0_i32_0 = arith.constant 0 : i32
    %c0_i32_1 = arith.constant 0 : i32
    return %c0_i32, %c0_i32_0 : i32, i32
  }
}

</mosaic_0001>

<llo_original>
// kernel: tpu_custom_call.1
$region0: #{tpu_custom_call.1}
  #allocation0 [shape = 'u32[]', space=smem, size = 0x4, offset = 0x4, fixed_abs, tag = 'smem constant byte address 0x4 - core index']
  #allocation1 [shape = 'u32[72,128]{1,0:T(1,128)}', space=vmem, size = 0x9000, scoped, tag = 'internal scratch']
  #allocation2 [shape = 'f32[8,256]{1,0:T(8,128)}', space=vmem, size = 0x2000, scoped, tag = 'scratch operand']
  #allocation3 [shape = 'f32[8,256]{1,0:T(8,128)}', space=vmem, size = 0x2000, scoped, tag = 'scratch operand']
  %s0 = inlined_call_operand.hbm [shape: bf16[1,8,2560], index: 0, kind: input, shape index: {}]
  %s1 = inlined_call_operand.hbm [shape: bf16[2560,1024], index: 1, kind: input, shape index: {}]
  %s2 = inlined_call_operand.hbm [shape: bf16[256,1024], index: 2, kind: input, shape index: {}]
  %s3 = inlined_call_operand.hbm [shape: f32[1,1024], index: 3, kind: input, shape index: {}]
  %s4 = inlined_call_operand.hbm [shape: f32[256,128], index: 4, kind: input, shape index: {}]
  %s5 = inlined_call_operand.hbm [shape: f32[1,128], index: 5, kind: input, shape index: {}]
  %s6 = inlined_call_operand.hbm [shape: f32[8,128], index: 6, kind: output, shape index: {}]
  %s7 = sld [smem:[#allocation0]]
  $region66: #{tpu_custom_call.1} parent=0
    _
  %s9 = ssub.s32 1, %s7
  %s10 = scalar_select 0, %s9, %s7
  $region1: #{tpu_custom_call.1} parent=0
    #allocation4 [shape = 'u8[40960]{0}', space=vmem, size = 0xa000, scoped, tag = 'input window, operand 0, single buffered']
    #allocation5 [shape = 's32[1]{0}', space=sflag, size = 0x4, scoped, tag = 'scoped memory for tpu_custom_call.1']
    #allocation6 [shape = 's32[1]{0}', space=sflag, size = 0x4, scoped, tag = 'scoped memory for tpu_custom_call.1']
    #allocation7 [shape = 'u8[5242880]{0}', space=vmem, size = 0x500000, scoped, tag = 'input window, operand 1, single buffered']
    #allocation8 [shape = 's32[1]{0}', space=sflag, size = 0x4, scoped, tag = 'scoped memory for tpu_custom_call.1']
    #allocation9 [shape = 'u8[524288]{0}', space=vmem, size = 0x80000, scoped, tag = 'input window, operand 2, single buffered']
    #allocation10 [shape = 'u8[4096]{0}', space=vmem, size = 0x1000, scoped, tag = 'input window, operand 3, single buffered']
    #allocation11 [shape = 's32[1]{0}', space=sflag, size = 0x4, scoped, tag = 'scoped memory for tpu_custom_call.1']
    #allocation12 [shape = 'u8[131072]{0}', space=vmem, size = 0x20000, scoped, tag = 'input window, operand 4, single buffered']
    #allocation13 [shape = 'u8[512]{0}', space=vmem, size = 0x400, scoped, tag = 'input window, operand 5, single buffered']
    #allocation14 [shape = 's32[1]{0}', space=sflag, size = 0x4, scoped, tag = 'scoped memory for tpu_custom_call.1']
    #allocation15 [shape = 'u8[4096]{0}', space=vmem, size = 0x1000, scoped, tag = 'output window, operand 0, single buffered']
    %11 = vsyncpa [#allocation5], 0
    %12 = vsyncpa [#allocation8], 0
    %13 = vsyncpa [#allocation11], 0
    %14 = vsyncpa [#allocation14], 0
    %15 = vsyncpa [#allocation6], 0
    // Predicated region
    $region2: #{tpu_custom_call.1} parent=1 // pred_check
      _
    $region3: #{tpu_custom_call.1} parent=1 // pred_check_branch
      %17 = sbr.rel (0) target = $region5
    $region4: #{tpu_custom_call.1} parent=1 // pred_region
      %19 = vsyncadd [#allocation5], 0
      %s21 = sshll.u32 %s0, 4
      %s22 = int_to_ptr.hbm [resolvable:$true] %s21
      %s23 = sshll.u32 [#allocation4], 4
      %s24 = int_to_ptr.vmem [resolvable:$true] %s23
      %26 = dma.hbm_to_vmem [thread:$0]  %s22, 1280, %s24, [#allocation5]
    $region5: #{tpu_custom_call.1} parent=1 // pred_fallthru
      _
    // Predicated region
    $region6: #{tpu_custom_call.1} parent=1 // pred_check
      _
    $region7: #{tpu_custom_call.1} parent=1 // pred_check_branch
      %28 = sbr.rel (0) target = $region9
    $region8: #{tpu_custom_call.1} parent=1 // pred_region
      %30 = vsyncadd [#allocation8], 0
      %s31 = sshll.u32 %s1, 4
      %s32 = int_to_ptr.hbm [resolvable:$true] %s31
      %s33 = sshll.u32 [#allocation7], 4
      %s34 = int_to_ptr.vmem [resolvable:$true] %s33
      %39 = dma.hbm_to_vmem [thread:$0]  %s32, 163840, %s34, [#allocation8], 512, 512, 32
    $region9: #{tpu_custom_call.1} parent=1 // pred_fallthru
      _
    // Predicated region
    $region10: #{tpu_custom_call.1} parent=1 // pred_check
      _
    $region11: #{tpu_custom_call.1} parent=1 // pred_check_branch
      %41 = sbr.rel (0) target = $region13
    $region12: #{tpu_custom_call.1} parent=1 // pred_region
      %43 = vsyncadd [#allocation8], 0
      %s44 = sshll.u32 %s2, 4
      %s45 = int_to_ptr.hbm [resolvable:$true] %s44
      %s46 = sshll.u32 [#allocation9], 4
      %s47 = int_to_ptr.vmem [resolvable:$true] %s46
      %52 = dma.hbm_to_vmem [thread:$0]  %s45, 16384, %s47, [#allocation8], 512, 512, 32
    $region13: #{tpu_custom_call.1} parent=1 // pred_fallthru
      _
    // Predicated region
    $region14: #{tpu_custom_call.1} parent=1 // pred_check
      _
    $region15: #{tpu_custom_call.1} parent=1 // pred_check_branch
      %54 = sbr.rel (0) target = $region17
    $region16: #{tpu_custom_call.1} parent=1 // pred_region
      %56 = vsyncadd [#allocation11], 0
      %s58 = sshll.u32 %s3, 4
      %s59 = int_to_ptr.hbm [resolvable:$true] %s58
      %s60 = sshll.u32 [#allocation10], 4
      %s61 = int_to_ptr.vmem [resolvable:$true] %s60
      %63 = dma.hbm_to_vmem [thread:$0]  %s59, 128, %s61, [#allocation11]
    $region17: #{tpu_custom_call.1} parent=1 // pred_fallthru
      _
    // Predicated region
    $region18: #{tpu_custom_call.1} parent=1 // pred_check
      _
    $region19: #{tpu_custom_call.1} parent=1 // pred_check_branch
      %65 = sbr.rel (0) target = $region21
    $region20: #{tpu_custom_call.1} parent=1 // pred_region
      %67 = vsyncadd [#allocation11], 0
      %s68 = sshll.u32 %s4, 4
      %s69 = int_to_ptr.hbm [resolvable:$true] %s68
      %s70 = sshll.u32 [#allocation12], 4
      %s71 = int_to_ptr.vmem [resolvable:$true] %s70
      %76 = dma.hbm_to_vmem [thread:$0]  %s69, 4096, %s71, [#allocation11], 128, 128, 8
    $region21: #{tpu_custom_call.1} parent=1 // pred_fallthru
      _
    // Predicated region
    $region22: #{tpu_custom_call.1} parent=1 // pred_check
      _
    $region23: #{tpu_custom_call.1} parent=1 // pred_check_branch
      %78 = sbr.rel (0) target = $region25
    $region24: #{tpu_custom_call.1} parent=1 // pred_region
      %80 = vsyncadd [#allocation14], 0
      %s82 = sshll.u32 %s5, 4
      %s83 = int_to_ptr.hbm [resolvable:$true] %s82
      %s84 = sshll.u32 [#allocation13], 4
      %s85 = int_to_ptr.vmem [resolvable:$true] %s84
      %87 = dma.hbm_to_vmem [thread:$0]  %s83, 16, %s85, [#allocation14]
    $region25: #{tpu_custom_call.1} parent=1 // pred_fallthru
      _
    // Predicated region
    $region26: #{tpu_custom_call.1} parent=1 // pred_check
      _
    $region27: #{tpu_custom_call.1} parent=1 // pred_check_branch
      %89 = sbr.rel (0) target = $region29
    $region28: #{tpu_custom_call.1} parent=1 // pred_region
      %91 = dma.done [#allocation5], 1280
    $region29: #{tpu_custom_call.1} parent=1 // pred_fallthru
      _
    // Predicated region
    $region30: #{tpu_custom_call.1} parent=1 // pred_check
      _
    $region31: #{tpu_custom_call.1} parent=1 // pred_check_branch
      %93 = sbr.rel (0) target = $region33
    $region32: #{tpu_custom_call.1} parent=1 // pred_region
      %95 = dma.done [#allocation8], 163840
    $region33: #{tpu_custom_call.1} parent=1 // pred_fallthru
      _
    // Predicated region
    $region34: #{tpu_custom_call.1} parent=1 // pred_check
      _
    $region35: #{tpu_custom_call.1} parent=1 // pred_check_branch
      %97 = sbr.rel (0) target = $region37
    $region36: #{tpu_custom_call.1} parent=1 // pred_region
      %99 = dma.done [#allocation8], 16384
    $region37: #{tpu_custom_call.1} parent=1 // pred_fallthru
      _
    // Predicated region
    $region38: #{tpu_custom_call.1} parent=1 // pred_check
      _
    $region39: #{tpu_custom_call.1} parent=1 // pred_check_branch
      %101 = sbr.rel (0) target = $region41
    $region40: #{tpu_custom_call.1} parent=1 // pred_region
      %103 = dma.done [#allocation11], 128
    $region41: #{tpu_custom_call.1} parent=1 // pred_fallthru
      _
    // Predicated region
    $region42: #{tpu_custom_call.1} parent=1 // pred_check
      _
    $region43: #{tpu_custom_call.1} parent=1 // pred_check_branch
      %105 = sbr.rel (0) target = $region45
    $region44: #{tpu_custom_call.1} parent=1 // pred_region
      %107 = dma.done [#allocation11], 4096
    $region45: #{tpu_custom_call.1} parent=1 // pred_fallthru
      _
    // Predicated region
    $region46: #{tpu_custom_call.1} parent=1 // pred_check
      _
    $region47: #{tpu_custom_call.1} parent=1 // pred_check_branch
      %109 = sbr.rel (0) target = $region49
    $region48: #{tpu_custom_call.1} parent=1 // pred_region
      %111 = dma.done [#allocation14], 16
    $region49: #{tpu_custom_call.1} parent=1 // pred_fallthru
      _
    %p112 = scmp.eq.s32.totalorder 0, 0
    // Predicated region
    $region50: #{tpu_custom_call.1} parent=1 // pred_check
      %p113 = pneg %p112
    $region51: #{tpu_custom_call.1} parent=1 // pred_check_branch
      %115 = sbr.rel (%p113) target = $region53
    $region52: #{tpu_custom_call.1} parent=1 // pred_region
      %116 = vst [vmem:[#allocation2] sm:$0xff] 0.0
      %117 = vst [vmem:[#allocation2 + $0x8] sm:$0xff] 0.0
      %118 = vst [vmem:[#allocation3] sm:$0xff] 0.0
      %119 = vst [vmem:[#allocation3 + $0x8] sm:$0xff] 0.0
    $region53: #{tpu_custom_call.1} parent=1 // pred_fallthru
      _
    %v120 = vld [vmem:[#allocation4] sm:$0xff]
    %v121 = vld [vmem:[#allocation4 + $0x8] sm:$0xff]
    %v122 = vld [vmem:[#allocation4 + $0x10] sm:$0xff]
    %v123 = vld [vmem:[#allocation4 + $0x18] sm:$0xff]
    %v124 = vld [vmem:[#allocation4 + $0x20] sm:$0xff]
    %v125 = vld [vmem:[#allocation4 + $0x28] sm:$0xff]
    %v126 = vld [vmem:[#allocation4 + $0x30] sm:$0xff]
    %v127 = vld [vmem:[#allocation4 + $0x38] sm:$0xff]
    %v128 = vld [vmem:[#allocation4 + $0x40] sm:$0xff]
    %v129 = vld [vmem:[#allocation4 + $0x48] sm:$0xff]
    %v130 = vld [vmem:[#allocation2] sm:$0xff]
    %v131 = vld [vmem:[#allocation2 + $0x8] sm:$0xff]
    %v132 = vld [vmem:[#allocation7] sm:$0xff]
    %v133 = vld [vmem:[#allocation7 + $0x8] sm:$0xff]
    %v134 = vld [vmem:[#allocation7 + $0x10] sm:$0xff]
    %v135 = vld [vmem:[#allocation7 + $0x18] sm:$0xff]
    %v136 = vld [vmem:[#allocation7 + $0x20] sm:$0xff]
    %v137 = vld [vmem:[#allocation7 + $0x28] sm:$0xff]
    %v138 = vld [vmem:[#allocation7 + $0x30] sm:$0xff]
    %v139 = vld [vmem:[#allocation7 + $0x38] sm:$0xff]
    %v140 = vld [vmem:[#allocation7 + $0x40] sm:$0xff]
    %v141 = vld [vmem:[#allocation7 + $0x48] sm:$0xff]
    %v142 = vld [vmem:[#allocation7 + $0x50] sm:$0xff]
    %v143 = vld [vmem:[#allocation7 + $0x58] sm:$0xff]
    %v144 = vld [vmem:[#allocation7 + $0x60] sm:$0xff]
    %v145 = vld [vmem:[#allocation7 + $0x68] sm:$0xff]
    %v146 = vld [vmem:[#allocation7 + $0x70] sm:$0xff]
    %v147 = vld [vmem:[#allocation7 + $0x78] sm:$0xff]
    %v148 = vld [vmem:[#allocation7 + $0x80] sm:$0xff]
    %v149 = vld [vmem:[#allocation7 + $0x88] sm:$0xff]
    %v150 = vld [vmem:[#allocation7 + $0x90] sm:$0xff]
    %v151 = vld [vmem:[#allocation7 + $0x98] sm:$0xff]
    %v152 = vld [vmem:[#allocation7 + $0xa0] sm:$0xff]
    %v153 = vld [vmem:[#allocation7 + $0xa8] sm:$0xff]
    %v154 = vld [vmem:[#allocation7 + $0xb0] sm:$0xff]
    %v155 = vld [vmem:[#allocation7 + $0xb8] sm:$0xff]
    %v156 = vld [vmem:[#allocation7 + $0xc0] sm:$0xff]
    %v157 = vld [vmem:[#allocation7 + $0xc8] sm:$0xff]
    %v158 = vld [vmem:[#allocation7 + $0xd0] sm:$0xff]
    %v159 = vld [vmem:[#allocation7 + $0xd8] sm:$0xff]
    %v160 = vld [vmem:[#allocation7 + $0xe0] sm:$0xff]
    %v161 = vld [vmem:[#allocation7 + $0xe8] sm:$0xff]
    %v162 = vld [vmem:[#allocation7 + $0xf0] sm:$0xff]
    %v163 = vld [vmem:[#allocation7 + $0xf8] sm:$0xff]
    %v164 = vld [vmem:[#allocation7 + $0x100] sm:$0xff]
    %v165 = vld [vmem:[#allocation7 + $0x108] sm:$0xff]
    %v166 = vld [vmem:[#allocation7 + $0x110] sm:$0xff]
    %v167 = vld [vmem:[#allocation7 + $0x118] sm:$0xff]
    %v168 = vld [vmem:[#allocation7 + $0x120] sm:$0xff]
    %v169 = vld [vmem:[#allocation7 + $0x128] sm:$0xff]
    %v170 = vld [vmem:[#allocation7 + $0x130] sm:$0xff]
    %v171 = vld [vmem:[#allocation7 + $0x138] sm:$0xff]
    %v172 = vld [vmem:[#allocation7 + $0x140] sm:$0xff]
    %v173 = vld [vmem:[#allocation7 + $0x148] sm:$0xff]
    %v174 = vld [vmem:[#allocation7 + $0x150] sm:$0xff]
    %v175 = vld [vmem:[#allocation7 + $0x158] sm:$0xff]
    %v176 = vld [vmem:[#allocation7 + $0x160] sm:$0xff]
    %v177 = vld [vmem:[#allocation7 + $0x168] sm:$0xff]
    %v178 = vld [vmem:[#allocation7 + $0x170] sm:$0xff]
    %v179 = vld [vmem:[#allocation7 + $0x178] sm:$0xff]
    %v180 = vld [vmem:[#allocation7 + $0x180] sm:$0xff]
    %v181 = vld [vmem:[#allocation7 + $0x188] sm:$0xff]
    %v182 = vld [vmem:[#allocation7 + $0x190] sm:$0xff]
    %v183 = vld [vmem:[#allocation7 + $0x198] sm:$0xff]
    %v184 = vld [vmem:[#allocation7 + $0x1a0] sm:$0xff]
    %v185 = vld [vmem:[#allocation7 + $0x1a8] sm:$0xff]
    %v186 = vld [vmem:[#allocation7 + $0x1b0] sm:$0xff]
    %v187 = vld [vmem:[#allocation7 + $0x1b8] sm:$0xff]
    %v188 = vld [vmem:[#allocation7 + $0x1c0] sm:$0xff]
    %v189 = vld [vmem:[#allocation7 + $0x1c8] sm:$0xff]
    %v190 = vld [vmem:[#allocation7 + $0x1d0] sm:$0xff]
    %v191 = vld [vmem:[#allocation7 + $0x1d8] sm:$0xff]
    %v192 = vld [vmem:[#allocation7 + $0x1e0] sm:$0xff]
    %v193 = vld [vmem:[#allocation7 + $0x1e8] sm:$0xff]
    %v194 = vld [vmem:[#allocation7 + $0x1f0] sm:$0xff]
    %v195 = vld [vmem:[#allocation7 + $0x1f8] sm:$0xff]
    %v196 = vld [vmem:[#allocation7 + $0x200] sm:$0xff]
    %v197 = vld [vmem:[#allocation7 + $0x208] sm:$0xff]
    %v198 = vld [vmem:[#allocation7 + $0x210] sm:$0xff]
    %v199 = vld [vmem:[#allocation7 + $0x218] sm:$0xff]
    %v200 = vld [vmem:[#allocation7 + $0x220] sm:$0xff]
    %v201 = vld [vmem:[#allocation7 + $0x228] sm:$0xff]
    %v202 = vld [vmem:[#allocation7 + $0x230] sm:$0xff]
    %v203 = vld [vmem:[#allocation7 + $0x238] sm:$0xff]
    %v204 = vld [vmem:[#allocation7 + $0x240] sm:$0xff]
    %v205 = vld [vmem:[#allocation7 + $0x248] sm:$0xff]
    %v206 = vld [vmem:[#allocation7 + $0x250] sm:$0xff]
    %v207 = vld [vmem:[#allocation7 + $0x258] sm:$0xff]
    %v208 = vld [vmem:[#allocation7 + $0x260] sm:$0xff]
    %v209 = vld [vmem:[#allocation7 + $0x268] sm:$0xff]
    %v210 = vld [vmem:[#allocation7 + $0x270] sm:$0xff]
    %v211 = vld [vmem:[#allocation7 + $0x278] sm:$0xff]
    %v212 = vld [vmem:[#allocation7 + $0x280] sm:$0xff]
    %v213 = vld [vmem:[#allocation7 + $0x288] sm:$0xff]
    %v214 = vld [vmem:[#allocation7 + $0x290] sm:$0xff]
    %v215 = vld [vmem:[#allocation7 + $0x298] sm:$0xff]
    %v216 = vld [vmem:[#allocation7 + $0x2a0] sm:$0xff]
    %v217 = vld [vmem:[#allocation7 + $0x2a8] sm:$0xff]
    %v218 = vld [vmem:[#allocation7 + $0x2b0] sm:$0xff]
    %v219 = vld [vmem:[#allocation7 + $0x2b8] sm:$0xff]
    %v220 = vld [vmem:[#allocation7 + $0x2c0] sm:$0xff]
    %v221 = vld [vmem:[#allocation7 + $0x2c8] sm:$0xff]
    %v222 = vld [vmem:[#allocation7 + $0x2d0] sm:$0xff]
    %v223 = vld [vmem:[#allocation7 + $0x2d8] sm:$0xff]
    %v224 = vld [vmem:[#allocation7 + $0x2e0] sm:$0xff]
    %v225 = vld [vmem:[#allocation7 + $0x2e8] sm:$0xff]
    %v226 = vld [vmem:[#allocation7 + $0x2f0] sm:$0xff]
    %v227 = vld [vmem:[#allocation7 + $0x2f8] sm:$0xff]
    %v228 = vld [vmem:[#allocation7 + $0x300] sm:$0xff]
    %v229 = vld [vmem:[#allocation7 + $0x308] sm:$0xff]
    %v230 = vld [vmem:[#allocation7 + $0x310] sm:$0xff]
    %v231 = vld [vmem:[#allocation7 + $0x318] sm:$0xff]
    %v232 = vld [vmem:[#allocation7 + $0x320] sm:$0xff]
    %v233 = vld [vmem:[#allocation7 + $0x328] sm:$0xff]
    %v234 = vld [vmem:[#allocation7 + $0x330] sm:$0xff]
    %v235 = vld [vmem:[#allocation7 + $0x338] sm:$0xff]
    %v236 = vld [vmem:[#allocation7 + $0x340] sm:$0xff]
    %v237 = vld [vmem:[#allocation7 + $0x348] sm:$0xff]
    %v238 = vld [vmem:[#allocation7 + $0x350] sm:$0xff]
    %v239 = vld [vmem:[#allocation7 + $0x358] sm:$0xff]
    %v240 = vld [vmem:[#allocation7 + $0x360] sm:$0xff]
    %v241 = vld [vmem:[#allocation7 + $0x368] sm:$0xff]
    %v242 = vld [vmem:[#allocation7 + $0x370] sm:$0xff]
    %v243 = vld [vmem:[#allocation7 + $0x378] sm:$0xff]
    %v244 = vld [vmem:[#allocation7 + $0x380] sm:$0xff]
    %v245 = vld [vmem:[#allocation7 + $0x388] sm:$0xff]
    %v246 = vld [vmem:[#allocation7 + $0x390] sm:$0xff]
    %v247 = vld [vmem:[#allocation7 + $0x398] sm:$0xff]
    %v248 = vld [vmem:[#allocation7 + $0x3a0] sm:$0xff]
    %v249 = vld [vmem:[#allocation7 + $0x3a8] sm:$0xff]
    %v250 = vld [vmem:[#allocation7 + $0x3b0] sm:$0xff]
    %v251 = vld [vmem:[#allocation7 + $0x3b8] sm:$0xff]
    %v252 = vld [vmem:[#allocation7 + $0x3c0] sm:$0xff]
    %v253 = vld [vmem:[#allocation7 + $0x3c8] sm:$0xff]
    %v254 = vld [vmem:[#allocation7 + $0x3d0] sm:$0xff]
    %v255 = vld [vmem:[#allocation7 + $0x3d8] sm:$0xff]
    %v256 = vld [vmem:[#allocation7 + $0x3e0] sm:$0xff]
    %v257 = vld [vmem:[#allocation7 + $0x3e8] sm:$0xff]
    %v258 = vld [vmem:[#allocation7 + $0x3f0] sm:$0xff]
    %v259 = vld [vmem:[#allocation7 + $0x3f8] sm:$0xff]
    %v260 = vld [vmem:[#allocation7 + $0x400] sm:$0xff]
    %v261 = vld [vmem:[#allocation7 + $0x408] sm:$0xff]
    %v262 = vld [vmem:[#allocation7 + $0x410] sm:$0xff]
    %v263 = vld [vmem:[#allocation7 + $0x418] sm:$0xff]
    %v264 = vld [vmem:[#allocation7 + $0x420] sm:$0xff]
    %v265 = vld [vmem:[#allocation7 + $0x428] sm:$0xff]
    %v266 = vld [vmem:[#allocation7 + $0x430] sm:$0xff]
    %v267 = vld [vmem:[#allocation7 + $0x438] sm:$0xff]
    %v268 = vld [vmem:[#allocation7 + $0x440] sm:$0xff]
    %v269 = vld [vmem:[#allocation7 + $0x448] sm:$0xff]
    %v270 = vld [vmem:[#allocation7 + $0x450] sm:$0xff]
    %v271 = vld [vmem:[#allocation7 + $0x458] sm:$0xff]
    %v272 = vld [vmem:[#allocation7 + $0x460] sm:$0xff]
    %v273 = vld [vmem:[#allocation7 + $0x468] sm:$0xff]
    %v274 = vld [vmem:[#allocation7 + $0x470] sm:$0xff]
    %v275 = vld [vmem:[#allocation7 + $0x478] sm:$0xff]
    %v276 = vld [vmem:[#allocation7 + $0x480] sm:$0xff]
    %v277 = vld [vmem:[#allocation7 + $0x488] sm:$0xff]
    %v278 = vld [vmem:[#allocation7 + $0x490] sm:$0xff]
    %v279 = vld [vmem:[#allocation7 + $0x498] sm:$0xff]
    %v280 = vld [vmem:[#allocation7 + $0x4a0] sm:$0xff]
    %v281 = vld [vmem:[#allocation7 + $0x4a8] sm:$0xff]
    %v282 = vld [vmem:[#allocation7 + $0x4b0] sm:$0xff]
    %v283 = vld [vmem:[#allocation7 + $0x4b8] sm:$0xff]
    %v284 = vld [vmem:[#allocation7 + $0x4c0] sm:$0xff]
    %v285 = vld [vmem:[#allocation7 + $0x4c8] sm:$0xff]
    %v286 = vld [vmem:[#allocation7 + $0x4d0] sm:$0xff]
    %v287 = vld [vmem:[#allocation7 + $0x4d8] sm:$0xff]
    %v288 = vld [vmem:[#allocation7 + $0x4e0] sm:$0xff]
    %v289 = vld [vmem:[#allocation7 + $0x4e8] sm:$0xff]
    %v290 = vld [vmem:[#allocation7 + $0x4f0] sm:$0xff]
    %v291 = vld [vmem:[#allocation7 + $0x4f8] sm:$0xff]
    %v292 = vld [vmem:[#allocation7 + $0x500] sm:$0xff]
    %v293 = vld [vmem:[#allocation7 + $0x508] sm:$0xff]
    %v294 = vld [vmem:[#allocation7 + $0x510] sm:$0xff]
    %v295 = vld [vmem:[#allocation7 + $0x518] sm:$0xff]
    %v296 = vld [vmem:[#allocation7 + $0x520] sm:$0xff]
    %v297 = vld [vmem:[#allocation7 + $0x528] sm:$0xff]
    %v298 = vld [vmem:[#allocation7 + $0x530] sm:$0xff]
    %v299 = vld [vmem:[#allocation7 + $0x538] sm:$0xff]
    %v300 = vld [vmem:[#allocation7 + $0x540] sm:$0xff]
    %v301 = vld [vmem:[#allocation7 + $0x548] sm:$0xff]
    %v302 = vld [vmem:[#allocation7 + $0x550] sm:$0xff]
    %v303 = vld [vmem:[#allocation7 + $0x558] sm:$0xff]
    %v304 = vld [vmem:[#allocation7 + $0x560] sm:$0xff]
    %v305 = vld [vmem:[#allocation7 + $0x568] sm:$0xff]
    %v306 = vld [vmem:[#allocation7 + $0x570] sm:$0xff]
    %v307 = vld [vmem:[#allocation7 + $0x578] sm:$0xff]
    %v308 = vld [vmem:[#allocation7 + $0x580] sm:$0xff]
    %v309 = vld [vmem:[#allocation7 + $0x588] sm:$0xff]
    %v310 = vld [vmem:[#allocation7 + $0x590] sm:$0xff]
    %v311 = vld [vmem:[#allocation7 + $0x598] sm:$0xff]
    %v312 = vld [vmem:[#allocation7 + $0x5a0] sm:$0xff]
    %v313 = vld [vmem:[#allocation7 + $0x5a8] sm:$0xff]
    %v314 = vld [vmem:[#allocation7 + $0x5b0] sm:$0xff]
    %v315 = vld [vmem:[#allocation7 + $0x5b8] sm:$0xff]
    %v316 = vld [vmem:[#allocation7 + $0x5c0] sm:$0xff]
    %v317 = vld [vmem:[#allocation7 + $0x5c8] sm:$0xff]
    %v318 = vld [vmem:[#allocation7 + $0x5d0] sm:$0xff]
    %v319 = vld [vmem:[#allocation7 + $0x5d8] sm:$0xff]
    %v320 = vld [vmem:[#allocation7 + $0x5e0] sm:$0xff]
    %v321 = vld [vmem:[#allocation7 + $0x5e8] sm:$0xff]
    %v322 = vld [vmem:[#allocation7 + $0x5f0] sm:$0xff]
    %v323 = vld [vmem:[#allocation7 + $0x5f8] sm:$0xff]
    %v324 = vld [vmem:[#allocation7 + $0x600] sm:$0xff]
    %v325 = vld [vmem:[#allocation7 + $0x608] sm:$0xff]
    %v326 = vld [vmem:[#allocation7 + $0x610] sm:$0xff]
    %v327 = vld [vmem:[#allocation7 + $0x618] sm:$0xff]
    %v328 = vld [vmem:[#allocation7 + $0x620] sm:$0xff]
    %v329 = vld [vmem:[#allocation7 + $0x628] sm:$0xff]
    %v330 = vld [vmem:[#allocation7 + $0x630] sm:$0xff]
    %v331 = vld [vmem:[#allocation7 + $0x638] sm:$0xff]
    %v332 = vld [vmem:[#allocation7 + $0x640] sm:$0xff]
    %v333 = vld [vmem:[#allocation7 + $0x648] sm:$0xff]
    %v334 = vld [vmem:[#allocation7 + $0x650] sm:$0xff]
    %v335 = vld [vmem:[#allocation7 + $0x658] sm:$0xff]
    %v336 = vld [vmem:[#allocation7 + $0x660] sm:$0xff]
    %v337 = vld [vmem:[#allocation7 + $0x668] sm:$0xff]
    %v338 = vld [vmem:[#allocation7 + $0x670] sm:$0xff]
    %v339 = vld [vmem:[#allocation7 + $0x678] sm:$0xff]
    %v340 = vld [vmem:[#allocation7 + $0x680] sm:$0xff]
    %v341 = vld [vmem:[#allocation7 + $0x688] sm:$0xff]
    %v342 = vld [vmem:[#allocation7 + $0x690] sm:$0xff]
    %v343 = vld [vmem:[#allocation7 + $0x698] sm:$0xff]
    %v344 = vld [vmem:[#allocation7 + $0x6a0] sm:$0xff]
    %v345 = vld [vmem:[#allocation7 + $0x6a8] sm:$0xff]
    %v346 = vld [vmem:[#allocation7 + $0x6b0] sm:$0xff]
    %v347 = vld [vmem:[#allocation7 + $0x6b8] sm:$0xff]
    %v348 = vld [vmem:[#allocation7 + $0x6c0] sm:$0xff]
    %v349 = vld [vmem:[#allocation7 + $0x6c8] sm:$0xff]
    %v350 = vld [vmem:[#allocation7 + $0x6d0] sm:$0xff]
    %v351 = vld [vmem:[#allocation7 + $0x6d8] sm:$0xff]
    %v352 = vld [vmem:[#allocation7 + $0x6e0] sm:$0xff]
    %v353 = vld [vmem:[#allocation7 + $0x6e8] sm:$0xff]
    %v354 = vld [vmem:[#allocation7 + $0x6f0] sm:$0xff]
    %v355 = vld [vmem:[#allocation7 + $0x6f8] sm:$0xff]
    %v356 = vld [vmem:[#allocation7 + $0x700] sm:$0xff]
    %v357 = vld [vmem:[#allocation7 + $0x708] sm:$0xff]
    %v358 = vld [vmem:[#allocation7 + $0x710] sm:$0xff]
    %v359 = vld [vmem:[#allocation7 + $0x718] sm:$0xff]
    %v360 = vld [vmem:[#allocation7 + $0x720] sm:$0xff]
    %v361 = vld [vmem:[#allocation7 + $0x728] sm:$0xff]
    %v362 = vld [vmem:[#allocation7 + $0x730] sm:$0xff]
    %v363 = vld [vmem:[#allocation7 + $0x738] sm:$0xff]
    %v364 = vld [vmem:[#allocation7 + $0x740] sm:$0xff]
    %v365 = vld [vmem:[#allocation7 + $0x748] sm:$0xff]
    %v366 = vld [vmem:[#allocation7 + $0x750] sm:$0xff]
    %v367 = vld [vmem:[#allocation7 + $0x758] sm:$0xff]
    %v368 = vld [vmem:[#allocation7 + $0x760] sm:$0xff]
    %v369 = vld [vmem:[#allocation7 + $0x768] sm:$0xff]
    %v370 = vld [vmem:[#allocation7 + $0x770] sm:$0xff]
    %v371 = vld [vmem:[#allocation7 + $0x778] sm:$0xff]
    %v372 = vld [vmem:[#allocation7 + $0x780] sm:$0xff]
    %v373 = vld [vmem:[#allocation7 + $0x788] sm:$0xff]
    %v374 = vld [vmem:[#allocation7 + $0x790] sm:$0xff]
    %v375 = vld [vmem:[#allocation7 + $0x798] sm:$0xff]
    %v376 = vld [vmem:[#allocation7 + $0x7a0] sm:$0xff]
    %v377 = vld [vmem:[#allocation7 + $0x7a8] sm:$0xff]
    %v378 = vld [vmem:[#allocation7 + $0x7b0] sm:$0xff]
    %v379 = vld [vmem:[#allocation7 + $0x7b8] sm:$0xff]
    %v380 = vld [vmem:[#allocation7 + $0x7c0] sm:$0xff]
    %v381 = vld [vmem:[#allocation7 + $0x7c8] sm:$0xff]
    %v382 = vld [vmem:[#allocation7 + $0x7d0] sm:$0xff]
    %v383 = vld [vmem:[#allocation7 + $0x7d8] sm:$0xff]
    %v384 = vld [vmem:[#allocation7 + $0x7e0] sm:$0xff]
    %v385 = vld [vmem:[#allocation7 + $0x7e8] sm:$0xff]
    %v386 = vld [vmem:[#allocation7 + $0x7f0] sm:$0xff]
    %v387 = vld [vmem:[#allocation7 + $0x7f8] sm:$0xff]
    %v388 = vld [vmem:[#allocation7 + $0x800] sm:$0xff]
    %v389 = vld [vmem:[#allocation7 + $0x808] sm:$0xff]
    %v390 = vld [vmem:[#allocation7 + $0x810] sm:$0xff]
    %v391 = vld [vmem:[#allocation7 + $0x818] sm:$0xff]
    %v392 = vld [vmem:[#allocation7 + $0x820] sm:$0xff]
    %v393 = vld [vmem:[#allocation7 + $0x828] sm:$0xff]
    %v394 = vld [vmem:[#allocation7 + $0x830] sm:$0xff]
    %v395 = vld [vmem:[#allocation7 + $0x838] sm:$0xff]
    %v396 = vld [vmem:[#allocation7 + $0x840] sm:$0xff]
    %v397 = vld [vmem:[#allocation7 + $0x848] sm:$0xff]
    %v398 = vld [vmem:[#allocation7 + $0x850] sm:$0xff]
    %v399 = vld [vmem:[#allocation7 + $0x858] sm:$0xff]
    %v400 = vld [vmem:[#allocation7 + $0x860] sm:$0xff]
    %v401 = vld [vmem:[#allocation7 + $0x868] sm:$0xff]
    %v402 = vld [vmem:[#allocation7 + $0x870] sm:$0xff]
    %v403 = vld [vmem:[#allocation7 + $0x878] sm:$0xff]
    %v404 = vld [vmem:[#allocation7 + $0x880] sm:$0xff]
    %v405 = vld [vmem:[#allocation7 + $0x888] sm:$0xff]
    %v406 = vld [vmem:[#allocation7 + $0x890] sm:$0xff]
    %v407 = vld [vmem:[#allocation7 + $0x898] sm:$0xff]
    %v408 = vld [vmem:[#allocation7 + $0x8a0] sm:$0xff]
    %v409 = vld [vmem:[#allocation7 + $0x8a8] sm:$0xff]
    %v410 = vld [vmem:[#allocation7 + $0x8b0] sm:$0xff]
    %v411 = vld [vmem:[#allocation7 + $0x8b8] sm:$0xff]
    %v412 = vld [vmem:[#allocation7 + $0x8c0] sm:$0xff]
    %v413 = vld [vmem:[#allocation7 + $0x8c8] sm:$0xff]
    %v414 = vld [vmem:[#allocation7 + $0x8d0] sm:$0xff]
    %v415 = vld [vmem:[#allocation7 + $0x8d8] sm:$0xff]
    %v416 = vld [vmem:[#allocation7 + $0x8e0] sm:$0xff]
    %v417 = vld [vmem:[#allocation7 + $0x8e8] sm:$0xff]
    %v418 = vld [vmem:[#allocation7 + $0x8f0] sm:$0xff]
    %v419 = vld [vmem:[#allocation7 + $0x8f8] sm:$0xff]
    %v420 = vld [vmem:[#allocation7 + $0x900] sm:$0xff]
    %v421 = vld [vmem:[#allocation7 + $0x908] sm:$0xff]
    %v422 = vld [vmem:[#allocation7 + $0x910] sm:$0xff]
    %v423 = vld [vmem:[#allocation7 + $0x918] sm:$0xff]
    %v424 = vld [vmem:[#allocation7 + $0x920] sm:$0xff]
    %v425 = vld [vmem:[#allocation7 + $0x928] sm:$0xff]
    %v426 = vld [vmem:[#allocation7 + $0x930] sm:$0xff]
    %v427 = vld [vmem:[#allocation7 + $0x938] sm:$0xff]
    %v428 = vld [vmem:[#allocation7 + $0x940] sm:$0xff]
    %v429 = vld [vmem:[#allocation7 + $0x948] sm:$0xff]
    %v430 = vld [vmem:[#allocation7 + $0x950] sm:$0xff]
    %v431 = vld [vmem:[#allocation7 + $0x958] sm:$0xff]
    %v432 = vld [vmem:[#allocation7 + $0x960] sm:$0xff]
    %v433 = vld [vmem:[#allocation7 + $0x968] sm:$0xff]
    %v434 = vld [vmem:[#allocation7 + $0x970] sm:$0xff]
    %v435 = vld [vmem:[#allocation7 + $0x978] sm:$0xff]
    %v436 = vld [vmem:[#allocation7 + $0x980] sm:$0xff]
    %v437 = vld [vmem:[#allocation7 + $0x988] sm:$0xff]
    %v438 = vld [vmem:[#allocation7 + $0x990] sm:$0xff]
    %v439 = vld [vmem:[#allocation7 + $0x998] sm:$0xff]
    %v440 = vld [vmem:[#allocation7 + $0x9a0] sm:$0xff]
    %v441 = vld [vmem:[#allocation7 + $0x9a8] sm:$0xff]
    %v442 = vld [vmem:[#allocation7 + $0x9b0] sm:$0xff]
    %v443 = vld [vmem:[#allocation7 + $0x9b8] sm:$0xff]
    %v444 = vld [vmem:[#allocation7 + $0x9c0] sm:$0xff]
    %v445 = vld [vmem:[#allocation7 + $0x9c8] sm:$0xff]
    %v446 = vld [vmem:[#allocation7 + $0x9d0] sm:$0xff]
    %v447 = vld [vmem:[#allocation7 + $0x9d8] sm:$0xff]
    %v448 = vld [vmem:[#allocation7 + $0x9e0] sm:$0xff]
    %v449 = vld [vmem:[#allocation7 + $0x9e8] sm:$0xff]
    %v450 = vld [vmem:[#allocation7 + $0x9f0] sm:$0xff]
    %v451 = vld [vmem:[#allocation7 + $0x9f8] sm:$0xff]
    %v452 = vld [vmem:[#allocation7 + $0xa00] sm:$0xff]
    %v453 = vld [vmem:[#allocation7 + $0xa08] sm:$0xff]
    %v454 = vld [vmem:[#allocation7 + $0xa10] sm:$0xff]
    %v455 = vld [vmem:[#allocation7 + $0xa18] sm:$0xff]
    %v456 = vld [vmem:[#allocation7 + $0xa20] sm:$0xff]
    %v457 = vld [vmem:[#allocation7 + $0xa28] sm:$0xff]
    %v458 = vld [vmem:[#allocation7 + $0xa30] sm:$0xff]
    %v459 = vld [vmem:[#allocation7 + $0xa38] sm:$0xff]
    %v460 = vld [vmem:[#allocation7 + $0xa40] sm:$0xff]
    %v461 = vld [vmem:[#allocation7 + $0xa48] sm:$0xff]
    %v462 = vld [vmem:[#allocation7 + $0xa50] sm:$0xff]
    %v463 = vld [vmem:[#allocation7 + $0xa58] sm:$0xff]
    %v464 = vld [vmem:[#allocation7 + $0xa60] sm:$0xff]
    %v465 = vld [vmem:[#allocation7 + $0xa68] sm:$0xff]
    %v466 = vld [vmem:[#allocation7 + $0xa70] sm:$0xff]
    %v467 = vld [vmem:[#allocation7 + $0xa78] sm:$0xff]
    %v468 = vld [vmem:[#allocation7 + $0xa80] sm:$0xff]
    %v469 = vld [vmem:[#allocation7 + $0xa88] sm:$0xff]
    %v470 = vld [vmem:[#allocation7 + $0xa90] sm:$0xff]
    %v471 = vld [vmem:[#allocation7 + $0xa98] sm:$0xff]
    %v472 = vld [vmem:[#allocation7 + $0xaa0] sm:$0xff]
    %v473 = vld [vmem:[#allocation7 + $0xaa8] sm:$0xff]
    %v474 = vld [vmem:[#allocation7 + $0xab0] sm:$0xff]
    %v475 = vld [vmem:[#allocation7 + $0xab8] sm:$0xff]
    %v476 = vld [vmem:[#allocation7 + $0xac0] sm:$0xff]
    %v477 = vld [vmem:[#allocation7 + $0xac8] sm:$0xff]
    %v478 = vld [vmem:[#allocation7 + $0xad0] sm:$0xff]
    %v479 = vld [vmem:[#allocation7 + $0xad8] sm:$0xff]
    %v480 = vld [vmem:[#allocation7 + $0xae0] sm:$0xff]
    %v481 = vld [vmem:[#allocation7 + $0xae8] sm:$0xff]
    %v482 = vld [vmem:[#allocation7 + $0xaf0] sm:$0xff]
    %v483 = vld [vmem:[#allocation7 + $0xaf8] sm:$0xff]
    %v484 = vld [vmem:[#allocation7 + $0xb00] sm:$0xff]
    %v485 = vld [vmem:[#allocation7 + $0xb08] sm:$0xff]
    %v486 = vld [vmem:[#allocation7 + $0xb10] sm:$0xff]
    %v487 = vld [vmem:[#allocation7 + $0xb18] sm:$0xff]
    %v488 = vld [vmem:[#allocation7 + $0xb20] sm:$0xff]
    %v489 = vld [vmem:[#allocation7 + $0xb28] sm:$0xff]
    %v490 = vld [vmem:[#allocation7 + $0xb30] sm:$0xff]
    %v491 = vld [vmem:[#allocation7 + $0xb38] sm:$0xff]
    %v492 = vld [vmem:[#allocation7 + $0xb40] sm:$0xff]
    %v493 = vld [vmem:[#allocation7 + $0xb48] sm:$0xff]
    %v494 = vld [vmem:[#allocation7 + $0xb50] sm:$0xff]
    %v495 = vld [vmem:[#allocation7 + $0xb58] sm:$0xff]
    %v496 = vld [vmem:[#allocation7 + $0xb60] sm:$0xff]
    %v497 = vld [vmem:[#allocation7 + $0xb68] sm:$0xff]
    %v498 = vld [vmem:[#allocation7 + $0xb70] sm:$0xff]
    %v499 = vld [vmem:[#allocation7 + $0xb78] sm:$0xff]
    %v500 = vld [vmem:[#allocation7 + $0xb80] sm:$0xff]
    %v501 = vld [vmem:[#allocation7 + $0xb88] sm:$0xff]
    %v502 = vld [vmem:[#allocation7 + $0xb90] sm:$0xff]
    %v503 = vld [vmem:[#allocation7 + $0xb98] sm:$0xff]
    %v504 = vld [vmem:[#allocation7 + $0xba0] sm:$0xff]
    %v505 = vld [vmem:[#allocation7 + $0xba8] sm:$0xff]
    %v506 = vld [vmem:[#allocation7 + $0xbb0] sm:$0xff]
    %v507 = vld [vmem:[#allocation7 + $0xbb8] sm:$0xff]
    %v508 = vld [vmem:[#allocation7 + $0xbc0] sm:$0xff]
    %v509 = vld [vmem:[#allocation7 + $0xbc8] sm:$0xff]
    %v510 = vld [vmem:[#allocation7 + $0xbd0] sm:$0xff]
    %v511 = vld [vmem:[#allocation7 + $0xbd8] sm:$0xff]
    %v512 = vld [vmem:[#allocation7 + $0xbe0] sm:$0xff]
    %v513 = vld [vmem:[#allocation7 + $0xbe8] sm:$0xff]
    %v514 = vld [vmem:[#allocation7 + $0xbf0] sm:$0xff]
    %v515 = vld [vmem:[#allocation7 + $0xbf8] sm:$0xff]
    %v516 = vld [vmem:[#allocation7 + $0xc00] sm:$0xff]
    %v517 = vld [vmem:[#allocation7 + $0xc08] sm:$0xff]
    %v518 = vld [vmem:[#allocation7 + $0xc10] sm:$0xff]
    %v519 = vld [vmem:[#allocation7 + $0xc18] sm:$0xff]
    %v520 = vld [vmem:[#allocation7 + $0xc20] sm:$0xff]
    %v521 = vld [vmem:[#allocation7 + $0xc28] sm:$0xff]
    %v522 = vld [vmem:[#allocation7 + $0xc30] sm:$0xff]
    %v523 = vld [vmem:[#allocation7 + $0xc38] sm:$0xff]
    %v524 = vld [vmem:[#allocation7 + $0xc40] sm:$0xff]
    %v525 = vld [vmem:[#allocation7 + $0xc48] sm:$0xff]
    %v526 = vld [vmem:[#allocation7 + $0xc50] sm:$0xff]
    %v527 = vld [vmem:[#allocation7 + $0xc58] sm:$0xff]
    %v528 = vld [vmem:[#allocation7 + $0xc60] sm:$0xff]
    %v529 = vld [vmem:[#allocation7 + $0xc68] sm:$0xff]
    %v530 = vld [vmem:[#allocation7 + $0xc70] sm:$0xff]
    %v531 = vld [vmem:[#allocation7 + $0xc78] sm:$0xff]
    %v532 = vld [vmem:[#allocation7 + $0xc80] sm:$0xff]
    %v533 = vld [vmem:[#allocation7 + $0xc88] sm:$0xff]
    %v534 = vld [vmem:[#allocation7 + $0xc90] sm:$0xff]
    %v535 = vld [vmem:[#allocation7 + $0xc98] sm:$0xff]
    %v536 = vld [vmem:[#allocation7 + $0xca0] sm:$0xff]
    %v537 = vld [vmem:[#allocation7 + $0xca8] sm:$0xff]
    %v538 = vld [vmem:[#allocation7 + $0xcb0] sm:$0xff]
    %v539 = vld [vmem:[#allocation7 + $0xcb8] sm:$0xff]
    %v540 = vld [vmem:[#allocation7 + $0xcc0] sm:$0xff]
    %v541 = vld [vmem:[#allocation7 + $0xcc8] sm:$0xff]
    %v542 = vld [vmem:[#allocation7 + $0xcd0] sm:$0xff]
    %v543 = vld [vmem:[#allocation7 + $0xcd8] sm:$0xff]
    %v544 = vld [vmem:[#allocation7 + $0xce0] sm:$0xff]
    %v545 = vld [vmem:[#allocation7 + $0xce8] sm:$0xff]
    %v546 = vld [vmem:[#allocation7 + $0xcf0] sm:$0xff]
    %v547 = vld [vmem:[#allocation7 + $0xcf8] sm:$0xff]
    %v548 = vld [vmem:[#allocation7 + $0xd00] sm:$0xff]
    %v549 = vld [vmem:[#allocation7 + $0xd08] sm:$0xff]
    %v550 = vld [vmem:[#allocation7 + $0xd10] sm:$0xff]
    %v551 = vld [vmem:[#allocation7 + $0xd18] sm:$0xff]
    %v552 = vld [vmem:[#allocation7 + $0xd20] sm:$0xff]
    %v553 = vld [vmem:[#allocation7 + $0xd28] sm:$0xff]
    %v554 = vld [vmem:[#allocation7 + $0xd30] sm:$0xff]
    %v555 = vld [vmem:[#allocation7 + $0xd38] sm:$0xff]
    %v556 = vld [vmem:[#allocation7 + $0xd40] sm:$0xff]
    %v557 = vld [vmem:[#allocation7 + $0xd48] sm:$0xff]
    %v558 = vld [vmem:[#allocation7 + $0xd50] sm:$0xff]
    %v559 = vld [vmem:[#allocation7 + $0xd58] sm:$0xff]
    %v560 = vld [vmem:[#allocation7 + $0xd60] sm:$0xff]
    %v561 = vld [vmem:[#allocation7 + $0xd68] sm:$0xff]
    %v562 = vld [vmem:[#allocation7 + $0xd70] sm:$0xff]
    %v563 = vld [vmem:[#allocation7 + $0xd78] sm:$0xff]
    %v564 = vld [vmem:[#allocation7 + $0xd80] sm:$0xff]
    %v565 = vld [vmem:[#allocation7 + $0xd88] sm:$0xff]
    %v566 = vld [vmem:[#allocation7 + $0xd90] sm:$0xff]
    %v567 = vld [vmem:[#allocation7 + $0xd98] sm:$0xff]
    %v568 = vld [vmem:[#allocation7 + $0xda0] sm:$0xff]
    %v569 = vld [vmem:[#allocation7 + $0xda8] sm:$0xff]
    %v570 = vld [vmem:[#allocation7 + $0xdb0] sm:$0xff]
    %v571 = vld [vmem:[#allocation7 + $0xdb8] sm:$0xff]
    %v572 = vld [vmem:[#allocation7 + $0xdc0] sm:$0xff]
    %v573 = vld [vmem:[#allocation7 + $0xdc8] sm:$0xff]
    %v574 = vld [vmem:[#allocation7 + $0xdd0] sm:$0xff]
    %v575 = vld [vmem:[#allocation7 + $0xdd8] sm:$0xff]
    %v576 = vld [vmem:[#allocation7 + $0xde0] sm:$0xff]
    %v577 = vld [vmem:[#allocation7 + $0xde8] sm:$0xff]
    %v578 = vld [vmem:[#allocation7 + $0xdf0] sm:$0xff]
    %v579 = vld [vmem:[#allocation7 + $0xdf8] sm:$0xff]
    %v580 = vld [vmem:[#allocation7 + $0xe00] sm:$0xff]
    %v581 = vld [vmem:[#allocation7 + $0xe08] sm:$0xff]
    %v582 = vld [vmem:[#allocation7 + $0xe10] sm:$0xff]
    %v583 = vld [vmem:[#allocation7 + $0xe18] sm:$0xff]
    %v584 = vld [vmem:[#allocation7 + $0xe20] sm:$0xff]
    %v585 = vld [vmem:[#allocation7 + $0xe28] sm:$0xff]
    %v586 = vld [vmem:[#allocation7 + $0xe30] sm:$0xff]
    %v587 = vld [vmem:[#allocation7 + $0xe38] sm:$0xff]
    %v588 = vld [vmem:[#allocation7 + $0xe40] sm:$0xff]
    %v589 = vld [vmem:[#allocation7 + $0xe48] sm:$0xff]
    %v590 = vld [vmem:[#allocation7 + $0xe50] sm:$0xff]
    %v591 = vld [vmem:[#allocation7 + $0xe58] sm:$0xff]
    %v592 = vld [vmem:[#allocation7 + $0xe60] sm:$0xff]
    %v593 = vld [vmem:[#allocation7 + $0xe68] sm:$0xff]
    %v594 = vld [vmem:[#allocation7 + $0xe70] sm:$0xff]
    %v595 = vld [vmem:[#allocation7 + $0xe78] sm:$0xff]
    %v596 = vld [vmem:[#allocation7 + $0xe80] sm:$0xff]
    %v597 = vld [vmem:[#allocation7 + $0xe88] sm:$0xff]
    %v598 = vld [vmem:[#allocation7 + $0xe90] sm:$0xff]
    %v599 = vld [vmem:[#allocation7 + $0xe98] sm:$0xff]
    %v600 = vld [vmem:[#allocation7 + $0xea0] sm:$0xff]
    %v601 = vld [vmem:[#allocation7 + $0xea8] sm:$0xff]
    %v602 = vld [vmem:[#allocation7 + $0xeb0] sm:$0xff]
    %v603 = vld [vmem:[#allocation7 + $0xeb8] sm:$0xff]
    %v604 = vld [vmem:[#allocation7 + $0xec0] sm:$0xff]
    %v605 = vld [vmem:[#allocation7 + $0xec8] sm:$0xff]
    %v606 = vld [vmem:[#allocation7 + $0xed0] sm:$0xff]
    %v607 = vld [vmem:[#allocation7 + $0xed8] sm:$0xff]
    %v608 = vld [vmem:[#allocation7 + $0xee0] sm:$0xff]
    %v609 = vld [vmem:[#allocation7 + $0xee8] sm:$0xff]
    %v610 = vld [vmem:[#allocation7 + $0xef0] sm:$0xff]
    %v611 = vld [vmem:[#allocation7 + $0xef8] sm:$0xff]
    %v612 = vld [vmem:[#allocation7 + $0xf00] sm:$0xff]
    %v613 = vld [vmem:[#allocation7 + $0xf08] sm:$0xff]
    %v614 = vld [vmem:[#allocation7 + $0xf10] sm:$0xff]
    %v615 = vld [vmem:[#allocation7 + $0xf18] sm:$0xff]
    %v616 = vld [vmem:[#allocation7 + $0xf20] sm:$0xff]
    %v617 = vld [vmem:[#allocation7 + $0xf28] sm:$0xff]
    %v618 = vld [vmem:[#allocation7 + $0xf30] sm:$0xff]
    %v619 = vld [vmem:[#allocation7 + $0xf38] sm:$0xff]
    %v620 = vld [vmem:[#allocation7 + $0xf40] sm:$0xff]
    %v621 = vld [vmem:[#allocation7 + $0xf48] sm:$0xff]
    %v622 = vld [vmem:[#allocation7 + $0xf50] sm:$0xff]
    %v623 = vld [vmem:[#allocation7 + $0xf58] sm:$0xff]
    %v624 = vld [vmem:[#allocation7 + $0xf60] sm:$0xff]
    %v625 = vld [vmem:[#allocation7 + $0xf68] sm:$0xff]
    %v626 = vld [vmem:[#allocation7 + $0xf70] sm:$0xff]
    %v627 = vld [vmem:[#allocation7 + $0xf78] sm:$0xff]
    %v628 = vld [vmem:[#allocation7 + $0xf80] sm:$0xff]
    %v629 = vld [vmem:[#allocation7 + $0xf88] sm:$0xff]
    %v630 = vld [vmem:[#allocation7 + $0xf90] sm:$0xff]
    %v631 = vld [vmem:[#allocation7 + $0xf98] sm:$0xff]
    %v632 = vld [vmem:[#allocation7 + $0xfa0] sm:$0xff]
    %v633 = vld [vmem:[#allocation7 + $0xfa8] sm:$0xff]
    %v634 = vld [vmem:[#allocation7 + $0xfb0] sm:$0xff]
    %v635 = vld [vmem:[#allocation7 + $0xfb8] sm:$0xff]
    %v636 = vld [vmem:[#allocation7 + $0xfc0] sm:$0xff]
    %v637 = vld [vmem:[#allocation7 + $0xfc8] sm:$0xff]
    %v638 = vld [vmem:[#allocation7 + $0xfd0] sm:$0xff]
    %v639 = vld [vmem:[#allocation7 + $0xfd8] sm:$0xff]
    %v640 = vld [vmem:[#allocation7 + $0xfe0] sm:$0xff]
    %v641 = vld [vmem:[#allocation7 + $0xfe8] sm:$0xff]
    %v642 = vld [vmem:[#allocation7 + $0xff0] sm:$0xff]
    %v643 = vld [vmem:[#allocation7 + $0xff8] sm:$0xff]
    %v644 = vld [vmem:[#allocation7 + $0x1000] sm:$0xff]
    %v645 = vld [vmem:[#allocation7 + $0x1008] sm:$0xff]
    %v646 = vld [vmem:[#allocation7 + $0x1010] sm:$0xff]
    %v647 = vld [vmem:[#allocation7 + $0x1018] sm:$0xff]
    %v648 = vld [vmem:[#allocation7 + $0x1020] sm:$0xff]
    %v649 = vld [vmem:[#allocation7 + $0x1028] sm:$0xff]
    %v650 = vld [vmem:[#allocation7 + $0x1030] sm:$0xff]
    %v651 = vld [vmem:[#allocation7 + $0x1038] sm:$0xff]
    %v652 = vld [vmem:[#allocation7 + $0x1040] sm:$0xff]
    %v653 = vld [vmem:[#allocation7 + $0x1048] sm:$0xff]
    %v654 = vld [vmem:[#allocation7 + $0x1050] sm:$0xff]
    %v655 = vld [vmem:[#allocation7 + $0x1058] sm:$0xff]
    %v656 = vld [vmem:[#allocation7 + $0x1060] sm:$0xff]
    %v657 = vld [vmem:[#allocation7 + $0x1068] sm:$0xff]
    %v658 = vld [vmem:[#allocation7 + $0x1070] sm:$0xff]
    %v659 = vld [vmem:[#allocation7 + $0x1078] sm:$0xff]
    %v660 = vld [vmem:[#allocation7 + $0x1080] sm:$0xff]
    %v661 = vld [vmem:[#allocation7 + $0x1088] sm:$0xff]
    %v662 = vld [vmem:[#allocation7 + $0x1090] sm:$0xff]
    %v663 = vld [vmem:[#allocation7 + $0x1098] sm:$0xff]
    %v664 = vld [vmem:[#allocation7 + $0x10a0] sm:$0xff]
    %v665 = vld [vmem:[#allocation7 + $0x10a8] sm:$0xff]
    %v666 = vld [vmem:[#allocation7 + $0x10b0] sm:$0xff]
    %v667 = vld [vmem:[#allocation7 + $0x10b8] sm:$0xff]
    %v668 = vld [vmem:[#allocation7 + $0x10c0] sm:$0xff]
    %v669 = vld [vmem:[#allocation7 + $0x10c8] sm:$0xff]
    %v670 = vld [vmem:[#allocation7 + $0x10d0] sm:$0xff]
    %v671 = vld [vmem:[#allocation7 + $0x10d8] sm:$0xff]
    %v672 = vld [vmem:[#allocation7 + $0x10e0] sm:$0xff]
    %v673 = vld [vmem:[#allocation7 + $0x10e8] sm:$0xff]
    %v674 = vld [vmem:[#allocation7 + $0x10f0] sm:$0xff]
    %v675 = vld [vmem:[#allocation7 + $0x10f8] sm:$0xff]
    %v676 = vld [vmem:[#allocation7 + $0x1100] sm:$0xff]
    %v677 = vld [vmem:[#allocation7 + $0x1108] sm:$0xff]
    %v678 = vld [vmem:[#allocation7 + $0x1110] sm:$0xff]
    %v679 = vld [vmem:[#allocation7 + $0x1118] sm:$0xff]
    %v680 = vld [vmem:[#allocation7 + $0x1120] sm:$0xff]
    %v681 = vld [vmem:[#allocation7 + $0x1128] sm:$0xff]
    %v682 = vld [vmem:[#allocation7 + $0x1130] sm:$0xff]
    %v683 = vld [vmem:[#allocation7 + $0x1138] sm:$0xff]
    %v684 = vld [vmem:[#allocation7 + $0x1140] sm:$0xff]
    %v685 = vld [vmem:[#allocation7 + $0x1148] sm:$0xff]
    %v686 = vld [vmem:[#allocation7 + $0x1150] sm:$0xff]
    %v687 = vld [vmem:[#allocation7 + $0x1158] sm:$0xff]
    %v688 = vld [vmem:[#allocation7 + $0x1160] sm:$0xff]
    %v689 = vld [vmem:[#allocation7 + $0x1168] sm:$0xff]
    %v690 = vld [vmem:[#allocation7 + $0x1170] sm:$0xff]
    %v691 = vld [vmem:[#allocation7 + $0x1178] sm:$0xff]
    %v692 = vld [vmem:[#allocation7 + $0x1180] sm:$0xff]
    %v693 = vld [vmem:[#allocation7 + $0x1188] sm:$0xff]
    %v694 = vld [vmem:[#allocation7 + $0x1190] sm:$0xff]
    %v695 = vld [vmem:[#allocation7 + $0x1198] sm:$0xff]
    %v696 = vld [vmem:[#allocation7 + $0x11a0] sm:$0xff]
    %v697 = vld [vmem:[#allocation7 + $0x11a8] sm:$0xff]
    %v698 = vld [vmem:[#allocation7 + $0x11b0] sm:$0xff]
    %v699 = vld [vmem:[#allocation7 + $0x11b8] sm:$0xff]
    %v700 = vld [vmem:[#allocation7 + $0x11c0] sm:$0xff]
    %v701 = vld [vmem:[#allocation7 + $0x11c8] sm:$0xff]
    %v702 = vld [vmem:[#allocation7 + $0x11d0] sm:$0xff]
    %v703 = vld [vmem:[#allocation7 + $0x11d8] sm:$0xff]
    %v704 = vld [vmem:[#allocation7 + $0x11e0] sm:$0xff]
    %v705 = vld [vmem:[#allocation7 + $0x11e8] sm:$0xff]
    %v706 = vld [vmem:[#allocation7 + $0x11f0] sm:$0xff]
    %v707 = vld [vmem:[#allocation7 + $0x11f8] sm:$0xff]
    %v708 = vld [vmem:[#allocation7 + $0x1200] sm:$0xff]
    %v709 = vld [vmem:[#allocation7 + $0x1208] sm:$0xff]
    %v710 = vld [vmem:[#allocation7 + $0x1210] sm:$0xff]
    %v711 = vld [vmem:[#allocation7 + $0x1218] sm:$0xff]
    %v712 = vld [vmem:[#allocation7 + $0x1220] sm:$0xff]
    %v713 = vld [vmem:[#allocation7 + $0x1228] sm:$0xff]
    %v714 = vld [vmem:[#allocation7 + $0x1230] sm:$0xff]
    %v715 = vld [vmem:[#allocation7 + $0x1238] sm:$0xff]
    %v716 = vld [vmem:[#allocation7 + $0x1240] sm:$0xff]
    %v717 = vld [vmem:[#allocation7 + $0x1248] sm:$0xff]
    %v718 = vld [vmem:[#allocation7 + $0x1250] sm:$0xff]
    %v719 = vld [vmem:[#allocation7 + $0x1258] sm:$0xff]
    %v720 = vld [vmem:[#allocation7 + $0x1260] sm:$0xff]
    %v721 = vld [vmem:[#allocation7 + $0x1268] sm:$0xff]
    %v722 = vld [vmem:[#allocation7 + $0x1270] sm:$0xff]
    %v723 = vld [vmem:[#allocation7 + $0x1278] sm:$0xff]
    %v724 = vld [vmem:[#allocation7 + $0x1280] sm:$0xff]
    %v725 = vld [vmem:[#allocation7 + $0x1288] sm:$0xff]
    %v726 = vld [vmem:[#allocation7 + $0x1290] sm:$0xff]
    %v727 = vld [vmem:[#allocation7 + $0x1298] sm:$0xff]
    %v728 = vld [vmem:[#allocation7 + $0x12a0] sm:$0xff]
    %v729 = vld [vmem:[#allocation7 + $0x12a8] sm:$0xff]
    %v730 = vld [vmem:[#allocation7 + $0x12b0] sm:$0xff]
    %v731 = vld [vmem:[#allocation7 + $0x12b8] sm:$0xff]
    %v732 = vld [vmem:[#allocation7 + $0x12c0] sm:$0xff]
    %v733 = vld [vmem:[#allocation7 + $0x12c8] sm:$0xff]
    %v734 = vld [vmem:[#allocation7 + $0x12d0] sm:$0xff]
    %v735 = vld [vmem:[#allocation7 + $0x12d8] sm:$0xff]
    %v736 = vld [vmem:[#allocation7 + $0x12e0] sm:$0xff]
    %v737 = vld [vmem:[#allocation7 + $0x12e8] sm:$0xff]
    %v738 = vld [vmem:[#allocation7 + $0x12f0] sm:$0xff]
    %v739 = vld [vmem:[#allocation7 + $0x12f8] sm:$0xff]
    %v740 = vld [vmem:[#allocation7 + $0x1300] sm:$0xff]
    %v741 = vld [vmem:[#allocation7 + $0x1308] sm:$0xff]
    %v742 = vld [vmem:[#allocation7 + $0x1310] sm:$0xff]
    %v743 = vld [vmem:[#allocation7 + $0x1318] sm:$0xff]
    %v744 = vld [vmem:[#allocation7 + $0x1320] sm:$0xff]
    %v745 = vld [vmem:[#allocation7 + $0x1328] sm:$0xff]
    %v746 = vld [vmem:[#allocation7 + $0x1330] sm:$0xff]
    %v747 = vld [vmem:[#allocation7 + $0x1338] sm:$0xff]
    %v748 = vld [vmem:[#allocation7 + $0x1340] sm:$0xff]
    %v749 = vld [vmem:[#allocation7 + $0x1348] sm:$0xff]
    %v750 = vld [vmem:[#allocation7 + $0x1350] sm:$0xff]
    %v751 = vld [vmem:[#allocation7 + $0x1358] sm:$0xff]
    %v752 = vld [vmem:[#allocation7 + $0x1360] sm:$0xff]
    %v753 = vld [vmem:[#allocation7 + $0x1368] sm:$0xff]
    %v754 = vld [vmem:[#allocation7 + $0x1370] sm:$0xff]
    %v755 = vld [vmem:[#allocation7 + $0x1378] sm:$0xff]
    %v756 = vld [vmem:[#allocation7 + $0x1380] sm:$0xff]
    %v757 = vld [vmem:[#allocation7 + $0x1388] sm:$0xff]
    %v758 = vld [vmem:[#allocation7 + $0x1390] sm:$0xff]
    %v759 = vld [vmem:[#allocation7 + $0x1398] sm:$0xff]
    %v760 = vld [vmem:[#allocation7 + $0x13a0] sm:$0xff]
    %v761 = vld [vmem:[#allocation7 + $0x13a8] sm:$0xff]
    %v762 = vld [vmem:[#allocation7 + $0x13b0] sm:$0xff]
    %v763 = vld [vmem:[#allocation7 + $0x13b8] sm:$0xff]
    %v764 = vld [vmem:[#allocation7 + $0x13c0] sm:$0xff]
    %v765 = vld [vmem:[#allocation7 + $0x13c8] sm:$0xff]
    %v766 = vld [vmem:[#allocation7 + $0x13d0] sm:$0xff]
    %v767 = vld [vmem:[#allocation7 + $0x13d8] sm:$0xff]
    %v768 = vld [vmem:[#allocation7 + $0x13e0] sm:$0xff]
    %v769 = vld [vmem:[#allocation7 + $0x13e8] sm:$0xff]
    %v770 = vld [vmem:[#allocation7 + $0x13f0] sm:$0xff]
    %v771 = vld [vmem:[#allocation7 + $0x13f8] sm:$0xff]
    %v772 = vld [vmem:[#allocation7 + $0x1400] sm:$0xff]
    %v773 = vld [vmem:[#allocation7 + $0x1408] sm:$0xff]
    %v774 = vld [vmem:[#allocation7 + $0x1410] sm:$0xff]
    %v775 = vld [vmem:[#allocation7 + $0x1418] sm:$0xff]
    %v776 = vld [vmem:[#allocation7 + $0x1420] sm:$0xff]
    %v777 = vld [vmem:[#allocation7 + $0x1428] sm:$0xff]
    %v778 = vld [vmem:[#allocation7 + $0x1430] sm:$0xff]
    %v779 = vld [vmem:[#allocation7 + $0x1438] sm:$0xff]
    %v780 = vld [vmem:[#allocation7 + $0x1440] sm:$0xff]
    %v781 = vld [vmem:[#allocation7 + $0x1448] sm:$0xff]
    %v782 = vld [vmem:[#allocation7 + $0x1450] sm:$0xff]
    %v783 = vld [vmem:[#allocation7 + $0x1458] sm:$0xff]
    %v784 = vld [vmem:[#allocation7 + $0x1460] sm:$0xff]
    %v785 = vld [vmem:[#allocation7 + $0x1468] sm:$0xff]
    %v786 = vld [vmem:[#allocation7 + $0x1470] sm:$0xff]
    %v787 = vld [vmem:[#allocation7 + $0x1478] sm:$0xff]
    %v788 = vld [vmem:[#allocation7 + $0x1480] sm:$0xff]
    %v789 = vld [vmem:[#allocation7 + $0x1488] sm:$0xff]
    %v790 = vld [vmem:[#allocation7 + $0x1490] sm:$0xff]
    %v791 = vld [vmem:[#allocation7 + $0x1498] sm:$0xff]
    %v792 = vld [vmem:[#allocation7 + $0x14a0] sm:$0xff]
    %v793 = vld [vmem:[#allocation7 + $0x14a8] sm:$0xff]
    %v794 = vld [vmem:[#allocation7 + $0x14b0] sm:$0xff]
    %v795 = vld [vmem:[#allocation7 + $0x14b8] sm:$0xff]
    %v796 = vld [vmem:[#allocation7 + $0x14c0] sm:$0xff]
    %v797 = vld [vmem:[#allocation7 + $0x14c8] sm:$0xff]
    %v798 = vld [vmem:[#allocation7 + $0x14d0] sm:$0xff]
    %v799 = vld [vmem:[#allocation7 + $0x14d8] sm:$0xff]
    %v800 = vld [vmem:[#allocation7 + $0x14e0] sm:$0xff]
    %v801 = vld [vmem:[#allocation7 + $0x14e8] sm:$0xff]
    %v802 = vld [vmem:[#allocation7 + $0x14f0] sm:$0xff]
    %v803 = vld [vmem:[#allocation7 + $0x14f8] sm:$0xff]
    %v804 = vld [vmem:[#allocation7 + $0x1500] sm:$0xff]
    %v805 = vld [vmem:[#allocation7 + $0x1508] sm:$0xff]
    %v806 = vld [vmem:[#allocation7 + $0x1510] sm:$0xff]
    %v807 = vld [vmem:[#allocation7 + $0x1518] sm:$0xff]
    %v808 = vld [vmem:[#allocation7 + $0x1520] sm:$0xff]
    %v809 = vld [vmem:[#allocation7 + $0x1528] sm:$0xff]
    %v810 = vld [vmem:[#allocation7 + $0x1530] sm:$0xff]
    %v811 = vld [vmem:[#allocation7 + $0x1538] sm:$0xff]
    %v812 = vld [vmem:[#allocation7 + $0x1540] sm:$0xff]
    %v813 = vld [vmem:[#allocation7 + $0x1548] sm:$0xff]
    %v814 = vld [vmem:[#allocation7 + $0x1550] sm:$0xff]
    %v815 = vld [vmem:[#allocation7 + $0x1558] sm:$0xff]
    %v816 = vld [vmem:[#allocation7 + $0x1560] sm:$0xff]
    %v817 = vld [vmem:[#allocation7 + $0x1568] sm:$0xff]
    %v818 = vld [vmem:[#allocation7 + $0x1570] sm:$0xff]
    %v819 = vld [vmem:[#allocation7 + $0x1578] sm:$0xff]
    %v820 = vld [vmem:[#allocation7 + $0x1580] sm:$0xff]
    %v821 = vld [vmem:[#allocation7 + $0x1588] sm:$0xff]
    %v822 = vld [vmem:[#allocation7 + $0x1590] sm:$0xff]
    %v823 = vld [vmem:[#allocation7 + $0x1598] sm:$0xff]
    %v824 = vld [vmem:[#allocation7 + $0x15a0] sm:$0xff]
    %v825 = vld [vmem:[#allocation7 + $0x15a8] sm:$0xff]
    %v826 = vld [vmem:[#allocation7 + $0x15b0] sm:$0xff]
    %v827 = vld [vmem:[#allocation7 + $0x15b8] sm:$0xff]
    %v828 = vld [vmem:[#allocation7 + $0x15c0] sm:$0xff]
    %v829 = vld [vmem:[#allocation7 + $0x15c8] sm:$0xff]
    %v830 = vld [vmem:[#allocation7 + $0x15d0] sm:$0xff]
    %v831 = vld [vmem:[#allocation7 + $0x15d8] sm:$0xff]
    %v832 = vld [vmem:[#allocation7 + $0x15e0] sm:$0xff]
    %v833 = vld [vmem:[#allocation7 + $0x15e8] sm:$0xff]
    %v834 = vld [vmem:[#allocation7 + $0x15f0] sm:$0xff]
    %v835 = vld [vmem:[#allocation7 + $0x15f8] sm:$0xff]
    %v836 = vld [vmem:[#allocation7 + $0x1600] sm:$0xff]
    %v837 = vld [vmem:[#allocation7 + $0x1608] sm:$0xff]
    %v838 = vld [vmem:[#allocation7 + $0x1610] sm:$0xff]
    %v839 = vld [vmem:[#allocation7 + $0x1618] sm:$0xff]
    %v840 = vld [vmem:[#allocation7 + $0x1620] sm:$0xff]
    %v841 = vld [vmem:[#allocation7 + $0x1628] sm:$0xff]
    %v842 = vld [vmem:[#allocation7 + $0x1630] sm:$0xff]
    %v843 = vld [vmem:[#allocation7 + $0x1638] sm:$0xff]
    %v844 = vld [vmem:[#allocation7 + $0x1640] sm:$0xff]
    %v845 = vld [vmem:[#allocation7 + $0x1648] sm:$0xff]
    %v846 = vld [vmem:[#allocation7 + $0x1650] sm:$0xff]
    %v847 = vld [vmem:[#allocation7 + $0x1658] sm:$0xff]
    %v848 = vld [vmem:[#allocation7 + $0x1660] sm:$0xff]
    %v849 = vld [vmem:[#allocation7 + $0x1668] sm:$0xff]
    %v850 = vld [vmem:[#allocation7 + $0x1670] sm:$0xff]
    %v851 = vld [vmem:[#allocation7 + $0x1678] sm:$0xff]
    %v852 = vld [vmem:[#allocation7 + $0x1680] sm:$0xff]
    %v853 = vld [vmem:[#allocation7 + $0x1688] sm:$0xff]
    %v854 = vld [vmem:[#allocation7 + $0x1690] sm:$0xff]
    %v855 = vld [vmem:[#allocation7 + $0x1698] sm:$0xff]
    %v856 = vld [vmem:[#allocation7 + $0x16a0] sm:$0xff]
    %v857 = vld [vmem:[#allocation7 + $0x16a8] sm:$0xff]
    %v858 = vld [vmem:[#allocation7 + $0x16b0] sm:$0xff]
    %v859 = vld [vmem:[#allocation7 + $0x16b8] sm:$0xff]
    %v860 = vld [vmem:[#allocation7 + $0x16c0] sm:$0xff]
    %v861 = vld [vmem:[#allocation7 + $0x16c8] sm:$0xff]
    %v862 = vld [vmem:[#allocation7 + $0x16d0] sm:$0xff]
    %v863 = vld [vmem:[#allocation7 + $0x16d8] sm:$0xff]
    %v864 = vld [vmem:[#allocation7 + $0x16e0] sm:$0xff]
    %v865 = vld [vmem:[#allocation7 + $0x16e8] sm:$0xff]
    %v866 = vld [vmem:[#allocation7 + $0x16f0] sm:$0xff]
    %v867 = vld [vmem:[#allocation7 + $0x16f8] sm:$0xff]
    %v868 = vld [vmem:[#allocation7 + $0x1700] sm:$0xff]
    %v869 = vld [vmem:[#allocation7 + $0x1708] sm:$0xff]
    %v870 = vld [vmem:[#allocation7 + $0x1710] sm:$0xff]
    %v871 = vld [vmem:[#allocation7 + $0x1718] sm:$0xff]
    %v872 = vld [vmem:[#allocation7 + $0x1720] sm:$0xff]
    %v873 = vld [vmem:[#allocation7 + $0x1728] sm:$0xff]
    %v874 = vld [vmem:[#allocation7 + $0x1730] sm:$0xff]
    %v875 = vld [vmem:[#allocation7 + $0x1738] sm:$0xff]
    %v876 = vld [vmem:[#allocation7 + $0x1740] sm:$0xff]
    %v877 = vld [vmem:[#allocation7 + $0x1748] sm:$0xff]
    %v878 = vld [vmem:[#allocation7 + $0x1750] sm:$0xff]
    %v879 = vld [vmem:[#allocation7 + $0x1758] sm:$0xff]
    %v880 = vld [vmem:[#allocation7 + $0x1760] sm:$0xff]
    %v881 = vld [vmem:[#allocation7 + $0x1768] sm:$0xff]
    %v882 = vld [vmem:[#allocation7 + $0x1770] sm:$0xff]
    %v883 = vld [vmem:[#allocation7 + $0x1778] sm:$0xff]
    %v884 = vld [vmem:[#allocation7 + $0x1780] sm:$0xff]
    %v885 = vld [vmem:[#allocation7 + $0x1788] sm:$0xff]
    %v886 = vld [vmem:[#allocation7 + $0x1790] sm:$0xff]
    %v887 = vld [vmem:[#allocation7 + $0x1798] sm:$0xff]
    %v888 = vld [vmem:[#allocation7 + $0x17a0] sm:$0xff]
    %v889 = vld [vmem:[#allocation7 + $0x17a8] sm:$0xff]
    %v890 = vld [vmem:[#allocation7 + $0x17b0] sm:$0xff]
    %v891 = vld [vmem:[#allocation7 + $0x17b8] sm:$0xff]
    %v892 = vld [vmem:[#allocation7 + $0x17c0] sm:$0xff]
    %v893 = vld [vmem:[#allocation7 + $0x17c8] sm:$0xff]
    %v894 = vld [vmem:[#allocation7 + $0x17d0] sm:$0xff]
    %v895 = vld [vmem:[#allocation7 + $0x17d8] sm:$0xff]
    %v896 = vld [vmem:[#allocation7 + $0x17e0] sm:$0xff]
    %v897 = vld [vmem:[#allocation7 + $0x17e8] sm:$0xff]
    %v898 = vld [vmem:[#allocation7 + $0x17f0] sm:$0xff]
    %v899 = vld [vmem:[#allocation7 + $0x17f8] sm:$0xff]
    %v900 = vld [vmem:[#allocation7 + $0x1800] sm:$0xff]
    %v901 = vld [vmem:[#allocation7 + $0x1808] sm:$0xff]
    %v902 = vld [vmem:[#allocation7 + $0x1810] sm:$0xff]
    %v903 = vld [vmem:[#allocation7 + $0x1818] sm:$0xff]
    %v904 = vld [vmem:[#allocation7 + $0x1820] sm:$0xff]
    %v905 = vld [vmem:[#allocation7 + $0x1828] sm:$0xff]
    %v906 = vld [vmem:[#allocation7 + $0x1830] sm:$0xff]
    %v907 = vld [vmem:[#allocation7 + $0x1838] sm:$0xff]
    %v908 = vld [vmem:[#allocation7 + $0x1840] sm:$0xff]
    %v909 = vld [vmem:[#allocation7 + $0x1848] sm:$0xff]
    %v910 = vld [vmem:[#allocation7 + $0x1850] sm:$0xff]
    %v911 = vld [vmem:[#allocation7 + $0x1858] sm:$0xff]
    %v912 = vld [vmem:[#allocation7 + $0x1860] sm:$0xff]
    %v913 = vld [vmem:[#allocation7 + $0x1868] sm:$0xff]
    %v914 = vld [vmem:[#allocation7 + $0x1870] sm:$0xff]
    %v915 = vld [vmem:[#allocation7 + $0x1878] sm:$0xff]
    %v916 = vld [vmem:[#allocation7 + $0x1880] sm:$0xff]
    %v917 = vld [vmem:[#allocation7 + $0x1888] sm:$0xff]
    %v918 = vld [vmem:[#allocation7 + $0x1890] sm:$0xff]
    %v919 = vld [vmem:[#allocation7 + $0x1898] sm:$0xff]
    %v920 = vld [vmem:[#allocation7 + $0x18a0] sm:$0xff]
    %v921 = vld [vmem:[#allocation7 + $0x18a8] sm:$0xff]
    %v922 = vld [vmem:[#allocation7 + $0x18b0] sm:$0xff]
    %v923 = vld [vmem:[#allocation7 + $0x18b8] sm:$0xff]
    %v924 = vld [vmem:[#allocation7 + $0x18c0] sm:$0xff]
    %v925 = vld [vmem:[#allocation7 + $0x18c8] sm:$0xff]
    %v926 = vld [vmem:[#allocation7 + $0x18d0] sm:$0xff]
    %v927 = vld [vmem:[#allocation7 + $0x18d8] sm:$0xff]
    %v928 = vld [vmem:[#allocation7 + $0x18e0] sm:$0xff]
    %v929 = vld [vmem:[#allocation7 + $0x18e8] sm:$0xff]
    %v930 = vld [vmem:[#allocation7 + $0x18f0] sm:$0xff]
    %v931 = vld [vmem:[#allocation7 + $0x18f8] sm:$0xff]
    %v932 = vld [vmem:[#allocation7 + $0x1900] sm:$0xff]
    %v933 = vld [vmem:[#allocation7 + $0x1908] sm:$0xff]
    %v934 = vld [vmem:[#allocation7 + $0x1910] sm:$0xff]
    %v935 = vld [vmem:[#allocation7 + $0x1918] sm:$0xff]
    %v936 = vld [vmem:[#allocation7 + $0x1920] sm:$0xff]
    %v937 = vld [vmem:[#allocation7 + $0x1928] sm:$0xff]
    %v938 = vld [vmem:[#allocation7 + $0x1930] sm:$0xff]
    %v939 = vld [vmem:[#allocation7 + $0x1938] sm:$0xff]
    %v940 = vld [vmem:[#allocation7 + $0x1940] sm:$0xff]
    %v941 = vld [vmem:[#allocation7 + $0x1948] sm:$0xff]
    %v942 = vld [vmem:[#allocation7 + $0x1950] sm:$0xff]
    %v943 = vld [vmem:[#allocation7 + $0x1958] sm:$0xff]
    %v944 = vld [vmem:[#allocation7 + $0x1960] sm:$0xff]
    %v945 = vld [vmem:[#allocation7 + $0x1968] sm:$0xff]
    %v946 = vld [vmem:[#allocation7 + $0x1970] sm:$0xff]
    %v947 = vld [vmem:[#allocation7 + $0x1978] sm:$0xff]
    %v948 = vld [vmem:[#allocation7 + $0x1980] sm:$0xff]
    %v949 = vld [vmem:[#allocation7 + $0x1988] sm:$0xff]
    %v950 = vld [vmem:[#allocation7 + $0x1990] sm:$0xff]
    %v951 = vld [vmem:[#allocation7 + $0x1998] sm:$0xff]
    %v952 = vld [vmem:[#allocation7 + $0x19a0] sm:$0xff]
    %v953 = vld [vmem:[#allocation7 + $0x19a8] sm:$0xff]
    %v954 = vld [vmem:[#allocation7 + $0x19b0] sm:$0xff]
    %v955 = vld [vmem:[#allocation7 + $0x19b8] sm:$0xff]
    %v956 = vld [vmem:[#allocation7 + $0x19c0] sm:$0xff]
    %v957 = vld [vmem:[#allocation7 + $0x19c8] sm:$0xff]
    %v958 = vld [vmem:[#allocation7 + $0x19d0] sm:$0xff]
    %v959 = vld [vmem:[#allocation7 + $0x19d8] sm:$0xff]
    %v960 = vld [vmem:[#allocation7 + $0x19e0] sm:$0xff]
    %v961 = vld [vmem:[#allocation7 + $0x19e8] sm:$0xff]
    %v962 = vld [vmem:[#allocation7 + $0x19f0] sm:$0xff]
    %v963 = vld [vmem:[#allocation7 + $0x19f8] sm:$0xff]
    %v964 = vld [vmem:[#allocation7 + $0x1a00] sm:$0xff]
    %v965 = vld [vmem:[#allocation7 + $0x1a08] sm:$0xff]
    %v966 = vld [vmem:[#allocation7 + $0x1a10] sm:$0xff]
    %v967 = vld [vmem:[#allocation7 + $0x1a18] sm:$0xff]
    %v968 = vld [vmem:[#allocation7 + $0x1a20] sm:$0xff]
    %v969 = vld [vmem:[#allocation7 + $0x1a28] sm:$0xff]
    %v970 = vld [vmem:[#allocation7 + $0x1a30] sm:$0xff]
    %v971 = vld [vmem:[#allocation7 + $0x1a38] sm:$0xff]
    %v972 = vld [vmem:[#allocation7 + $0x1a40] sm:$0xff]
    %v973 = vld [vmem:[#allocation7 + $0x1a48] sm:$0xff]
    %v974 = vld [vmem:[#allocation7 + $0x1a50] sm:$0xff]
    %v975 = vld [vmem:[#allocation7 + $0x1a58] sm:$0xff]
    %v976 = vld [vmem:[#allocation7 + $0x1a60] sm:$0xff]
    %v977 = vld [vmem:[#allocation7 + $0x1a68] sm:$0xff]
    %v978 = vld [vmem:[#allocation7 + $0x1a70] sm:$0xff]
    %v979 = vld [vmem:[#allocation7 + $0x1a78] sm:$0xff]
    %v980 = vld [vmem:[#allocation7 + $0x1a80] sm:$0xff]
    %v981 = vld [vmem:[#allocation7 + $0x1a88] sm:$0xff]
    %v982 = vld [vmem:[#allocation7 + $0x1a90] sm:$0xff]
    %v983 = vld [vmem:[#allocation7 + $0x1a98] sm:$0xff]
    %v984 = vld [vmem:[#allocation7 + $0x1aa0] sm:$0xff]
    %v985 = vld [vmem:[#allocation7 + $0x1aa8] sm:$0xff]
    %v986 = vld [vmem:[#allocation7 + $0x1ab0] sm:$0xff]
    %v987 = vld [vmem:[#allocation7 + $0x1ab8] sm:$0xff]
    %v988 = vld [vmem:[#allocation7 + $0x1ac0] sm:$0xff]
    %v989 = vld [vmem:[#allocation7 + $0x1ac8] sm:$0xff]
    %v990 = vld [vmem:[#allocation7 + $0x1ad0] sm:$0xff]
    %v991 = vld [vmem:[#allocation7 + $0x1ad8] sm:$0xff]
    %v992 = vld [vmem:[#allocation7 + $0x1ae0] sm:$0xff]
    %v993 = vld [vmem:[#allocation7 + $0x1ae8] sm:$0xff]
    %v994 = vld [vmem:[#allocation7 + $0x1af0] sm:$0xff]
    %v995 = vld [vmem:[#allocation7 + $0x1af8] sm:$0xff]
    %v996 = vld [vmem:[#allocation7 + $0x1b00] sm:$0xff]
    %v997 = vld [vmem:[#allocation7 + $0x1b08] sm:$0xff]
    %v998 = vld [vmem:[#allocation7 + $0x1b10] sm:$0xff]
    %v999 = vld [vmem:[#allocation7 + $0x1b18] sm:$0xff]
    %v1000 = vld [vmem:[#allocation7 + $0x1b20] sm:$0xff]
    %v1001 = vld [vmem:[#allocation7 + $0x1b28] sm:$0xff]
    %v1002 = vld [vmem:[#allocation7 + $0x1b30] sm:$0xff]
    %v1003 = vld [vmem:[#allocation7 + $0x1b38] sm:$0xff]
    %v1004 = vld [vmem:[#allocation7 + $0x1b40] sm:$0xff]
    %v1005 = vld [vmem:[#allocation7 + $0x1b48] sm:$0xff]
    %v1006 = vld [vmem:[#allocation7 + $0x1b50] sm:$0xff]
    %v1007 = vld [vmem:[#allocation7 + $0x1b58] sm:$0xff]
    %v1008 = vld [vmem:[#allocation7 + $0x1b60] sm:$0xff]
    %v1009 = vld [vmem:[#allocation7 + $0x1b68] sm:$0xff]
    %v1010 = vld [vmem:[#allocation7 + $0x1b70] sm:$0xff]
    %v1011 = vld [vmem:[#allocation7 + $0x1b78] sm:$0xff]
    %v1012 = vld [vmem:[#allocation7 + $0x1b80] sm:$0xff]
    %v1013 = vld [vmem:[#allocation7 + $0x1b88] sm:$0xff]
    %v1014 = vld [vmem:[#allocation7 + $0x1b90] sm:$0xff]
    %v1015 = vld [vmem:[#allocation7 + $0x1b98] sm:$0xff]
    %v1016 = vld [vmem:[#allocation7 + $0x1ba0] sm:$0xff]
    %v1017 = vld [vmem:[#allocation7 + $0x1ba8] sm:$0xff]
    %v1018 = vld [vmem:[#allocation7 + $0x1bb0] sm:$0xff]
    %v1019 = vld [vmem:[#allocation7 + $0x1bb8] sm:$0xff]
    %v1020 = vld [vmem:[#allocation7 + $0x1bc0] sm:$0xff]
    %v1021 = vld [vmem:[#allocation7 + $0x1bc8] sm:$0xff]
    %v1022 = vld [vmem:[#allocation7 + $0x1bd0] sm:$0xff]
    %v1023 = vld [vmem:[#allocation7 + $0x1bd8] sm:$0xff]
    %v1024 = vld [vmem:[#allocation7 + $0x1be0] sm:$0xff]
    %v1025 = vld [vmem:[#allocation7 + $0x1be8] sm:$0xff]
    %v1026 = vld [vmem:[#allocation7 + $0x1bf0] sm:$0xff]
    %v1027 = vld [vmem:[#allocation7 + $0x1bf8] sm:$0xff]
    %v1028 = vld [vmem:[#allocation7 + $0x1c00] sm:$0xff]
    %v1029 = vld [vmem:[#allocation7 + $0x1c08] sm:$0xff]
    %v1030 = vld [vmem:[#allocation7 + $0x1c10] sm:$0xff]
    %v1031 = vld [vmem:[#allocation7 + $0x1c18] sm:$0xff]
    %v1032 = vld [vmem:[#allocation7 + $0x1c20] sm:$0xff]
    %v1033 = vld [vmem:[#allocation7 + $0x1c28] sm:$0xff]
    %v1034 = vld [vmem:[#allocation7 + $0x1c30] sm:$0xff]
    %v1035 = vld [vmem:[#allocation7 + $0x1c38] sm:$0xff]
    %v1036 = vld [vmem:[#allocation7 + $0x1c40] sm:$0xff]
    %v1037 = vld [vmem:[#allocation7 + $0x1c48] sm:$0xff]
    %v1038 = vld [vmem:[#allocation7 + $0x1c50] sm:$0xff]
    %v1039 = vld [vmem:[#allocation7 + $0x1c58] sm:$0xff]
    %v1040 = vld [vmem:[#allocation7 + $0x1c60] sm:$0xff]
    %v1041 = vld [vmem:[#allocation7 + $0x1c68] sm:$0xff]
    %v1042 = vld [vmem:[#allocation7 + $0x1c70] sm:$0xff]
    %v1043 = vld [vmem:[#allocation7 + $0x1c78] sm:$0xff]
    %v1044 = vld [vmem:[#allocation7 + $0x1c80] sm:$0xff]
    %v1045 = vld [vmem:[#allocation7 + $0x1c88] sm:$0xff]
    %v1046 = vld [vmem:[#allocation7 + $0x1c90] sm:$0xff]
    %v1047 = vld [vmem:[#allocation7 + $0x1c98] sm:$0xff]
    %v1048 = vld [vmem:[#allocation7 + $0x1ca0] sm:$0xff]
    %v1049 = vld [vmem:[#allocation7 + $0x1ca8] sm:$0xff]
    %v1050 = vld [vmem:[#allocation7 + $0x1cb0] sm:$0xff]
    %v1051 = vld [vmem:[#allocation7 + $0x1cb8] sm:$0xff]
    %v1052 = vld [vmem:[#allocation7 + $0x1cc0] sm:$0xff]
    %v1053 = vld [vmem:[#allocation7 + $0x1cc8] sm:$0xff]
    %v1054 = vld [vmem:[#allocation7 + $0x1cd0] sm:$0xff]
    %v1055 = vld [vmem:[#allocation7 + $0x1cd8] sm:$0xff]
    %v1056 = vld [vmem:[#allocation7 + $0x1ce0] sm:$0xff]
    %v1057 = vld [vmem:[#allocation7 + $0x1ce8] sm:$0xff]
    %v1058 = vld [vmem:[#allocation7 + $0x1cf0] sm:$0xff]
    %v1059 = vld [vmem:[#allocation7 + $0x1cf8] sm:$0xff]
    %v1060 = vld [vmem:[#allocation7 + $0x1d00] sm:$0xff]
    %v1061 = vld [vmem:[#allocation7 + $0x1d08] sm:$0xff]
    %v1062 = vld [vmem:[#allocation7 + $0x1d10] sm:$0xff]
    %v1063 = vld [vmem:[#allocation7 + $0x1d18] sm:$0xff]
    %v1064 = vld [vmem:[#allocation7 + $0x1d20] sm:$0xff]
    %v1065 = vld [vmem:[#allocation7 + $0x1d28] sm:$0xff]
    %v1066 = vld [vmem:[#allocation7 + $0x1d30] sm:$0xff]
    %v1067 = vld [vmem:[#allocation7 + $0x1d38] sm:$0xff]
    %v1068 = vld [vmem:[#allocation7 + $0x1d40] sm:$0xff]
    %v1069 = vld [vmem:[#allocation7 + $0x1d48] sm:$0xff]
    %v1070 = vld [vmem:[#allocation7 + $0x1d50] sm:$0xff]
    %v1071 = vld [vmem:[#allocation7 + $0x1d58] sm:$0xff]
    %v1072 = vld [vmem:[#allocation7 + $0x1d60] sm:$0xff]
    %v1073 = vld [vmem:[#allocation7 + $0x1d68] sm:$0xff]
    %v1074 = vld [vmem:[#allocation7 + $0x1d70] sm:$0xff]
    %v1075 = vld [vmem:[#allocation7 + $0x1d78] sm:$0xff]
    %v1076 = vld [vmem:[#allocation7 + $0x1d80] sm:$0xff]
    %v1077 = vld [vmem:[#allocation7 + $0x1d88] sm:$0xff]
    %v1078 = vld [vmem:[#allocation7 + $0x1d90] sm:$0xff]
    %v1079 = vld [vmem:[#allocation7 + $0x1d98] sm:$0xff]
    %v1080 = vld [vmem:[#allocation7 + $0x1da0] sm:$0xff]
    %v1081 = vld [vmem:[#allocation7 + $0x1da8] sm:$0xff]
    %v1082 = vld [vmem:[#allocation7 + $0x1db0] sm:$0xff]
    %v1083 = vld [vmem:[#allocation7 + $0x1db8] sm:$0xff]
    %v1084 = vld [vmem:[#allocation7 + $0x1dc0] sm:$0xff]
    %v1085 = vld [vmem:[#allocation7 + $0x1dc8] sm:$0xff]
    %v1086 = vld [vmem:[#allocation7 + $0x1dd0] sm:$0xff]
    %v1087 = vld [vmem:[#allocation7 + $0x1dd8] sm:$0xff]
    %v1088 = vld [vmem:[#allocation7 + $0x1de0] sm:$0xff]
    %v1089 = vld [vmem:[#allocation7 + $0x1de8] sm:$0xff]
    %v1090 = vld [vmem:[#allocation7 + $0x1df0] sm:$0xff]
    %v1091 = vld [vmem:[#allocation7 + $0x1df8] sm:$0xff]
    %v1092 = vld [vmem:[#allocation7 + $0x1e00] sm:$0xff]
    %v1093 = vld [vmem:[#allocation7 + $0x1e08] sm:$0xff]
    %v1094 = vld [vmem:[#allocation7 + $0x1e10] sm:$0xff]
    %v1095 = vld [vmem:[#allocation7 + $0x1e18] sm:$0xff]
    %v1096 = vld [vmem:[#allocation7 + $0x1e20] sm:$0xff]
    %v1097 = vld [vmem:[#allocation7 + $0x1e28] sm:$0xff]
    %v1098 = vld [vmem:[#allocation7 + $0x1e30] sm:$0xff]
    %v1099 = vld [vmem:[#allocation7 + $0x1e38] sm:$0xff]
    %v1100 = vld [vmem:[#allocation7 + $0x1e40] sm:$0xff]
    %v1101 = vld [vmem:[#allocation7 + $0x1e48] sm:$0xff]
    %v1102 = vld [vmem:[#allocation7 + $0x1e50] sm:$0xff]
    %v1103 = vld [vmem:[#allocation7 + $0x1e58] sm:$0xff]
    %v1104 = vld [vmem:[#allocation7 + $0x1e60] sm:$0xff]
    %v1105 = vld [vmem:[#allocation7 + $0x1e68] sm:$0xff]
    %v1106 = vld [vmem:[#allocation7 + $0x1e70] sm:$0xff]
    %v1107 = vld [vmem:[#allocation7 + $0x1e78] sm:$0xff]
    %v1108 = vld [vmem:[#allocation7 + $0x1e80] sm:$0xff]
    %v1109 = vld [vmem:[#allocation7 + $0x1e88] sm:$0xff]
    %v1110 = vld [vmem:[#allocation7 + $0x1e90] sm:$0xff]
    %v1111 = vld [vmem:[#allocation7 + $0x1e98] sm:$0xff]
    %v1112 = vld [vmem:[#allocation7 + $0x1ea0] sm:$0xff]
    %v1113 = vld [vmem:[#allocation7 + $0x1ea8] sm:$0xff]
    %v1114 = vld [vmem:[#allocation7 + $0x1eb0] sm:$0xff]
    %v1115 = vld [vmem:[#allocation7 + $0x1eb8] sm:$0xff]
    %v1116 = vld [vmem:[#allocation7 + $0x1ec0] sm:$0xff]
    %v1117 = vld [vmem:[#allocation7 + $0x1ec8] sm:$0xff]
    %v1118 = vld [vmem:[#allocation7 + $0x1ed0] sm:$0xff]
    %v1119 = vld [vmem:[#allocation7 + $0x1ed8] sm:$0xff]
    %v1120 = vld [vmem:[#allocation7 + $0x1ee0] sm:$0xff]
    %v1121 = vld [vmem:[#allocation7 + $0x1ee8] sm:$0xff]
    %v1122 = vld [vmem:[#allocation7 + $0x1ef0] sm:$0xff]
    %v1123 = vld [vmem:[#allocation7 + $0x1ef8] sm:$0xff]
    %v1124 = vld [vmem:[#allocation7 + $0x1f00] sm:$0xff]
    %v1125 = vld [vmem:[#allocation7 + $0x1f08] sm:$0xff]
    %v1126 = vld [vmem:[#allocation7 + $0x1f10] sm:$0xff]
    %v1127 = vld [vmem:[#allocation7 + $0x1f18] sm:$0xff]
    %v1128 = vld [vmem:[#allocation7 + $0x1f20] sm:$0xff]
    %v1129 = vld [vmem:[#allocation7 + $0x1f28] sm:$0xff]
    %v1130 = vld [vmem:[#allocation7 + $0x1f30] sm:$0xff]
    %v1131 = vld [vmem:[#allocation7 + $0x1f38] sm:$0xff]
    %v1132 = vld [vmem:[#allocation7 + $0x1f40] sm:$0xff]
    %v1133 = vld [vmem:[#allocation7 + $0x1f48] sm:$0xff]
    %v1134 = vld [vmem:[#allocation7 + $0x1f50] sm:$0xff]
    %v1135 = vld [vmem:[#allocation7 + $0x1f58] sm:$0xff]
    %v1136 = vld [vmem:[#allocation7 + $0x1f60] sm:$0xff]
    %v1137 = vld [vmem:[#allocation7 + $0x1f68] sm:$0xff]
    %v1138 = vld [vmem:[#allocation7 + $0x1f70] sm:$0xff]
    %v1139 = vld [vmem:[#allocation7 + $0x1f78] sm:$0xff]
    %v1140 = vld [vmem:[#allocation7 + $0x1f80] sm:$0xff]
    %v1141 = vld [vmem:[#allocation7 + $0x1f88] sm:$0xff]
    %v1142 = vld [vmem:[#allocation7 + $0x1f90] sm:$0xff]
    %v1143 = vld [vmem:[#allocation7 + $0x1f98] sm:$0xff]
    %v1144 = vld [vmem:[#allocation7 + $0x1fa0] sm:$0xff]
    %v1145 = vld [vmem:[#allocation7 + $0x1fa8] sm:$0xff]
    %v1146 = vld [vmem:[#allocation7 + $0x1fb0] sm:$0xff]
    %v1147 = vld [vmem:[#allocation7 + $0x1fb8] sm:$0xff]
    %v1148 = vld [vmem:[#allocation7 + $0x1fc0] sm:$0xff]
    %v1149 = vld [vmem:[#allocation7 + $0x1fc8] sm:$0xff]
    %v1150 = vld [vmem:[#allocation7 + $0x1fd0] sm:$0xff]
    %v1151 = vld [vmem:[#allocation7 + $0x1fd8] sm:$0xff]
    %v1152 = vld [vmem:[#allocation7 + $0x1fe0] sm:$0xff]
    %v1153 = vld [vmem:[#allocation7 + $0x1fe8] sm:$0xff]
    %v1154 = vld [vmem:[#allocation7 + $0x1ff0] sm:$0xff]
    %v1155 = vld [vmem:[#allocation7 + $0x1ff8] sm:$0xff]
    %v1156 = vld [vmem:[#allocation7 + $0x2000] sm:$0xff]
    %v1157 = vld [vmem:[#allocation7 + $0x2008] sm:$0xff]
    %v1158 = vld [vmem:[#allocation7 + $0x2010] sm:$0xff]
    %v1159 = vld [vmem:[#allocation7 + $0x2018] sm:$0xff]
    %v1160 = vld [vmem:[#allocation7 + $0x2020] sm:$0xff]
    %v1161 = vld [vmem:[#allocation7 + $0x2028] sm:$0xff]
    %v1162 = vld [vmem:[#allocation7 + $0x2030] sm:$0xff]
    %v1163 = vld [vmem:[#allocation7 + $0x2038] sm:$0xff]
    %v1164 = vld [vmem:[#allocation7 + $0x2040] sm:$0xff]
    %v1165 = vld [vmem:[#allocation7 + $0x2048] sm:$0xff]
    %v1166 = vld [vmem:[#allocation7 + $0x2050] sm:$0xff]
    %v1167 = vld [vmem:[#allocation7 + $0x2058] sm:$0xff]
    %v1168 = vld [vmem:[#allocation7 + $0x2060] sm:$0xff]
    %v1169 = vld [vmem:[#allocation7 + $0x2068] sm:$0xff]
    %v1170 = vld [vmem:[#allocation7 + $0x2070] sm:$0xff]
    %v1171 = vld [vmem:[#allocation7 + $0x2078] sm:$0xff]
    %v1172 = vld [vmem:[#allocation7 + $0x2080] sm:$0xff]
    %v1173 = vld [vmem:[#allocation7 + $0x2088] sm:$0xff]
    %v1174 = vld [vmem:[#allocation7 + $0x2090] sm:$0xff]
    %v1175 = vld [vmem:[#allocation7 + $0x2098] sm:$0xff]
    %v1176 = vld [vmem:[#allocation7 + $0x20a0] sm:$0xff]
    %v1177 = vld [vmem:[#allocation7 + $0x20a8] sm:$0xff]
    %v1178 = vld [vmem:[#allocation7 + $0x20b0] sm:$0xff]
    %v1179 = vld [vmem:[#allocation7 + $0x20b8] sm:$0xff]
    %v1180 = vld [vmem:[#allocation7 + $0x20c0] sm:$0xff]
    %v1181 = vld [vmem:[#allocation7 + $0x20c8] sm:$0xff]
    %v1182 = vld [vmem:[#allocation7 + $0x20d0] sm:$0xff]
    %v1183 = vld [vmem:[#allocation7 + $0x20d8] sm:$0xff]
    %v1184 = vld [vmem:[#allocation7 + $0x20e0] sm:$0xff]
    %v1185 = vld [vmem:[#allocation7 + $0x20e8] sm:$0xff]
    %v1186 = vld [vmem:[#allocation7 + $0x20f0] sm:$0xff]
    %v1187 = vld [vmem:[#allocation7 + $0x20f8] sm:$0xff]
    %v1188 = vld [vmem:[#allocation7 + $0x2100] sm:$0xff]
    %v1189 = vld [vmem:[#allocation7 + $0x2108] sm:$0xff]
    %v1190 = vld [vmem:[#allocation7 + $0x2110] sm:$0xff]
    %v1191 = vld [vmem:[#allocation7 + $0x2118] sm:$0xff]
    %v1192 = vld [vmem:[#allocation7 + $0x2120] sm:$0xff]
    %v1193 = vld [vmem:[#allocation7 + $0x2128] sm:$0xff]
    %v1194 = vld [vmem:[#allocation7 + $0x2130] sm:$0xff]
    %v1195 = vld [vmem:[#allocation7 + $0x2138] sm:$0xff]
    %v1196 = vld [vmem:[#allocation7 + $0x2140] sm:$0xff]
    %v1197 = vld [vmem:[#allocation7 + $0x2148] sm:$0xff]
    %v1198 = vld [vmem:[#allocation7 + $0x2150] sm:$0xff]
    %v1199 = vld [vmem:[#allocation7 + $0x2158] sm:$0xff]
    %v1200 = vld [vmem:[#allocation7 + $0x2160] sm:$0xff]
    %v1201 = vld [vmem:[#allocation7 + $0x2168] sm:$0xff]
    %v1202 = vld [vmem:[#allocation7 + $0x2170] sm:$0xff]
    %v1203 = vld [vmem:[#allocation7 + $0x2178] sm:$0xff]
    %v1204 = vld [vmem:[#allocation7 + $0x2180] sm:$0xff]
    %v1205 = vld [vmem:[#allocation7 + $0x2188] sm:$0xff]
    %v1206 = vld [vmem:[#allocation7 + $0x2190] sm:$0xff]
    %v1207 = vld [vmem:[#allocation7 + $0x2198] sm:$0xff]
    %v1208 = vld [vmem:[#allocation7 + $0x21a0] sm:$0xff]
    %v1209 = vld [vmem:[#allocation7 + $0x21a8] sm:$0xff]
    %v1210 = vld [vmem:[#allocation7 + $0x21b0] sm:$0xff]
    %v1211 = vld [vmem:[#allocation7 + $0x21b8] sm:$0xff]
    %v1212 = vld [vmem:[#allocation7 + $0x21c0] sm:$0xff]
    %v1213 = vld [vmem:[#allocation7 + $0x21c8] sm:$0xff]
    %v1214 = vld [vmem:[#allocation7 + $0x21d0] sm:$0xff]
    %v1215 = vld [vmem:[#allocation7 + $0x21d8] sm:$0xff]
    %v1216 = vld [vmem:[#allocation7 + $0x21e0] sm:$0xff]
    %v1217 = vld [vmem:[#allocation7 + $0x21e8] sm:$0xff]
    %v1218 = vld [vmem:[#allocation7 + $0x21f0] sm:$0xff]
    %v1219 = vld [vmem:[#allocation7 + $0x21f8] sm:$0xff]
    %v1220 = vld [vmem:[#allocation7 + $0x2200] sm:$0xff]
    %v1221 = vld [vmem:[#allocation7 + $0x2208] sm:$0xff]
    %v1222 = vld [vmem:[#allocation7 + $0x2210] sm:$0xff]
    %v1223 = vld [vmem:[#allocation7 + $0x2218] sm:$0xff]
    %v1224 = vld [vmem:[#allocation7 + $0x2220] sm:$0xff]
    %v1225 = vld [vmem:[#allocation7 + $0x2228] sm:$0xff]
    %v1226 = vld [vmem:[#allocation7 + $0x2230] sm:$0xff]
    %v1227 = vld [vmem:[#allocation7 + $0x2238] sm:$0xff]
    %v1228 = vld [vmem:[#allocation7 + $0x2240] sm:$0xff]
    %v1229 = vld [vmem:[#allocation7 + $0x2248] sm:$0xff]
    %v1230 = vld [vmem:[#allocation7 + $0x2250] sm:$0xff]
    %v1231 = vld [vmem:[#allocation7 + $0x2258] sm:$0xff]
    %v1232 = vld [vmem:[#allocation7 + $0x2260] sm:$0xff]
    %v1233 = vld [vmem:[#allocation7 + $0x2268] sm:$0xff]
    %v1234 = vld [vmem:[#allocation7 + $0x2270] sm:$0xff]
    %v1235 = vld [vmem:[#allocation7 + $0x2278] sm:$0xff]
    %v1236 = vld [vmem:[#allocation7 + $0x2280] sm:$0xff]
    %v1237 = vld [vmem:[#allocation7 + $0x2288] sm:$0xff]
    %v1238 = vld [vmem:[#allocation7 + $0x2290] sm:$0xff]
    %v1239 = vld [vmem:[#allocation7 + $0x2298] sm:$0xff]
    %v1240 = vld [vmem:[#allocation7 + $0x22a0] sm:$0xff]
    %v1241 = vld [vmem:[#allocation7 + $0x22a8] sm:$0xff]
    %v1242 = vld [vmem:[#allocation7 + $0x22b0] sm:$0xff]
    %v1243 = vld [vmem:[#allocation7 + $0x22b8] sm:$0xff]
    %v1244 = vld [vmem:[#allocation7 + $0x22c0] sm:$0xff]
    %v1245 = vld [vmem:[#allocation7 + $0x22c8] sm:$0xff]
    %v1246 = vld [vmem:[#allocation7 + $0x22d0] sm:$0xff]
    %v1247 = vld [vmem:[#allocation7 + $0x22d8] sm:$0xff]
    %v1248 = vld [vmem:[#allocation7 + $0x22e0] sm:$0xff]
    %v1249 = vld [vmem:[#allocation7 + $0x22e8] sm:$0xff]
    %v1250 = vld [vmem:[#allocation7 + $0x22f0] sm:$0xff]
    %v1251 = vld [vmem:[#allocation7 + $0x22f8] sm:$0xff]
    %v1252 = vld [vmem:[#allocation7 + $0x2300] sm:$0xff]
    %v1253 = vld [vmem:[#allocation7 + $0x2308] sm:$0xff]
    %v1254 = vld [vmem:[#allocation7 + $0x2310] sm:$0xff]
    %v1255 = vld [vmem:[#allocation7 + $0x2318] sm:$0xff]
    %v1256 = vld [vmem:[#allocation7 + $0x2320] sm:$0xff]
    %v1257 = vld [vmem:[#allocation7 + $0x2328] sm:$0xff]
    %v1258 = vld [vmem:[#allocation7 + $0x2330] sm:$0xff]
    %v1259 = vld [vmem:[#allocation7 + $0x2338] sm:$0xff]
    %v1260 = vld [vmem:[#allocation7 + $0x2340] sm:$0xff]
    %v1261 = vld [vmem:[#allocation7 + $0x2348] sm:$0xff]
    %v1262 = vld [vmem:[#allocation7 + $0x2350] sm:$0xff]
    %v1263 = vld [vmem:[#allocation7 + $0x2358] sm:$0xff]
    %v1264 = vld [vmem:[#allocation7 + $0x2360] sm:$0xff]
    %v1265 = vld [vmem:[#allocation7 + $0x2368] sm:$0xff]
    %v1266 = vld [vmem:[#allocation7 + $0x2370] sm:$0xff]
    %v1267 = vld [vmem:[#allocation7 + $0x2378] sm:$0xff]
    %v1268 = vld [vmem:[#allocation7 + $0x2380] sm:$0xff]
    %v1269 = vld [vmem:[#allocation7 + $0x2388] sm:$0xff]
    %v1270 = vld [vmem:[#allocation7 + $0x2390] sm:$0xff]
    %v1271 = vld [vmem:[#allocation7 + $0x2398] sm:$0xff]
    %v1272 = vld [vmem:[#allocation7 + $0x23a0] sm:$0xff]
    %v1273 = vld [vmem:[#allocation7 + $0x23a8] sm:$0xff]
    %v1274 = vld [vmem:[#allocation7 + $0x23b0] sm:$0xff]
    %v1275 = vld [vmem:[#allocation7 + $0x23b8] sm:$0xff]
    %v1276 = vld [vmem:[#allocation7 + $0x23c0] sm:$0xff]
    %v1277 = vld [vmem:[#allocation7 + $0x23c8] sm:$0xff]
    %v1278 = vld [vmem:[#allocation7 + $0x23d0] sm:$0xff]
    %v1279 = vld [vmem:[#allocation7 + $0x23d8] sm:$0xff]
    %v1280 = vld [vmem:[#allocation7 + $0x23e0] sm:$0xff]
    %v1281 = vld [vmem:[#allocation7 + $0x23e8] sm:$0xff]
    %v1282 = vld [vmem:[#allocation7 + $0x23f0] sm:$0xff]
    %v1283 = vld [vmem:[#allocation7 + $0x23f8] sm:$0xff]
    %v1284 = vld [vmem:[#allocation7 + $0x2400] sm:$0xff]
    %v1285 = vld [vmem:[#allocation7 + $0x2408] sm:$0xff]
    %v1286 = vld [vmem:[#allocation7 + $0x2410] sm:$0xff]
    %v1287 = vld [vmem:[#allocation7 + $0x2418] sm:$0xff]
    %v1288 = vld [vmem:[#allocation7 + $0x2420] sm:$0xff]
    %v1289 = vld [vmem:[#allocation7 + $0x2428] sm:$0xff]
    %v1290 = vld [vmem:[#allocation7 + $0x2430] sm:$0xff]
    %v1291 = vld [vmem:[#allocation7 + $0x2438] sm:$0xff]
    %v1292 = vld [vmem:[#allocation7 + $0x2440] sm:$0xff]
    %v1293 = vld [vmem:[#allocation7 + $0x2448] sm:$0xff]
    %v1294 = vld [vmem:[#allocation7 + $0x2450] sm:$0xff]
    %v1295 = vld [vmem:[#allocation7 + $0x2458] sm:$0xff]
    %v1296 = vld [vmem:[#allocation7 + $0x2460] sm:$0xff]
    %v1297 = vld [vmem:[#allocation7 + $0x2468] sm:$0xff]
    %v1298 = vld [vmem:[#allocation7 + $0x2470] sm:$0xff]
    %v1299 = vld [vmem:[#allocation7 + $0x2478] sm:$0xff]
    %v1300 = vld [vmem:[#allocation7 + $0x2480] sm:$0xff]
    %v1301 = vld [vmem:[#allocation7 + $0x2488] sm:$0xff]
    %v1302 = vld [vmem:[#allocation7 + $0x2490] sm:$0xff]
    %v1303 = vld [vmem:[#allocation7 + $0x2498] sm:$0xff]
    %v1304 = vld [vmem:[#allocation7 + $0x24a0] sm:$0xff]
    %v1305 = vld [vmem:[#allocation7 + $0x24a8] sm:$0xff]
    %v1306 = vld [vmem:[#allocation7 + $0x24b0] sm:$0xff]
    %v1307 = vld [vmem:[#allocation7 + $0x24b8] sm:$0xff]
    %v1308 = vld [vmem:[#allocation7 + $0x24c0] sm:$0xff]
    %v1309 = vld [vmem:[#allocation7 + $0x24c8] sm:$0xff]
    %v1310 = vld [vmem:[#allocation7 + $0x24d0] sm:$0xff]
    %v1311 = vld [vmem:[#allocation7 + $0x24d8] sm:$0xff]
    %v1312 = vld [vmem:[#allocation7 + $0x24e0] sm:$0xff]
    %v1313 = vld [vmem:[#allocation7 + $0x24e8] sm:$0xff]
    %v1314 = vld [vmem:[#allocation7 + $0x24f0] sm:$0xff]
    %v1315 = vld [vmem:[#allocation7 + $0x24f8] sm:$0xff]
    %v1316 = vld [vmem:[#allocation7 + $0x2500] sm:$0xff]
    %v1317 = vld [vmem:[#allocation7 + $0x2508] sm:$0xff]
    %v1318 = vld [vmem:[#allocation7 + $0x2510] sm:$0xff]
    %v1319 = vld [vmem:[#allocation7 + $0x2518] sm:$0xff]
    %v1320 = vld [vmem:[#allocation7 + $0x2520] sm:$0xff]
    %v1321 = vld [vmem:[#allocation7 + $0x2528] sm:$0xff]
    %v1322 = vld [vmem:[#allocation7 + $0x2530] sm:$0xff]
    %v1323 = vld [vmem:[#allocation7 + $0x2538] sm:$0xff]
    %v1324 = vld [vmem:[#allocation7 + $0x2540] sm:$0xff]
    %v1325 = vld [vmem:[#allocation7 + $0x2548] sm:$0xff]
    %v1326 = vld [vmem:[#allocation7 + $0x2550] sm:$0xff]
    %v1327 = vld [vmem:[#allocation7 + $0x2558] sm:$0xff]
    %v1328 = vld [vmem:[#allocation7 + $0x2560] sm:$0xff]
    %v1329 = vld [vmem:[#allocation7 + $0x2568] sm:$0xff]
    %v1330 = vld [vmem:[#allocation7 + $0x2570] sm:$0xff]
    %v1331 = vld [vmem:[#allocation7 + $0x2578] sm:$0xff]
    %v1332 = vld [vmem:[#allocation7 + $0x2580] sm:$0xff]
    %v1333 = vld [vmem:[#allocation7 + $0x2588] sm:$0xff]
    %v1334 = vld [vmem:[#allocation7 + $0x2590] sm:$0xff]
    %v1335 = vld [vmem:[#allocation7 + $0x2598] sm:$0xff]
    %v1336 = vld [vmem:[#allocation7 + $0x25a0] sm:$0xff]
    %v1337 = vld [vmem:[#allocation7 + $0x25a8] sm:$0xff]
    %v1338 = vld [vmem:[#allocation7 + $0x25b0] sm:$0xff]
    %v1339 = vld [vmem:[#allocation7 + $0x25b8] sm:$0xff]
    %v1340 = vld [vmem:[#allocation7 + $0x25c0] sm:$0xff]
    %v1341 = vld [vmem:[#allocation7 + $0x25c8] sm:$0xff]
    %v1342 = vld [vmem:[#allocation7 + $0x25d0] sm:$0xff]
    %v1343 = vld [vmem:[#allocation7 + $0x25d8] sm:$0xff]
    %v1344 = vld [vmem:[#allocation7 + $0x25e0] sm:$0xff]
    %v1345 = vld [vmem:[#allocation7 + $0x25e8] sm:$0xff]
    %v1346 = vld [vmem:[#allocation7 + $0x25f0] sm:$0xff]
    %v1347 = vld [vmem:[#allocation7 + $0x25f8] sm:$0xff]
    %v1348 = vld [vmem:[#allocation7 + $0x2600] sm:$0xff]
    %v1349 = vld [vmem:[#allocation7 + $0x2608] sm:$0xff]
    %v1350 = vld [vmem:[#allocation7 + $0x2610] sm:$0xff]
    %v1351 = vld [vmem:[#allocation7 + $0x2618] sm:$0xff]
    %v1352 = vld [vmem:[#allocation7 + $0x2620] sm:$0xff]
    %v1353 = vld [vmem:[#allocation7 + $0x2628] sm:$0xff]
    %v1354 = vld [vmem:[#allocation7 + $0x2630] sm:$0xff]
    %v1355 = vld [vmem:[#allocation7 + $0x2638] sm:$0xff]
    %v1356 = vld [vmem:[#allocation7 + $0x2640] sm:$0xff]
    %v1357 = vld [vmem:[#allocation7 + $0x2648] sm:$0xff]
    %v1358 = vld [vmem:[#allocation7 + $0x2650] sm:$0xff]
    %v1359 = vld [vmem:[#allocation7 + $0x2658] sm:$0xff]
    %v1360 = vld [vmem:[#allocation7 + $0x2660] sm:$0xff]
    %v1361 = vld [vmem:[#allocation7 + $0x2668] sm:$0xff]
    %v1362 = vld [vmem:[#allocation7 + $0x2670] sm:$0xff]
    %v1363 = vld [vmem:[#allocation7 + $0x2678] sm:$0xff]
    %v1364 = vld [vmem:[#allocation7 + $0x2680] sm:$0xff]
    %v1365 = vld [vmem:[#allocation7 + $0x2688] sm:$0xff]
    %v1366 = vld [vmem:[#allocation7 + $0x2690] sm:$0xff]
    %v1367 = vld [vmem:[#allocation7 + $0x2698] sm:$0xff]
    %v1368 = vld [vmem:[#allocation7 + $0x26a0] sm:$0xff]
    %v1369 = vld [vmem:[#allocation7 + $0x26a8] sm:$0xff]
    %v1370 = vld [vmem:[#allocation7 + $0x26b0] sm:$0xff]
    %v1371 = vld [vmem:[#allocation7 + $0x26b8] sm:$0xff]
    %v1372 = vld [vmem:[#allocation7 + $0x26c0] sm:$0xff]
    %v1373 = vld [vmem:[#allocation7 + $0x26c8] sm:$0xff]
    %v1374 = vld [vmem:[#allocation7 + $0x26d0] sm:$0xff]
    %v1375 = vld [vmem:[#allocation7 + $0x26d8] sm:$0xff]
    %v1376 = vld [vmem:[#allocation7 + $0x26e0] sm:$0xff]
    %v1377 = vld [vmem:[#allocation7 + $0x26e8] sm:$0xff]
    %v1378 = vld [vmem:[#allocation7 + $0x26f0] sm:$0xff]
    %v1379 = vld [vmem:[#allocation7 + $0x26f8] sm:$0xff]
    %v1380 = vld [vmem:[#allocation7 + $0x2700] sm:$0xff]
    %v1381 = vld [vmem:[#allocation7 + $0x2708] sm:$0xff]
    %v1382 = vld [vmem:[#allocation7 + $0x2710] sm:$0xff]
    %v1383 = vld [vmem:[#allocation7 + $0x2718] sm:$0xff]
    %v1384 = vld [vmem:[#allocation7 + $0x2720] sm:$0xff]
    %v1385 = vld [vmem:[#allocation7 + $0x2728] sm:$0xff]
    %v1386 = vld [vmem:[#allocation7 + $0x2730] sm:$0xff]
    %v1387 = vld [vmem:[#allocation7 + $0x2738] sm:$0xff]
    %v1388 = vld [vmem:[#allocation7 + $0x2740] sm:$0xff]
    %v1389 = vld [vmem:[#allocation7 + $0x2748] sm:$0xff]
    %v1390 = vld [vmem:[#allocation7 + $0x2750] sm:$0xff]
    %v1391 = vld [vmem:[#allocation7 + $0x2758] sm:$0xff]
    %v1392 = vld [vmem:[#allocation7 + $0x2760] sm:$0xff]
    %v1393 = vld [vmem:[#allocation7 + $0x2768] sm:$0xff]
    %v1394 = vld [vmem:[#allocation7 + $0x2770] sm:$0xff]
    %v1395 = vld [vmem:[#allocation7 + $0x2778] sm:$0xff]
    %v1396 = vld [vmem:[#allocation7 + $0x2780] sm:$0xff]
    %v1397 = vld [vmem:[#allocation7 + $0x2788] sm:$0xff]
    %v1398 = vld [vmem:[#allocation7 + $0x2790] sm:$0xff]
    %v1399 = vld [vmem:[#allocation7 + $0x2798] sm:$0xff]
    %v1400 = vld [vmem:[#allocation7 + $0x27a0] sm:$0xff]
    %v1401 = vld [vmem:[#allocation7 + $0x27a8] sm:$0xff]
    %v1402 = vld [vmem:[#allocation7 + $0x27b0] sm:$0xff]
    %v1403 = vld [vmem:[#allocation7 + $0x27b8] sm:$0xff]
    %v1404 = vld [vmem:[#allocation7 + $0x27c0] sm:$0xff]
    %v1405 = vld [vmem:[#allocation7 + $0x27c8] sm:$0xff]
    %v1406 = vld [vmem:[#allocation7 + $0x27d0] sm:$0xff]
    %v1407 = vld [vmem:[#allocation7 + $0x27d8] sm:$0xff]
    %v1408 = vld [vmem:[#allocation7 + $0x27e0] sm:$0xff]
    %v1409 = vld [vmem:[#allocation7 + $0x27e8] sm:$0xff]
    %v1410 = vld [vmem:[#allocation7 + $0x27f0] sm:$0xff]
    %v1411 = vld [vmem:[#allocation7 + $0x27f8] sm:$0xff]
    %v1412 = vpack.c.bf16 %v130, %v130
    %v1413 = vpack.c.bf16 %v131, %v131
    %v1414 = vld [vmem:[#allocation9] sm:$0xff]
    %v1415 = vld [vmem:[#allocation9 + $0x8] sm:$0xff]
    %v1416 = vld [vmem:[#allocation9 + $0x10] sm:$0xff]
    %v1417 = vld [vmem:[#allocation9 + $0x18] sm:$0xff]
    %v1418 = vld [vmem:[#allocation9 + $0x20] sm:$0xff]
    %v1419 = vld [vmem:[#allocation9 + $0x28] sm:$0xff]
    %v1420 = vld [vmem:[#allocation9 + $0x30] sm:$0xff]
    %v1421 = vld [vmem:[#allocation9 + $0x38] sm:$0xff]
    %v1422 = vld [vmem:[#allocation9 + $0x40] sm:$0xff]
    %v1423 = vld [vmem:[#allocation9 + $0x48] sm:$0xff]
    %v1424 = vld [vmem:[#allocation9 + $0x50] sm:$0xff]
    %v1425 = vld [vmem:[#allocation9 + $0x58] sm:$0xff]
    %v1426 = vld [vmem:[#allocation9 + $0x60] sm:$0xff]
    %v1427 = vld [vmem:[#allocation9 + $0x68] sm:$0xff]
    %v1428 = vld [vmem:[#allocation9 + $0x70] sm:$0xff]
    %v1429 = vld [vmem:[#allocation9 + $0x78] sm:$0xff]
    %v1430 = vld [vmem:[#allocation9 + $0x80] sm:$0xff]
    %v1431 = vld [vmem:[#allocation9 + $0x88] sm:$0xff]
    %v1432 = vld [vmem:[#allocation9 + $0x90] sm:$0xff]
    %v1433 = vld [vmem:[#allocation9 + $0x98] sm:$0xff]
    %v1434 = vld [vmem:[#allocation9 + $0xa0] sm:$0xff]
    %v1435 = vld [vmem:[#allocation9 + $0xa8] sm:$0xff]
    %v1436 = vld [vmem:[#allocation9 + $0xb0] sm:$0xff]
    %v1437 = vld [vmem:[#allocation9 + $0xb8] sm:$0xff]
    %v1438 = vld [vmem:[#allocation9 + $0xc0] sm:$0xff]
    %v1439 = vld [vmem:[#allocation9 + $0xc8] sm:$0xff]
    %v1440 = vld [vmem:[#allocation9 + $0xd0] sm:$0xff]
    %v1441 = vld [vmem:[#allocation9 + $0xd8] sm:$0xff]
    %v1442 = vld [vmem:[#allocation9 + $0xe0] sm:$0xff]
    %v1443 = vld [vmem:[#allocation9 + $0xe8] sm:$0xff]
    %v1444 = vld [vmem:[#allocation9 + $0xf0] sm:$0xff]
    %v1445 = vld [vmem:[#allocation9 + $0xf8] sm:$0xff]
    %v1446 = vld [vmem:[#allocation9 + $0x100] sm:$0xff]
    %v1447 = vld [vmem:[#allocation9 + $0x108] sm:$0xff]
    %v1448 = vld [vmem:[#allocation9 + $0x110] sm:$0xff]
    %v1449 = vld [vmem:[#allocation9 + $0x118] sm:$0xff]
    %v1450 = vld [vmem:[#allocation9 + $0x120] sm:$0xff]
    %v1451 = vld [vmem:[#allocation9 + $0x128] sm:$0xff]
    %v1452 = vld [vmem:[#allocation9 + $0x130] sm:$0xff]
    %v1453 = vld [vmem:[#allocation9 + $0x138] sm:$0xff]
    %v1454 = vld [vmem:[#allocation9 + $0x140] sm:$0xff]
    %v1455 = vld [vmem:[#allocation9 + $0x148] sm:$0xff]
    %v1456 = vld [vmem:[#allocation9 + $0x150] sm:$0xff]
    %v1457 = vld [vmem:[#allocation9 + $0x158] sm:$0xff]
    %v1458 = vld [vmem:[#allocation9 + $0x160] sm:$0xff]
    %v1459 = vld [vmem:[#allocation9 + $0x168] sm:$0xff]
    %v1460 = vld [vmem:[#allocation9 + $0x170] sm:$0xff]
    %v1461 = vld [vmem:[#allocation9 + $0x178] sm:$0xff]
    %v1462 = vld [vmem:[#allocation9 + $0x180] sm:$0xff]
    %v1463 = vld [vmem:[#allocation9 + $0x188] sm:$0xff]
    %v1464 = vld [vmem:[#allocation9 + $0x190] sm:$0xff]
    %v1465 = vld [vmem:[#allocation9 + $0x198] sm:$0xff]
    %v1466 = vld [vmem:[#allocation9 + $0x1a0] sm:$0xff]
    %v1467 = vld [vmem:[#allocation9 + $0x1a8] sm:$0xff]
    %v1468 = vld [vmem:[#allocation9 + $0x1b0] sm:$0xff]
    %v1469 = vld [vmem:[#allocation9 + $0x1b8] sm:$0xff]
    %v1470 = vld [vmem:[#allocation9 + $0x1c0] sm:$0xff]
    %v1471 = vld [vmem:[#allocation9 + $0x1c8] sm:$0xff]
    %v1472 = vld [vmem:[#allocation9 + $0x1d0] sm:$0xff]
    %v1473 = vld [vmem:[#allocation9 + $0x1d8] sm:$0xff]
    %v1474 = vld [vmem:[#allocation9 + $0x1e0] sm:$0xff]
    %v1475 = vld [vmem:[#allocation9 + $0x1e8] sm:$0xff]
    %v1476 = vld [vmem:[#allocation9 + $0x1f0] sm:$0xff]
    %v1477 = vld [vmem:[#allocation9 + $0x1f8] sm:$0xff]
    %v1478 = vld [vmem:[#allocation9 + $0x200] sm:$0xff]
    %v1479 = vld [vmem:[#allocation9 + $0x208] sm:$0xff]
    %v1480 = vld [vmem:[#allocation9 + $0x210] sm:$0xff]
    %v1481 = vld [vmem:[#allocation9 + $0x218] sm:$0xff]
    %v1482 = vld [vmem:[#allocation9 + $0x220] sm:$0xff]
    %v1483 = vld [vmem:[#allocation9 + $0x228] sm:$0xff]
    %v1484 = vld [vmem:[#allocation9 + $0x230] sm:$0xff]
    %v1485 = vld [vmem:[#allocation9 + $0x238] sm:$0xff]
    %v1486 = vld [vmem:[#allocation9 + $0x240] sm:$0xff]
    %v1487 = vld [vmem:[#allocation9 + $0x248] sm:$0xff]
    %v1488 = vld [vmem:[#allocation9 + $0x250] sm:$0xff]
    %v1489 = vld [vmem:[#allocation9 + $0x258] sm:$0xff]
    %v1490 = vld [vmem:[#allocation9 + $0x260] sm:$0xff]
    %v1491 = vld [vmem:[#allocation9 + $0x268] sm:$0xff]
    %v1492 = vld [vmem:[#allocation9 + $0x270] sm:$0xff]
    %v1493 = vld [vmem:[#allocation9 + $0x278] sm:$0xff]
    %v1494 = vld [vmem:[#allocation9 + $0x280] sm:$0xff]
    %v1495 = vld [vmem:[#allocation9 + $0x288] sm:$0xff]
    %v1496 = vld [vmem:[#allocation9 + $0x290] sm:$0xff]
    %v1497 = vld [vmem:[#allocation9 + $0x298] sm:$0xff]
    %v1498 = vld [vmem:[#allocation9 + $0x2a0] sm:$0xff]
    %v1499 = vld [vmem:[#allocation9 + $0x2a8] sm:$0xff]
    %v1500 = vld [vmem:[#allocation9 + $0x2b0] sm:$0xff]
    %v1501 = vld [vmem:[#allocation9 + $0x2b8] sm:$0xff]
    %v1502 = vld [vmem:[#allocation9 + $0x2c0] sm:$0xff]
    %v1503 = vld [vmem:[#allocation9 + $0x2c8] sm:$0xff]
    %v1504 = vld [vmem:[#allocation9 + $0x2d0] sm:$0xff]
    %v1505 = vld [vmem:[#allocation9 + $0x2d8] sm:$0xff]
    %v1506 = vld [vmem:[#allocation9 + $0x2e0] sm:$0xff]
    %v1507 = vld [vmem:[#allocation9 + $0x2e8] sm:$0xff]
    %v1508 = vld [vmem:[#allocation9 + $0x2f0] sm:$0xff]
    %v1509 = vld [vmem:[#allocation9 + $0x2f8] sm:$0xff]
    %v1510 = vld [vmem:[#allocation9 + $0x300] sm:$0xff]
    %v1511 = vld [vmem:[#allocation9 + $0x308] sm:$0xff]
    %v1512 = vld [vmem:[#allocation9 + $0x310] sm:$0xff]
    %v1513 = vld [vmem:[#allocation9 + $0x318] sm:$0xff]
    %v1514 = vld [vmem:[#allocation9 + $0x320] sm:$0xff]
    %v1515 = vld [vmem:[#allocation9 + $0x328] sm:$0xff]
    %v1516 = vld [vmem:[#allocation9 + $0x330] sm:$0xff]
    %v1517 = vld [vmem:[#allocation9 + $0x338] sm:$0xff]
    %v1518 = vld [vmem:[#allocation9 + $0x340] sm:$0xff]
    %v1519 = vld [vmem:[#allocation9 + $0x348] sm:$0xff]
    %v1520 = vld [vmem:[#allocation9 + $0x350] sm:$0xff]
    %v1521 = vld [vmem:[#allocation9 + $0x358] sm:$0xff]
    %v1522 = vld [vmem:[#allocation9 + $0x360] sm:$0xff]
    %v1523 = vld [vmem:[#allocation9 + $0x368] sm:$0xff]
    %v1524 = vld [vmem:[#allocation9 + $0x370] sm:$0xff]
    %v1525 = vld [vmem:[#allocation9 + $0x378] sm:$0xff]
    %v1526 = vld [vmem:[#allocation9 + $0x380] sm:$0xff]
    %v1527 = vld [vmem:[#allocation9 + $0x388] sm:$0xff]
    %v1528 = vld [vmem:[#allocation9 + $0x390] sm:$0xff]
    %v1529 = vld [vmem:[#allocation9 + $0x398] sm:$0xff]
    %v1530 = vld [vmem:[#allocation9 + $0x3a0] sm:$0xff]
    %v1531 = vld [vmem:[#allocation9 + $0x3a8] sm:$0xff]
    %v1532 = vld [vmem:[#allocation9 + $0x3b0] sm:$0xff]
    %v1533 = vld [vmem:[#allocation9 + $0x3b8] sm:$0xff]
    %v1534 = vld [vmem:[#allocation9 + $0x3c0] sm:$0xff]
    %v1535 = vld [vmem:[#allocation9 + $0x3c8] sm:$0xff]
    %v1536 = vld [vmem:[#allocation9 + $0x3d0] sm:$0xff]
    %v1537 = vld [vmem:[#allocation9 + $0x3d8] sm:$0xff]
    %v1538 = vld [vmem:[#allocation9 + $0x3e0] sm:$0xff]
    %v1539 = vld [vmem:[#allocation9 + $0x3e8] sm:$0xff]
    %v1540 = vld [vmem:[#allocation9 + $0x3f0] sm:$0xff]
    %v1541 = vld [vmem:[#allocation9 + $0x3f8] sm:$0xff]
    %v1670 = vunpack.c.l.b16 %v1414
    %v1671 = vunpack.c.h.b16 %v1414
    %v1672 = vunpack.c.l.b16 %v1415
    %v1673 = vunpack.c.h.b16 %v1415
    %v1674 = vunpack.c.l.b16 %v1416
    %v1675 = vunpack.c.h.b16 %v1416
    %v1676 = vunpack.c.l.b16 %v1417
    %v1677 = vunpack.c.h.b16 %v1417
    %v1678 = vunpack.c.l.b16 %v1418
    %v1679 = vunpack.c.h.b16 %v1418
    %v1680 = vunpack.c.l.b16 %v1419
    %v1681 = vunpack.c.h.b16 %v1419
    %v1682 = vunpack.c.l.b16 %v1420
    %v1683 = vunpack.c.h.b16 %v1420
    %v1684 = vunpack.c.l.b16 %v1421
    %v1685 = vunpack.c.h.b16 %v1421
    %v1686 = vunpack.c.l.b16 %v1422
    %v1687 = vunpack.c.h.b16 %v1422
    %v1688 = vunpack.c.l.b16 %v1423
    %v1689 = vunpack.c.h.b16 %v1423
    %v1690 = vunpack.c.l.b16 %v1424
    %v1691 = vunpack.c.h.b16 %v1424
    %v1692 = vunpack.c.l.b16 %v1425
    %v1693 = vunpack.c.h.b16 %v1425
    %v1694 = vunpack.c.l.b16 %v1426
    %v1695 = vunpack.c.h.b16 %v1426
    %v1696 = vunpack.c.l.b16 %v1427
    %v1697 = vunpack.c.h.b16 %v1427
    %v1698 = vunpack.c.l.b16 %v1428
    %v1699 = vunpack.c.h.b16 %v1428
    %v1700 = vunpack.c.l.b16 %v1429
    %v1701 = vunpack.c.h.b16 %v1429
    %v1702 = vunpack.c.l.b16 %v1430
    %v1703 = vunpack.c.h.b16 %v1430
    %v1704 = vunpack.c.l.b16 %v1431
    %v1705 = vunpack.c.h.b16 %v1431
    %v1706 = vunpack.c.l.b16 %v1432
    %v1707 = vunpack.c.h.b16 %v1432
    %v1708 = vunpack.c.l.b16 %v1433
    %v1709 = vunpack.c.h.b16 %v1433
    %v1710 = vunpack.c.l.b16 %v1434
    %v1711 = vunpack.c.h.b16 %v1434
    %v1712 = vunpack.c.l.b16 %v1435
    %v1713 = vunpack.c.h.b16 %v1435
    %v1714 = vunpack.c.l.b16 %v1436
    %v1715 = vunpack.c.h.b16 %v1436
    %v1716 = vunpack.c.l.b16 %v1437
    %v1717 = vunpack.c.h.b16 %v1437
    %v1718 = vunpack.c.l.b16 %v1438
    %v1719 = vunpack.c.h.b16 %v1438
    %v1720 = vunpack.c.l.b16 %v1439
    %v1721 = vunpack.c.h.b16 %v1439
    %v1722 = vunpack.c.l.b16 %v1440
    %v1723 = vunpack.c.h.b16 %v1440
    %v1724 = vunpack.c.l.b16 %v1441
    %v1725 = vunpack.c.h.b16 %v1441
    %v1726 = vunpack.c.l.b16 %v1442
    %v1727 = vunpack.c.h.b16 %v1442
    %v1728 = vunpack.c.l.b16 %v1443
    %v1729 = vunpack.c.h.b16 %v1443
    %v1730 = vunpack.c.l.b16 %v1444
    %v1731 = vunpack.c.h.b16 %v1444
    %v1732 = vunpack.c.l.b16 %v1445
    %v1733 = vunpack.c.h.b16 %v1445
    %v1734 = vunpack.c.l.b16 %v1446
    %v1735 = vunpack.c.h.b16 %v1446
    %v1736 = vunpack.c.l.b16 %v1447
    %v1737 = vunpack.c.h.b16 %v1447
    %v1738 = vunpack.c.l.b16 %v1448
    %v1739 = vunpack.c.h.b16 %v1448
    %v1740 = vunpack.c.l.b16 %v1449
    %v1741 = vunpack.c.h.b16 %v1449
    %v1742 = vunpack.c.l.b16 %v1450
    %v1743 = vunpack.c.h.b16 %v1450
    %v1744 = vunpack.c.l.b16 %v1451
    %v1745 = vunpack.c.h.b16 %v1451
    %v1746 = vunpack.c.l.b16 %v1452
    %v1747 = vunpack.c.h.b16 %v1452
    %v1748 = vunpack.c.l.b16 %v1453
    %v1749 = vunpack.c.h.b16 %v1453
    %v1750 = vunpack.c.l.b16 %v1454
    %v1751 = vunpack.c.h.b16 %v1454
    %v1752 = vunpack.c.l.b16 %v1455
    %v1753 = vunpack.c.h.b16 %v1455
    %v1754 = vunpack.c.l.b16 %v1456
    %v1755 = vunpack.c.h.b16 %v1456
    %v1756 = vunpack.c.l.b16 %v1457
    %v1757 = vunpack.c.h.b16 %v1457
    %v1758 = vunpack.c.l.b16 %v1458
    %v1759 = vunpack.c.h.b16 %v1458
    %v1760 = vunpack.c.l.b16 %v1459
    %v1761 = vunpack.c.h.b16 %v1459
    %v1762 = vunpack.c.l.b16 %v1460
    %v1763 = vunpack.c.h.b16 %v1460
    %v1764 = vunpack.c.l.b16 %v1461
    %v1765 = vunpack.c.h.b16 %v1461
    %v1766 = vunpack.c.l.b16 %v1462
    %v1767 = vunpack.c.h.b16 %v1462
    %v1768 = vunpack.c.l.b16 %v1463
    %v1769 = vunpack.c.h.b16 %v1463
    %v1770 = vunpack.c.l.b16 %v1464
    %v1771 = vunpack.c.h.b16 %v1464
    %v1772 = vunpack.c.l.b16 %v1465
    %v1773 = vunpack.c.h.b16 %v1465
    %v1774 = vunpack.c.l.b16 %v1466
    %v1775 = vunpack.c.h.b16 %v1466
    %v1776 = vunpack.c.l.b16 %v1467
    %v1777 = vunpack.c.h.b16 %v1467
    %v1778 = vunpack.c.l.b16 %v1468
    %v1779 = vunpack.c.h.b16 %v1468
    %v1780 = vunpack.c.l.b16 %v1469
    %v1781 = vunpack.c.h.b16 %v1469
    %v1782 = vunpack.c.l.b16 %v1470
    %v1783 = vunpack.c.h.b16 %v1470
    %v1784 = vunpack.c.l.b16 %v1471
    %v1785 = vunpack.c.h.b16 %v1471
    %v1786 = vunpack.c.l.b16 %v1472
    %v1787 = vunpack.c.h.b16 %v1472
    %v1788 = vunpack.c.l.b16 %v1473
    %v1789 = vunpack.c.h.b16 %v1473
    %v1790 = vunpack.c.l.b16 %v1474
    %v1791 = vunpack.c.h.b16 %v1474
    %v1792 = vunpack.c.l.b16 %v1475
    %v1793 = vunpack.c.h.b16 %v1475
    %v1794 = vunpack.c.l.b16 %v1476
    %v1795 = vunpack.c.h.b16 %v1476
    %v1796 = vunpack.c.l.b16 %v1477
    %v1797 = vunpack.c.h.b16 %v1477
    %v1798 = vunpack.c.l.b16 %v1478
    %v1799 = vunpack.c.h.b16 %v1478
    %v1800 = vunpack.c.l.b16 %v1479
    %v1801 = vunpack.c.h.b16 %v1479
    %v1802 = vunpack.c.l.b16 %v1480
    %v1803 = vunpack.c.h.b16 %v1480
    %v1804 = vunpack.c.l.b16 %v1481
    %v1805 = vunpack.c.h.b16 %v1481
    %v1806 = vunpack.c.l.b16 %v1482
    %v1807 = vunpack.c.h.b16 %v1482
    %v1808 = vunpack.c.l.b16 %v1483
    %v1809 = vunpack.c.h.b16 %v1483
    %v1810 = vunpack.c.l.b16 %v1484
    %v1811 = vunpack.c.h.b16 %v1484
    %v1812 = vunpack.c.l.b16 %v1485
    %v1813 = vunpack.c.h.b16 %v1485
    %v1814 = vunpack.c.l.b16 %v1486
    %v1815 = vunpack.c.h.b16 %v1486
    %v1816 = vunpack.c.l.b16 %v1487
    %v1817 = vunpack.c.h.b16 %v1487
    %v1818 = vunpack.c.l.b16 %v1488
    %v1819 = vunpack.c.h.b16 %v1488
    %v1820 = vunpack.c.l.b16 %v1489
    %v1821 = vunpack.c.h.b16 %v1489
    %v1822 = vunpack.c.l.b16 %v1490
    %v1823 = vunpack.c.h.b16 %v1490
    %v1824 = vunpack.c.l.b16 %v1491
    %v1825 = vunpack.c.h.b16 %v1491
    %v1826 = vunpack.c.l.b16 %v1492
    %v1827 = vunpack.c.h.b16 %v1492
    %v1828 = vunpack.c.l.b16 %v1493
    %v1829 = vunpack.c.h.b16 %v1493
    %v1830 = vunpack.c.l.b16 %v1494
    %v1831 = vunpack.c.h.b16 %v1494
    %v1832 = vunpack.c.l.b16 %v1495
    %v1833 = vunpack.c.h.b16 %v1495
    %v1834 = vunpack.c.l.b16 %v1496
    %v1835 = vunpack.c.h.b16 %v1496
    %v1836 = vunpack.c.l.b16 %v1497
    %v1837 = vunpack.c.h.b16 %v1497
    %v1838 = vunpack.c.l.b16 %v1498
    %v1839 = vunpack.c.h.b16 %v1498
    %v1840 = vunpack.c.l.b16 %v1499
    %v1841 = vunpack.c.h.b16 %v1499
    %v1842 = vunpack.c.l.b16 %v1500
    %v1843 = vunpack.c.h.b16 %v1500
    %v1844 = vunpack.c.l.b16 %v1501
    %v1845 = vunpack.c.h.b16 %v1501
    %v1846 = vunpack.c.l.b16 %v1502
    %v1847 = vunpack.c.h.b16 %v1502
    %v1848 = vunpack.c.l.b16 %v1503
    %v1849 = vunpack.c.h.b16 %v1503
    %v1850 = vunpack.c.l.b16 %v1504
    %v1851 = vunpack.c.h.b16 %v1504
    %v1852 = vunpack.c.l.b16 %v1505
    %v1853 = vunpack.c.h.b16 %v1505
    %v1854 = vunpack.c.l.b16 %v1506
    %v1855 = vunpack.c.h.b16 %v1506
    %v1856 = vunpack.c.l.b16 %v1507
    %v1857 = vunpack.c.h.b16 %v1507
    %v1858 = vunpack.c.l.b16 %v1508
    %v1859 = vunpack.c.h.b16 %v1508
    %v1860 = vunpack.c.l.b16 %v1509
    %v1861 = vunpack.c.h.b16 %v1509
    %v1862 = vunpack.c.l.b16 %v1510
    %v1863 = vunpack.c.h.b16 %v1510
    %v1864 = vunpack.c.l.b16 %v1511
    %v1865 = vunpack.c.h.b16 %v1511
    %v1866 = vunpack.c.l.b16 %v1512
    %v1867 = vunpack.c.h.b16 %v1512
    %v1868 = vunpack.c.l.b16 %v1513
    %v1869 = vunpack.c.h.b16 %v1513
    %v1870 = vunpack.c.l.b16 %v1514
    %v1871 = vunpack.c.h.b16 %v1514
    %v1872 = vunpack.c.l.b16 %v1515
    %v1873 = vunpack.c.h.b16 %v1515
    %v1874 = vunpack.c.l.b16 %v1516
    %v1875 = vunpack.c.h.b16 %v1516
    %v1876 = vunpack.c.l.b16 %v1517
    %v1877 = vunpack.c.h.b16 %v1517
    %v1878 = vunpack.c.l.b16 %v1518
    %v1879 = vunpack.c.h.b16 %v1518
    %v1880 = vunpack.c.l.b16 %v1519
    %v1881 = vunpack.c.h.b16 %v1519
    %v1882 = vunpack.c.l.b16 %v1520
    %v1883 = vunpack.c.h.b16 %v1520
    %v1884 = vunpack.c.l.b16 %v1521
    %v1885 = vunpack.c.h.b16 %v1521
    %v1886 = vunpack.c.l.b16 %v1522
    %v1887 = vunpack.c.h.b16 %v1522
    %v1888 = vunpack.c.l.b16 %v1523
    %v1889 = vunpack.c.h.b16 %v1523
    %v1890 = vunpack.c.l.b16 %v1524
    %v1891 = vunpack.c.h.b16 %v1524
    %v1892 = vunpack.c.l.b16 %v1525
    %v1893 = vunpack.c.h.b16 %v1525
    %v1894 = vunpack.c.l.b16 %v1526
    %v1895 = vunpack.c.h.b16 %v1526
    %v1896 = vunpack.c.l.b16 %v1527
    %v1897 = vunpack.c.h.b16 %v1527
    %v1898 = vunpack.c.l.b16 %v1528
    %v1899 = vunpack.c.h.b16 %v1528
    %v1900 = vunpack.c.l.b16 %v1529
    %v1901 = vunpack.c.h.b16 %v1529
    %v1902 = vunpack.c.l.b16 %v1530
    %v1903 = vunpack.c.h.b16 %v1530
    %v1904 = vunpack.c.l.b16 %v1531
    %v1905 = vunpack.c.h.b16 %v1531
    %v1906 = vunpack.c.l.b16 %v1532
    %v1907 = vunpack.c.h.b16 %v1532
    %v1908 = vunpack.c.l.b16 %v1533
    %v1909 = vunpack.c.h.b16 %v1533
    %v1910 = vunpack.c.l.b16 %v1534
    %v1911 = vunpack.c.h.b16 %v1534
    %v1912 = vunpack.c.l.b16 %v1535
    %v1913 = vunpack.c.h.b16 %v1535
    %v1914 = vunpack.c.l.b16 %v1536
    %v1915 = vunpack.c.h.b16 %v1536
    %v1916 = vunpack.c.l.b16 %v1537
    %v1917 = vunpack.c.h.b16 %v1537
    %v1918 = vunpack.c.l.b16 %v1538
    %v1919 = vunpack.c.h.b16 %v1538
    %v1920 = vunpack.c.l.b16 %v1539
    %v1921 = vunpack.c.h.b16 %v1539
    %v1922 = vunpack.c.l.b16 %v1540
    %v1923 = vunpack.c.h.b16 %v1540
    %v1924 = vunpack.c.l.b16 %v1541
    %v1925 = vunpack.c.h.b16 %v1541
    %v1926 = vpack.c.b16 %v1678, %v1670
    %v1927 = vpack.c.b16 %v1679, %v1671
    %v1928 = vpack.c.b16 %v1680, %v1672
    %v1929 = vpack.c.b16 %v1681, %v1673
    %v1930 = vpack.c.b16 %v1682, %v1674
    %v1931 = vpack.c.b16 %v1683, %v1675
    %v1932 = vpack.c.b16 %v1684, %v1676
    %v1933 = vpack.c.b16 %v1685, %v1677
    %v1934 = vpack.c.b16 %v1694, %v1686
    %v1935 = vpack.c.b16 %v1695, %v1687
    %v1936 = vpack.c.b16 %v1696, %v1688
    %v1937 = vpack.c.b16 %v1697, %v1689
    %v1938 = vpack.c.b16 %v1698, %v1690
    %v1939 = vpack.c.b16 %v1699, %v1691
    %v1940 = vpack.c.b16 %v1700, %v1692
    %v1941 = vpack.c.b16 %v1701, %v1693
    %v1942 = vpack.c.b16 %v1710, %v1702
    %v1943 = vpack.c.b16 %v1711, %v1703
    %v1944 = vpack.c.b16 %v1712, %v1704
    %v1945 = vpack.c.b16 %v1713, %v1705
    %v1946 = vpack.c.b16 %v1714, %v1706
    %v1947 = vpack.c.b16 %v1715, %v1707
    %v1948 = vpack.c.b16 %v1716, %v1708
    %v1949 = vpack.c.b16 %v1717, %v1709
    %v1950 = vpack.c.b16 %v1726, %v1718
    %v1951 = vpack.c.b16 %v1727, %v1719
    %v1952 = vpack.c.b16 %v1728, %v1720
    %v1953 = vpack.c.b16 %v1729, %v1721
    %v1954 = vpack.c.b16 %v1730, %v1722
    %v1955 = vpack.c.b16 %v1731, %v1723
    %v1956 = vpack.c.b16 %v1732, %v1724
    %v1957 = vpack.c.b16 %v1733, %v1725
    %v1958 = vpack.c.b16 %v1742, %v1734
    %v1959 = vpack.c.b16 %v1743, %v1735
    %v1960 = vpack.c.b16 %v1744, %v1736
    %v1961 = vpack.c.b16 %v1745, %v1737
    %v1962 = vpack.c.b16 %v1746, %v1738
    %v1963 = vpack.c.b16 %v1747, %v1739
    %v1964 = vpack.c.b16 %v1748, %v1740
    %v1965 = vpack.c.b16 %v1749, %v1741
    %v1966 = vpack.c.b16 %v1758, %v1750
    %v1967 = vpack.c.b16 %v1759, %v1751
    %v1968 = vpack.c.b16 %v1760, %v1752
    %v1969 = vpack.c.b16 %v1761, %v1753
    %v1970 = vpack.c.b16 %v1762, %v1754
    %v1971 = vpack.c.b16 %v1763, %v1755
    %v1972 = vpack.c.b16 %v1764, %v1756
    %v1973 = vpack.c.b16 %v1765, %v1757
    %v1974 = vpack.c.b16 %v1774, %v1766
    %v1975 = vpack.c.b16 %v1775, %v1767
    %v1976 = vpack.c.b16 %v1776, %v1768
    %v1977 = vpack.c.b16 %v1777, %v1769
    %v1978 = vpack.c.b16 %v1778, %v1770
    %v1979 = vpack.c.b16 %v1779, %v1771
    %v1980 = vpack.c.b16 %v1780, %v1772
    %v1981 = vpack.c.b16 %v1781, %v1773
    %v1982 = vpack.c.b16 %v1790, %v1782
    %v1983 = vpack.c.b16 %v1791, %v1783
    %v1984 = vpack.c.b16 %v1792, %v1784
    %v1985 = vpack.c.b16 %v1793, %v1785
    %v1986 = vpack.c.b16 %v1794, %v1786
    %v1987 = vpack.c.b16 %v1795, %v1787
    %v1988 = vpack.c.b16 %v1796, %v1788
    %v1989 = vpack.c.b16 %v1797, %v1789
    %v1990 = vpack.c.b16 %v1806, %v1798
    %v1991 = vpack.c.b16 %v1807, %v1799
    %v1992 = vpack.c.b16 %v1808, %v1800
    %v1993 = vpack.c.b16 %v1809, %v1801
    %v1994 = vpack.c.b16 %v1810, %v1802
    %v1995 = vpack.c.b16 %v1811, %v1803
    %v1996 = vpack.c.b16 %v1812, %v1804
    %v1997 = vpack.c.b16 %v1813, %v1805
    %v1998 = vpack.c.b16 %v1822, %v1814
    %v1999 = vpack.c.b16 %v1823, %v1815
    %v2000 = vpack.c.b16 %v1824, %v1816
    %v2001 = vpack.c.b16 %v1825, %v1817
    %v2002 = vpack.c.b16 %v1826, %v1818
    %v2003 = vpack.c.b16 %v1827, %v1819
    %v2004 = vpack.c.b16 %v1828, %v1820
    %v2005 = vpack.c.b16 %v1829, %v1821
    %v2006 = vpack.c.b16 %v1838, %v1830
    %v2007 = vpack.c.b16 %v1839, %v1831
    %v2008 = vpack.c.b16 %v1840, %v1832
    %v2009 = vpack.c.b16 %v1841, %v1833
    %v2010 = vpack.c.b16 %v1842, %v1834
    %v2011 = vpack.c.b16 %v1843, %v1835
    %v2012 = vpack.c.b16 %v1844, %v1836
    %v2013 = vpack.c.b16 %v1845, %v1837
    %v2014 = vpack.c.b16 %v1854, %v1846
    %v2015 = vpack.c.b16 %v1855, %v1847
    %v2016 = vpack.c.b16 %v1856, %v1848
    %v2017 = vpack.c.b16 %v1857, %v1849
    %v2018 = vpack.c.b16 %v1858, %v1850
    %v2019 = vpack.c.b16 %v1859, %v1851
    %v2020 = vpack.c.b16 %v1860, %v1852
    %v2021 = vpack.c.b16 %v1861, %v1853
    %v2022 = vpack.c.b16 %v1870, %v1862
    %v2023 = vpack.c.b16 %v1871, %v1863
    %v2024 = vpack.c.b16 %v1872, %v1864
    %v2025 = vpack.c.b16 %v1873, %v1865
    %v2026 = vpack.c.b16 %v1874, %v1866
    %v2027 = vpack.c.b16 %v1875, %v1867
    %v2028 = vpack.c.b16 %v1876, %v1868
    %v2029 = vpack.c.b16 %v1877, %v1869
    %v2030 = vpack.c.b16 %v1886, %v1878
    %v2031 = vpack.c.b16 %v1887, %v1879
    %v2032 = vpack.c.b16 %v1888, %v1880
    %v2033 = vpack.c.b16 %v1889, %v1881
    %v2034 = vpack.c.b16 %v1890, %v1882
    %v2035 = vpack.c.b16 %v1891, %v1883
    %v2036 = vpack.c.b16 %v1892, %v1884
    %v2037 = vpack.c.b16 %v1893, %v1885
    %v2038 = vpack.c.b16 %v1902, %v1894
    %v2039 = vpack.c.b16 %v1903, %v1895
    %v2040 = vpack.c.b16 %v1904, %v1896
    %v2041 = vpack.c.b16 %v1905, %v1897
    %v2042 = vpack.c.b16 %v1906, %v1898
    %v2043 = vpack.c.b16 %v1907, %v1899
    %v2044 = vpack.c.b16 %v1908, %v1900
    %v2045 = vpack.c.b16 %v1909, %v1901
    %v2046 = vpack.c.b16 %v1918, %v1910
    %v2047 = vpack.c.b16 %v1919, %v1911
    %v2048 = vpack.c.b16 %v1920, %v1912
    %v2049 = vpack.c.b16 %v1921, %v1913
    %v2050 = vpack.c.b16 %v1922, %v1914
    %v2051 = vpack.c.b16 %v1923, %v1915
    %v2052 = vpack.c.b16 %v1924, %v1916
    %v2053 = vpack.c.b16 %v1925, %v1917
    %2182 = vmatpush.bf16.msra.mxu0 %v1982
    %2183 = vmatpush.bf16.msra.mxu0 %v1974
    %2184 = vmatpush.bf16.msra.mxu0 %v1966
    %2185 = vmatpush.bf16.msra.mxu0 %v1958
    %2186 = vmatpush.bf16.msra.mxu0 %v1950
    %2187 = vmatpush.bf16.msra.mxu0 %v1942
    %2188 = vmatpush.bf16.msra.mxu0 %v1934
    %2189 = vmatpush.bf16.msra.mxu0 %v1926
    %2190 = vmatmul.bf16.gmra.mxu0 %v1412
    %v2191 = vpop.f32.mrf.mxu0
    %v2192 = vadd.f32 0.0, %v2191
    %v2193 = vpop.f32.mrf.mxu0
    %2194 = vdwg.mxu0
    %2195 = vmatpush.bf16.msra.mxu0 %v2046
    %2196 = vmatpush.bf16.msra.mxu0 %v2038
    %2197 = vmatpush.bf16.msra.mxu0 %v2030
    %2198 = vmatpush.bf16.msra.mxu0 %v2022
    %2199 = vmatpush.bf16.msra.mxu0 %v2014
    %2200 = vmatpush.bf16.msra.mxu0 %v2006
    %2201 = vmatpush.bf16.msra.mxu0 %v1998
    %2202 = vmatpush.bf16.msra.mxu0 %v1990
    %2203 = vmatmul.bf16.gmra.mxu0 %v1413
    %v2204 = vpop.f32.mrf.mxu0
    %v2205 = vadd.f32 %v2192, %v2204
    %v2206 = vpop.f32.mrf.mxu0
    %2207 = vdwg.mxu0
    %2208 = vmatpush.bf16.msra.mxu0 %v1983
    %2209 = vmatpush.bf16.msra.mxu0 %v1975
    %2210 = vmatpush.bf16.msra.mxu0 %v1967
    %2211 = vmatpush.bf16.msra.mxu0 %v1959
    %2212 = vmatpush.bf16.msra.mxu0 %v1951
    %2213 = vmatpush.bf16.msra.mxu0 %v1943
    %2214 = vmatpush.bf16.msra.mxu0 %v1935
    %2215 = vmatpush.bf16.msra.mxu0 %v1927
    %2216 = vmatmul.bf16.gmra.mxu0 %v1412
    %v2217 = vpop.f32.mrf.mxu0
    %v2218 = vadd.f32 0.0, %v2217
    %v2219 = vpop.f32.mrf.mxu0
    %2220 = vdwg.mxu0
    %2221 = vmatpush.bf16.msra.mxu0 %v2047
    %2222 = vmatpush.bf16.msra.mxu0 %v2039
    %2223 = vmatpush.bf16.msra.mxu0 %v2031
    %2224 = vmatpush.bf16.msra.mxu0 %v2023
    %2225 = vmatpush.bf16.msra.mxu0 %v2015
    %2226 = vmatpush.bf16.msra.mxu0 %v2007
    %2227 = vmatpush.bf16.msra.mxu0 %v1999
    %2228 = vmatpush.bf16.msra.mxu0 %v1991
    %2229 = vmatmul.bf16.gmra.mxu0 %v1413
    %v2230 = vpop.f32.mrf.mxu0
    %v2231 = vadd.f32 %v2218, %v2230
    %v2232 = vpop.f32.mrf.mxu0
    %2233 = vdwg.mxu0
    %2234 = vmatpush.bf16.msra.mxu0 %v1984
    %2235 = vmatpush.bf16.msra.mxu0 %v1976
    %2236 = vmatpush.bf16.msra.mxu0 %v1968
    %2237 = vmatpush.bf16.msra.mxu0 %v1960
    %2238 = vmatpush.bf16.msra.mxu0 %v1952
    %2239 = vmatpush.bf16.msra.mxu0 %v1944
    %2240 = vmatpush.bf16.msra.mxu0 %v1936
    %2241 = vmatpush.bf16.msra.mxu0 %v1928
    %2242 = vmatmul.bf16.gmra.mxu0 %v1412
    %v2243 = vpop.f32.mrf.mxu0
    %v2244 = vadd.f32 0.0, %v2243
    %v2245 = vpop.f32.mrf.mxu0
    %2246 = vdwg.mxu0
    %2247 = vmatpush.bf16.msra.mxu0 %v2048
    %2248 = vmatpush.bf16.msra.mxu0 %v2040
    %2249 = vmatpush.bf16.msra.mxu0 %v2032
    %2250 = vmatpush.bf16.msra.mxu0 %v2024
    %2251 = vmatpush.bf16.msra.mxu0 %v2016
    %2252 = vmatpush.bf16.msra.mxu0 %v2008
    %2253 = vmatpush.bf16.msra.mxu0 %v2000
    %2254 = vmatpush.bf16.msra.mxu0 %v1992
    %2255 = vmatmul.bf16.gmra.mxu0 %v1413
    %v2256 = vpop.f32.mrf.mxu0
    %v2257 = vadd.f32 %v2244, %v2256
    %v2258 = vpop.f32.mrf.mxu0
    %2259 = vdwg.mxu0
    %2260 = vmatpush.bf16.msra.mxu0 %v1985
    %2261 = vmatpush.bf16.msra.mxu0 %v1977
    %2262 = vmatpush.bf16.msra.mxu0 %v1969
    %2263 = vmatpush.bf16.msra.mxu0 %v1961
    %2264 = vmatpush.bf16.msra.mxu0 %v1953
    %2265 = vmatpush.bf16.msra.mxu0 %v1945
    %2266 = vmatpush.bf16.msra.mxu0 %v1937
    %2267 = vmatpush.bf16.msra.mxu0 %v1929
    %2268 = vmatmul.bf16.gmra.mxu0 %v1412
    %v2269 = vpop.f32.mrf.mxu0
    %v2270 = vadd.f32 0.0, %v2269
    %v2271 = vpop.f32.mrf.mxu0
    %2272 = vdwg.mxu0
    %2273 = vmatpush.bf16.msra.mxu0 %v2049
    %2274 = vmatpush.bf16.msra.mxu0 %v2041
    %2275 = vmatpush.bf16.msra.mxu0 %v2033
    %2276 = vmatpush.bf16.msra.mxu0 %v2025
    %2277 = vmatpush.bf16.msra.mxu0 %v2017
    %2278 = vmatpush.bf16.msra.mxu0 %v2009
    %2279 = vmatpush.bf16.msra.mxu0 %v2001
    %2280 = vmatpush.bf16.msra.mxu0 %v1993
    %2281 = vmatmul.bf16.gmra.mxu0 %v1413
    %v2282 = vpop.f32.mrf.mxu0
    %v2283 = vadd.f32 %v2270, %v2282
    %v2284 = vpop.f32.mrf.mxu0
    %2285 = vdwg.mxu0
    %2286 = vmatpush.bf16.msra.mxu0 %v1986
    %2287 = vmatpush.bf16.msra.mxu0 %v1978
    %2288 = vmatpush.bf16.msra.mxu0 %v1970
    %2289 = vmatpush.bf16.msra.mxu0 %v1962
    %2290 = vmatpush.bf16.msra.mxu0 %v1954
    %2291 = vmatpush.bf16.msra.mxu0 %v1946
    %2292 = vmatpush.bf16.msra.mxu0 %v1938
    %2293 = vmatpush.bf16.msra.mxu0 %v1930
    %2294 = vmatmul.bf16.gmra.mxu0 %v1412
    %v2295 = vpop.f32.mrf.mxu0
    %v2296 = vadd.f32 0.0, %v2295
    %v2297 = vpop.f32.mrf.mxu0
    %2298 = vdwg.mxu0
    %2299 = vmatpush.bf16.msra.mxu0 %v2050
    %2300 = vmatpush.bf16.msra.mxu0 %v2042
    %2301 = vmatpush.bf16.msra.mxu0 %v2034
    %2302 = vmatpush.bf16.msra.mxu0 %v2026
    %2303 = vmatpush.bf16.msra.mxu0 %v2018
    %2304 = vmatpush.bf16.msra.mxu0 %v2010
    %2305 = vmatpush.bf16.msra.mxu0 %v2002
    %2306 = vmatpush.bf16.msra.mxu0 %v1994
    %2307 = vmatmul.bf16.gmra.mxu0 %v1413
    %v2308 = vpop.f32.mrf.mxu0
    %v2309 = vadd.f32 %v2296, %v2308
    %v2310 = vpop.f32.mrf.mxu0
    %2311 = vdwg.mxu0
    %2312 = vmatpush.bf16.msra.mxu0 %v1987
    %2313 = vmatpush.bf16.msra.mxu0 %v1979
    %2314 = vmatpush.bf16.msra.mxu0 %v1971
    %2315 = vmatpush.bf16.msra.mxu0 %v1963
    %2316 = vmatpush.bf16.msra.mxu0 %v1955
    %2317 = vmatpush.bf16.msra.mxu0 %v1947
    %2318 = vmatpush.bf16.msra.mxu0 %v1939
    %2319 = vmatpush.bf16.msra.mxu0 %v1931
    %2320 = vmatmul.bf16.gmra.mxu0 %v1412
    %v2321 = vpop.f32.mrf.mxu0
    %v2322 = vadd.f32 0.0, %v2321
    %v2323 = vpop.f32.mrf.mxu0
    %2324 = vdwg.mxu0
    %2325 = vmatpush.bf16.msra.mxu0 %v2051
    %2326 = vmatpush.bf16.msra.mxu0 %v2043
    %2327 = vmatpush.bf16.msra.mxu0 %v2035
    %2328 = vmatpush.bf16.msra.mxu0 %v2027
    %2329 = vmatpush.bf16.msra.mxu0 %v2019
    %2330 = vmatpush.bf16.msra.mxu0 %v2011
    %2331 = vmatpush.bf16.msra.mxu0 %v2003
    %2332 = vmatpush.bf16.msra.mxu0 %v1995
    %2333 = vmatmul.bf16.gmra.mxu0 %v1413
    %v2334 = vpop.f32.mrf.mxu0
    %v2335 = vadd.f32 %v2322, %v2334
    %v2336 = vpop.f32.mrf.mxu0
    %2337 = vdwg.mxu0
    %2338 = vmatpush.bf16.msra.mxu0 %v1988
    %2339 = vmatpush.bf16.msra.mxu0 %v1980
    %2340 = vmatpush.bf16.msra.mxu0 %v1972
    %2341 = vmatpush.bf16.msra.mxu0 %v1964
    %2342 = vmatpush.bf16.msra.mxu0 %v1956
    %2343 = vmatpush.bf16.msra.mxu0 %v1948
    %2344 = vmatpush.bf16.msra.mxu0 %v1940
    %2345 = vmatpush.bf16.msra.mxu0 %v1932
    %2346 = vmatmul.bf16.gmra.mxu0 %v1412
    %v2347 = vpop.f32.mrf.mxu0
    %v2348 = vadd.f32 0.0, %v2347
    %v2349 = vpop.f32.mrf.mxu0
    %2350 = vdwg.mxu0
    %2351 = vmatpush.bf16.msra.mxu0 %v2052
    %2352 = vmatpush.bf16.msra.mxu0 %v2044
    %2353 = vmatpush.bf16.msra.mxu0 %v2036
    %2354 = vmatpush.bf16.msra.mxu0 %v2028
    %2355 = vmatpush.bf16.msra.mxu0 %v2020
    %2356 = vmatpush.bf16.msra.mxu0 %v2012
    %2357 = vmatpush.bf16.msra.mxu0 %v2004
    %2358 = vmatpush.bf16.msra.mxu0 %v1996
    %2359 = vmatmul.bf16.gmra.mxu0 %v1413
    %v2360 = vpop.f32.mrf.mxu0
    %v2361 = vadd.f32 %v2348, %v2360
    %v2362 = vpop.f32.mrf.mxu0
    %2363 = vdwg.mxu0
    %2364 = vmatpush.bf16.msra.mxu0 %v1989
    %2365 = vmatpush.bf16.msra.mxu0 %v1981
    %2366 = vmatpush.bf16.msra.mxu0 %v1973
    %2367 = vmatpush.bf16.msra.mxu0 %v1965
    %2368 = vmatpush.bf16.msra.mxu0 %v1957
    %2369 = vmatpush.bf16.msra.mxu0 %v1949
    %2370 = vmatpush.bf16.msra.mxu0 %v1941
    %2371 = vmatpush.bf16.msra.mxu0 %v1933
    %2372 = vmatmul.bf16.gmra.mxu0 %v1412
    %v2373 = vpop.f32.mrf.mxu0
    %v2374 = vadd.f32 0.0, %v2373
    %v2375 = vpop.f32.mrf.mxu0
    %2376 = vdwg.mxu0
    %2377 = vmatpush.bf16.msra.mxu0 %v2053
    %2378 = vmatpush.bf16.msra.mxu0 %v2045
    %2379 = vmatpush.bf16.msra.mxu0 %v2037
    %2380 = vmatpush.bf16.msra.mxu0 %v2029
    %2381 = vmatpush.bf16.msra.mxu0 %v2021
    %2382 = vmatpush.bf16.msra.mxu0 %v2013
    %2383 = vmatpush.bf16.msra.mxu0 %v2005
    %2384 = vmatpush.bf16.msra.mxu0 %v1997
    %2385 = vmatmul.bf16.gmra.mxu0 %v1413
    %v2386 = vpop.f32.mrf.mxu0
    %v2387 = vadd.f32 %v2374, %v2386
    %v2388 = vpop.f32.mrf.mxu0
    %2389 = vdwg.mxu0
    %v2400 = vunpack.c.l.b16 %v120
    %v2401 = vunpack.c.h.b16 %v120
    %v2402 = vunpack.c.l.b16 %v121
    %v2403 = vunpack.c.h.b16 %v121
    %v2404 = vunpack.c.l.b16 %v122
    %v2405 = vunpack.c.h.b16 %v122
    %v2406 = vunpack.c.l.b16 %v123
    %v2407 = vunpack.c.h.b16 %v123
    %v2408 = vunpack.c.l.b16 %v124
    %v2409 = vunpack.c.h.b16 %v124
    %v2410 = vunpack.c.l.b16 %v125
    %v2411 = vunpack.c.h.b16 %v125
    %v2412 = vunpack.c.l.b16 %v126
    %v2413 = vunpack.c.h.b16 %v126
    %v2414 = vunpack.c.l.b16 %v127
    %v2415 = vunpack.c.h.b16 %v127
    %v2416 = vunpack.c.l.b16 %v128
    %v2417 = vunpack.c.h.b16 %v128
    %v2418 = vunpack.c.l.b16 %v129
    %v2419 = vunpack.c.h.b16 %v129
    %v2420 = vpack.c.b16 %v2400, %v2400
    %v2421 = vpack.c.b16 %v2401, %v2401
    %v2422 = vpack.c.b16 %v2402, %v2402
    %v2423 = vpack.c.b16 %v2403, %v2403
    %v2424 = vpack.c.b16 %v2404, %v2404
    %v2425 = vpack.c.b16 %v2405, %v2405
    %v2426 = vpack.c.b16 %v2406, %v2406
    %v2427 = vpack.c.b16 %v2407, %v2407
    %v2428 = vpack.c.b16 %v2408, %v2408
    %v2429 = vpack.c.b16 %v2409, %v2409
    %v2430 = vpack.c.b16 %v2410, %v2410
    %v2431 = vpack.c.b16 %v2411, %v2411
    %v2432 = vpack.c.b16 %v2412, %v2412
    %v2433 = vpack.c.b16 %v2413, %v2413
    %v2434 = vpack.c.b16 %v2414, %v2414
    %v2435 = vpack.c.b16 %v2415, %v2415
    %v2436 = vpack.c.b16 %v2416, %v2416
    %v2437 = vpack.c.b16 %v2417, %v2417
    %v2438 = vpack.c.b16 %v2418, %v2418
    %v2439 = vpack.c.b16 %v2419, %v2419
    %v3740 = vunpack.c.l.b16 %v132
    %v3741 = vunpack.c.h.b16 %v132
    %v3742 = vunpack.c.l.b16 %v133
    %v3743 = vunpack.c.h.b16 %v133
    %v3744 = vunpack.c.l.b16 %v134
    %v3745 = vunpack.c.h.b16 %v134
    %v3746 = vunpack.c.l.b16 %v135
    %v3747 = vunpack.c.h.b16 %v135
    %v3748 = vunpack.c.l.b16 %v136
    %v3749 = vunpack.c.h.b16 %v136
    %v3750 = vunpack.c.l.b16 %v137
    %v3751 = vunpack.c.h.b16 %v137
    %v3752 = vunpack.c.l.b16 %v138
    %v3753 = vunpack.c.h.b16 %v138
    %v3754 = vunpack.c.l.b16 %v139
    %v3755 = vunpack.c.h.b16 %v139
    %v3756 = vunpack.c.l.b16 %v140
    %v3757 = vunpack.c.h.b16 %v140
    %v3758 = vunpack.c.l.b16 %v141
    %v3759 = vunpack.c.h.b16 %v141
    %v3760 = vunpack.c.l.b16 %v142
    %v3761 = vunpack.c.h.b16 %v142
    %v3762 = vunpack.c.l.b16 %v143
    %v3763 = vunpack.c.h.b16 %v143
    %v3764 = vunpack.c.l.b16 %v144
    %v3765 = vunpack.c.h.b16 %v144
    %v3766 = vunpack.c.l.b16 %v145
    %v3767 = vunpack.c.h.b16 %v145
    %v3768 = vunpack.c.l.b16 %v146
    %v3769 = vunpack.c.h.b16 %v146
    %v3770 = vunpack.c.l.b16 %v147
    %v3771 = vunpack.c.h.b16 %v147
    %v3772 = vunpack.c.l.b16 %v148
    %v3773 = vunpack.c.h.b16 %v148
    %v3774 = vunpack.c.l.b16 %v149
    %v3775 = vunpack.c.h.b16 %v149
    %v3776 = vunpack.c.l.b16 %v150
    %v3777 = vunpack.c.h.b16 %v150
    %v3778 = vunpack.c.l.b16 %v151
    %v3779 = vunpack.c.h.b16 %v151
    %v3780 = vunpack.c.l.b16 %v152
    %v3781 = vunpack.c.h.b16 %v152
    %v3782 = vunpack.c.l.b16 %v153
    %v3783 = vunpack.c.h.b16 %v153
    %v3784 = vunpack.c.l.b16 %v154
    %v3785 = vunpack.c.h.b16 %v154
    %v3786 = vunpack.c.l.b16 %v155
    %v3787 = vunpack.c.h.b16 %v155
    %v3788 = vunpack.c.l.b16 %v156
    %v3789 = vunpack.c.h.b16 %v156
    %v3790 = vunpack.c.l.b16 %v157
    %v3791 = vunpack.c.h.b16 %v157
    %v3792 = vunpack.c.l.b16 %v158
    %v3793 = vunpack.c.h.b16 %v158
    %v3794 = vunpack.c.l.b16 %v159
    %v3795 = vunpack.c.h.b16 %v159
    %v3796 = vunpack.c.l.b16 %v160
    %v3797 = vunpack.c.h.b16 %v160
    %v3798 = vunpack.c.l.b16 %v161
    %v3799 = vunpack.c.h.b16 %v161
    %v3800 = vunpack.c.l.b16 %v162
    %v3801 = vunpack.c.h.b16 %v162
    %v3802 = vunpack.c.l.b16 %v163
    %v3803 = vunpack.c.h.b16 %v163
    %v3804 = vunpack.c.l.b16 %v164
    %v3805 = vunpack.c.h.b16 %v164
    %v3806 = vunpack.c.l.b16 %v165
    %v3807 = vunpack.c.h.b16 %v165
    %v3808 = vunpack.c.l.b16 %v166
    %v3809 = vunpack.c.h.b16 %v166
    %v3810 = vunpack.c.l.b16 %v167
    %v3811 = vunpack.c.h.b16 %v167
    %v3812 = vunpack.c.l.b16 %v168
    %v3813 = vunpack.c.h.b16 %v168
    %v3814 = vunpack.c.l.b16 %v169
    %v3815 = vunpack.c.h.b16 %v169
    %v3816 = vunpack.c.l.b16 %v170
    %v3817 = vunpack.c.h.b16 %v170
    %v3818 = vunpack.c.l.b16 %v171
    %v3819 = vunpack.c.h.b16 %v171
    %v3820 = vunpack.c.l.b16 %v172
    %v3821 = vunpack.c.h.b16 %v172
    %v3822 = vunpack.c.l.b16 %v173
    %v3823 = vunpack.c.h.b16 %v173
    %v3824 = vunpack.c.l.b16 %v174
    %v3825 = vunpack.c.h.b16 %v174
    %v3826 = vunpack.c.l.b16 %v175
    %v3827 = vunpack.c.h.b16 %v175
    %v3828 = vunpack.c.l.b16 %v176
    %v3829 = vunpack.c.h.b16 %v176
    %v3830 = vunpack.c.l.b16 %v177
    %v3831 = vunpack.c.h.b16 %v177
    %v3832 = vunpack.c.l.b16 %v178
    %v3833 = vunpack.c.h.b16 %v178
    %v3834 = vunpack.c.l.b16 %v179
    %v3835 = vunpack.c.h.b16 %v179
    %v3836 = vunpack.c.l.b16 %v180
    %v3837 = vunpack.c.h.b16 %v180
    %v3838 = vunpack.c.l.b16 %v181
    %v3839 = vunpack.c.h.b16 %v181
    %v3840 = vunpack.c.l.b16 %v182
    %v3841 = vunpack.c.h.b16 %v182
    %v3842 = vunpack.c.l.b16 %v183
    %v3843 = vunpack.c.h.b16 %v183
    %v3844 = vunpack.c.l.b16 %v184
    %v3845 = vunpack.c.h.b16 %v184
    %v3846 = vunpack.c.l.b16 %v185
    %v3847 = vunpack.c.h.b16 %v185
    %v3848 = vunpack.c.l.b16 %v186
    %v3849 = vunpack.c.h.b16 %v186
    %v3850 = vunpack.c.l.b16 %v187
    %v3851 = vunpack.c.h.b16 %v187
    %v3852 = vunpack.c.l.b16 %v188
    %v3853 = vunpack.c.h.b16 %v188
    %v3854 = vunpack.c.l.b16 %v189
    %v3855 = vunpack.c.h.b16 %v189
    %v3856 = vunpack.c.l.b16 %v190
    %v3857 = vunpack.c.h.b16 %v190
    %v3858 = vunpack.c.l.b16 %v191
    %v3859 = vunpack.c.h.b16 %v191
    %v3860 = vunpack.c.l.b16 %v192
    %v3861 = vunpack.c.h.b16 %v192
    %v3862 = vunpack.c.l.b16 %v193
    %v3863 = vunpack.c.h.b16 %v193
    %v3864 = vunpack.c.l.b16 %v194
    %v3865 = vunpack.c.h.b16 %v194
    %v3866 = vunpack.c.l.b16 %v195
    %v3867 = vunpack.c.h.b16 %v195
    %v3868 = vunpack.c.l.b16 %v196
    %v3869 = vunpack.c.h.b16 %v196
    %v3870 = vunpack.c.l.b16 %v197
    %v3871 = vunpack.c.h.b16 %v197
    %v3872 = vunpack.c.l.b16 %v198
    %v3873 = vunpack.c.h.b16 %v198
    %v3874 = vunpack.c.l.b16 %v199
    %v3875 = vunpack.c.h.b16 %v199
    %v3876 = vunpack.c.l.b16 %v200
    %v3877 = vunpack.c.h.b16 %v200
    %v3878 = vunpack.c.l.b16 %v201
    %v3879 = vunpack.c.h.b16 %v201
    %v3880 = vunpack.c.l.b16 %v202
    %v3881 = vunpack.c.h.b16 %v202
    %v3882 = vunpack.c.l.b16 %v203
    %v3883 = vunpack.c.h.b16 %v203
    %v3884 = vunpack.c.l.b16 %v204
    %v3885 = vunpack.c.h.b16 %v204
    %v3886 = vunpack.c.l.b16 %v205
    %v3887 = vunpack.c.h.b16 %v205
    %v3888 = vunpack.c.l.b16 %v206
    %v3889 = vunpack.c.h.b16 %v206
    %v3890 = vunpack.c.l.b16 %v207
    %v3891 = vunpack.c.h.b16 %v207
    %v3892 = vunpack.c.l.b16 %v208
    %v3893 = vunpack.c.h.b16 %v208
    %v3894 = vunpack.c.l.b16 %v209
    %v3895 = vunpack.c.h.b16 %v209
    %v3896 = vunpack.c.l.b16 %v210
    %v3897 = vunpack.c.h.b16 %v210
    %v3898 = vunpack.c.l.b16 %v211
    %v3899 = vunpack.c.h.b16 %v211
    %v3900 = vunpack.c.l.b16 %v212
    %v3901 = vunpack.c.h.b16 %v212
    %v3902 = vunpack.c.l.b16 %v213
    %v3903 = vunpack.c.h.b16 %v213
    %v3904 = vunpack.c.l.b16 %v214
    %v3905 = vunpack.c.h.b16 %v214
    %v3906 = vunpack.c.l.b16 %v215
    %v3907 = vunpack.c.h.b16 %v215
    %v3908 = vunpack.c.l.b16 %v216
    %v3909 = vunpack.c.h.b16 %v216
    %v3910 = vunpack.c.l.b16 %v217
    %v3911 = vunpack.c.h.b16 %v217
    %v3912 = vunpack.c.l.b16 %v218
    %v3913 = vunpack.c.h.b16 %v218
    %v3914 = vunpack.c.l.b16 %v219
    %v3915 = vunpack.c.h.b16 %v219
    %v3916 = vunpack.c.l.b16 %v220
    %v3917 = vunpack.c.h.b16 %v220
    %v3918 = vunpack.c.l.b16 %v221
    %v3919 = vunpack.c.h.b16 %v221
    %v3920 = vunpack.c.l.b16 %v222
    %v3921 = vunpack.c.h.b16 %v222
    %v3922 = vunpack.c.l.b16 %v223
    %v3923 = vunpack.c.h.b16 %v223
    %v3924 = vunpack.c.l.b16 %v224
    %v3925 = vunpack.c.h.b16 %v224
    %v3926 = vunpack.c.l.b16 %v225
    %v3927 = vunpack.c.h.b16 %v225
    %v3928 = vunpack.c.l.b16 %v226
    %v3929 = vunpack.c.h.b16 %v226
    %v3930 = vunpack.c.l.b16 %v227
    %v3931 = vunpack.c.h.b16 %v227
    %v3932 = vunpack.c.l.b16 %v228
    %v3933 = vunpack.c.h.b16 %v228
    %v3934 = vunpack.c.l.b16 %v229
    %v3935 = vunpack.c.h.b16 %v229
    %v3936 = vunpack.c.l.b16 %v230
    %v3937 = vunpack.c.h.b16 %v230
    %v3938 = vunpack.c.l.b16 %v231
    %v3939 = vunpack.c.h.b16 %v231
    %v3940 = vunpack.c.l.b16 %v232
    %v3941 = vunpack.c.h.b16 %v232
    %v3942 = vunpack.c.l.b16 %v233
    %v3943 = vunpack.c.h.b16 %v233
    %v3944 = vunpack.c.l.b16 %v234
    %v3945 = vunpack.c.h.b16 %v234
    %v3946 = vunpack.c.l.b16 %v235
    %v3947 = vunpack.c.h.b16 %v235
    %v3948 = vunpack.c.l.b16 %v236
    %v3949 = vunpack.c.h.b16 %v236
    %v3950 = vunpack.c.l.b16 %v237
    %v3951 = vunpack.c.h.b16 %v237
    %v3952 = vunpack.c.l.b16 %v238
    %v3953 = vunpack.c.h.b16 %v238
    %v3954 = vunpack.c.l.b16 %v239
    %v3955 = vunpack.c.h.b16 %v239
    %v3956 = vunpack.c.l.b16 %v240
    %v3957 = vunpack.c.h.b16 %v240
    %v3958 = vunpack.c.l.b16 %v241
    %v3959 = vunpack.c.h.b16 %v241
    %v3960 = vunpack.c.l.b16 %v242
    %v3961 = vunpack.c.h.b16 %v242
    %v3962 = vunpack.c.l.b16 %v243
    %v3963 = vunpack.c.h.b16 %v243
    %v3964 = vunpack.c.l.b16 %v244
    %v3965 = vunpack.c.h.b16 %v244
    %v3966 = vunpack.c.l.b16 %v245
    %v3967 = vunpack.c.h.b16 %v245
    %v3968 = vunpack.c.l.b16 %v246
    %v3969 = vunpack.c.h.b16 %v246
    %v3970 = vunpack.c.l.b16 %v247
    %v3971 = vunpack.c.h.b16 %v247
    %v3972 = vunpack.c.l.b16 %v248
    %v3973 = vunpack.c.h.b16 %v248
    %v3974 = vunpack.c.l.b16 %v249
    %v3975 = vunpack.c.h.b16 %v249
    %v3976 = vunpack.c.l.b16 %v250
    %v3977 = vunpack.c.h.b16 %v250
    %v3978 = vunpack.c.l.b16 %v251
    %v3979 = vunpack.c.h.b16 %v251
    %v3980 = vunpack.c.l.b16 %v252
    %v3981 = vunpack.c.h.b16 %v252
    %v3982 = vunpack.c.l.b16 %v253
    %v3983 = vunpack.c.h.b16 %v253
    %v3984 = vunpack.c.l.b16 %v254
    %v3985 = vunpack.c.h.b16 %v254
    %v3986 = vunpack.c.l.b16 %v255
    %v3987 = vunpack.c.h.b16 %v255
    %v3988 = vunpack.c.l.b16 %v256
    %v3989 = vunpack.c.h.b16 %v256
    %v3990 = vunpack.c.l.b16 %v257
    %v3991 = vunpack.c.h.b16 %v257
    %v3992 = vunpack.c.l.b16 %v258
    %v3993 = vunpack.c.h.b16 %v258
    %v3994 = vunpack.c.l.b16 %v259
    %v3995 = vunpack.c.h.b16 %v259
    %v3996 = vunpack.c.l.b16 %v260
    %v3997 = vunpack.c.h.b16 %v260
    %v3998 = vunpack.c.l.b16 %v261
    %v3999 = vunpack.c.h.b16 %v261
    %v4000 = vunpack.c.l.b16 %v262
    %v4001 = vunpack.c.h.b16 %v262
    %v4002 = vunpack.c.l.b16 %v263
    %v4003 = vunpack.c.h.b16 %v263
    %v4004 = vunpack.c.l.b16 %v264
    %v4005 = vunpack.c.h.b16 %v264
    %v4006 = vunpack.c.l.b16 %v265
    %v4007 = vunpack.c.h.b16 %v265
    %v4008 = vunpack.c.l.b16 %v266
    %v4009 = vunpack.c.h.b16 %v266
    %v4010 = vunpack.c.l.b16 %v267
    %v4011 = vunpack.c.h.b16 %v267
    %v4012 = vunpack.c.l.b16 %v268
    %v4013 = vunpack.c.h.b16 %v268
    %v4014 = vunpack.c.l.b16 %v269
    %v4015 = vunpack.c.h.b16 %v269
    %v4016 = vunpack.c.l.b16 %v270
    %v4017 = vunpack.c.h.b16 %v270
    %v4018 = vunpack.c.l.b16 %v271
    %v4019 = vunpack.c.h.b16 %v271
    %v4020 = vunpack.c.l.b16 %v272
    %v4021 = vunpack.c.h.b16 %v272
    %v4022 = vunpack.c.l.b16 %v273
    %v4023 = vunpack.c.h.b16 %v273
    %v4024 = vunpack.c.l.b16 %v274
    %v4025 = vunpack.c.h.b16 %v274
    %v4026 = vunpack.c.l.b16 %v275
    %v4027 = vunpack.c.h.b16 %v275
    %v4028 = vunpack.c.l.b16 %v276
    %v4029 = vunpack.c.h.b16 %v276
    %v4030 = vunpack.c.l.b16 %v277
    %v4031 = vunpack.c.h.b16 %v277
    %v4032 = vunpack.c.l.b16 %v278
    %v4033 = vunpack.c.h.b16 %v278
    %v4034 = vunpack.c.l.b16 %v279
    %v4035 = vunpack.c.h.b16 %v279
    %v4036 = vunpack.c.l.b16 %v280
    %v4037 = vunpack.c.h.b16 %v280
    %v4038 = vunpack.c.l.b16 %v281
    %v4039 = vunpack.c.h.b16 %v281
    %v4040 = vunpack.c.l.b16 %v282
    %v4041 = vunpack.c.h.b16 %v282
    %v4042 = vunpack.c.l.b16 %v283
    %v4043 = vunpack.c.h.b16 %v283
    %v4044 = vunpack.c.l.b16 %v284
    %v4045 = vunpack.c.h.b16 %v284
    %v4046 = vunpack.c.l.b16 %v285
    %v4047 = vunpack.c.h.b16 %v285
    %v4048 = vunpack.c.l.b16 %v286
    %v4049 = vunpack.c.h.b16 %v286
    %v4050 = vunpack.c.l.b16 %v287
    %v4051 = vunpack.c.h.b16 %v287
    %v4052 = vunpack.c.l.b16 %v288
    %v4053 = vunpack.c.h.b16 %v288
    %v4054 = vunpack.c.l.b16 %v289
    %v4055 = vunpack.c.h.b16 %v289
    %v4056 = vunpack.c.l.b16 %v290
    %v4057 = vunpack.c.h.b16 %v290
    %v4058 = vunpack.c.l.b16 %v291
    %v4059 = vunpack.c.h.b16 %v291
    %v4060 = vunpack.c.l.b16 %v292
    %v4061 = vunpack.c.h.b16 %v292
    %v4062 = vunpack.c.l.b16 %v293
    %v4063 = vunpack.c.h.b16 %v293
    %v4064 = vunpack.c.l.b16 %v294
    %v4065 = vunpack.c.h.b16 %v294
    %v4066 = vunpack.c.l.b16 %v295
    %v4067 = vunpack.c.h.b16 %v295
    %v4068 = vunpack.c.l.b16 %v296
    %v4069 = vunpack.c.h.b16 %v296
    %v4070 = vunpack.c.l.b16 %v297
    %v4071 = vunpack.c.h.b16 %v297
    %v4072 = vunpack.c.l.b16 %v298
    %v4073 = vunpack.c.h.b16 %v298
    %v4074 = vunpack.c.l.b16 %v299
    %v4075 = vunpack.c.h.b16 %v299
    %v4076 = vunpack.c.l.b16 %v300
    %v4077 = vunpack.c.h.b16 %v300
    %v4078 = vunpack.c.l.b16 %v301
    %v4079 = vunpack.c.h.b16 %v301
    %v4080 = vunpack.c.l.b16 %v302
    %v4081 = vunpack.c.h.b16 %v302
    %v4082 = vunpack.c.l.b16 %v303
    %v4083 = vunpack.c.h.b16 %v303
    %v4084 = vunpack.c.l.b16 %v304
    %v4085 = vunpack.c.h.b16 %v304
    %v4086 = vunpack.c.l.b16 %v305
    %v4087 = vunpack.c.h.b16 %v305
    %v4088 = vunpack.c.l.b16 %v306
    %v4089 = vunpack.c.h.b16 %v306
    %v4090 = vunpack.c.l.b16 %v307
    %v4091 = vunpack.c.h.b16 %v307
    %v4092 = vunpack.c.l.b16 %v308
    %v4093 = vunpack.c.h.b16 %v308
    %v4094 = vunpack.c.l.b16 %v309
    %v4095 = vunpack.c.h.b16 %v309
    %v4096 = vunpack.c.l.b16 %v310
    %v4097 = vunpack.c.h.b16 %v310
    %v4098 = vunpack.c.l.b16 %v311
    %v4099 = vunpack.c.h.b16 %v311
    %v4100 = vunpack.c.l.b16 %v312
    %v4101 = vunpack.c.h.b16 %v312
    %v4102 = vunpack.c.l.b16 %v313
    %v4103 = vunpack.c.h.b16 %v313
    %v4104 = vunpack.c.l.b16 %v314
    %v4105 = vunpack.c.h.b16 %v314
    %v4106 = vunpack.c.l.b16 %v315
    %v4107 = vunpack.c.h.b16 %v315
    %v4108 = vunpack.c.l.b16 %v316
    %v4109 = vunpack.c.h.b16 %v316
    %v4110 = vunpack.c.l.b16 %v317
    %v4111 = vunpack.c.h.b16 %v317
    %v4112 = vunpack.c.l.b16 %v318
    %v4113 = vunpack.c.h.b16 %v318
    %v4114 = vunpack.c.l.b16 %v319
    %v4115 = vunpack.c.h.b16 %v319
    %v4116 = vunpack.c.l.b16 %v320
    %v4117 = vunpack.c.h.b16 %v320
    %v4118 = vunpack.c.l.b16 %v321
    %v4119 = vunpack.c.h.b16 %v321
    %v4120 = vunpack.c.l.b16 %v322
    %v4121 = vunpack.c.h.b16 %v322
    %v4122 = vunpack.c.l.b16 %v323
    %v4123 = vunpack.c.h.b16 %v323
    %v4124 = vunpack.c.l.b16 %v324
    %v4125 = vunpack.c.h.b16 %v324
    %v4126 = vunpack.c.l.b16 %v325
    %v4127 = vunpack.c.h.b16 %v325
    %v4128 = vunpack.c.l.b16 %v326
    %v4129 = vunpack.c.h.b16 %v326
    %v4130 = vunpack.c.l.b16 %v327
    %v4131 = vunpack.c.h.b16 %v327
    %v4132 = vunpack.c.l.b16 %v328
    %v4133 = vunpack.c.h.b16 %v328
    %v4134 = vunpack.c.l.b16 %v329
    %v4135 = vunpack.c.h.b16 %v329
    %v4136 = vunpack.c.l.b16 %v330
    %v4137 = vunpack.c.h.b16 %v330
    %v4138 = vunpack.c.l.b16 %v331
    %v4139 = vunpack.c.h.b16 %v331
    %v4140 = vunpack.c.l.b16 %v332
    %v4141 = vunpack.c.h.b16 %v332
    %v4142 = vunpack.c.l.b16 %v333
    %v4143 = vunpack.c.h.b16 %v333
    %v4144 = vunpack.c.l.b16 %v334
    %v4145 = vunpack.c.h.b16 %v334
    %v4146 = vunpack.c.l.b16 %v335
    %v4147 = vunpack.c.h.b16 %v335
    %v4148 = vunpack.c.l.b16 %v336
    %v4149 = vunpack.c.h.b16 %v336
    %v4150 = vunpack.c.l.b16 %v337
    %v4151 = vunpack.c.h.b16 %v337
    %v4152 = vunpack.c.l.b16 %v338
    %v4153 = vunpack.c.h.b16 %v338
    %v4154 = vunpack.c.l.b16 %v339
    %v4155 = vunpack.c.h.b16 %v339
    %v4156 = vunpack.c.l.b16 %v340
    %v4157 = vunpack.c.h.b16 %v340
    %v4158 = vunpack.c.l.b16 %v341
    %v4159 = vunpack.c.h.b16 %v341
    %v4160 = vunpack.c.l.b16 %v342
    %v4161 = vunpack.c.h.b16 %v342
    %v4162 = vunpack.c.l.b16 %v343
    %v4163 = vunpack.c.h.b16 %v343
    %v4164 = vunpack.c.l.b16 %v344
    %v4165 = vunpack.c.h.b16 %v344
    %v4166 = vunpack.c.l.b16 %v345
    %v4167 = vunpack.c.h.b16 %v345
    %v4168 = vunpack.c.l.b16 %v346
    %v4169 = vunpack.c.h.b16 %v346
    %v4170 = vunpack.c.l.b16 %v347
    %v4171 = vunpack.c.h.b16 %v347
    %v4172 = vunpack.c.l.b16 %v348
    %v4173 = vunpack.c.h.b16 %v348
    %v4174 = vunpack.c.l.b16 %v349
    %v4175 = vunpack.c.h.b16 %v349
    %v4176 = vunpack.c.l.b16 %v350
    %v4177 = vunpack.c.h.b16 %v350
    %v4178 = vunpack.c.l.b16 %v351
    %v4179 = vunpack.c.h.b16 %v351
    %v4180 = vunpack.c.l.b16 %v352
    %v4181 = vunpack.c.h.b16 %v352
    %v4182 = vunpack.c.l.b16 %v353
    %v4183 = vunpack.c.h.b16 %v353
    %v4184 = vunpack.c.l.b16 %v354
    %v4185 = vunpack.c.h.b16 %v354
    %v4186 = vunpack.c.l.b16 %v355
    %v4187 = vunpack.c.h.b16 %v355
    %v4188 = vunpack.c.l.b16 %v356
    %v4189 = vunpack.c.h.b16 %v356
    %v4190 = vunpack.c.l.b16 %v357
    %v4191 = vunpack.c.h.b16 %v357
    %v4192 = vunpack.c.l.b16 %v358
    %v4193 = vunpack.c.h.b16 %v358
    %v4194 = vunpack.c.l.b16 %v359
    %v4195 = vunpack.c.h.b16 %v359
    %v4196 = vunpack.c.l.b16 %v360
    %v4197 = vunpack.c.h.b16 %v360
    %v4198 = vunpack.c.l.b16 %v361
    %v4199 = vunpack.c.h.b16 %v361
    %v4200 = vunpack.c.l.b16 %v362
    %v4201 = vunpack.c.h.b16 %v362
    %v4202 = vunpack.c.l.b16 %v363
    %v4203 = vunpack.c.h.b16 %v363
    %v4204 = vunpack.c.l.b16 %v364
    %v4205 = vunpack.c.h.b16 %v364
    %v4206 = vunpack.c.l.b16 %v365
    %v4207 = vunpack.c.h.b16 %v365
    %v4208 = vunpack.c.l.b16 %v366
    %v4209 = vunpack.c.h.b16 %v366
    %v4210 = vunpack.c.l.b16 %v367
    %v4211 = vunpack.c.h.b16 %v367
    %v4212 = vunpack.c.l.b16 %v368
    %v4213 = vunpack.c.h.b16 %v368
    %v4214 = vunpack.c.l.b16 %v369
    %v4215 = vunpack.c.h.b16 %v369
    %v4216 = vunpack.c.l.b16 %v370
    %v4217 = vunpack.c.h.b16 %v370
    %v4218 = vunpack.c.l.b16 %v371
    %v4219 = vunpack.c.h.b16 %v371
    %v4220 = vunpack.c.l.b16 %v372
    %v4221 = vunpack.c.h.b16 %v372
    %v4222 = vunpack.c.l.b16 %v373
    %v4223 = vunpack.c.h.b16 %v373
    %v4224 = vunpack.c.l.b16 %v374
    %v4225 = vunpack.c.h.b16 %v374
    %v4226 = vunpack.c.l.b16 %v375
    %v4227 = vunpack.c.h.b16 %v375
    %v4228 = vunpack.c.l.b16 %v376
    %v4229 = vunpack.c.h.b16 %v376
    %v4230 = vunpack.c.l.b16 %v377
    %v4231 = vunpack.c.h.b16 %v377
    %v4232 = vunpack.c.l.b16 %v378
    %v4233 = vunpack.c.h.b16 %v378
    %v4234 = vunpack.c.l.b16 %v379
    %v4235 = vunpack.c.h.b16 %v379
    %v4236 = vunpack.c.l.b16 %v380
    %v4237 = vunpack.c.h.b16 %v380
    %v4238 = vunpack.c.l.b16 %v381
    %v4239 = vunpack.c.h.b16 %v381
    %v4240 = vunpack.c.l.b16 %v382
    %v4241 = vunpack.c.h.b16 %v382
    %v4242 = vunpack.c.l.b16 %v383
    %v4243 = vunpack.c.h.b16 %v383
    %v4244 = vunpack.c.l.b16 %v384
    %v4245 = vunpack.c.h.b16 %v384
    %v4246 = vunpack.c.l.b16 %v385
    %v4247 = vunpack.c.h.b16 %v385
    %v4248 = vunpack.c.l.b16 %v386
    %v4249 = vunpack.c.h.b16 %v386
    %v4250 = vunpack.c.l.b16 %v387
    %v4251 = vunpack.c.h.b16 %v387
    %v4252 = vunpack.c.l.b16 %v388
    %v4253 = vunpack.c.h.b16 %v388
    %v4254 = vunpack.c.l.b16 %v389
    %v4255 = vunpack.c.h.b16 %v389
    %v4256 = vunpack.c.l.b16 %v390
    %v4257 = vunpack.c.h.b16 %v390
    %v4258 = vunpack.c.l.b16 %v391
    %v4259 = vunpack.c.h.b16 %v391
    %v4260 = vunpack.c.l.b16 %v392
    %v4261 = vunpack.c.h.b16 %v392
    %v4262 = vunpack.c.l.b16 %v393
    %v4263 = vunpack.c.h.b16 %v393
    %v4264 = vunpack.c.l.b16 %v394
    %v4265 = vunpack.c.h.b16 %v394
    %v4266 = vunpack.c.l.b16 %v395
    %v4267 = vunpack.c.h.b16 %v395
    %v4268 = vunpack.c.l.b16 %v396
    %v4269 = vunpack.c.h.b16 %v396
    %v4270 = vunpack.c.l.b16 %v397
    %v4271 = vunpack.c.h.b16 %v397
    %v4272 = vunpack.c.l.b16 %v398
    %v4273 = vunpack.c.h.b16 %v398
    %v4274 = vunpack.c.l.b16 %v399
    %v4275 = vunpack.c.h.b16 %v399
    %v4276 = vunpack.c.l.b16 %v400
    %v4277 = vunpack.c.h.b16 %v400
    %v4278 = vunpack.c.l.b16 %v401
    %v4279 = vunpack.c.h.b16 %v401
    %v4280 = vunpack.c.l.b16 %v402
    %v4281 = vunpack.c.h.b16 %v402
    %v4282 = vunpack.c.l.b16 %v403
    %v4283 = vunpack.c.h.b16 %v403
    %v4284 = vunpack.c.l.b16 %v404
    %v4285 = vunpack.c.h.b16 %v404
    %v4286 = vunpack.c.l.b16 %v405
    %v4287 = vunpack.c.h.b16 %v405
    %v4288 = vunpack.c.l.b16 %v406
    %v4289 = vunpack.c.h.b16 %v406
    %v4290 = vunpack.c.l.b16 %v407
    %v4291 = vunpack.c.h.b16 %v407
    %v4292 = vunpack.c.l.b16 %v408
    %v4293 = vunpack.c.h.b16 %v408
    %v4294 = vunpack.c.l.b16 %v409
    %v4295 = vunpack.c.h.b16 %v409
    %v4296 = vunpack.c.l.b16 %v410
    %v4297 = vunpack.c.h.b16 %v410
    %v4298 = vunpack.c.l.b16 %v411
    %v4299 = vunpack.c.h.b16 %v411
    %v4300 = vunpack.c.l.b16 %v412
    %v4301 = vunpack.c.h.b16 %v412
    %v4302 = vunpack.c.l.b16 %v413
    %v4303 = vunpack.c.h.b16 %v413
    %v4304 = vunpack.c.l.b16 %v414
    %v4305 = vunpack.c.h.b16 %v414
    %v4306 = vunpack.c.l.b16 %v415
    %v4307 = vunpack.c.h.b16 %v415
    %v4308 = vunpack.c.l.b16 %v416
    %v4309 = vunpack.c.h.b16 %v416
    %v4310 = vunpack.c.l.b16 %v417
    %v4311 = vunpack.c.h.b16 %v417
    %v4312 = vunpack.c.l.b16 %v418
    %v4313 = vunpack.c.h.b16 %v418
    %v4314 = vunpack.c.l.b16 %v419
    %v4315 = vunpack.c.h.b16 %v419
    %v4316 = vunpack.c.l.b16 %v420
    %v4317 = vunpack.c.h.b16 %v420
    %v4318 = vunpack.c.l.b16 %v421
    %v4319 = vunpack.c.h.b16 %v421
    %v4320 = vunpack.c.l.b16 %v422
    %v4321 = vunpack.c.h.b16 %v422
    %v4322 = vunpack.c.l.b16 %v423
    %v4323 = vunpack.c.h.b16 %v423
    %v4324 = vunpack.c.l.b16 %v424
    %v4325 = vunpack.c.h.b16 %v424
    %v4326 = vunpack.c.l.b16 %v425
    %v4327 = vunpack.c.h.b16 %v425
    %v4328 = vunpack.c.l.b16 %v426
    %v4329 = vunpack.c.h.b16 %v426
    %v4330 = vunpack.c.l.b16 %v427
    %v4331 = vunpack.c.h.b16 %v427
    %v4332 = vunpack.c.l.b16 %v428
    %v4333 = vunpack.c.h.b16 %v428
    %v4334 = vunpack.c.l.b16 %v429
    %v4335 = vunpack.c.h.b16 %v429
    %v4336 = vunpack.c.l.b16 %v430
    %v4337 = vunpack.c.h.b16 %v430
    %v4338 = vunpack.c.l.b16 %v431
    %v4339 = vunpack.c.h.b16 %v431
    %v4340 = vunpack.c.l.b16 %v432
    %v4341 = vunpack.c.h.b16 %v432
    %v4342 = vunpack.c.l.b16 %v433
    %v4343 = vunpack.c.h.b16 %v433
    %v4344 = vunpack.c.l.b16 %v434
    %v4345 = vunpack.c.h.b16 %v434
    %v4346 = vunpack.c.l.b16 %v435
    %v4347 = vunpack.c.h.b16 %v435
    %v4348 = vunpack.c.l.b16 %v436
    %v4349 = vunpack.c.h.b16 %v436
    %v4350 = vunpack.c.l.b16 %v437
    %v4351 = vunpack.c.h.b16 %v437
    %v4352 = vunpack.c.l.b16 %v438
    %v4353 = vunpack.c.h.b16 %v438
    %v4354 = vunpack.c.l.b16 %v439
    %v4355 = vunpack.c.h.b16 %v439
    %v4356 = vunpack.c.l.b16 %v440
    %v4357 = vunpack.c.h.b16 %v440
    %v4358 = vunpack.c.l.b16 %v441
    %v4359 = vunpack.c.h.b16 %v441
    %v4360 = vunpack.c.l.b16 %v442
    %v4361 = vunpack.c.h.b16 %v442
    %v4362 = vunpack.c.l.b16 %v443
    %v4363 = vunpack.c.h.b16 %v443
    %v4364 = vunpack.c.l.b16 %v444
    %v4365 = vunpack.c.h.b16 %v444
    %v4366 = vunpack.c.l.b16 %v445
    %v4367 = vunpack.c.h.b16 %v445
    %v4368 = vunpack.c.l.b16 %v446
    %v4369 = vunpack.c.h.b16 %v446
    %v4370 = vunpack.c.l.b16 %v447
    %v4371 = vunpack.c.h.b16 %v447
    %v4372 = vunpack.c.l.b16 %v448
    %v4373 = vunpack.c.h.b16 %v448
    %v4374 = vunpack.c.l.b16 %v449
    %v4375 = vunpack.c.h.b16 %v449
    %v4376 = vunpack.c.l.b16 %v450
    %v4377 = vunpack.c.h.b16 %v450
    %v4378 = vunpack.c.l.b16 %v451
    %v4379 = vunpack.c.h.b16 %v451
    %v4380 = vunpack.c.l.b16 %v452
    %v4381 = vunpack.c.h.b16 %v452
    %v4382 = vunpack.c.l.b16 %v453
    %v4383 = vunpack.c.h.b16 %v453
    %v4384 = vunpack.c.l.b16 %v454
    %v4385 = vunpack.c.h.b16 %v454
    %v4386 = vunpack.c.l.b16 %v455
    %v4387 = vunpack.c.h.b16 %v455
    %v4388 = vunpack.c.l.b16 %v456
    %v4389 = vunpack.c.h.b16 %v456
    %v4390 = vunpack.c.l.b16 %v457
    %v4391 = vunpack.c.h.b16 %v457
    %v4392 = vunpack.c.l.b16 %v458
    %v4393 = vunpack.c.h.b16 %v458
    %v4394 = vunpack.c.l.b16 %v459
    %v4395 = vunpack.c.h.b16 %v459
    %v4396 = vunpack.c.l.b16 %v460
    %v4397 = vunpack.c.h.b16 %v460
    %v4398 = vunpack.c.l.b16 %v461
    %v4399 = vunpack.c.h.b16 %v461
    %v4400 = vunpack.c.l.b16 %v462
    %v4401 = vunpack.c.h.b16 %v462
    %v4402 = vunpack.c.l.b16 %v463
    %v4403 = vunpack.c.h.b16 %v463
    %v4404 = vunpack.c.l.b16 %v464
    %v4405 = vunpack.c.h.b16 %v464
    %v4406 = vunpack.c.l.b16 %v465
    %v4407 = vunpack.c.h.b16 %v465
    %v4408 = vunpack.c.l.b16 %v466
    %v4409 = vunpack.c.h.b16 %v466
    %v4410 = vunpack.c.l.b16 %v467
    %v4411 = vunpack.c.h.b16 %v467
    %v4412 = vunpack.c.l.b16 %v468
    %v4413 = vunpack.c.h.b16 %v468
    %v4414 = vunpack.c.l.b16 %v469
    %v4415 = vunpack.c.h.b16 %v469
    %v4416 = vunpack.c.l.b16 %v470
    %v4417 = vunpack.c.h.b16 %v470
    %v4418 = vunpack.c.l.b16 %v471
    %v4419 = vunpack.c.h.b16 %v471
    %v4420 = vunpack.c.l.b16 %v472
    %v4421 = vunpack.c.h.b16 %v472
    %v4422 = vunpack.c.l.b16 %v473
    %v4423 = vunpack.c.h.b16 %v473
    %v4424 = vunpack.c.l.b16 %v474
    %v4425 = vunpack.c.h.b16 %v474
    %v4426 = vunpack.c.l.b16 %v475
    %v4427 = vunpack.c.h.b16 %v475
    %v4428 = vunpack.c.l.b16 %v476
    %v4429 = vunpack.c.h.b16 %v476
    %v4430 = vunpack.c.l.b16 %v477
    %v4431 = vunpack.c.h.b16 %v477
    %v4432 = vunpack.c.l.b16 %v478
    %v4433 = vunpack.c.h.b16 %v478
    %v4434 = vunpack.c.l.b16 %v479
    %v4435 = vunpack.c.h.b16 %v479
    %v4436 = vunpack.c.l.b16 %v480
    %v4437 = vunpack.c.h.b16 %v480
    %v4438 = vunpack.c.l.b16 %v481
    %v4439 = vunpack.c.h.b16 %v481
    %v4440 = vunpack.c.l.b16 %v482
    %v4441 = vunpack.c.h.b16 %v482
    %v4442 = vunpack.c.l.b16 %v483
    %v4443 = vunpack.c.h.b16 %v483
    %v4444 = vunpack.c.l.b16 %v484
    %v4445 = vunpack.c.h.b16 %v484
    %v4446 = vunpack.c.l.b16 %v485
    %v4447 = vunpack.c.h.b16 %v485
    %v4448 = vunpack.c.l.b16 %v486
    %v4449 = vunpack.c.h.b16 %v486
    %v4450 = vunpack.c.l.b16 %v487
    %v4451 = vunpack.c.h.b16 %v487
    %v4452 = vunpack.c.l.b16 %v488
    %v4453 = vunpack.c.h.b16 %v488
    %v4454 = vunpack.c.l.b16 %v489
    %v4455 = vunpack.c.h.b16 %v489
    %v4456 = vunpack.c.l.b16 %v490
    %v4457 = vunpack.c.h.b16 %v490
    %v4458 = vunpack.c.l.b16 %v491
    %v4459 = vunpack.c.h.b16 %v491
    %v4460 = vunpack.c.l.b16 %v492
    %v4461 = vunpack.c.h.b16 %v492
    %v4462 = vunpack.c.l.b16 %v493
    %v4463 = vunpack.c.h.b16 %v493
    %v4464 = vunpack.c.l.b16 %v494
    %v4465 = vunpack.c.h.b16 %v494
    %v4466 = vunpack.c.l.b16 %v495
    %v4467 = vunpack.c.h.b16 %v495
    %v4468 = vunpack.c.l.b16 %v496
    %v4469 = vunpack.c.h.b16 %v496
    %v4470 = vunpack.c.l.b16 %v497
    %v4471 = vunpack.c.h.b16 %v497
    %v4472 = vunpack.c.l.b16 %v498
    %v4473 = vunpack.c.h.b16 %v498
    %v4474 = vunpack.c.l.b16 %v499
    %v4475 = vunpack.c.h.b16 %v499
    %v4476 = vunpack.c.l.b16 %v500
    %v4477 = vunpack.c.h.b16 %v500
    %v4478 = vunpack.c.l.b16 %v501
    %v4479 = vunpack.c.h.b16 %v501
    %v4480 = vunpack.c.l.b16 %v502
    %v4481 = vunpack.c.h.b16 %v502
    %v4482 = vunpack.c.l.b16 %v503
    %v4483 = vunpack.c.h.b16 %v503
    %v4484 = vunpack.c.l.b16 %v504
    %v4485 = vunpack.c.h.b16 %v504
    %v4486 = vunpack.c.l.b16 %v505
    %v4487 = vunpack.c.h.b16 %v505
    %v4488 = vunpack.c.l.b16 %v506
    %v4489 = vunpack.c.h.b16 %v506
    %v4490 = vunpack.c.l.b16 %v507
    %v4491 = vunpack.c.h.b16 %v507
    %v4492 = vunpack.c.l.b16 %v508
    %v4493 = vunpack.c.h.b16 %v508
    %v4494 = vunpack.c.l.b16 %v509
    %v4495 = vunpack.c.h.b16 %v509
    %v4496 = vunpack.c.l.b16 %v510
    %v4497 = vunpack.c.h.b16 %v510
    %v4498 = vunpack.c.l.b16 %v511
    %v4499 = vunpack.c.h.b16 %v511
    %v4500 = vunpack.c.l.b16 %v512
    %v4501 = vunpack.c.h.b16 %v512
    %v4502 = vunpack.c.l.b16 %v513
    %v4503 = vunpack.c.h.b16 %v513
    %v4504 = vunpack.c.l.b16 %v514
    %v4505 = vunpack.c.h.b16 %v514
    %v4506 = vunpack.c.l.b16 %v515
    %v4507 = vunpack.c.h.b16 %v515
    %v4508 = vunpack.c.l.b16 %v516
    %v4509 = vunpack.c.h.b16 %v516
    %v4510 = vunpack.c.l.b16 %v517
    %v4511 = vunpack.c.h.b16 %v517
    %v4512 = vunpack.c.l.b16 %v518
    %v4513 = vunpack.c.h.b16 %v518
    %v4514 = vunpack.c.l.b16 %v519
    %v4515 = vunpack.c.h.b16 %v519
    %v4516 = vunpack.c.l.b16 %v520
    %v4517 = vunpack.c.h.b16 %v520
    %v4518 = vunpack.c.l.b16 %v521
    %v4519 = vunpack.c.h.b16 %v521
    %v4520 = vunpack.c.l.b16 %v522
    %v4521 = vunpack.c.h.b16 %v522
    %v4522 = vunpack.c.l.b16 %v523
    %v4523 = vunpack.c.h.b16 %v523
    %v4524 = vunpack.c.l.b16 %v524
    %v4525 = vunpack.c.h.b16 %v524
    %v4526 = vunpack.c.l.b16 %v525
    %v4527 = vunpack.c.h.b16 %v525
    %v4528 = vunpack.c.l.b16 %v526
    %v4529 = vunpack.c.h.b16 %v526
    %v4530 = vunpack.c.l.b16 %v527
    %v4531 = vunpack.c.h.b16 %v527
    %v4532 = vunpack.c.l.b16 %v528
    %v4533 = vunpack.c.h.b16 %v528
    %v4534 = vunpack.c.l.b16 %v529
    %v4535 = vunpack.c.h.b16 %v529
    %v4536 = vunpack.c.l.b16 %v530
    %v4537 = vunpack.c.h.b16 %v530
    %v4538 = vunpack.c.l.b16 %v531
    %v4539 = vunpack.c.h.b16 %v531
    %v4540 = vunpack.c.l.b16 %v532
    %v4541 = vunpack.c.h.b16 %v532
    %v4542 = vunpack.c.l.b16 %v533
    %v4543 = vunpack.c.h.b16 %v533
    %v4544 = vunpack.c.l.b16 %v534
    %v4545 = vunpack.c.h.b16 %v534
    %v4546 = vunpack.c.l.b16 %v535
    %v4547 = vunpack.c.h.b16 %v535
    %v4548 = vunpack.c.l.b16 %v536
    %v4549 = vunpack.c.h.b16 %v536
    %v4550 = vunpack.c.l.b16 %v537
    %v4551 = vunpack.c.h.b16 %v537
    %v4552 = vunpack.c.l.b16 %v538
    %v4553 = vunpack.c.h.b16 %v538
    %v4554 = vunpack.c.l.b16 %v539
    %v4555 = vunpack.c.h.b16 %v539
    %v4556 = vunpack.c.l.b16 %v540
    %v4557 = vunpack.c.h.b16 %v540
    %v4558 = vunpack.c.l.b16 %v541
    %v4559 = vunpack.c.h.b16 %v541
    %v4560 = vunpack.c.l.b16 %v542
    %v4561 = vunpack.c.h.b16 %v542
    %v4562 = vunpack.c.l.b16 %v543
    %v4563 = vunpack.c.h.b16 %v543
    %v4564 = vunpack.c.l.b16 %v544
    %v4565 = vunpack.c.h.b16 %v544
    %v4566 = vunpack.c.l.b16 %v545
    %v4567 = vunpack.c.h.b16 %v545
    %v4568 = vunpack.c.l.b16 %v546
    %v4569 = vunpack.c.h.b16 %v546
    %v4570 = vunpack.c.l.b16 %v547
    %v4571 = vunpack.c.h.b16 %v547
    %v4572 = vunpack.c.l.b16 %v548
    %v4573 = vunpack.c.h.b16 %v548
    %v4574 = vunpack.c.l.b16 %v549
    %v4575 = vunpack.c.h.b16 %v549
    %v4576 = vunpack.c.l.b16 %v550
    %v4577 = vunpack.c.h.b16 %v550
    %v4578 = vunpack.c.l.b16 %v551
    %v4579 = vunpack.c.h.b16 %v551
    %v4580 = vunpack.c.l.b16 %v552
    %v4581 = vunpack.c.h.b16 %v552
    %v4582 = vunpack.c.l.b16 %v553
    %v4583 = vunpack.c.h.b16 %v553
    %v4584 = vunpack.c.l.b16 %v554
    %v4585 = vunpack.c.h.b16 %v554
    %v4586 = vunpack.c.l.b16 %v555
    %v4587 = vunpack.c.h.b16 %v555
    %v4588 = vunpack.c.l.b16 %v556
    %v4589 = vunpack.c.h.b16 %v556
    %v4590 = vunpack.c.l.b16 %v557
    %v4591 = vunpack.c.h.b16 %v557
    %v4592 = vunpack.c.l.b16 %v558
    %v4593 = vunpack.c.h.b16 %v558
    %v4594 = vunpack.c.l.b16 %v559
    %v4595 = vunpack.c.h.b16 %v559
    %v4596 = vunpack.c.l.b16 %v560
    %v4597 = vunpack.c.h.b16 %v560
    %v4598 = vunpack.c.l.b16 %v561
    %v4599 = vunpack.c.h.b16 %v561
    %v4600 = vunpack.c.l.b16 %v562
    %v4601 = vunpack.c.h.b16 %v562
    %v4602 = vunpack.c.l.b16 %v563
    %v4603 = vunpack.c.h.b16 %v563
    %v4604 = vunpack.c.l.b16 %v564
    %v4605 = vunpack.c.h.b16 %v564
    %v4606 = vunpack.c.l.b16 %v565
    %v4607 = vunpack.c.h.b16 %v565
    %v4608 = vunpack.c.l.b16 %v566
    %v4609 = vunpack.c.h.b16 %v566
    %v4610 = vunpack.c.l.b16 %v567
    %v4611 = vunpack.c.h.b16 %v567
    %v4612 = vunpack.c.l.b16 %v568
    %v4613 = vunpack.c.h.b16 %v568
    %v4614 = vunpack.c.l.b16 %v569
    %v4615 = vunpack.c.h.b16 %v569
    %v4616 = vunpack.c.l.b16 %v570
    %v4617 = vunpack.c.h.b16 %v570
    %v4618 = vunpack.c.l.b16 %v571
    %v4619 = vunpack.c.h.b16 %v571
    %v4620 = vunpack.c.l.b16 %v572
    %v4621 = vunpack.c.h.b16 %v572
    %v4622 = vunpack.c.l.b16 %v573
    %v4623 = vunpack.c.h.b16 %v573
    %v4624 = vunpack.c.l.b16 %v574
    %v4625 = vunpack.c.h.b16 %v574
    %v4626 = vunpack.c.l.b16 %v575
    %v4627 = vunpack.c.h.b16 %v575
    %v4628 = vunpack.c.l.b16 %v576
    %v4629 = vunpack.c.h.b16 %v576
    %v4630 = vunpack.c.l.b16 %v577
    %v4631 = vunpack.c.h.b16 %v577
    %v4632 = vunpack.c.l.b16 %v578
    %v4633 = vunpack.c.h.b16 %v578
    %v4634 = vunpack.c.l.b16 %v579
    %v4635 = vunpack.c.h.b16 %v579
    %v4636 = vunpack.c.l.b16 %v580
    %v4637 = vunpack.c.h.b16 %v580
    %v4638 = vunpack.c.l.b16 %v581
    %v4639 = vunpack.c.h.b16 %v581
    %v4640 = vunpack.c.l.b16 %v582
    %v4641 = vunpack.c.h.b16 %v582
    %v4642 = vunpack.c.l.b16 %v583
    %v4643 = vunpack.c.h.b16 %v583
    %v4644 = vunpack.c.l.b16 %v584
    %v4645 = vunpack.c.h.b16 %v584
    %v4646 = vunpack.c.l.b16 %v585
    %v4647 = vunpack.c.h.b16 %v585
    %v4648 = vunpack.c.l.b16 %v586
    %v4649 = vunpack.c.h.b16 %v586
    %v4650 = vunpack.c.l.b16 %v587
    %v4651 = vunpack.c.h.b16 %v587
    %v4652 = vunpack.c.l.b16 %v588
    %v4653 = vunpack.c.h.b16 %v588
    %v4654 = vunpack.c.l.b16 %v589
    %v4655 = vunpack.c.h.b16 %v589
    %v4656 = vunpack.c.l.b16 %v590
    %v4657 = vunpack.c.h.b16 %v590
    %v4658 = vunpack.c.l.b16 %v591
    %v4659 = vunpack.c.h.b16 %v591
    %v4660 = vunpack.c.l.b16 %v592
    %v4661 = vunpack.c.h.b16 %v592
    %v4662 = vunpack.c.l.b16 %v593
    %v4663 = vunpack.c.h.b16 %v593
    %v4664 = vunpack.c.l.b16 %v594
    %v4665 = vunpack.c.h.b16 %v594
    %v4666 = vunpack.c.l.b16 %v595
    %v4667 = vunpack.c.h.b16 %v595
    %v4668 = vunpack.c.l.b16 %v596
    %v4669 = vunpack.c.h.b16 %v596
    %v4670 = vunpack.c.l.b16 %v597
    %v4671 = vunpack.c.h.b16 %v597
    %v4672 = vunpack.c.l.b16 %v598
    %v4673 = vunpack.c.h.b16 %v598
    %v4674 = vunpack.c.l.b16 %v599
    %v4675 = vunpack.c.h.b16 %v599
    %v4676 = vunpack.c.l.b16 %v600
    %v4677 = vunpack.c.h.b16 %v600
    %v4678 = vunpack.c.l.b16 %v601
    %v4679 = vunpack.c.h.b16 %v601
    %v4680 = vunpack.c.l.b16 %v602
    %v4681 = vunpack.c.h.b16 %v602
    %v4682 = vunpack.c.l.b16 %v603
    %v4683 = vunpack.c.h.b16 %v603
    %v4684 = vunpack.c.l.b16 %v604
    %v4685 = vunpack.c.h.b16 %v604
    %v4686 = vunpack.c.l.b16 %v605
    %v4687 = vunpack.c.h.b16 %v605
    %v4688 = vunpack.c.l.b16 %v606
    %v4689 = vunpack.c.h.b16 %v606
    %v4690 = vunpack.c.l.b16 %v607
    %v4691 = vunpack.c.h.b16 %v607
    %v4692 = vunpack.c.l.b16 %v608
    %v4693 = vunpack.c.h.b16 %v608
    %v4694 = vunpack.c.l.b16 %v609
    %v4695 = vunpack.c.h.b16 %v609
    %v4696 = vunpack.c.l.b16 %v610
    %v4697 = vunpack.c.h.b16 %v610
    %v4698 = vunpack.c.l.b16 %v611
    %v4699 = vunpack.c.h.b16 %v611
    %v4700 = vunpack.c.l.b16 %v612
    %v4701 = vunpack.c.h.b16 %v612
    %v4702 = vunpack.c.l.b16 %v613
    %v4703 = vunpack.c.h.b16 %v613
    %v4704 = vunpack.c.l.b16 %v614
    %v4705 = vunpack.c.h.b16 %v614
    %v4706 = vunpack.c.l.b16 %v615
    %v4707 = vunpack.c.h.b16 %v615
    %v4708 = vunpack.c.l.b16 %v616
    %v4709 = vunpack.c.h.b16 %v616
    %v4710 = vunpack.c.l.b16 %v617
    %v4711 = vunpack.c.h.b16 %v617
    %v4712 = vunpack.c.l.b16 %v618
    %v4713 = vunpack.c.h.b16 %v618
    %v4714 = vunpack.c.l.b16 %v619
    %v4715 = vunpack.c.h.b16 %v619
    %v4716 = vunpack.c.l.b16 %v620
    %v4717 = vunpack.c.h.b16 %v620
    %v4718 = vunpack.c.l.b16 %v621
    %v4719 = vunpack.c.h.b16 %v621
    %v4720 = vunpack.c.l.b16 %v622
    %v4721 = vunpack.c.h.b16 %v622
    %v4722 = vunpack.c.l.b16 %v623
    %v4723 = vunpack.c.h.b16 %v623
    %v4724 = vunpack.c.l.b16 %v624
    %v4725 = vunpack.c.h.b16 %v624
    %v4726 = vunpack.c.l.b16 %v625
    %v4727 = vunpack.c.h.b16 %v625
    %v4728 = vunpack.c.l.b16 %v626
    %v4729 = vunpack.c.h.b16 %v626
    %v4730 = vunpack.c.l.b16 %v627
    %v4731 = vunpack.c.h.b16 %v627
    %v4732 = vunpack.c.l.b16 %v628
    %v4733 = vunpack.c.h.b16 %v628
    %v4734 = vunpack.c.l.b16 %v629
    %v4735 = vunpack.c.h.b16 %v629
    %v4736 = vunpack.c.l.b16 %v630
    %v4737 = vunpack.c.h.b16 %v630
    %v4738 = vunpack.c.l.b16 %v631
    %v4739 = vunpack.c.h.b16 %v631
    %v4740 = vunpack.c.l.b16 %v632
    %v4741 = vunpack.c.h.b16 %v632
    %v4742 = vunpack.c.l.b16 %v633
    %v4743 = vunpack.c.h.b16 %v633
    %v4744 = vunpack.c.l.b16 %v634
    %v4745 = vunpack.c.h.b16 %v634
    %v4746 = vunpack.c.l.b16 %v635
    %v4747 = vunpack.c.h.b16 %v635
    %v4748 = vunpack.c.l.b16 %v636
    %v4749 = vunpack.c.h.b16 %v636
    %v4750 = vunpack.c.l.b16 %v637
    %v4751 = vunpack.c.h.b16 %v637
    %v4752 = vunpack.c.l.b16 %v638
    %v4753 = vunpack.c.h.b16 %v638
    %v4754 = vunpack.c.l.b16 %v639
    %v4755 = vunpack.c.h.b16 %v639
    %v4756 = vunpack.c.l.b16 %v640
    %v4757 = vunpack.c.h.b16 %v640
    %v4758 = vunpack.c.l.b16 %v641
    %v4759 = vunpack.c.h.b16 %v641
    %v4760 = vunpack.c.l.b16 %v642
    %v4761 = vunpack.c.h.b16 %v642
    %v4762 = vunpack.c.l.b16 %v643
    %v4763 = vunpack.c.h.b16 %v643
    %v4764 = vunpack.c.l.b16 %v644
    %v4765 = vunpack.c.h.b16 %v644
    %v4766 = vunpack.c.l.b16 %v645
    %v4767 = vunpack.c.h.b16 %v645
    %v4768 = vunpack.c.l.b16 %v646
    %v4769 = vunpack.c.h.b16 %v646
    %v4770 = vunpack.c.l.b16 %v647
    %v4771 = vunpack.c.h.b16 %v647
    %v4772 = vunpack.c.l.b16 %v648
    %v4773 = vunpack.c.h.b16 %v648
    %v4774 = vunpack.c.l.b16 %v649
    %v4775 = vunpack.c.h.b16 %v649
    %v4776 = vunpack.c.l.b16 %v650
    %v4777 = vunpack.c.h.b16 %v650
    %v4778 = vunpack.c.l.b16 %v651
    %v4779 = vunpack.c.h.b16 %v651
    %v4780 = vunpack.c.l.b16 %v652
    %v4781 = vunpack.c.h.b16 %v652
    %v4782 = vunpack.c.l.b16 %v653
    %v4783 = vunpack.c.h.b16 %v653
    %v4784 = vunpack.c.l.b16 %v654
    %v4785 = vunpack.c.h.b16 %v654
    %v4786 = vunpack.c.l.b16 %v655
    %v4787 = vunpack.c.h.b16 %v655
    %v4788 = vunpack.c.l.b16 %v656
    %v4789 = vunpack.c.h.b16 %v656
    %v4790 = vunpack.c.l.b16 %v657
    %v4791 = vunpack.c.h.b16 %v657
    %v4792 = vunpack.c.l.b16 %v658
    %v4793 = vunpack.c.h.b16 %v658
    %v4794 = vunpack.c.l.b16 %v659
    %v4795 = vunpack.c.h.b16 %v659
    %v4796 = vunpack.c.l.b16 %v660
    %v4797 = vunpack.c.h.b16 %v660
    %v4798 = vunpack.c.l.b16 %v661
    %v4799 = vunpack.c.h.b16 %v661
    %v4800 = vunpack.c.l.b16 %v662
    %v4801 = vunpack.c.h.b16 %v662
    %v4802 = vunpack.c.l.b16 %v663
    %v4803 = vunpack.c.h.b16 %v663
    %v4804 = vunpack.c.l.b16 %v664
    %v4805 = vunpack.c.h.b16 %v664
    %v4806 = vunpack.c.l.b16 %v665
    %v4807 = vunpack.c.h.b16 %v665
    %v4808 = vunpack.c.l.b16 %v666
    %v4809 = vunpack.c.h.b16 %v666
    %v4810 = vunpack.c.l.b16 %v667
    %v4811 = vunpack.c.h.b16 %v667
    %v4812 = vunpack.c.l.b16 %v668
    %v4813 = vunpack.c.h.b16 %v668
    %v4814 = vunpack.c.l.b16 %v669
    %v4815 = vunpack.c.h.b16 %v669
    %v4816 = vunpack.c.l.b16 %v670
    %v4817 = vunpack.c.h.b16 %v670
    %v4818 = vunpack.c.l.b16 %v671
    %v4819 = vunpack.c.h.b16 %v671
    %v4820 = vunpack.c.l.b16 %v672
    %v4821 = vunpack.c.h.b16 %v672
    %v4822 = vunpack.c.l.b16 %v673
    %v4823 = vunpack.c.h.b16 %v673
    %v4824 = vunpack.c.l.b16 %v674
    %v4825 = vunpack.c.h.b16 %v674
    %v4826 = vunpack.c.l.b16 %v675
    %v4827 = vunpack.c.h.b16 %v675
    %v4828 = vunpack.c.l.b16 %v676
    %v4829 = vunpack.c.h.b16 %v676
    %v4830 = vunpack.c.l.b16 %v677
    %v4831 = vunpack.c.h.b16 %v677
    %v4832 = vunpack.c.l.b16 %v678
    %v4833 = vunpack.c.h.b16 %v678
    %v4834 = vunpack.c.l.b16 %v679
    %v4835 = vunpack.c.h.b16 %v679
    %v4836 = vunpack.c.l.b16 %v680
    %v4837 = vunpack.c.h.b16 %v680
    %v4838 = vunpack.c.l.b16 %v681
    %v4839 = vunpack.c.h.b16 %v681
    %v4840 = vunpack.c.l.b16 %v682
    %v4841 = vunpack.c.h.b16 %v682
    %v4842 = vunpack.c.l.b16 %v683
    %v4843 = vunpack.c.h.b16 %v683
    %v4844 = vunpack.c.l.b16 %v684
    %v4845 = vunpack.c.h.b16 %v684
    %v4846 = vunpack.c.l.b16 %v685
    %v4847 = vunpack.c.h.b16 %v685
    %v4848 = vunpack.c.l.b16 %v686
    %v4849 = vunpack.c.h.b16 %v686
    %v4850 = vunpack.c.l.b16 %v687
    %v4851 = vunpack.c.h.b16 %v687
    %v4852 = vunpack.c.l.b16 %v688
    %v4853 = vunpack.c.h.b16 %v688
    %v4854 = vunpack.c.l.b16 %v689
    %v4855 = vunpack.c.h.b16 %v689
    %v4856 = vunpack.c.l.b16 %v690
    %v4857 = vunpack.c.h.b16 %v690
    %v4858 = vunpack.c.l.b16 %v691
    %v4859 = vunpack.c.h.b16 %v691
    %v4860 = vunpack.c.l.b16 %v692
    %v4861 = vunpack.c.h.b16 %v692
    %v4862 = vunpack.c.l.b16 %v693
    %v4863 = vunpack.c.h.b16 %v693
    %v4864 = vunpack.c.l.b16 %v694
    %v4865 = vunpack.c.h.b16 %v694
    %v4866 = vunpack.c.l.b16 %v695
    %v4867 = vunpack.c.h.b16 %v695
    %v4868 = vunpack.c.l.b16 %v696
    %v4869 = vunpack.c.h.b16 %v696
    %v4870 = vunpack.c.l.b16 %v697
    %v4871 = vunpack.c.h.b16 %v697
    %v4872 = vunpack.c.l.b16 %v698
    %v4873 = vunpack.c.h.b16 %v698
    %v4874 = vunpack.c.l.b16 %v699
    %v4875 = vunpack.c.h.b16 %v699
    %v4876 = vunpack.c.l.b16 %v700
    %v4877 = vunpack.c.h.b16 %v700
    %v4878 = vunpack.c.l.b16 %v701
    %v4879 = vunpack.c.h.b16 %v701
    %v4880 = vunpack.c.l.b16 %v702
    %v4881 = vunpack.c.h.b16 %v702
    %v4882 = vunpack.c.l.b16 %v703
    %v4883 = vunpack.c.h.b16 %v703
    %v4884 = vunpack.c.l.b16 %v704
    %v4885 = vunpack.c.h.b16 %v704
    %v4886 = vunpack.c.l.b16 %v705
    %v4887 = vunpack.c.h.b16 %v705
    %v4888 = vunpack.c.l.b16 %v706
    %v4889 = vunpack.c.h.b16 %v706
    %v4890 = vunpack.c.l.b16 %v707
    %v4891 = vunpack.c.h.b16 %v707
    %v4892 = vunpack.c.l.b16 %v708
    %v4893 = vunpack.c.h.b16 %v708
    %v4894 = vunpack.c.l.b16 %v709
    %v4895 = vunpack.c.h.b16 %v709
    %v4896 = vunpack.c.l.b16 %v710
    %v4897 = vunpack.c.h.b16 %v710
    %v4898 = vunpack.c.l.b16 %v711
    %v4899 = vunpack.c.h.b16 %v711
    %v4900 = vunpack.c.l.b16 %v712
    %v4901 = vunpack.c.h.b16 %v712
    %v4902 = vunpack.c.l.b16 %v713
    %v4903 = vunpack.c.h.b16 %v713
    %v4904 = vunpack.c.l.b16 %v714
    %v4905 = vunpack.c.h.b16 %v714
    %v4906 = vunpack.c.l.b16 %v715
    %v4907 = vunpack.c.h.b16 %v715
    %v4908 = vunpack.c.l.b16 %v716
    %v4909 = vunpack.c.h.b16 %v716
    %v4910 = vunpack.c.l.b16 %v717
    %v4911 = vunpack.c.h.b16 %v717
    %v4912 = vunpack.c.l.b16 %v718
    %v4913 = vunpack.c.h.b16 %v718
    %v4914 = vunpack.c.l.b16 %v719
    %v4915 = vunpack.c.h.b16 %v719
    %v4916 = vunpack.c.l.b16 %v720
    %v4917 = vunpack.c.h.b16 %v720
    %v4918 = vunpack.c.l.b16 %v721
    %v4919 = vunpack.c.h.b16 %v721
    %v4920 = vunpack.c.l.b16 %v722
    %v4921 = vunpack.c.h.b16 %v722
    %v4922 = vunpack.c.l.b16 %v723
    %v4923 = vunpack.c.h.b16 %v723
    %v4924 = vunpack.c.l.b16 %v724
    %v4925 = vunpack.c.h.b16 %v724
    %v4926 = vunpack.c.l.b16 %v725
    %v4927 = vunpack.c.h.b16 %v725
    %v4928 = vunpack.c.l.b16 %v726
    %v4929 = vunpack.c.h.b16 %v726
    %v4930 = vunpack.c.l.b16 %v727
    %v4931 = vunpack.c.h.b16 %v727
    %v4932 = vunpack.c.l.b16 %v728
    %v4933 = vunpack.c.h.b16 %v728
    %v4934 = vunpack.c.l.b16 %v729
    %v4935 = vunpack.c.h.b16 %v729
    %v4936 = vunpack.c.l.b16 %v730
    %v4937 = vunpack.c.h.b16 %v730
    %v4938 = vunpack.c.l.b16 %v731
    %v4939 = vunpack.c.h.b16 %v731
    %v4940 = vunpack.c.l.b16 %v732
    %v4941 = vunpack.c.h.b16 %v732
    %v4942 = vunpack.c.l.b16 %v733
    %v4943 = vunpack.c.h.b16 %v733
    %v4944 = vunpack.c.l.b16 %v734
    %v4945 = vunpack.c.h.b16 %v734
    %v4946 = vunpack.c.l.b16 %v735
    %v4947 = vunpack.c.h.b16 %v735
    %v4948 = vunpack.c.l.b16 %v736
    %v4949 = vunpack.c.h.b16 %v736
    %v4950 = vunpack.c.l.b16 %v737
    %v4951 = vunpack.c.h.b16 %v737
    %v4952 = vunpack.c.l.b16 %v738
    %v4953 = vunpack.c.h.b16 %v738
    %v4954 = vunpack.c.l.b16 %v739
    %v4955 = vunpack.c.h.b16 %v739
    %v4956 = vunpack.c.l.b16 %v740
    %v4957 = vunpack.c.h.b16 %v740
    %v4958 = vunpack.c.l.b16 %v741
    %v4959 = vunpack.c.h.b16 %v741
    %v4960 = vunpack.c.l.b16 %v742
    %v4961 = vunpack.c.h.b16 %v742
    %v4962 = vunpack.c.l.b16 %v743
    %v4963 = vunpack.c.h.b16 %v743
    %v4964 = vunpack.c.l.b16 %v744
    %v4965 = vunpack.c.h.b16 %v744
    %v4966 = vunpack.c.l.b16 %v745
    %v4967 = vunpack.c.h.b16 %v745
    %v4968 = vunpack.c.l.b16 %v746
    %v4969 = vunpack.c.h.b16 %v746
    %v4970 = vunpack.c.l.b16 %v747
    %v4971 = vunpack.c.h.b16 %v747
    %v4972 = vunpack.c.l.b16 %v748
    %v4973 = vunpack.c.h.b16 %v748
    %v4974 = vunpack.c.l.b16 %v749
    %v4975 = vunpack.c.h.b16 %v749
    %v4976 = vunpack.c.l.b16 %v750
    %v4977 = vunpack.c.h.b16 %v750
    %v4978 = vunpack.c.l.b16 %v751
    %v4979 = vunpack.c.h.b16 %v751
    %v4980 = vunpack.c.l.b16 %v752
    %v4981 = vunpack.c.h.b16 %v752
    %v4982 = vunpack.c.l.b16 %v753
    %v4983 = vunpack.c.h.b16 %v753
    %v4984 = vunpack.c.l.b16 %v754
    %v4985 = vunpack.c.h.b16 %v754
    %v4986 = vunpack.c.l.b16 %v755
    %v4987 = vunpack.c.h.b16 %v755
    %v4988 = vunpack.c.l.b16 %v756
    %v4989 = vunpack.c.h.b16 %v756
    %v4990 = vunpack.c.l.b16 %v757
    %v4991 = vunpack.c.h.b16 %v757
    %v4992 = vunpack.c.l.b16 %v758
    %v4993 = vunpack.c.h.b16 %v758
    %v4994 = vunpack.c.l.b16 %v759
    %v4995 = vunpack.c.h.b16 %v759
    %v4996 = vunpack.c.l.b16 %v760
    %v4997 = vunpack.c.h.b16 %v760
    %v4998 = vunpack.c.l.b16 %v761
    %v4999 = vunpack.c.h.b16 %v761
    %v5000 = vunpack.c.l.b16 %v762
    %v5001 = vunpack.c.h.b16 %v762
    %v5002 = vunpack.c.l.b16 %v763
    %v5003 = vunpack.c.h.b16 %v763
    %v5004 = vunpack.c.l.b16 %v764
    %v5005 = vunpack.c.h.b16 %v764
    %v5006 = vunpack.c.l.b16 %v765
    %v5007 = vunpack.c.h.b16 %v765
    %v5008 = vunpack.c.l.b16 %v766
    %v5009 = vunpack.c.h.b16 %v766
    %v5010 = vunpack.c.l.b16 %v767
    %v5011 = vunpack.c.h.b16 %v767
    %v5012 = vunpack.c.l.b16 %v768
    %v5013 = vunpack.c.h.b16 %v768
    %v5014 = vunpack.c.l.b16 %v769
    %v5015 = vunpack.c.h.b16 %v769
    %v5016 = vunpack.c.l.b16 %v770
    %v5017 = vunpack.c.h.b16 %v770
    %v5018 = vunpack.c.l.b16 %v771
    %v5019 = vunpack.c.h.b16 %v771
    %v5020 = vunpack.c.l.b16 %v772
    %v5021 = vunpack.c.h.b16 %v772
    %v5022 = vunpack.c.l.b16 %v773
    %v5023 = vunpack.c.h.b16 %v773
    %v5024 = vunpack.c.l.b16 %v774
    %v5025 = vunpack.c.h.b16 %v774
    %v5026 = vunpack.c.l.b16 %v775
    %v5027 = vunpack.c.h.b16 %v775
    %v5028 = vunpack.c.l.b16 %v776
    %v5029 = vunpack.c.h.b16 %v776
    %v5030 = vunpack.c.l.b16 %v777
    %v5031 = vunpack.c.h.b16 %v777
    %v5032 = vunpack.c.l.b16 %v778
    %v5033 = vunpack.c.h.b16 %v778
    %v5034 = vunpack.c.l.b16 %v779
    %v5035 = vunpack.c.h.b16 %v779
    %v5036 = vunpack.c.l.b16 %v780
    %v5037 = vunpack.c.h.b16 %v780
    %v5038 = vunpack.c.l.b16 %v781
    %v5039 = vunpack.c.h.b16 %v781
    %v5040 = vunpack.c.l.b16 %v782
    %v5041 = vunpack.c.h.b16 %v782
    %v5042 = vunpack.c.l.b16 %v783
    %v5043 = vunpack.c.h.b16 %v783
    %v5044 = vunpack.c.l.b16 %v784
    %v5045 = vunpack.c.h.b16 %v784
    %v5046 = vunpack.c.l.b16 %v785
    %v5047 = vunpack.c.h.b16 %v785
    %v5048 = vunpack.c.l.b16 %v786
    %v5049 = vunpack.c.h.b16 %v786
    %v5050 = vunpack.c.l.b16 %v787
    %v5051 = vunpack.c.h.b16 %v787
    %v5052 = vunpack.c.l.b16 %v788
    %v5053 = vunpack.c.h.b16 %v788
    %v5054 = vunpack.c.l.b16 %v789
    %v5055 = vunpack.c.h.b16 %v789
    %v5056 = vunpack.c.l.b16 %v790
    %v5057 = vunpack.c.h.b16 %v790
    %v5058 = vunpack.c.l.b16 %v791
    %v5059 = vunpack.c.h.b16 %v791
    %v5060 = vunpack.c.l.b16 %v792
    %v5061 = vunpack.c.h.b16 %v792
    %v5062 = vunpack.c.l.b16 %v793
    %v5063 = vunpack.c.h.b16 %v793
    %v5064 = vunpack.c.l.b16 %v794
    %v5065 = vunpack.c.h.b16 %v794
    %v5066 = vunpack.c.l.b16 %v795
    %v5067 = vunpack.c.h.b16 %v795
    %v5068 = vunpack.c.l.b16 %v796
    %v5069 = vunpack.c.h.b16 %v796
    %v5070 = vunpack.c.l.b16 %v797
    %v5071 = vunpack.c.h.b16 %v797
    %v5072 = vunpack.c.l.b16 %v798
    %v5073 = vunpack.c.h.b16 %v798
    %v5074 = vunpack.c.l.b16 %v799
    %v5075 = vunpack.c.h.b16 %v799
    %v5076 = vunpack.c.l.b16 %v800
    %v5077 = vunpack.c.h.b16 %v800
    %v5078 = vunpack.c.l.b16 %v801
    %v5079 = vunpack.c.h.b16 %v801
    %v5080 = vunpack.c.l.b16 %v802
    %v5081 = vunpack.c.h.b16 %v802
    %v5082 = vunpack.c.l.b16 %v803
    %v5083 = vunpack.c.h.b16 %v803
    %v5084 = vunpack.c.l.b16 %v804
    %v5085 = vunpack.c.h.b16 %v804
    %v5086 = vunpack.c.l.b16 %v805
    %v5087 = vunpack.c.h.b16 %v805
    %v5088 = vunpack.c.l.b16 %v806
    %v5089 = vunpack.c.h.b16 %v806
    %v5090 = vunpack.c.l.b16 %v807
    %v5091 = vunpack.c.h.b16 %v807
    %v5092 = vunpack.c.l.b16 %v808
    %v5093 = vunpack.c.h.b16 %v808
    %v5094 = vunpack.c.l.b16 %v809
    %v5095 = vunpack.c.h.b16 %v809
    %v5096 = vunpack.c.l.b16 %v810
    %v5097 = vunpack.c.h.b16 %v810
    %v5098 = vunpack.c.l.b16 %v811
    %v5099 = vunpack.c.h.b16 %v811
    %v5100 = vunpack.c.l.b16 %v812
    %v5101 = vunpack.c.h.b16 %v812
    %v5102 = vunpack.c.l.b16 %v813
    %v5103 = vunpack.c.h.b16 %v813
    %v5104 = vunpack.c.l.b16 %v814
    %v5105 = vunpack.c.h.b16 %v814
    %v5106 = vunpack.c.l.b16 %v815
    %v5107 = vunpack.c.h.b16 %v815
    %v5108 = vunpack.c.l.b16 %v816
    %v5109 = vunpack.c.h.b16 %v816
    %v5110 = vunpack.c.l.b16 %v817
    %v5111 = vunpack.c.h.b16 %v817
    %v5112 = vunpack.c.l.b16 %v818
    %v5113 = vunpack.c.h.b16 %v818
    %v5114 = vunpack.c.l.b16 %v819
    %v5115 = vunpack.c.h.b16 %v819
    %v5116 = vunpack.c.l.b16 %v820
    %v5117 = vunpack.c.h.b16 %v820
    %v5118 = vunpack.c.l.b16 %v821
    %v5119 = vunpack.c.h.b16 %v821
    %v5120 = vunpack.c.l.b16 %v822
    %v5121 = vunpack.c.h.b16 %v822
    %v5122 = vunpack.c.l.b16 %v823
    %v5123 = vunpack.c.h.b16 %v823
    %v5124 = vunpack.c.l.b16 %v824
    %v5125 = vunpack.c.h.b16 %v824
    %v5126 = vunpack.c.l.b16 %v825
    %v5127 = vunpack.c.h.b16 %v825
    %v5128 = vunpack.c.l.b16 %v826
    %v5129 = vunpack.c.h.b16 %v826
    %v5130 = vunpack.c.l.b16 %v827
    %v5131 = vunpack.c.h.b16 %v827
    %v5132 = vunpack.c.l.b16 %v828
    %v5133 = vunpack.c.h.b16 %v828
    %v5134 = vunpack.c.l.b16 %v829
    %v5135 = vunpack.c.h.b16 %v829
    %v5136 = vunpack.c.l.b16 %v830
    %v5137 = vunpack.c.h.b16 %v830
    %v5138 = vunpack.c.l.b16 %v831
    %v5139 = vunpack.c.h.b16 %v831
    %v5140 = vunpack.c.l.b16 %v832
    %v5141 = vunpack.c.h.b16 %v832
    %v5142 = vunpack.c.l.b16 %v833
    %v5143 = vunpack.c.h.b16 %v833
    %v5144 = vunpack.c.l.b16 %v834
    %v5145 = vunpack.c.h.b16 %v834
    %v5146 = vunpack.c.l.b16 %v835
    %v5147 = vunpack.c.h.b16 %v835
    %v5148 = vunpack.c.l.b16 %v836
    %v5149 = vunpack.c.h.b16 %v836
    %v5150 = vunpack.c.l.b16 %v837
    %v5151 = vunpack.c.h.b16 %v837
    %v5152 = vunpack.c.l.b16 %v838
    %v5153 = vunpack.c.h.b16 %v838
    %v5154 = vunpack.c.l.b16 %v839
    %v5155 = vunpack.c.h.b16 %v839
    %v5156 = vunpack.c.l.b16 %v840
    %v5157 = vunpack.c.h.b16 %v840
    %v5158 = vunpack.c.l.b16 %v841
    %v5159 = vunpack.c.h.b16 %v841
    %v5160 = vunpack.c.l.b16 %v842
    %v5161 = vunpack.c.h.b16 %v842
    %v5162 = vunpack.c.l.b16 %v843
    %v5163 = vunpack.c.h.b16 %v843
    %v5164 = vunpack.c.l.b16 %v844
    %v5165 = vunpack.c.h.b16 %v844
    %v5166 = vunpack.c.l.b16 %v845
    %v5167 = vunpack.c.h.b16 %v845
    %v5168 = vunpack.c.l.b16 %v846
    %v5169 = vunpack.c.h.b16 %v846
    %v5170 = vunpack.c.l.b16 %v847
    %v5171 = vunpack.c.h.b16 %v847
    %v5172 = vunpack.c.l.b16 %v848
    %v5173 = vunpack.c.h.b16 %v848
    %v5174 = vunpack.c.l.b16 %v849
    %v5175 = vunpack.c.h.b16 %v849
    %v5176 = vunpack.c.l.b16 %v850
    %v5177 = vunpack.c.h.b16 %v850
    %v5178 = vunpack.c.l.b16 %v851
    %v5179 = vunpack.c.h.b16 %v851
    %v5180 = vunpack.c.l.b16 %v852
    %v5181 = vunpack.c.h.b16 %v852
    %v5182 = vunpack.c.l.b16 %v853
    %v5183 = vunpack.c.h.b16 %v853
    %v5184 = vunpack.c.l.b16 %v854
    %v5185 = vunpack.c.h.b16 %v854
    %v5186 = vunpack.c.l.b16 %v855
    %v5187 = vunpack.c.h.b16 %v855
    %v5188 = vunpack.c.l.b16 %v856
    %v5189 = vunpack.c.h.b16 %v856
    %v5190 = vunpack.c.l.b16 %v857
    %v5191 = vunpack.c.h.b16 %v857
    %v5192 = vunpack.c.l.b16 %v858
    %v5193 = vunpack.c.h.b16 %v858
    %v5194 = vunpack.c.l.b16 %v859
    %v5195 = vunpack.c.h.b16 %v859
    %v5196 = vunpack.c.l.b16 %v860
    %v5197 = vunpack.c.h.b16 %v860
    %v5198 = vunpack.c.l.b16 %v861
    %v5199 = vunpack.c.h.b16 %v861
    %v5200 = vunpack.c.l.b16 %v862
    %v5201 = vunpack.c.h.b16 %v862
    %v5202 = vunpack.c.l.b16 %v863
    %v5203 = vunpack.c.h.b16 %v863
    %v5204 = vunpack.c.l.b16 %v864
    %v5205 = vunpack.c.h.b16 %v864
    %v5206 = vunpack.c.l.b16 %v865
    %v5207 = vunpack.c.h.b16 %v865
    %v5208 = vunpack.c.l.b16 %v866
    %v5209 = vunpack.c.h.b16 %v866
    %v5210 = vunpack.c.l.b16 %v867
    %v5211 = vunpack.c.h.b16 %v867
    %v5212 = vunpack.c.l.b16 %v868
    %v5213 = vunpack.c.h.b16 %v868
    %v5214 = vunpack.c.l.b16 %v869
    %v5215 = vunpack.c.h.b16 %v869
    %v5216 = vunpack.c.l.b16 %v870
    %v5217 = vunpack.c.h.b16 %v870
    %v5218 = vunpack.c.l.b16 %v871
    %v5219 = vunpack.c.h.b16 %v871
    %v5220 = vunpack.c.l.b16 %v872
    %v5221 = vunpack.c.h.b16 %v872
    %v5222 = vunpack.c.l.b16 %v873
    %v5223 = vunpack.c.h.b16 %v873
    %v5224 = vunpack.c.l.b16 %v874
    %v5225 = vunpack.c.h.b16 %v874
    %v5226 = vunpack.c.l.b16 %v875
    %v5227 = vunpack.c.h.b16 %v875
    %v5228 = vunpack.c.l.b16 %v876
    %v5229 = vunpack.c.h.b16 %v876
    %v5230 = vunpack.c.l.b16 %v877
    %v5231 = vunpack.c.h.b16 %v877
    %v5232 = vunpack.c.l.b16 %v878
    %v5233 = vunpack.c.h.b16 %v878
    %v5234 = vunpack.c.l.b16 %v879
    %v5235 = vunpack.c.h.b16 %v879
    %v5236 = vunpack.c.l.b16 %v880
    %v5237 = vunpack.c.h.b16 %v880
    %v5238 = vunpack.c.l.b16 %v881
    %v5239 = vunpack.c.h.b16 %v881
    %v5240 = vunpack.c.l.b16 %v882
    %v5241 = vunpack.c.h.b16 %v882
    %v5242 = vunpack.c.l.b16 %v883
    %v5243 = vunpack.c.h.b16 %v883
    %v5244 = vunpack.c.l.b16 %v884
    %v5245 = vunpack.c.h.b16 %v884
    %v5246 = vunpack.c.l.b16 %v885
    %v5247 = vunpack.c.h.b16 %v885
    %v5248 = vunpack.c.l.b16 %v886
    %v5249 = vunpack.c.h.b16 %v886
    %v5250 = vunpack.c.l.b16 %v887
    %v5251 = vunpack.c.h.b16 %v887
    %v5252 = vunpack.c.l.b16 %v888
    %v5253 = vunpack.c.h.b16 %v888
    %v5254 = vunpack.c.l.b16 %v889
    %v5255 = vunpack.c.h.b16 %v889
    %v5256 = vunpack.c.l.b16 %v890
    %v5257 = vunpack.c.h.b16 %v890
    %v5258 = vunpack.c.l.b16 %v891
    %v5259 = vunpack.c.h.b16 %v891
    %v5260 = vunpack.c.l.b16 %v892
    %v5261 = vunpack.c.h.b16 %v892
    %v5262 = vunpack.c.l.b16 %v893
    %v5263 = vunpack.c.h.b16 %v893
    %v5264 = vunpack.c.l.b16 %v894
    %v5265 = vunpack.c.h.b16 %v894
    %v5266 = vunpack.c.l.b16 %v895
    %v5267 = vunpack.c.h.b16 %v895
    %v5268 = vunpack.c.l.b16 %v896
    %v5269 = vunpack.c.h.b16 %v896
    %v5270 = vunpack.c.l.b16 %v897
    %v5271 = vunpack.c.h.b16 %v897
    %v5272 = vunpack.c.l.b16 %v898
    %v5273 = vunpack.c.h.b16 %v898
    %v5274 = vunpack.c.l.b16 %v899
    %v5275 = vunpack.c.h.b16 %v899
    %v5276 = vunpack.c.l.b16 %v900
    %v5277 = vunpack.c.h.b16 %v900
    %v5278 = vunpack.c.l.b16 %v901
    %v5279 = vunpack.c.h.b16 %v901
    %v5280 = vunpack.c.l.b16 %v902
    %v5281 = vunpack.c.h.b16 %v902
    %v5282 = vunpack.c.l.b16 %v903
    %v5283 = vunpack.c.h.b16 %v903
    %v5284 = vunpack.c.l.b16 %v904
    %v5285 = vunpack.c.h.b16 %v904
    %v5286 = vunpack.c.l.b16 %v905
    %v5287 = vunpack.c.h.b16 %v905
    %v5288 = vunpack.c.l.b16 %v906
    %v5289 = vunpack.c.h.b16 %v906
    %v5290 = vunpack.c.l.b16 %v907
    %v5291 = vunpack.c.h.b16 %v907
    %v5292 = vunpack.c.l.b16 %v908
    %v5293 = vunpack.c.h.b16 %v908
    %v5294 = vunpack.c.l.b16 %v909
    %v5295 = vunpack.c.h.b16 %v909
    %v5296 = vunpack.c.l.b16 %v910
    %v5297 = vunpack.c.h.b16 %v910
    %v5298 = vunpack.c.l.b16 %v911
    %v5299 = vunpack.c.h.b16 %v911
    %v5300 = vunpack.c.l.b16 %v912
    %v5301 = vunpack.c.h.b16 %v912
    %v5302 = vunpack.c.l.b16 %v913
    %v5303 = vunpack.c.h.b16 %v913
    %v5304 = vunpack.c.l.b16 %v914
    %v5305 = vunpack.c.h.b16 %v914
    %v5306 = vunpack.c.l.b16 %v915
    %v5307 = vunpack.c.h.b16 %v915
    %v5308 = vunpack.c.l.b16 %v916
    %v5309 = vunpack.c.h.b16 %v916
    %v5310 = vunpack.c.l.b16 %v917
    %v5311 = vunpack.c.h.b16 %v917
    %v5312 = vunpack.c.l.b16 %v918
    %v5313 = vunpack.c.h.b16 %v918
    %v5314 = vunpack.c.l.b16 %v919
    %v5315 = vunpack.c.h.b16 %v919
    %v5316 = vunpack.c.l.b16 %v920
    %v5317 = vunpack.c.h.b16 %v920
    %v5318 = vunpack.c.l.b16 %v921
    %v5319 = vunpack.c.h.b16 %v921
    %v5320 = vunpack.c.l.b16 %v922
    %v5321 = vunpack.c.h.b16 %v922
    %v5322 = vunpack.c.l.b16 %v923
    %v5323 = vunpack.c.h.b16 %v923
    %v5324 = vunpack.c.l.b16 %v924
    %v5325 = vunpack.c.h.b16 %v924
    %v5326 = vunpack.c.l.b16 %v925
    %v5327 = vunpack.c.h.b16 %v925
    %v5328 = vunpack.c.l.b16 %v926
    %v5329 = vunpack.c.h.b16 %v926
    %v5330 = vunpack.c.l.b16 %v927
    %v5331 = vunpack.c.h.b16 %v927
    %v5332 = vunpack.c.l.b16 %v928
    %v5333 = vunpack.c.h.b16 %v928
    %v5334 = vunpack.c.l.b16 %v929
    %v5335 = vunpack.c.h.b16 %v929
    %v5336 = vunpack.c.l.b16 %v930
    %v5337 = vunpack.c.h.b16 %v930
    %v5338 = vunpack.c.l.b16 %v931
    %v5339 = vunpack.c.h.b16 %v931
    %v5340 = vunpack.c.l.b16 %v932
    %v5341 = vunpack.c.h.b16 %v932
    %v5342 = vunpack.c.l.b16 %v933
    %v5343 = vunpack.c.h.b16 %v933
    %v5344 = vunpack.c.l.b16 %v934
    %v5345 = vunpack.c.h.b16 %v934
    %v5346 = vunpack.c.l.b16 %v935
    %v5347 = vunpack.c.h.b16 %v935
    %v5348 = vunpack.c.l.b16 %v936
    %v5349 = vunpack.c.h.b16 %v936
    %v5350 = vunpack.c.l.b16 %v937
    %v5351 = vunpack.c.h.b16 %v937
    %v5352 = vunpack.c.l.b16 %v938
    %v5353 = vunpack.c.h.b16 %v938
    %v5354 = vunpack.c.l.b16 %v939
    %v5355 = vunpack.c.h.b16 %v939
    %v5356 = vunpack.c.l.b16 %v940
    %v5357 = vunpack.c.h.b16 %v940
    %v5358 = vunpack.c.l.b16 %v941
    %v5359 = vunpack.c.h.b16 %v941
    %v5360 = vunpack.c.l.b16 %v942
    %v5361 = vunpack.c.h.b16 %v942
    %v5362 = vunpack.c.l.b16 %v943
    %v5363 = vunpack.c.h.b16 %v943
    %v5364 = vunpack.c.l.b16 %v944
    %v5365 = vunpack.c.h.b16 %v944
    %v5366 = vunpack.c.l.b16 %v945
    %v5367 = vunpack.c.h.b16 %v945
    %v5368 = vunpack.c.l.b16 %v946
    %v5369 = vunpack.c.h.b16 %v946
    %v5370 = vunpack.c.l.b16 %v947
    %v5371 = vunpack.c.h.b16 %v947
    %v5372 = vunpack.c.l.b16 %v948
    %v5373 = vunpack.c.h.b16 %v948
    %v5374 = vunpack.c.l.b16 %v949
    %v5375 = vunpack.c.h.b16 %v949
    %v5376 = vunpack.c.l.b16 %v950
    %v5377 = vunpack.c.h.b16 %v950
    %v5378 = vunpack.c.l.b16 %v951
    %v5379 = vunpack.c.h.b16 %v951
    %v5380 = vunpack.c.l.b16 %v952
    %v5381 = vunpack.c.h.b16 %v952
    %v5382 = vunpack.c.l.b16 %v953
    %v5383 = vunpack.c.h.b16 %v953
    %v5384 = vunpack.c.l.b16 %v954
    %v5385 = vunpack.c.h.b16 %v954
    %v5386 = vunpack.c.l.b16 %v955
    %v5387 = vunpack.c.h.b16 %v955
    %v5388 = vunpack.c.l.b16 %v956
    %v5389 = vunpack.c.h.b16 %v956
    %v5390 = vunpack.c.l.b16 %v957
    %v5391 = vunpack.c.h.b16 %v957
    %v5392 = vunpack.c.l.b16 %v958
    %v5393 = vunpack.c.h.b16 %v958
    %v5394 = vunpack.c.l.b16 %v959
    %v5395 = vunpack.c.h.b16 %v959
    %v5396 = vunpack.c.l.b16 %v960
    %v5397 = vunpack.c.h.b16 %v960
    %v5398 = vunpack.c.l.b16 %v961
    %v5399 = vunpack.c.h.b16 %v961
    %v5400 = vunpack.c.l.b16 %v962
    %v5401 = vunpack.c.h.b16 %v962
    %v5402 = vunpack.c.l.b16 %v963
    %v5403 = vunpack.c.h.b16 %v963
    %v5404 = vunpack.c.l.b16 %v964
    %v5405 = vunpack.c.h.b16 %v964
    %v5406 = vunpack.c.l.b16 %v965
    %v5407 = vunpack.c.h.b16 %v965
    %v5408 = vunpack.c.l.b16 %v966
    %v5409 = vunpack.c.h.b16 %v966
    %v5410 = vunpack.c.l.b16 %v967
    %v5411 = vunpack.c.h.b16 %v967
    %v5412 = vunpack.c.l.b16 %v968
    %v5413 = vunpack.c.h.b16 %v968
    %v5414 = vunpack.c.l.b16 %v969
    %v5415 = vunpack.c.h.b16 %v969
    %v5416 = vunpack.c.l.b16 %v970
    %v5417 = vunpack.c.h.b16 %v970
    %v5418 = vunpack.c.l.b16 %v971
    %v5419 = vunpack.c.h.b16 %v971
    %v5420 = vunpack.c.l.b16 %v972
    %v5421 = vunpack.c.h.b16 %v972
    %v5422 = vunpack.c.l.b16 %v973
    %v5423 = vunpack.c.h.b16 %v973
    %v5424 = vunpack.c.l.b16 %v974
    %v5425 = vunpack.c.h.b16 %v974
    %v5426 = vunpack.c.l.b16 %v975
    %v5427 = vunpack.c.h.b16 %v975
    %v5428 = vunpack.c.l.b16 %v976
    %v5429 = vunpack.c.h.b16 %v976
    %v5430 = vunpack.c.l.b16 %v977
    %v5431 = vunpack.c.h.b16 %v977
    %v5432 = vunpack.c.l.b16 %v978
    %v5433 = vunpack.c.h.b16 %v978
    %v5434 = vunpack.c.l.b16 %v979
    %v5435 = vunpack.c.h.b16 %v979
    %v5436 = vunpack.c.l.b16 %v980
    %v5437 = vunpack.c.h.b16 %v980
    %v5438 = vunpack.c.l.b16 %v981
    %v5439 = vunpack.c.h.b16 %v981
    %v5440 = vunpack.c.l.b16 %v982
    %v5441 = vunpack.c.h.b16 %v982
    %v5442 = vunpack.c.l.b16 %v983
    %v5443 = vunpack.c.h.b16 %v983
    %v5444 = vunpack.c.l.b16 %v984
    %v5445 = vunpack.c.h.b16 %v984
    %v5446 = vunpack.c.l.b16 %v985
    %v5447 = vunpack.c.h.b16 %v985
    %v5448 = vunpack.c.l.b16 %v986
    %v5449 = vunpack.c.h.b16 %v986
    %v5450 = vunpack.c.l.b16 %v987
    %v5451 = vunpack.c.h.b16 %v987
    %v5452 = vunpack.c.l.b16 %v988
    %v5453 = vunpack.c.h.b16 %v988
    %v5454 = vunpack.c.l.b16 %v989
    %v5455 = vunpack.c.h.b16 %v989
    %v5456 = vunpack.c.l.b16 %v990
    %v5457 = vunpack.c.h.b16 %v990
    %v5458 = vunpack.c.l.b16 %v991
    %v5459 = vunpack.c.h.b16 %v991
    %v5460 = vunpack.c.l.b16 %v992
    %v5461 = vunpack.c.h.b16 %v992
    %v5462 = vunpack.c.l.b16 %v993
    %v5463 = vunpack.c.h.b16 %v993
    %v5464 = vunpack.c.l.b16 %v994
    %v5465 = vunpack.c.h.b16 %v994
    %v5466 = vunpack.c.l.b16 %v995
    %v5467 = vunpack.c.h.b16 %v995
    %v5468 = vunpack.c.l.b16 %v996
    %v5469 = vunpack.c.h.b16 %v996
    %v5470 = vunpack.c.l.b16 %v997
    %v5471 = vunpack.c.h.b16 %v997
    %v5472 = vunpack.c.l.b16 %v998
    %v5473 = vunpack.c.h.b16 %v998
    %v5474 = vunpack.c.l.b16 %v999
    %v5475 = vunpack.c.h.b16 %v999
    %v5476 = vunpack.c.l.b16 %v1000
    %v5477 = vunpack.c.h.b16 %v1000
    %v5478 = vunpack.c.l.b16 %v1001
    %v5479 = vunpack.c.h.b16 %v1001
    %v5480 = vunpack.c.l.b16 %v1002
    %v5481 = vunpack.c.h.b16 %v1002
    %v5482 = vunpack.c.l.b16 %v1003
    %v5483 = vunpack.c.h.b16 %v1003
    %v5484 = vunpack.c.l.b16 %v1004
    %v5485 = vunpack.c.h.b16 %v1004
    %v5486 = vunpack.c.l.b16 %v1005
    %v5487 = vunpack.c.h.b16 %v1005
    %v5488 = vunpack.c.l.b16 %v1006
    %v5489 = vunpack.c.h.b16 %v1006
    %v5490 = vunpack.c.l.b16 %v1007
    %v5491 = vunpack.c.h.b16 %v1007
    %v5492 = vunpack.c.l.b16 %v1008
    %v5493 = vunpack.c.h.b16 %v1008
    %v5494 = vunpack.c.l.b16 %v1009
    %v5495 = vunpack.c.h.b16 %v1009
    %v5496 = vunpack.c.l.b16 %v1010
    %v5497 = vunpack.c.h.b16 %v1010
    %v5498 = vunpack.c.l.b16 %v1011
    %v5499 = vunpack.c.h.b16 %v1011
    %v5500 = vunpack.c.l.b16 %v1012
    %v5501 = vunpack.c.h.b16 %v1012
    %v5502 = vunpack.c.l.b16 %v1013
    %v5503 = vunpack.c.h.b16 %v1013
    %v5504 = vunpack.c.l.b16 %v1014
    %v5505 = vunpack.c.h.b16 %v1014
    %v5506 = vunpack.c.l.b16 %v1015
    %v5507 = vunpack.c.h.b16 %v1015
    %v5508 = vunpack.c.l.b16 %v1016
    %v5509 = vunpack.c.h.b16 %v1016
    %v5510 = vunpack.c.l.b16 %v1017
    %v5511 = vunpack.c.h.b16 %v1017
    %v5512 = vunpack.c.l.b16 %v1018
    %v5513 = vunpack.c.h.b16 %v1018
    %v5514 = vunpack.c.l.b16 %v1019
    %v5515 = vunpack.c.h.b16 %v1019
    %v5516 = vunpack.c.l.b16 %v1020
    %v5517 = vunpack.c.h.b16 %v1020
    %v5518 = vunpack.c.l.b16 %v1021
    %v5519 = vunpack.c.h.b16 %v1021
    %v5520 = vunpack.c.l.b16 %v1022
    %v5521 = vunpack.c.h.b16 %v1022
    %v5522 = vunpack.c.l.b16 %v1023
    %v5523 = vunpack.c.h.b16 %v1023
    %v5524 = vunpack.c.l.b16 %v1024
    %v5525 = vunpack.c.h.b16 %v1024
    %v5526 = vunpack.c.l.b16 %v1025
    %v5527 = vunpack.c.h.b16 %v1025
    %v5528 = vunpack.c.l.b16 %v1026
    %v5529 = vunpack.c.h.b16 %v1026
    %v5530 = vunpack.c.l.b16 %v1027
    %v5531 = vunpack.c.h.b16 %v1027
    %v5532 = vunpack.c.l.b16 %v1028
    %v5533 = vunpack.c.h.b16 %v1028
    %v5534 = vunpack.c.l.b16 %v1029
    %v5535 = vunpack.c.h.b16 %v1029
    %v5536 = vunpack.c.l.b16 %v1030
    %v5537 = vunpack.c.h.b16 %v1030
    %v5538 = vunpack.c.l.b16 %v1031
    %v5539 = vunpack.c.h.b16 %v1031
    %v5540 = vunpack.c.l.b16 %v1032
    %v5541 = vunpack.c.h.b16 %v1032
    %v5542 = vunpack.c.l.b16 %v1033
    %v5543 = vunpack.c.h.b16 %v1033
    %v5544 = vunpack.c.l.b16 %v1034
    %v5545 = vunpack.c.h.b16 %v1034
    %v5546 = vunpack.c.l.b16 %v1035
    %v5547 = vunpack.c.h.b16 %v1035
    %v5548 = vunpack.c.l.b16 %v1036
    %v5549 = vunpack.c.h.b16 %v1036
    %v5550 = vunpack.c.l.b16 %v1037
    %v5551 = vunpack.c.h.b16 %v1037
    %v5552 = vunpack.c.l.b16 %v1038
    %v5553 = vunpack.c.h.b16 %v1038
    %v5554 = vunpack.c.l.b16 %v1039
    %v5555 = vunpack.c.h.b16 %v1039
    %v5556 = vunpack.c.l.b16 %v1040
    %v5557 = vunpack.c.h.b16 %v1040
    %v5558 = vunpack.c.l.b16 %v1041
    %v5559 = vunpack.c.h.b16 %v1041
    %v5560 = vunpack.c.l.b16 %v1042
    %v5561 = vunpack.c.h.b16 %v1042
    %v5562 = vunpack.c.l.b16 %v1043
    %v5563 = vunpack.c.h.b16 %v1043
    %v5564 = vunpack.c.l.b16 %v1044
    %v5565 = vunpack.c.h.b16 %v1044
    %v5566 = vunpack.c.l.b16 %v1045
    %v5567 = vunpack.c.h.b16 %v1045
    %v5568 = vunpack.c.l.b16 %v1046
    %v5569 = vunpack.c.h.b16 %v1046
    %v5570 = vunpack.c.l.b16 %v1047
    %v5571 = vunpack.c.h.b16 %v1047
    %v5572 = vunpack.c.l.b16 %v1048
    %v5573 = vunpack.c.h.b16 %v1048
    %v5574 = vunpack.c.l.b16 %v1049
    %v5575 = vunpack.c.h.b16 %v1049
    %v5576 = vunpack.c.l.b16 %v1050
    %v5577 = vunpack.c.h.b16 %v1050
    %v5578 = vunpack.c.l.b16 %v1051
    %v5579 = vunpack.c.h.b16 %v1051
    %v5580 = vunpack.c.l.b16 %v1052
    %v5581 = vunpack.c.h.b16 %v1052
    %v5582 = vunpack.c.l.b16 %v1053
    %v5583 = vunpack.c.h.b16 %v1053
    %v5584 = vunpack.c.l.b16 %v1054
    %v5585 = vunpack.c.h.b16 %v1054
    %v5586 = vunpack.c.l.b16 %v1055
    %v5587 = vunpack.c.h.b16 %v1055
    %v5588 = vunpack.c.l.b16 %v1056
    %v5589 = vunpack.c.h.b16 %v1056
    %v5590 = vunpack.c.l.b16 %v1057
    %v5591 = vunpack.c.h.b16 %v1057
    %v5592 = vunpack.c.l.b16 %v1058
    %v5593 = vunpack.c.h.b16 %v1058
    %v5594 = vunpack.c.l.b16 %v1059
    %v5595 = vunpack.c.h.b16 %v1059
    %v5596 = vunpack.c.l.b16 %v1060
    %v5597 = vunpack.c.h.b16 %v1060
    %v5598 = vunpack.c.l.b16 %v1061
    %v5599 = vunpack.c.h.b16 %v1061
    %v5600 = vunpack.c.l.b16 %v1062
    %v5601 = vunpack.c.h.b16 %v1062
    %v5602 = vunpack.c.l.b16 %v1063
    %v5603 = vunpack.c.h.b16 %v1063
    %v5604 = vunpack.c.l.b16 %v1064
    %v5605 = vunpack.c.h.b16 %v1064
    %v5606 = vunpack.c.l.b16 %v1065
    %v5607 = vunpack.c.h.b16 %v1065
    %v5608 = vunpack.c.l.b16 %v1066
    %v5609 = vunpack.c.h.b16 %v1066
    %v5610 = vunpack.c.l.b16 %v1067
    %v5611 = vunpack.c.h.b16 %v1067
    %v5612 = vunpack.c.l.b16 %v1068
    %v5613 = vunpack.c.h.b16 %v1068
    %v5614 = vunpack.c.l.b16 %v1069
    %v5615 = vunpack.c.h.b16 %v1069
    %v5616 = vunpack.c.l.b16 %v1070
    %v5617 = vunpack.c.h.b16 %v1070
    %v5618 = vunpack.c.l.b16 %v1071
    %v5619 = vunpack.c.h.b16 %v1071
    %v5620 = vunpack.c.l.b16 %v1072
    %v5621 = vunpack.c.h.b16 %v1072
    %v5622 = vunpack.c.l.b16 %v1073
    %v5623 = vunpack.c.h.b16 %v1073
    %v5624 = vunpack.c.l.b16 %v1074
    %v5625 = vunpack.c.h.b16 %v1074
    %v5626 = vunpack.c.l.b16 %v1075
    %v5627 = vunpack.c.h.b16 %v1075
    %v5628 = vunpack.c.l.b16 %v1076
    %v5629 = vunpack.c.h.b16 %v1076
    %v5630 = vunpack.c.l.b16 %v1077
    %v5631 = vunpack.c.h.b16 %v1077
    %v5632 = vunpack.c.l.b16 %v1078
    %v5633 = vunpack.c.h.b16 %v1078
    %v5634 = vunpack.c.l.b16 %v1079
    %v5635 = vunpack.c.h.b16 %v1079
    %v5636 = vunpack.c.l.b16 %v1080
    %v5637 = vunpack.c.h.b16 %v1080
    %v5638 = vunpack.c.l.b16 %v1081
    %v5639 = vunpack.c.h.b16 %v1081
    %v5640 = vunpack.c.l.b16 %v1082
    %v5641 = vunpack.c.h.b16 %v1082
    %v5642 = vunpack.c.l.b16 %v1083
    %v5643 = vunpack.c.h.b16 %v1083
    %v5644 = vunpack.c.l.b16 %v1084
    %v5645 = vunpack.c.h.b16 %v1084
    %v5646 = vunpack.c.l.b16 %v1085
    %v5647 = vunpack.c.h.b16 %v1085
    %v5648 = vunpack.c.l.b16 %v1086
    %v5649 = vunpack.c.h.b16 %v1086
    %v5650 = vunpack.c.l.b16 %v1087
    %v5651 = vunpack.c.h.b16 %v1087
    %v5652 = vunpack.c.l.b16 %v1088
    %v5653 = vunpack.c.h.b16 %v1088
    %v5654 = vunpack.c.l.b16 %v1089
    %v5655 = vunpack.c.h.b16 %v1089
    %v5656 = vunpack.c.l.b16 %v1090
    %v5657 = vunpack.c.h.b16 %v1090
    %v5658 = vunpack.c.l.b16 %v1091
    %v5659 = vunpack.c.h.b16 %v1091
    %v5660 = vunpack.c.l.b16 %v1092
    %v5661 = vunpack.c.h.b16 %v1092
    %v5662 = vunpack.c.l.b16 %v1093
    %v5663 = vunpack.c.h.b16 %v1093
    %v5664 = vunpack.c.l.b16 %v1094
    %v5665 = vunpack.c.h.b16 %v1094
    %v5666 = vunpack.c.l.b16 %v1095
    %v5667 = vunpack.c.h.b16 %v1095
    %v5668 = vunpack.c.l.b16 %v1096
    %v5669 = vunpack.c.h.b16 %v1096
    %v5670 = vunpack.c.l.b16 %v1097
    %v5671 = vunpack.c.h.b16 %v1097
    %v5672 = vunpack.c.l.b16 %v1098
    %v5673 = vunpack.c.h.b16 %v1098
    %v5674 = vunpack.c.l.b16 %v1099
    %v5675 = vunpack.c.h.b16 %v1099
    %v5676 = vunpack.c.l.b16 %v1100
    %v5677 = vunpack.c.h.b16 %v1100
    %v5678 = vunpack.c.l.b16 %v1101
    %v5679 = vunpack.c.h.b16 %v1101
    %v5680 = vunpack.c.l.b16 %v1102
    %v5681 = vunpack.c.h.b16 %v1102
    %v5682 = vunpack.c.l.b16 %v1103
    %v5683 = vunpack.c.h.b16 %v1103
    %v5684 = vunpack.c.l.b16 %v1104
    %v5685 = vunpack.c.h.b16 %v1104
    %v5686 = vunpack.c.l.b16 %v1105
    %v5687 = vunpack.c.h.b16 %v1105
    %v5688 = vunpack.c.l.b16 %v1106
    %v5689 = vunpack.c.h.b16 %v1106
    %v5690 = vunpack.c.l.b16 %v1107
    %v5691 = vunpack.c.h.b16 %v1107
    %v5692 = vunpack.c.l.b16 %v1108
    %v5693 = vunpack.c.h.b16 %v1108
    %v5694 = vunpack.c.l.b16 %v1109
    %v5695 = vunpack.c.h.b16 %v1109
    %v5696 = vunpack.c.l.b16 %v1110
    %v5697 = vunpack.c.h.b16 %v1110
    %v5698 = vunpack.c.l.b16 %v1111
    %v5699 = vunpack.c.h.b16 %v1111
    %v5700 = vunpack.c.l.b16 %v1112
    %v5701 = vunpack.c.h.b16 %v1112
    %v5702 = vunpack.c.l.b16 %v1113
    %v5703 = vunpack.c.h.b16 %v1113
    %v5704 = vunpack.c.l.b16 %v1114
    %v5705 = vunpack.c.h.b16 %v1114
    %v5706 = vunpack.c.l.b16 %v1115
    %v5707 = vunpack.c.h.b16 %v1115
    %v5708 = vunpack.c.l.b16 %v1116
    %v5709 = vunpack.c.h.b16 %v1116
    %v5710 = vunpack.c.l.b16 %v1117
    %v5711 = vunpack.c.h.b16 %v1117
    %v5712 = vunpack.c.l.b16 %v1118
    %v5713 = vunpack.c.h.b16 %v1118
    %v5714 = vunpack.c.l.b16 %v1119
    %v5715 = vunpack.c.h.b16 %v1119
    %v5716 = vunpack.c.l.b16 %v1120
    %v5717 = vunpack.c.h.b16 %v1120
    %v5718 = vunpack.c.l.b16 %v1121
    %v5719 = vunpack.c.h.b16 %v1121
    %v5720 = vunpack.c.l.b16 %v1122
    %v5721 = vunpack.c.h.b16 %v1122
    %v5722 = vunpack.c.l.b16 %v1123
    %v5723 = vunpack.c.h.b16 %v1123
    %v5724 = vunpack.c.l.b16 %v1124
    %v5725 = vunpack.c.h.b16 %v1124
    %v5726 = vunpack.c.l.b16 %v1125
    %v5727 = vunpack.c.h.b16 %v1125
    %v5728 = vunpack.c.l.b16 %v1126
    %v5729 = vunpack.c.h.b16 %v1126
    %v5730 = vunpack.c.l.b16 %v1127
    %v5731 = vunpack.c.h.b16 %v1127
    %v5732 = vunpack.c.l.b16 %v1128
    %v5733 = vunpack.c.h.b16 %v1128
    %v5734 = vunpack.c.l.b16 %v1129
    %v5735 = vunpack.c.h.b16 %v1129
    %v5736 = vunpack.c.l.b16 %v1130
    %v5737 = vunpack.c.h.b16 %v1130
    %v5738 = vunpack.c.l.b16 %v1131
    %v5739 = vunpack.c.h.b16 %v1131
    %v5740 = vunpack.c.l.b16 %v1132
    %v5741 = vunpack.c.h.b16 %v1132
    %v5742 = vunpack.c.l.b16 %v1133
    %v5743 = vunpack.c.h.b16 %v1133
    %v5744 = vunpack.c.l.b16 %v1134
    %v5745 = vunpack.c.h.b16 %v1134
    %v5746 = vunpack.c.l.b16 %v1135
    %v5747 = vunpack.c.h.b16 %v1135
    %v5748 = vunpack.c.l.b16 %v1136
    %v5749 = vunpack.c.h.b16 %v1136
    %v5750 = vunpack.c.l.b16 %v1137
    %v5751 = vunpack.c.h.b16 %v1137
    %v5752 = vunpack.c.l.b16 %v1138
    %v5753 = vunpack.c.h.b16 %v1138
    %v5754 = vunpack.c.l.b16 %v1139
    %v5755 = vunpack.c.h.b16 %v1139
    %v5756 = vunpack.c.l.b16 %v1140
    %v5757 = vunpack.c.h.b16 %v1140
    %v5758 = vunpack.c.l.b16 %v1141
    %v5759 = vunpack.c.h.b16 %v1141
    %v5760 = vunpack.c.l.b16 %v1142
    %v5761 = vunpack.c.h.b16 %v1142
    %v5762 = vunpack.c.l.b16 %v1143
    %v5763 = vunpack.c.h.b16 %v1143
    %v5764 = vunpack.c.l.b16 %v1144
    %v5765 = vunpack.c.h.b16 %v1144
    %v5766 = vunpack.c.l.b16 %v1145
    %v5767 = vunpack.c.h.b16 %v1145
    %v5768 = vunpack.c.l.b16 %v1146
    %v5769 = vunpack.c.h.b16 %v1146
    %v5770 = vunpack.c.l.b16 %v1147
    %v5771 = vunpack.c.h.b16 %v1147
    %v5772 = vunpack.c.l.b16 %v1148
    %v5773 = vunpack.c.h.b16 %v1148
    %v5774 = vunpack.c.l.b16 %v1149
    %v5775 = vunpack.c.h.b16 %v1149
    %v5776 = vunpack.c.l.b16 %v1150
    %v5777 = vunpack.c.h.b16 %v1150
    %v5778 = vunpack.c.l.b16 %v1151
    %v5779 = vunpack.c.h.b16 %v1151
    %v5780 = vunpack.c.l.b16 %v1152
    %v5781 = vunpack.c.h.b16 %v1152
    %v5782 = vunpack.c.l.b16 %v1153
    %v5783 = vunpack.c.h.b16 %v1153
    %v5784 = vunpack.c.l.b16 %v1154
    %v5785 = vunpack.c.h.b16 %v1154
    %v5786 = vunpack.c.l.b16 %v1155
    %v5787 = vunpack.c.h.b16 %v1155
    %v5788 = vunpack.c.l.b16 %v1156
    %v5789 = vunpack.c.h.b16 %v1156
    %v5790 = vunpack.c.l.b16 %v1157
    %v5791 = vunpack.c.h.b16 %v1157
    %v5792 = vunpack.c.l.b16 %v1158
    %v5793 = vunpack.c.h.b16 %v1158
    %v5794 = vunpack.c.l.b16 %v1159
    %v5795 = vunpack.c.h.b16 %v1159
    %v5796 = vunpack.c.l.b16 %v1160
    %v5797 = vunpack.c.h.b16 %v1160
    %v5798 = vunpack.c.l.b16 %v1161
    %v5799 = vunpack.c.h.b16 %v1161
    %v5800 = vunpack.c.l.b16 %v1162
    %v5801 = vunpack.c.h.b16 %v1162
    %v5802 = vunpack.c.l.b16 %v1163
    %v5803 = vunpack.c.h.b16 %v1163
    %v5804 = vunpack.c.l.b16 %v1164
    %v5805 = vunpack.c.h.b16 %v1164
    %v5806 = vunpack.c.l.b16 %v1165
    %v5807 = vunpack.c.h.b16 %v1165
    %v5808 = vunpack.c.l.b16 %v1166
    %v5809 = vunpack.c.h.b16 %v1166
    %v5810 = vunpack.c.l.b16 %v1167
    %v5811 = vunpack.c.h.b16 %v1167
    %v5812 = vunpack.c.l.b16 %v1168
    %v5813 = vunpack.c.h.b16 %v1168
    %v5814 = vunpack.c.l.b16 %v1169
    %v5815 = vunpack.c.h.b16 %v1169
    %v5816 = vunpack.c.l.b16 %v1170
    %v5817 = vunpack.c.h.b16 %v1170
    %v5818 = vunpack.c.l.b16 %v1171
    %v5819 = vunpack.c.h.b16 %v1171
    %v5820 = vunpack.c.l.b16 %v1172
    %v5821 = vunpack.c.h.b16 %v1172
    %v5822 = vunpack.c.l.b16 %v1173
    %v5823 = vunpack.c.h.b16 %v1173
    %v5824 = vunpack.c.l.b16 %v1174
    %v5825 = vunpack.c.h.b16 %v1174
    %v5826 = vunpack.c.l.b16 %v1175
    %v5827 = vunpack.c.h.b16 %v1175
    %v5828 = vunpack.c.l.b16 %v1176
    %v5829 = vunpack.c.h.b16 %v1176
    %v5830 = vunpack.c.l.b16 %v1177
    %v5831 = vunpack.c.h.b16 %v1177
    %v5832 = vunpack.c.l.b16 %v1178
    %v5833 = vunpack.c.h.b16 %v1178
    %v5834 = vunpack.c.l.b16 %v1179
    %v5835 = vunpack.c.h.b16 %v1179
    %v5836 = vunpack.c.l.b16 %v1180
    %v5837 = vunpack.c.h.b16 %v1180
    %v5838 = vunpack.c.l.b16 %v1181
    %v5839 = vunpack.c.h.b16 %v1181
    %v5840 = vunpack.c.l.b16 %v1182
    %v5841 = vunpack.c.h.b16 %v1182
    %v5842 = vunpack.c.l.b16 %v1183
    %v5843 = vunpack.c.h.b16 %v1183
    %v5844 = vunpack.c.l.b16 %v1184
    %v5845 = vunpack.c.h.b16 %v1184
    %v5846 = vunpack.c.l.b16 %v1185
    %v5847 = vunpack.c.h.b16 %v1185
    %v5848 = vunpack.c.l.b16 %v1186
    %v5849 = vunpack.c.h.b16 %v1186
    %v5850 = vunpack.c.l.b16 %v1187
    %v5851 = vunpack.c.h.b16 %v1187
    %v5852 = vunpack.c.l.b16 %v1188
    %v5853 = vunpack.c.h.b16 %v1188
    %v5854 = vunpack.c.l.b16 %v1189
    %v5855 = vunpack.c.h.b16 %v1189
    %v5856 = vunpack.c.l.b16 %v1190
    %v5857 = vunpack.c.h.b16 %v1190
    %v5858 = vunpack.c.l.b16 %v1191
    %v5859 = vunpack.c.h.b16 %v1191
    %v5860 = vunpack.c.l.b16 %v1192
    %v5861 = vunpack.c.h.b16 %v1192
    %v5862 = vunpack.c.l.b16 %v1193
    %v5863 = vunpack.c.h.b16 %v1193
    %v5864 = vunpack.c.l.b16 %v1194
    %v5865 = vunpack.c.h.b16 %v1194
    %v5866 = vunpack.c.l.b16 %v1195
    %v5867 = vunpack.c.h.b16 %v1195
    %v5868 = vunpack.c.l.b16 %v1196
    %v5869 = vunpack.c.h.b16 %v1196
    %v5870 = vunpack.c.l.b16 %v1197
    %v5871 = vunpack.c.h.b16 %v1197
    %v5872 = vunpack.c.l.b16 %v1198
    %v5873 = vunpack.c.h.b16 %v1198
    %v5874 = vunpack.c.l.b16 %v1199
    %v5875 = vunpack.c.h.b16 %v1199
    %v5876 = vunpack.c.l.b16 %v1200
    %v5877 = vunpack.c.h.b16 %v1200
    %v5878 = vunpack.c.l.b16 %v1201
    %v5879 = vunpack.c.h.b16 %v1201
    %v5880 = vunpack.c.l.b16 %v1202
    %v5881 = vunpack.c.h.b16 %v1202
    %v5882 = vunpack.c.l.b16 %v1203
    %v5883 = vunpack.c.h.b16 %v1203
    %v5884 = vunpack.c.l.b16 %v1204
    %v5885 = vunpack.c.h.b16 %v1204
    %v5886 = vunpack.c.l.b16 %v1205
    %v5887 = vunpack.c.h.b16 %v1205
    %v5888 = vunpack.c.l.b16 %v1206
    %v5889 = vunpack.c.h.b16 %v1206
    %v5890 = vunpack.c.l.b16 %v1207
    %v5891 = vunpack.c.h.b16 %v1207
    %v5892 = vunpack.c.l.b16 %v1208
    %v5893 = vunpack.c.h.b16 %v1208
    %v5894 = vunpack.c.l.b16 %v1209
    %v5895 = vunpack.c.h.b16 %v1209
    %v5896 = vunpack.c.l.b16 %v1210
    %v5897 = vunpack.c.h.b16 %v1210
    %v5898 = vunpack.c.l.b16 %v1211
    %v5899 = vunpack.c.h.b16 %v1211
    %v5900 = vunpack.c.l.b16 %v1212
    %v5901 = vunpack.c.h.b16 %v1212
    %v5902 = vunpack.c.l.b16 %v1213
    %v5903 = vunpack.c.h.b16 %v1213
    %v5904 = vunpack.c.l.b16 %v1214
    %v5905 = vunpack.c.h.b16 %v1214
    %v5906 = vunpack.c.l.b16 %v1215
    %v5907 = vunpack.c.h.b16 %v1215
    %v5908 = vunpack.c.l.b16 %v1216
    %v5909 = vunpack.c.h.b16 %v1216
    %v5910 = vunpack.c.l.b16 %v1217
    %v5911 = vunpack.c.h.b16 %v1217
    %v5912 = vunpack.c.l.b16 %v1218
    %v5913 = vunpack.c.h.b16 %v1218
    %v5914 = vunpack.c.l.b16 %v1219
    %v5915 = vunpack.c.h.b16 %v1219
    %v5916 = vunpack.c.l.b16 %v1220
    %v5917 = vunpack.c.h.b16 %v1220
    %v5918 = vunpack.c.l.b16 %v1221
    %v5919 = vunpack.c.h.b16 %v1221
    %v5920 = vunpack.c.l.b16 %v1222
    %v5921 = vunpack.c.h.b16 %v1222
    %v5922 = vunpack.c.l.b16 %v1223
    %v5923 = vunpack.c.h.b16 %v1223
    %v5924 = vunpack.c.l.b16 %v1224
    %v5925 = vunpack.c.h.b16 %v1224
    %v5926 = vunpack.c.l.b16 %v1225
    %v5927 = vunpack.c.h.b16 %v1225
    %v5928 = vunpack.c.l.b16 %v1226
    %v5929 = vunpack.c.h.b16 %v1226
    %v5930 = vunpack.c.l.b16 %v1227
    %v5931 = vunpack.c.h.b16 %v1227
    %v5932 = vunpack.c.l.b16 %v1228
    %v5933 = vunpack.c.h.b16 %v1228
    %v5934 = vunpack.c.l.b16 %v1229
    %v5935 = vunpack.c.h.b16 %v1229
    %v5936 = vunpack.c.l.b16 %v1230
    %v5937 = vunpack.c.h.b16 %v1230
    %v5938 = vunpack.c.l.b16 %v1231
    %v5939 = vunpack.c.h.b16 %v1231
    %v5940 = vunpack.c.l.b16 %v1232
    %v5941 = vunpack.c.h.b16 %v1232
    %v5942 = vunpack.c.l.b16 %v1233
    %v5943 = vunpack.c.h.b16 %v1233
    %v5944 = vunpack.c.l.b16 %v1234
    %v5945 = vunpack.c.h.b16 %v1234
    %v5946 = vunpack.c.l.b16 %v1235
    %v5947 = vunpack.c.h.b16 %v1235
    %v5948 = vunpack.c.l.b16 %v1236
    %v5949 = vunpack.c.h.b16 %v1236
    %v5950 = vunpack.c.l.b16 %v1237
    %v5951 = vunpack.c.h.b16 %v1237
    %v5952 = vunpack.c.l.b16 %v1238
    %v5953 = vunpack.c.h.b16 %v1238
    %v5954 = vunpack.c.l.b16 %v1239
    %v5955 = vunpack.c.h.b16 %v1239
    %v5956 = vunpack.c.l.b16 %v1240
    %v5957 = vunpack.c.h.b16 %v1240
    %v5958 = vunpack.c.l.b16 %v1241
    %v5959 = vunpack.c.h.b16 %v1241
    %v5960 = vunpack.c.l.b16 %v1242
    %v5961 = vunpack.c.h.b16 %v1242
    %v5962 = vunpack.c.l.b16 %v1243
    %v5963 = vunpack.c.h.b16 %v1243
    %v5964 = vunpack.c.l.b16 %v1244
    %v5965 = vunpack.c.h.b16 %v1244
    %v5966 = vunpack.c.l.b16 %v1245
    %v5967 = vunpack.c.h.b16 %v1245
    %v5968 = vunpack.c.l.b16 %v1246
    %v5969 = vunpack.c.h.b16 %v1246
    %v5970 = vunpack.c.l.b16 %v1247
    %v5971 = vunpack.c.h.b16 %v1247
    %v5972 = vunpack.c.l.b16 %v1248
    %v5973 = vunpack.c.h.b16 %v1248
    %v5974 = vunpack.c.l.b16 %v1249
    %v5975 = vunpack.c.h.b16 %v1249
    %v5976 = vunpack.c.l.b16 %v1250
    %v5977 = vunpack.c.h.b16 %v1250
    %v5978 = vunpack.c.l.b16 %v1251
    %v5979 = vunpack.c.h.b16 %v1251
    %v5980 = vunpack.c.l.b16 %v1252
    %v5981 = vunpack.c.h.b16 %v1252
    %v5982 = vunpack.c.l.b16 %v1253
    %v5983 = vunpack.c.h.b16 %v1253
    %v5984 = vunpack.c.l.b16 %v1254
    %v5985 = vunpack.c.h.b16 %v1254
    %v5986 = vunpack.c.l.b16 %v1255
    %v5987 = vunpack.c.h.b16 %v1255
    %v5988 = vunpack.c.l.b16 %v1256
    %v5989 = vunpack.c.h.b16 %v1256
    %v5990 = vunpack.c.l.b16 %v1257
    %v5991 = vunpack.c.h.b16 %v1257
    %v5992 = vunpack.c.l.b16 %v1258
    %v5993 = vunpack.c.h.b16 %v1258
    %v5994 = vunpack.c.l.b16 %v1259
    %v5995 = vunpack.c.h.b16 %v1259
    %v5996 = vunpack.c.l.b16 %v1260
    %v5997 = vunpack.c.h.b16 %v1260
    %v5998 = vunpack.c.l.b16 %v1261
    %v5999 = vunpack.c.h.b16 %v1261
    %v6000 = vunpack.c.l.b16 %v1262
    %v6001 = vunpack.c.h.b16 %v1262
    %v6002 = vunpack.c.l.b16 %v1263
    %v6003 = vunpack.c.h.b16 %v1263
    %v6004 = vunpack.c.l.b16 %v1264
    %v6005 = vunpack.c.h.b16 %v1264
    %v6006 = vunpack.c.l.b16 %v1265
    %v6007 = vunpack.c.h.b16 %v1265
    %v6008 = vunpack.c.l.b16 %v1266
    %v6009 = vunpack.c.h.b16 %v1266
    %v6010 = vunpack.c.l.b16 %v1267
    %v6011 = vunpack.c.h.b16 %v1267
    %v6012 = vunpack.c.l.b16 %v1268
    %v6013 = vunpack.c.h.b16 %v1268
    %v6014 = vunpack.c.l.b16 %v1269
    %v6015 = vunpack.c.h.b16 %v1269
    %v6016 = vunpack.c.l.b16 %v1270
    %v6017 = vunpack.c.h.b16 %v1270
    %v6018 = vunpack.c.l.b16 %v1271
    %v6019 = vunpack.c.h.b16 %v1271
    %v6020 = vunpack.c.l.b16 %v1272
    %v6021 = vunpack.c.h.b16 %v1272
    %v6022 = vunpack.c.l.b16 %v1273
    %v6023 = vunpack.c.h.b16 %v1273
    %v6024 = vunpack.c.l.b16 %v1274
    %v6025 = vunpack.c.h.b16 %v1274
    %v6026 = vunpack.c.l.b16 %v1275
    %v6027 = vunpack.c.h.b16 %v1275
    %v6028 = vunpack.c.l.b16 %v1276
    %v6029 = vunpack.c.h.b16 %v1276
    %v6030 = vunpack.c.l.b16 %v1277
    %v6031 = vunpack.c.h.b16 %v1277
    %v6032 = vunpack.c.l.b16 %v1278
    %v6033 = vunpack.c.h.b16 %v1278
    %v6034 = vunpack.c.l.b16 %v1279
    %v6035 = vunpack.c.h.b16 %v1279
    %v6036 = vunpack.c.l.b16 %v1280
    %v6037 = vunpack.c.h.b16 %v1280
    %v6038 = vunpack.c.l.b16 %v1281
    %v6039 = vunpack.c.h.b16 %v1281
    %v6040 = vunpack.c.l.b16 %v1282
    %v6041 = vunpack.c.h.b16 %v1282
    %v6042 = vunpack.c.l.b16 %v1283
    %v6043 = vunpack.c.h.b16 %v1283
    %v6044 = vunpack.c.l.b16 %v1284
    %v6045 = vunpack.c.h.b16 %v1284
    %v6046 = vunpack.c.l.b16 %v1285
    %v6047 = vunpack.c.h.b16 %v1285
    %v6048 = vunpack.c.l.b16 %v1286
    %v6049 = vunpack.c.h.b16 %v1286
    %v6050 = vunpack.c.l.b16 %v1287
    %v6051 = vunpack.c.h.b16 %v1287
    %v6052 = vunpack.c.l.b16 %v1288
    %v6053 = vunpack.c.h.b16 %v1288
    %v6054 = vunpack.c.l.b16 %v1289
    %v6055 = vunpack.c.h.b16 %v1289
    %v6056 = vunpack.c.l.b16 %v1290
    %v6057 = vunpack.c.h.b16 %v1290
    %v6058 = vunpack.c.l.b16 %v1291
    %v6059 = vunpack.c.h.b16 %v1291
    %v6060 = vunpack.c.l.b16 %v1292
    %v6061 = vunpack.c.h.b16 %v1292
    %v6062 = vunpack.c.l.b16 %v1293
    %v6063 = vunpack.c.h.b16 %v1293
    %v6064 = vunpack.c.l.b16 %v1294
    %v6065 = vunpack.c.h.b16 %v1294
    %v6066 = vunpack.c.l.b16 %v1295
    %v6067 = vunpack.c.h.b16 %v1295
    %v6068 = vunpack.c.l.b16 %v1296
    %v6069 = vunpack.c.h.b16 %v1296
    %v6070 = vunpack.c.l.b16 %v1297
    %v6071 = vunpack.c.h.b16 %v1297
    %v6072 = vunpack.c.l.b16 %v1298
    %v6073 = vunpack.c.h.b16 %v1298
    %v6074 = vunpack.c.l.b16 %v1299
    %v6075 = vunpack.c.h.b16 %v1299
    %v6076 = vunpack.c.l.b16 %v1300
    %v6077 = vunpack.c.h.b16 %v1300
    %v6078 = vunpack.c.l.b16 %v1301
    %v6079 = vunpack.c.h.b16 %v1301
    %v6080 = vunpack.c.l.b16 %v1302
    %v6081 = vunpack.c.h.b16 %v1302
    %v6082 = vunpack.c.l.b16 %v1303
    %v6083 = vunpack.c.h.b16 %v1303
    %v6084 = vunpack.c.l.b16 %v1304
    %v6085 = vunpack.c.h.b16 %v1304
    %v6086 = vunpack.c.l.b16 %v1305
    %v6087 = vunpack.c.h.b16 %v1305
    %v6088 = vunpack.c.l.b16 %v1306
    %v6089 = vunpack.c.h.b16 %v1306
    %v6090 = vunpack.c.l.b16 %v1307
    %v6091 = vunpack.c.h.b16 %v1307
    %v6092 = vunpack.c.l.b16 %v1308
    %v6093 = vunpack.c.h.b16 %v1308
    %v6094 = vunpack.c.l.b16 %v1309
    %v6095 = vunpack.c.h.b16 %v1309
    %v6096 = vunpack.c.l.b16 %v1310
    %v6097 = vunpack.c.h.b16 %v1310
    %v6098 = vunpack.c.l.b16 %v1311
    %v6099 = vunpack.c.h.b16 %v1311
    %v6100 = vunpack.c.l.b16 %v1312
    %v6101 = vunpack.c.h.b16 %v1312
    %v6102 = vunpack.c.l.b16 %v1313
    %v6103 = vunpack.c.h.b16 %v1313
    %v6104 = vunpack.c.l.b16 %v1314
    %v6105 = vunpack.c.h.b16 %v1314
    %v6106 = vunpack.c.l.b16 %v1315
    %v6107 = vunpack.c.h.b16 %v1315
    %v6108 = vunpack.c.l.b16 %v1316
    %v6109 = vunpack.c.h.b16 %v1316
    %v6110 = vunpack.c.l.b16 %v1317
    %v6111 = vunpack.c.h.b16 %v1317
    %v6112 = vunpack.c.l.b16 %v1318
    %v6113 = vunpack.c.h.b16 %v1318
    %v6114 = vunpack.c.l.b16 %v1319
    %v6115 = vunpack.c.h.b16 %v1319
    %v6116 = vunpack.c.l.b16 %v1320
    %v6117 = vunpack.c.h.b16 %v1320
    %v6118 = vunpack.c.l.b16 %v1321
    %v6119 = vunpack.c.h.b16 %v1321
    %v6120 = vunpack.c.l.b16 %v1322
    %v6121 = vunpack.c.h.b16 %v1322
    %v6122 = vunpack.c.l.b16 %v1323
    %v6123 = vunpack.c.h.b16 %v1323
    %v6124 = vunpack.c.l.b16 %v1324
    %v6125 = vunpack.c.h.b16 %v1324
    %v6126 = vunpack.c.l.b16 %v1325
    %v6127 = vunpack.c.h.b16 %v1325
    %v6128 = vunpack.c.l.b16 %v1326
    %v6129 = vunpack.c.h.b16 %v1326
    %v6130 = vunpack.c.l.b16 %v1327
    %v6131 = vunpack.c.h.b16 %v1327
    %v6132 = vunpack.c.l.b16 %v1328
    %v6133 = vunpack.c.h.b16 %v1328
    %v6134 = vunpack.c.l.b16 %v1329
    %v6135 = vunpack.c.h.b16 %v1329
    %v6136 = vunpack.c.l.b16 %v1330
    %v6137 = vunpack.c.h.b16 %v1330
    %v6138 = vunpack.c.l.b16 %v1331
    %v6139 = vunpack.c.h.b16 %v1331
    %v6140 = vunpack.c.l.b16 %v1332
    %v6141 = vunpack.c.h.b16 %v1332
    %v6142 = vunpack.c.l.b16 %v1333
    %v6143 = vunpack.c.h.b16 %v1333
    %v6144 = vunpack.c.l.b16 %v1334
    %v6145 = vunpack.c.h.b16 %v1334
    %v6146 = vunpack.c.l.b16 %v1335
    %v6147 = vunpack.c.h.b16 %v1335
    %v6148 = vunpack.c.l.b16 %v1336
    %v6149 = vunpack.c.h.b16 %v1336
    %v6150 = vunpack.c.l.b16 %v1337
    %v6151 = vunpack.c.h.b16 %v1337
    %v6152 = vunpack.c.l.b16 %v1338
    %v6153 = vunpack.c.h.b16 %v1338
    %v6154 = vunpack.c.l.b16 %v1339
    %v6155 = vunpack.c.h.b16 %v1339
    %v6156 = vunpack.c.l.b16 %v1340
    %v6157 = vunpack.c.h.b16 %v1340
    %v6158 = vunpack.c.l.b16 %v1341
    %v6159 = vunpack.c.h.b16 %v1341
    %v6160 = vunpack.c.l.b16 %v1342
    %v6161 = vunpack.c.h.b16 %v1342
    %v6162 = vunpack.c.l.b16 %v1343
    %v6163 = vunpack.c.h.b16 %v1343
    %v6164 = vunpack.c.l.b16 %v1344
    %v6165 = vunpack.c.h.b16 %v1344
    %v6166 = vunpack.c.l.b16 %v1345
    %v6167 = vunpack.c.h.b16 %v1345
    %v6168 = vunpack.c.l.b16 %v1346
    %v6169 = vunpack.c.h.b16 %v1346
    %v6170 = vunpack.c.l.b16 %v1347
    %v6171 = vunpack.c.h.b16 %v1347
    %v6172 = vunpack.c.l.b16 %v1348
    %v6173 = vunpack.c.h.b16 %v1348
    %v6174 = vunpack.c.l.b16 %v1349
    %v6175 = vunpack.c.h.b16 %v1349
    %v6176 = vunpack.c.l.b16 %v1350
    %v6177 = vunpack.c.h.b16 %v1350
    %v6178 = vunpack.c.l.b16 %v1351
    %v6179 = vunpack.c.h.b16 %v1351
    %v6180 = vunpack.c.l.b16 %v1352
    %v6181 = vunpack.c.h.b16 %v1352
    %v6182 = vunpack.c.l.b16 %v1353
    %v6183 = vunpack.c.h.b16 %v1353
    %v6184 = vunpack.c.l.b16 %v1354
    %v6185 = vunpack.c.h.b16 %v1354
    %v6186 = vunpack.c.l.b16 %v1355
    %v6187 = vunpack.c.h.b16 %v1355
    %v6188 = vunpack.c.l.b16 %v1356
    %v6189 = vunpack.c.h.b16 %v1356
    %v6190 = vunpack.c.l.b16 %v1357
    %v6191 = vunpack.c.h.b16 %v1357
    %v6192 = vunpack.c.l.b16 %v1358
    %v6193 = vunpack.c.h.b16 %v1358
    %v6194 = vunpack.c.l.b16 %v1359
    %v6195 = vunpack.c.h.b16 %v1359
    %v6196 = vunpack.c.l.b16 %v1360
    %v6197 = vunpack.c.h.b16 %v1360
    %v6198 = vunpack.c.l.b16 %v1361
    %v6199 = vunpack.c.h.b16 %v1361
    %v6200 = vunpack.c.l.b16 %v1362
    %v6201 = vunpack.c.h.b16 %v1362
    %v6202 = vunpack.c.l.b16 %v1363
    %v6203 = vunpack.c.h.b16 %v1363
    %v6204 = vunpack.c.l.b16 %v1364
    %v6205 = vunpack.c.h.b16 %v1364
    %v6206 = vunpack.c.l.b16 %v1365
    %v6207 = vunpack.c.h.b16 %v1365
    %v6208 = vunpack.c.l.b16 %v1366
    %v6209 = vunpack.c.h.b16 %v1366
    %v6210 = vunpack.c.l.b16 %v1367
    %v6211 = vunpack.c.h.b16 %v1367
    %v6212 = vunpack.c.l.b16 %v1368
    %v6213 = vunpack.c.h.b16 %v1368
    %v6214 = vunpack.c.l.b16 %v1369
    %v6215 = vunpack.c.h.b16 %v1369
    %v6216 = vunpack.c.l.b16 %v1370
    %v6217 = vunpack.c.h.b16 %v1370
    %v6218 = vunpack.c.l.b16 %v1371
    %v6219 = vunpack.c.h.b16 %v1371
    %v6220 = vunpack.c.l.b16 %v1372
    %v6221 = vunpack.c.h.b16 %v1372
    %v6222 = vunpack.c.l.b16 %v1373
    %v6223 = vunpack.c.h.b16 %v1373
    %v6224 = vunpack.c.l.b16 %v1374
    %v6225 = vunpack.c.h.b16 %v1374
    %v6226 = vunpack.c.l.b16 %v1375
    %v6227 = vunpack.c.h.b16 %v1375
    %v6228 = vunpack.c.l.b16 %v1376
    %v6229 = vunpack.c.h.b16 %v1376
    %v6230 = vunpack.c.l.b16 %v1377
    %v6231 = vunpack.c.h.b16 %v1377
    %v6232 = vunpack.c.l.b16 %v1378
    %v6233 = vunpack.c.h.b16 %v1378
    %v6234 = vunpack.c.l.b16 %v1379
    %v6235 = vunpack.c.h.b16 %v1379
    %v6236 = vunpack.c.l.b16 %v1380
    %v6237 = vunpack.c.h.b16 %v1380
    %v6238 = vunpack.c.l.b16 %v1381
    %v6239 = vunpack.c.h.b16 %v1381
    %v6240 = vunpack.c.l.b16 %v1382
    %v6241 = vunpack.c.h.b16 %v1382
    %v6242 = vunpack.c.l.b16 %v1383
    %v6243 = vunpack.c.h.b16 %v1383
    %v6244 = vunpack.c.l.b16 %v1384
    %v6245 = vunpack.c.h.b16 %v1384
    %v6246 = vunpack.c.l.b16 %v1385
    %v6247 = vunpack.c.h.b16 %v1385
    %v6248 = vunpack.c.l.b16 %v1386
    %v6249 = vunpack.c.h.b16 %v1386
    %v6250 = vunpack.c.l.b16 %v1387
    %v6251 = vunpack.c.h.b16 %v1387
    %v6252 = vunpack.c.l.b16 %v1388
    %v6253 = vunpack.c.h.b16 %v1388
    %v6254 = vunpack.c.l.b16 %v1389
    %v6255 = vunpack.c.h.b16 %v1389
    %v6256 = vunpack.c.l.b16 %v1390
    %v6257 = vunpack.c.h.b16 %v1390
    %v6258 = vunpack.c.l.b16 %v1391
    %v6259 = vunpack.c.h.b16 %v1391
    %v6260 = vunpack.c.l.b16 %v1392
    %v6261 = vunpack.c.h.b16 %v1392
    %v6262 = vunpack.c.l.b16 %v1393
    %v6263 = vunpack.c.h.b16 %v1393
    %v6264 = vunpack.c.l.b16 %v1394
    %v6265 = vunpack.c.h.b16 %v1394
    %v6266 = vunpack.c.l.b16 %v1395
    %v6267 = vunpack.c.h.b16 %v1395
    %v6268 = vunpack.c.l.b16 %v1396
    %v6269 = vunpack.c.h.b16 %v1396
    %v6270 = vunpack.c.l.b16 %v1397
    %v6271 = vunpack.c.h.b16 %v1397
    %v6272 = vunpack.c.l.b16 %v1398
    %v6273 = vunpack.c.h.b16 %v1398
    %v6274 = vunpack.c.l.b16 %v1399
    %v6275 = vunpack.c.h.b16 %v1399
    %v6276 = vunpack.c.l.b16 %v1400
    %v6277 = vunpack.c.h.b16 %v1400
    %v6278 = vunpack.c.l.b16 %v1401
    %v6279 = vunpack.c.h.b16 %v1401
    %v6280 = vunpack.c.l.b16 %v1402
    %v6281 = vunpack.c.h.b16 %v1402
    %v6282 = vunpack.c.l.b16 %v1403
    %v6283 = vunpack.c.h.b16 %v1403
    %v6284 = vunpack.c.l.b16 %v1404
    %v6285 = vunpack.c.h.b16 %v1404
    %v6286 = vunpack.c.l.b16 %v1405
    %v6287 = vunpack.c.h.b16 %v1405
    %v6288 = vunpack.c.l.b16 %v1406
    %v6289 = vunpack.c.h.b16 %v1406
    %v6290 = vunpack.c.l.b16 %v1407
    %v6291 = vunpack.c.h.b16 %v1407
    %v6292 = vunpack.c.l.b16 %v1408
    %v6293 = vunpack.c.h.b16 %v1408
    %v6294 = vunpack.c.l.b16 %v1409
    %v6295 = vunpack.c.h.b16 %v1409
    %v6296 = vunpack.c.l.b16 %v1410
    %v6297 = vunpack.c.h.b16 %v1410
    %v6298 = vunpack.c.l.b16 %v1411
    %v6299 = vunpack.c.h.b16 %v1411
    %v6300 = vpack.c.b16 %v3748, %v3740
    %v6301 = vpack.c.b16 %v3749, %v3741
    %v6302 = vpack.c.b16 %v3750, %v3742
    %v6303 = vpack.c.b16 %v3751, %v3743
    %v6304 = vpack.c.b16 %v3752, %v3744
    %v6305 = vpack.c.b16 %v3753, %v3745
    %v6306 = vpack.c.b16 %v3754, %v3746
    %v6307 = vpack.c.b16 %v3755, %v3747
    %v6308 = vpack.c.b16 %v3764, %v3756
    %v6309 = vpack.c.b16 %v3765, %v3757
    %v6310 = vpack.c.b16 %v3766, %v3758
    %v6311 = vpack.c.b16 %v3767, %v3759
    %v6312 = vpack.c.b16 %v3768, %v3760
    %v6313 = vpack.c.b16 %v3769, %v3761
    %v6314 = vpack.c.b16 %v3770, %v3762
    %v6315 = vpack.c.b16 %v3771, %v3763
    %v6316 = vpack.c.b16 %v3780, %v3772
    %v6317 = vpack.c.b16 %v3781, %v3773
    %v6318 = vpack.c.b16 %v3782, %v3774
    %v6319 = vpack.c.b16 %v3783, %v3775
    %v6320 = vpack.c.b16 %v3784, %v3776
    %v6321 = vpack.c.b16 %v3785, %v3777
    %v6322 = vpack.c.b16 %v3786, %v3778
    %v6323 = vpack.c.b16 %v3787, %v3779
    %v6324 = vpack.c.b16 %v3796, %v3788
    %v6325 = vpack.c.b16 %v3797, %v3789
    %v6326 = vpack.c.b16 %v3798, %v3790
    %v6327 = vpack.c.b16 %v3799, %v3791
    %v6328 = vpack.c.b16 %v3800, %v3792
    %v6329 = vpack.c.b16 %v3801, %v3793
    %v6330 = vpack.c.b16 %v3802, %v3794
    %v6331 = vpack.c.b16 %v3803, %v3795
    %v6332 = vpack.c.b16 %v3812, %v3804
    %v6333 = vpack.c.b16 %v3813, %v3805
    %v6334 = vpack.c.b16 %v3814, %v3806
    %v6335 = vpack.c.b16 %v3815, %v3807
    %v6336 = vpack.c.b16 %v3816, %v3808
    %v6337 = vpack.c.b16 %v3817, %v3809
    %v6338 = vpack.c.b16 %v3818, %v3810
    %v6339 = vpack.c.b16 %v3819, %v3811
    %v6340 = vpack.c.b16 %v3828, %v3820
    %v6341 = vpack.c.b16 %v3829, %v3821
    %v6342 = vpack.c.b16 %v3830, %v3822
    %v6343 = vpack.c.b16 %v3831, %v3823
    %v6344 = vpack.c.b16 %v3832, %v3824
    %v6345 = vpack.c.b16 %v3833, %v3825
    %v6346 = vpack.c.b16 %v3834, %v3826
    %v6347 = vpack.c.b16 %v3835, %v3827
    %v6348 = vpack.c.b16 %v3844, %v3836
    %v6349 = vpack.c.b16 %v3845, %v3837
    %v6350 = vpack.c.b16 %v3846, %v3838
    %v6351 = vpack.c.b16 %v3847, %v3839
    %v6352 = vpack.c.b16 %v3848, %v3840
    %v6353 = vpack.c.b16 %v3849, %v3841
    %v6354 = vpack.c.b16 %v3850, %v3842
    %v6355 = vpack.c.b16 %v3851, %v3843
    %v6356 = vpack.c.b16 %v3860, %v3852
    %v6357 = vpack.c.b16 %v3861, %v3853
    %v6358 = vpack.c.b16 %v3862, %v3854
    %v6359 = vpack.c.b16 %v3863, %v3855
    %v6360 = vpack.c.b16 %v3864, %v3856
    %v6361 = vpack.c.b16 %v3865, %v3857
    %v6362 = vpack.c.b16 %v3866, %v3858
    %v6363 = vpack.c.b16 %v3867, %v3859
    %v6364 = vpack.c.b16 %v3876, %v3868
    %v6365 = vpack.c.b16 %v3877, %v3869
    %v6366 = vpack.c.b16 %v3878, %v3870
    %v6367 = vpack.c.b16 %v3879, %v3871
    %v6368 = vpack.c.b16 %v3880, %v3872
    %v6369 = vpack.c.b16 %v3881, %v3873
    %v6370 = vpack.c.b16 %v3882, %v3874
    %v6371 = vpack.c.b16 %v3883, %v3875
    %v6372 = vpack.c.b16 %v3892, %v3884
    %v6373 = vpack.c.b16 %v3893, %v3885
    %v6374 = vpack.c.b16 %v3894, %v3886
    %v6375 = vpack.c.b16 %v3895, %v3887
    %v6376 = vpack.c.b16 %v3896, %v3888
    %v6377 = vpack.c.b16 %v3897, %v3889
    %v6378 = vpack.c.b16 %v3898, %v3890
    %v6379 = vpack.c.b16 %v3899, %v3891
    %v6380 = vpack.c.b16 %v3908, %v3900
    %v6381 = vpack.c.b16 %v3909, %v3901
    %v6382 = vpack.c.b16 %v3910, %v3902
    %v6383 = vpack.c.b16 %v3911, %v3903
    %v6384 = vpack.c.b16 %v3912, %v3904
    %v6385 = vpack.c.b16 %v3913, %v3905
    %v6386 = vpack.c.b16 %v3914, %v3906
    %v6387 = vpack.c.b16 %v3915, %v3907
    %v6388 = vpack.c.b16 %v3924, %v3916
    %v6389 = vpack.c.b16 %v3925, %v3917
    %v6390 = vpack.c.b16 %v3926, %v3918
    %v6391 = vpack.c.b16 %v3927, %v3919
    %v6392 = vpack.c.b16 %v3928, %v3920
    %v6393 = vpack.c.b16 %v3929, %v3921
    %v6394 = vpack.c.b16 %v3930, %v3922
    %v6395 = vpack.c.b16 %v3931, %v3923
    %v6396 = vpack.c.b16 %v3940, %v3932
    %v6397 = vpack.c.b16 %v3941, %v3933
    %v6398 = vpack.c.b16 %v3942, %v3934
    %v6399 = vpack.c.b16 %v3943, %v3935
    %v6400 = vpack.c.b16 %v3944, %v3936
    %v6401 = vpack.c.b16 %v3945, %v3937
    %v6402 = vpack.c.b16 %v3946, %v3938
    %v6403 = vpack.c.b16 %v3947, %v3939
    %v6404 = vpack.c.b16 %v3956, %v3948
    %v6405 = vpack.c.b16 %v3957, %v3949
    %v6406 = vpack.c.b16 %v3958, %v3950
    %v6407 = vpack.c.b16 %v3959, %v3951
    %v6408 = vpack.c.b16 %v3960, %v3952
    %v6409 = vpack.c.b16 %v3961, %v3953
    %v6410 = vpack.c.b16 %v3962, %v3954
    %v6411 = vpack.c.b16 %v3963, %v3955
    %v6412 = vpack.c.b16 %v3972, %v3964
    %v6413 = vpack.c.b16 %v3973, %v3965
    %v6414 = vpack.c.b16 %v3974, %v3966
    %v6415 = vpack.c.b16 %v3975, %v3967
    %v6416 = vpack.c.b16 %v3976, %v3968
    %v6417 = vpack.c.b16 %v3977, %v3969
    %v6418 = vpack.c.b16 %v3978, %v3970
    %v6419 = vpack.c.b16 %v3979, %v3971
    %v6420 = vpack.c.b16 %v3988, %v3980
    %v6421 = vpack.c.b16 %v3989, %v3981
    %v6422 = vpack.c.b16 %v3990, %v3982
    %v6423 = vpack.c.b16 %v3991, %v3983
    %v6424 = vpack.c.b16 %v3992, %v3984
    %v6425 = vpack.c.b16 %v3993, %v3985
    %v6426 = vpack.c.b16 %v3994, %v3986
    %v6427 = vpack.c.b16 %v3995, %v3987
    %v6428 = vpack.c.b16 %v4004, %v3996
    %v6429 = vpack.c.b16 %v4005, %v3997
    %v6430 = vpack.c.b16 %v4006, %v3998
    %v6431 = vpack.c.b16 %v4007, %v3999
    %v6432 = vpack.c.b16 %v4008, %v4000
    %v6433 = vpack.c.b16 %v4009, %v4001
    %v6434 = vpack.c.b16 %v4010, %v4002
    %v6435 = vpack.c.b16 %v4011, %v4003
    %v6436 = vpack.c.b16 %v4020, %v4012
    %v6437 = vpack.c.b16 %v4021, %v4013
    %v6438 = vpack.c.b16 %v4022, %v4014
    %v6439 = vpack.c.b16 %v4023, %v4015
    %v6440 = vpack.c.b16 %v4024, %v4016
    %v6441 = vpack.c.b16 %v4025, %v4017
    %v6442 = vpack.c.b16 %v4026, %v4018
    %v6443 = vpack.c.b16 %v4027, %v4019
    %v6444 = vpack.c.b16 %v4036, %v4028
    %v6445 = vpack.c.b16 %v4037, %v4029
    %v6446 = vpack.c.b16 %v4038, %v4030
    %v6447 = vpack.c.b16 %v4039, %v4031
    %v6448 = vpack.c.b16 %v4040, %v4032
    %v6449 = vpack.c.b16 %v4041, %v4033
    %v6450 = vpack.c.b16 %v4042, %v4034
    %v6451 = vpack.c.b16 %v4043, %v4035
    %v6452 = vpack.c.b16 %v4052, %v4044
    %v6453 = vpack.c.b16 %v4053, %v4045
    %v6454 = vpack.c.b16 %v4054, %v4046
    %v6455 = vpack.c.b16 %v4055, %v4047
    %v6456 = vpack.c.b16 %v4056, %v4048
    %v6457 = vpack.c.b16 %v4057, %v4049
    %v6458 = vpack.c.b16 %v4058, %v4050
    %v6459 = vpack.c.b16 %v4059, %v4051
    %v6460 = vpack.c.b16 %v4068, %v4060
    %v6461 = vpack.c.b16 %v4069, %v4061
    %v6462 = vpack.c.b16 %v4070, %v4062
    %v6463 = vpack.c.b16 %v4071, %v4063
    %v6464 = vpack.c.b16 %v4072, %v4064
    %v6465 = vpack.c.b16 %v4073, %v4065
    %v6466 = vpack.c.b16 %v4074, %v4066
    %v6467 = vpack.c.b16 %v4075, %v4067
    %v6468 = vpack.c.b16 %v4084, %v4076
    %v6469 = vpack.c.b16 %v4085, %v4077
    %v6470 = vpack.c.b16 %v4086, %v4078
    %v6471 = vpack.c.b16 %v4087, %v4079
    %v6472 = vpack.c.b16 %v4088, %v4080
    %v6473 = vpack.c.b16 %v4089, %v4081
    %v6474 = vpack.c.b16 %v4090, %v4082
    %v6475 = vpack.c.b16 %v4091, %v4083
    %v6476 = vpack.c.b16 %v4100, %v4092
    %v6477 = vpack.c.b16 %v4101, %v4093
    %v6478 = vpack.c.b16 %v4102, %v4094
    %v6479 = vpack.c.b16 %v4103, %v4095
    %v6480 = vpack.c.b16 %v4104, %v4096
    %v6481 = vpack.c.b16 %v4105, %v4097
    %v6482 = vpack.c.b16 %v4106, %v4098
    %v6483 = vpack.c.b16 %v4107, %v4099
    %v6484 = vpack.c.b16 %v4116, %v4108
    %v6485 = vpack.c.b16 %v4117, %v4109
    %v6486 = vpack.c.b16 %v4118, %v4110
    %v6487 = vpack.c.b16 %v4119, %v4111
    %v6488 = vpack.c.b16 %v4120, %v4112
    %v6489 = vpack.c.b16 %v4121, %v4113
    %v6490 = vpack.c.b16 %v4122, %v4114
    %v6491 = vpack.c.b16 %v4123, %v4115
    %v6492 = vpack.c.b16 %v4132, %v4124
    %v6493 = vpack.c.b16 %v4133, %v4125
    %v6494 = vpack.c.b16 %v4134, %v4126
    %v6495 = vpack.c.b16 %v4135, %v4127
    %v6496 = vpack.c.b16 %v4136, %v4128
    %v6497 = vpack.c.b16 %v4137, %v4129
    %v6498 = vpack.c.b16 %v4138, %v4130
    %v6499 = vpack.c.b16 %v4139, %v4131
    %v6500 = vpack.c.b16 %v4148, %v4140
    %v6501 = vpack.c.b16 %v4149, %v4141
    %v6502 = vpack.c.b16 %v4150, %v4142
    %v6503 = vpack.c.b16 %v4151, %v4143
    %v6504 = vpack.c.b16 %v4152, %v4144
    %v6505 = vpack.c.b16 %v4153, %v4145
    %v6506 = vpack.c.b16 %v4154, %v4146
    %v6507 = vpack.c.b16 %v4155, %v4147
    %v6508 = vpack.c.b16 %v4164, %v4156
    %v6509 = vpack.c.b16 %v4165, %v4157
    %v6510 = vpack.c.b16 %v4166, %v4158
    %v6511 = vpack.c.b16 %v4167, %v4159
    %v6512 = vpack.c.b16 %v4168, %v4160
    %v6513 = vpack.c.b16 %v4169, %v4161
    %v6514 = vpack.c.b16 %v4170, %v4162
    %v6515 = vpack.c.b16 %v4171, %v4163
    %v6516 = vpack.c.b16 %v4180, %v4172
    %v6517 = vpack.c.b16 %v4181, %v4173
    %v6518 = vpack.c.b16 %v4182, %v4174
    %v6519 = vpack.c.b16 %v4183, %v4175
    %v6520 = vpack.c.b16 %v4184, %v4176
    %v6521 = vpack.c.b16 %v4185, %v4177
    %v6522 = vpack.c.b16 %v4186, %v4178
    %v6523 = vpack.c.b16 %v4187, %v4179
    %v6524 = vpack.c.b16 %v4196, %v4188
    %v6525 = vpack.c.b16 %v4197, %v4189
    %v6526 = vpack.c.b16 %v4198, %v4190
    %v6527 = vpack.c.b16 %v4199, %v4191
    %v6528 = vpack.c.b16 %v4200, %v4192
    %v6529 = vpack.c.b16 %v4201, %v4193
    %v6530 = vpack.c.b16 %v4202, %v4194
    %v6531 = vpack.c.b16 %v4203, %v4195
    %v6532 = vpack.c.b16 %v4212, %v4204
    %v6533 = vpack.c.b16 %v4213, %v4205
    %v6534 = vpack.c.b16 %v4214, %v4206
    %v6535 = vpack.c.b16 %v4215, %v4207
    %v6536 = vpack.c.b16 %v4216, %v4208
    %v6537 = vpack.c.b16 %v4217, %v4209
    %v6538 = vpack.c.b16 %v4218, %v4210
    %v6539 = vpack.c.b16 %v4219, %v4211
    %v6540 = vpack.c.b16 %v4228, %v4220
    %v6541 = vpack.c.b16 %v4229, %v4221
    %v6542 = vpack.c.b16 %v4230, %v4222
    %v6543 = vpack.c.b16 %v4231, %v4223
    %v6544 = vpack.c.b16 %v4232, %v4224
    %v6545 = vpack.c.b16 %v4233, %v4225
    %v6546 = vpack.c.b16 %v4234, %v4226
    %v6547 = vpack.c.b16 %v4235, %v4227
    %v6548 = vpack.c.b16 %v4244, %v4236
    %v6549 = vpack.c.b16 %v4245, %v4237
    %v6550 = vpack.c.b16 %v4246, %v4238
    %v6551 = vpack.c.b16 %v4247, %v4239
    %v6552 = vpack.c.b16 %v4248, %v4240
    %v6553 = vpack.c.b16 %v4249, %v4241
    %v6554 = vpack.c.b16 %v4250, %v4242
    %v6555 = vpack.c.b16 %v4251, %v4243
    %v6556 = vpack.c.b16 %v4260, %v4252
    %v6557 = vpack.c.b16 %v4261, %v4253
    %v6558 = vpack.c.b16 %v4262, %v4254
    %v6559 = vpack.c.b16 %v4263, %v4255
    %v6560 = vpack.c.b16 %v4264, %v4256
    %v6561 = vpack.c.b16 %v4265, %v4257
    %v6562 = vpack.c.b16 %v4266, %v4258
    %v6563 = vpack.c.b16 %v4267, %v4259
    %v6564 = vpack.c.b16 %v4276, %v4268
    %v6565 = vpack.c.b16 %v4277, %v4269
    %v6566 = vpack.c.b16 %v4278, %v4270
    %v6567 = vpack.c.b16 %v4279, %v4271
    %v6568 = vpack.c.b16 %v4280, %v4272
    %v6569 = vpack.c.b16 %v4281, %v4273
    %v6570 = vpack.c.b16 %v4282, %v4274
    %v6571 = vpack.c.b16 %v4283, %v4275
    %v6572 = vpack.c.b16 %v4292, %v4284
    %v6573 = vpack.c.b16 %v4293, %v4285
    %v6574 = vpack.c.b16 %v4294, %v4286
    %v6575 = vpack.c.b16 %v4295, %v4287
    %v6576 = vpack.c.b16 %v4296, %v4288
    %v6577 = vpack.c.b16 %v4297, %v4289
    %v6578 = vpack.c.b16 %v4298, %v4290
    %v6579 = vpack.c.b16 %v4299, %v4291
    %v6580 = vpack.c.b16 %v4308, %v4300
    %v6581 = vpack.c.b16 %v4309, %v4301
    %v6582 = vpack.c.b16 %v4310, %v4302
    %v6583 = vpack.c.b16 %v4311, %v4303
    %v6584 = vpack.c.b16 %v4312, %v4304
    %v6585 = vpack.c.b16 %v4313, %v4305
    %v6586 = vpack.c.b16 %v4314, %v4306
    %v6587 = vpack.c.b16 %v4315, %v4307
    %v6588 = vpack.c.b16 %v4324, %v4316
    %v6589 = vpack.c.b16 %v4325, %v4317
    %v6590 = vpack.c.b16 %v4326, %v4318
    %v6591 = vpack.c.b16 %v4327, %v4319
    %v6592 = vpack.c.b16 %v4328, %v4320
    %v6593 = vpack.c.b16 %v4329, %v4321
    %v6594 = vpack.c.b16 %v4330, %v4322
    %v6595 = vpack.c.b16 %v4331, %v4323
    %v6596 = vpack.c.b16 %v4340, %v4332
    %v6597 = vpack.c.b16 %v4341, %v4333
    %v6598 = vpack.c.b16 %v4342, %v4334
    %v6599 = vpack.c.b16 %v4343, %v4335
    %v6600 = vpack.c.b16 %v4344, %v4336
    %v6601 = vpack.c.b16 %v4345, %v4337
    %v6602 = vpack.c.b16 %v4346, %v4338
    %v6603 = vpack.c.b16 %v4347, %v4339
    %v6604 = vpack.c.b16 %v4356, %v4348
    %v6605 = vpack.c.b16 %v4357, %v4349
    %v6606 = vpack.c.b16 %v4358, %v4350
    %v6607 = vpack.c.b16 %v4359, %v4351
    %v6608 = vpack.c.b16 %v4360, %v4352
    %v6609 = vpack.c.b16 %v4361, %v4353
    %v6610 = vpack.c.b16 %v4362, %v4354
    %v6611 = vpack.c.b16 %v4363, %v4355
    %v6612 = vpack.c.b16 %v4372, %v4364
    %v6613 = vpack.c.b16 %v4373, %v4365
    %v6614 = vpack.c.b16 %v4374, %v4366
    %v6615 = vpack.c.b16 %v4375, %v4367
    %v6616 = vpack.c.b16 %v4376, %v4368
    %v6617 = vpack.c.b16 %v4377, %v4369
    %v6618 = vpack.c.b16 %v4378, %v4370
    %v6619 = vpack.c.b16 %v4379, %v4371
    %v6620 = vpack.c.b16 %v4388, %v4380
    %v6621 = vpack.c.b16 %v4389, %v4381
    %v6622 = vpack.c.b16 %v4390, %v4382
    %v6623 = vpack.c.b16 %v4391, %v4383
    %v6624 = vpack.c.b16 %v4392, %v4384
    %v6625 = vpack.c.b16 %v4393, %v4385
    %v6626 = vpack.c.b16 %v4394, %v4386
    %v6627 = vpack.c.b16 %v4395, %v4387
    %v6628 = vpack.c.b16 %v4404, %v4396
    %v6629 = vpack.c.b16 %v4405, %v4397
    %v6630 = vpack.c.b16 %v4406, %v4398
    %v6631 = vpack.c.b16 %v4407, %v4399
    %v6632 = vpack.c.b16 %v4408, %v4400
    %v6633 = vpack.c.b16 %v4409, %v4401
    %v6634 = vpack.c.b16 %v4410, %v4402
    %v6635 = vpack.c.b16 %v4411, %v4403
    %v6636 = vpack.c.b16 %v4420, %v4412
    %v6637 = vpack.c.b16 %v4421, %v4413
    %v6638 = vpack.c.b16 %v4422, %v4414
    %v6639 = vpack.c.b16 %v4423, %v4415
    %v6640 = vpack.c.b16 %v4424, %v4416
    %v6641 = vpack.c.b16 %v4425, %v4417
    %v6642 = vpack.c.b16 %v4426, %v4418
    %v6643 = vpack.c.b16 %v4427, %v4419
    %v6644 = vpack.c.b16 %v4436, %v4428
    %v6645 = vpack.c.b16 %v4437, %v4429
    %v6646 = vpack.c.b16 %v4438, %v4430
    %v6647 = vpack.c.b16 %v4439, %v4431
    %v6648 = vpack.c.b16 %v4440, %v4432
    %v6649 = vpack.c.b16 %v4441, %v4433
    %v6650 = vpack.c.b16 %v4442, %v4434
    %v6651 = vpack.c.b16 %v4443, %v4435
    %v6652 = vpack.c.b16 %v4452, %v4444
    %v6653 = vpack.c.b16 %v4453, %v4445
    %v6654 = vpack.c.b16 %v4454, %v4446
    %v6655 = vpack.c.b16 %v4455, %v4447
    %v6656 = vpack.c.b16 %v4456, %v4448
    %v6657 = vpack.c.b16 %v4457, %v4449
    %v6658 = vpack.c.b16 %v4458, %v4450
    %v6659 = vpack.c.b16 %v4459, %v4451
    %v6660 = vpack.c.b16 %v4468, %v4460
    %v6661 = vpack.c.b16 %v4469, %v4461
    %v6662 = vpack.c.b16 %v4470, %v4462
    %v6663 = vpack.c.b16 %v4471, %v4463
    %v6664 = vpack.c.b16 %v4472, %v4464
    %v6665 = vpack.c.b16 %v4473, %v4465
    %v6666 = vpack.c.b16 %v4474, %v4466
    %v6667 = vpack.c.b16 %v4475, %v4467
    %v6668 = vpack.c.b16 %v4484, %v4476
    %v6669 = vpack.c.b16 %v4485, %v4477
    %v6670 = vpack.c.b16 %v4486, %v4478
    %v6671 = vpack.c.b16 %v4487, %v4479
    %v6672 = vpack.c.b16 %v4488, %v4480
    %v6673 = vpack.c.b16 %v4489, %v4481
    %v6674 = vpack.c.b16 %v4490, %v4482
    %v6675 = vpack.c.b16 %v4491, %v4483
    %v6676 = vpack.c.b16 %v4500, %v4492
    %v6677 = vpack.c.b16 %v4501, %v4493
    %v6678 = vpack.c.b16 %v4502, %v4494
    %v6679 = vpack.c.b16 %v4503, %v4495
    %v6680 = vpack.c.b16 %v4504, %v4496
    %v6681 = vpack.c.b16 %v4505, %v4497
    %v6682 = vpack.c.b16 %v4506, %v4498
    %v6683 = vpack.c.b16 %v4507, %v4499
    %v6684 = vpack.c.b16 %v4516, %v4508
    %v6685 = vpack.c.b16 %v4517, %v4509
    %v6686 = vpack.c.b16 %v4518, %v4510
    %v6687 = vpack.c.b16 %v4519, %v4511
    %v6688 = vpack.c.b16 %v4520, %v4512
    %v6689 = vpack.c.b16 %v4521, %v4513
    %v6690 = vpack.c.b16 %v4522, %v4514
    %v6691 = vpack.c.b16 %v4523, %v4515
    %v6692 = vpack.c.b16 %v4532, %v4524
    %v6693 = vpack.c.b16 %v4533, %v4525
    %v6694 = vpack.c.b16 %v4534, %v4526
    %v6695 = vpack.c.b16 %v4535, %v4527
    %v6696 = vpack.c.b16 %v4536, %v4528
    %v6697 = vpack.c.b16 %v4537, %v4529
    %v6698 = vpack.c.b16 %v4538, %v4530
    %v6699 = vpack.c.b16 %v4539, %v4531
    %v6700 = vpack.c.b16 %v4548, %v4540
    %v6701 = vpack.c.b16 %v4549, %v4541
    %v6702 = vpack.c.b16 %v4550, %v4542
    %v6703 = vpack.c.b16 %v4551, %v4543
    %v6704 = vpack.c.b16 %v4552, %v4544
    %v6705 = vpack.c.b16 %v4553, %v4545
    %v6706 = vpack.c.b16 %v4554, %v4546
    %v6707 = vpack.c.b16 %v4555, %v4547
    %v6708 = vpack.c.b16 %v4564, %v4556
    %v6709 = vpack.c.b16 %v4565, %v4557
    %v6710 = vpack.c.b16 %v4566, %v4558
    %v6711 = vpack.c.b16 %v4567, %v4559
    %v6712 = vpack.c.b16 %v4568, %v4560
    %v6713 = vpack.c.b16 %v4569, %v4561
    %v6714 = vpack.c.b16 %v4570, %v4562
    %v6715 = vpack.c.b16 %v4571, %v4563
    %v6716 = vpack.c.b16 %v4580, %v4572
    %v6717 = vpack.c.b16 %v4581, %v4573
    %v6718 = vpack.c.b16 %v4582, %v4574
    %v6719 = vpack.c.b16 %v4583, %v4575
    %v6720 = vpack.c.b16 %v4584, %v4576
    %v6721 = vpack.c.b16 %v4585, %v4577
    %v6722 = vpack.c.b16 %v4586, %v4578
    %v6723 = vpack.c.b16 %v4587, %v4579
    %v6724 = vpack.c.b16 %v4596, %v4588
    %v6725 = vpack.c.b16 %v4597, %v4589
    %v6726 = vpack.c.b16 %v4598, %v4590
    %v6727 = vpack.c.b16 %v4599, %v4591
    %v6728 = vpack.c.b16 %v4600, %v4592
    %v6729 = vpack.c.b16 %v4601, %v4593
    %v6730 = vpack.c.b16 %v4602, %v4594
    %v6731 = vpack.c.b16 %v4603, %v4595
    %v6732 = vpack.c.b16 %v4612, %v4604
    %v6733 = vpack.c.b16 %v4613, %v4605
    %v6734 = vpack.c.b16 %v4614, %v4606
    %v6735 = vpack.c.b16 %v4615, %v4607
    %v6736 = vpack.c.b16 %v4616, %v4608
    %v6737 = vpack.c.b16 %v4617, %v4609
    %v6738 = vpack.c.b16 %v4618, %v4610
    %v6739 = vpack.c.b16 %v4619, %v4611
    %v6740 = vpack.c.b16 %v4628, %v4620
    %v6741 = vpack.c.b16 %v4629, %v4621
    %v6742 = vpack.c.b16 %v4630, %v4622
    %v6743 = vpack.c.b16 %v4631, %v4623
    %v6744 = vpack.c.b16 %v4632, %v4624
    %v6745 = vpack.c.b16 %v4633, %v4625
    %v6746 = vpack.c.b16 %v4634, %v4626
    %v6747 = vpack.c.b16 %v4635, %v4627
    %v6748 = vpack.c.b16 %v4644, %v4636
    %v6749 = vpack.c.b16 %v4645, %v4637
    %v6750 = vpack.c.b16 %v4646, %v4638
    %v6751 = vpack.c.b16 %v4647, %v4639
    %v6752 = vpack.c.b16 %v4648, %v4640
    %v6753 = vpack.c.b16 %v4649, %v4641
    %v6754 = vpack.c.b16 %v4650, %v4642
    %v6755 = vpack.c.b16 %v4651, %v4643
    %v6756 = vpack.c.b16 %v4660, %v4652
    %v6757 = vpack.c.b16 %v4661, %v4653
    %v6758 = vpack.c.b16 %v4662, %v4654
    %v6759 = vpack.c.b16 %v4663, %v4655
    %v6760 = vpack.c.b16 %v4664, %v4656
    %v6761 = vpack.c.b16 %v4665, %v4657
    %v6762 = vpack.c.b16 %v4666, %v4658
    %v6763 = vpack.c.b16 %v4667, %v4659
    %v6764 = vpack.c.b16 %v4676, %v4668
    %v6765 = vpack.c.b16 %v4677, %v4669
    %v6766 = vpack.c.b16 %v4678, %v4670
    %v6767 = vpack.c.b16 %v4679, %v4671
    %v6768 = vpack.c.b16 %v4680, %v4672
    %v6769 = vpack.c.b16 %v4681, %v4673
    %v6770 = vpack.c.b16 %v4682, %v4674
    %v6771 = vpack.c.b16 %v4683, %v4675
    %v6772 = vpack.c.b16 %v4692, %v4684
    %v6773 = vpack.c.b16 %v4693, %v4685
    %v6774 = vpack.c.b16 %v4694, %v4686
    %v6775 = vpack.c.b16 %v4695, %v4687
    %v6776 = vpack.c.b16 %v4696, %v4688
    %v6777 = vpack.c.b16 %v4697, %v4689
    %v6778 = vpack.c.b16 %v4698, %v4690
    %v6779 = vpack.c.b16 %v4699, %v4691
    %v6780 = vpack.c.b16 %v4708, %v4700
    %v6781 = vpack.c.b16 %v4709, %v4701
    %v6782 = vpack.c.b16 %v4710, %v4702
    %v6783 = vpack.c.b16 %v4711, %v4703
    %v6784 = vpack.c.b16 %v4712, %v4704
    %v6785 = vpack.c.b16 %v4713, %v4705
    %v6786 = vpack.c.b16 %v4714, %v4706
    %v6787 = vpack.c.b16 %v4715, %v4707
    %v6788 = vpack.c.b16 %v4724, %v4716
    %v6789 = vpack.c.b16 %v4725, %v4717
    %v6790 = vpack.c.b16 %v4726, %v4718
    %v6791 = vpack.c.b16 %v4727, %v4719
    %v6792 = vpack.c.b16 %v4728, %v4720
    %v6793 = vpack.c.b16 %v4729, %v4721
    %v6794 = vpack.c.b16 %v4730, %v4722
    %v6795 = vpack.c.b16 %v4731, %v4723
    %v6796 = vpack.c.b16 %v4740, %v4732
    %v6797 = vpack.c.b16 %v4741, %v4733
    %v6798 = vpack.c.b16 %v4742, %v4734
    %v6799 = vpack.c.b16 %v4743, %v4735
    %v6800 = vpack.c.b16 %v4744, %v4736
    %v6801 = vpack.c.b16 %v4745, %v4737
    %v6802 = vpack.c.b16 %v4746, %v4738
    %v6803 = vpack.c.b16 %v4747, %v4739
    %v6804 = vpack.c.b16 %v4756, %v4748
    %v6805 = vpack.c.b16 %v4757, %v4749
    %v6806 = vpack.c.b16 %v4758, %v4750
    %v6807 = vpack.c.b16 %v4759, %v4751
    %v6808 = vpack.c.b16 %v4760, %v4752
    %v6809 = vpack.c.b16 %v4761, %v4753
    %v6810 = vpack.c.b16 %v4762, %v4754
    %v6811 = vpack.c.b16 %v4763, %v4755
    %v6812 = vpack.c.b16 %v4772, %v4764
    %v6813 = vpack.c.b16 %v4773, %v4765
    %v6814 = vpack.c.b16 %v4774, %v4766
    %v6815 = vpack.c.b16 %v4775, %v4767
    %v6816 = vpack.c.b16 %v4776, %v4768
    %v6817 = vpack.c.b16 %v4777, %v4769
    %v6818 = vpack.c.b16 %v4778, %v4770
    %v6819 = vpack.c.b16 %v4779, %v4771
    %v6820 = vpack.c.b16 %v4788, %v4780
    %v6821 = vpack.c.b16 %v4789, %v4781
    %v6822 = vpack.c.b16 %v4790, %v4782
    %v6823 = vpack.c.b16 %v4791, %v4783
    %v6824 = vpack.c.b16 %v4792, %v4784
    %v6825 = vpack.c.b16 %v4793, %v4785
    %v6826 = vpack.c.b16 %v4794, %v4786
    %v6827 = vpack.c.b16 %v4795, %v4787
    %v6828 = vpack.c.b16 %v4804, %v4796
    %v6829 = vpack.c.b16 %v4805, %v4797
    %v6830 = vpack.c.b16 %v4806, %v4798
    %v6831 = vpack.c.b16 %v4807, %v4799
    %v6832 = vpack.c.b16 %v4808, %v4800
    %v6833 = vpack.c.b16 %v4809, %v4801
    %v6834 = vpack.c.b16 %v4810, %v4802
    %v6835 = vpack.c.b16 %v4811, %v4803
    %v6836 = vpack.c.b16 %v4820, %v4812
    %v6837 = vpack.c.b16 %v4821, %v4813
    %v6838 = vpack.c.b16 %v4822, %v4814
    %v6839 = vpack.c.b16 %v4823, %v4815
    %v6840 = vpack.c.b16 %v4824, %v4816
    %v6841 = vpack.c.b16 %v4825, %v4817
    %v6842 = vpack.c.b16 %v4826, %v4818
    %v6843 = vpack.c.b16 %v4827, %v4819
    %v6844 = vpack.c.b16 %v4836, %v4828
    %v6845 = vpack.c.b16 %v4837, %v4829
    %v6846 = vpack.c.b16 %v4838, %v4830
    %v6847 = vpack.c.b16 %v4839, %v4831
    %v6848 = vpack.c.b16 %v4840, %v4832
    %v6849 = vpack.c.b16 %v4841, %v4833
    %v6850 = vpack.c.b16 %v4842, %v4834
    %v6851 = vpack.c.b16 %v4843, %v4835
    %v6852 = vpack.c.b16 %v4852, %v4844
    %v6853 = vpack.c.b16 %v4853, %v4845
    %v6854 = vpack.c.b16 %v4854, %v4846
    %v6855 = vpack.c.b16 %v4855, %v4847
    %v6856 = vpack.c.b16 %v4856, %v4848
    %v6857 = vpack.c.b16 %v4857, %v4849
    %v6858 = vpack.c.b16 %v4858, %v4850
    %v6859 = vpack.c.b16 %v4859, %v4851
    %v6860 = vpack.c.b16 %v4868, %v4860
    %v6861 = vpack.c.b16 %v4869, %v4861
    %v6862 = vpack.c.b16 %v4870, %v4862
    %v6863 = vpack.c.b16 %v4871, %v4863
    %v6864 = vpack.c.b16 %v4872, %v4864
    %v6865 = vpack.c.b16 %v4873, %v4865
    %v6866 = vpack.c.b16 %v4874, %v4866
    %v6867 = vpack.c.b16 %v4875, %v4867
    %v6868 = vpack.c.b16 %v4884, %v4876
    %v6869 = vpack.c.b16 %v4885, %v4877
    %v6870 = vpack.c.b16 %v4886, %v4878
    %v6871 = vpack.c.b16 %v4887, %v4879
    %v6872 = vpack.c.b16 %v4888, %v4880
    %v6873 = vpack.c.b16 %v4889, %v4881
    %v6874 = vpack.c.b16 %v4890, %v4882
    %v6875 = vpack.c.b16 %v4891, %v4883
    %v6876 = vpack.c.b16 %v4900, %v4892
    %v6877 = vpack.c.b16 %v4901, %v4893
    %v6878 = vpack.c.b16 %v4902, %v4894
    %v6879 = vpack.c.b16 %v4903, %v4895
    %v6880 = vpack.c.b16 %v4904, %v4896
    %v6881 = vpack.c.b16 %v4905, %v4897
    %v6882 = vpack.c.b16 %v4906, %v4898
    %v6883 = vpack.c.b16 %v4907, %v4899
    %v6884 = vpack.c.b16 %v4916, %v4908
    %v6885 = vpack.c.b16 %v4917, %v4909
    %v6886 = vpack.c.b16 %v4918, %v4910
    %v6887 = vpack.c.b16 %v4919, %v4911
    %v6888 = vpack.c.b16 %v4920, %v4912
    %v6889 = vpack.c.b16 %v4921, %v4913
    %v6890 = vpack.c.b16 %v4922, %v4914
    %v6891 = vpack.c.b16 %v4923, %v4915
    %v6892 = vpack.c.b16 %v4932, %v4924
    %v6893 = vpack.c.b16 %v4933, %v4925
    %v6894 = vpack.c.b16 %v4934, %v4926
    %v6895 = vpack.c.b16 %v4935, %v4927
    %v6896 = vpack.c.b16 %v4936, %v4928
    %v6897 = vpack.c.b16 %v4937, %v4929
    %v6898 = vpack.c.b16 %v4938, %v4930
    %v6899 = vpack.c.b16 %v4939, %v4931
    %v6900 = vpack.c.b16 %v4948, %v4940
    %v6901 = vpack.c.b16 %v4949, %v4941
    %v6902 = vpack.c.b16 %v4950, %v4942
    %v6903 = vpack.c.b16 %v4951, %v4943
    %v6904 = vpack.c.b16 %v4952, %v4944
    %v6905 = vpack.c.b16 %v4953, %v4945
    %v6906 = vpack.c.b16 %v4954, %v4946
    %v6907 = vpack.c.b16 %v4955, %v4947
    %v6908 = vpack.c.b16 %v4964, %v4956
    %v6909 = vpack.c.b16 %v4965, %v4957
    %v6910 = vpack.c.b16 %v4966, %v4958
    %v6911 = vpack.c.b16 %v4967, %v4959
    %v6912 = vpack.c.b16 %v4968, %v4960
    %v6913 = vpack.c.b16 %v4969, %v4961
    %v6914 = vpack.c.b16 %v4970, %v4962
    %v6915 = vpack.c.b16 %v4971, %v4963
    %v6916 = vpack.c.b16 %v4980, %v4972
    %v6917 = vpack.c.b16 %v4981, %v4973
    %v6918 = vpack.c.b16 %v4982, %v4974
    %v6919 = vpack.c.b16 %v4983, %v4975
    %v6920 = vpack.c.b16 %v4984, %v4976
    %v6921 = vpack.c.b16 %v4985, %v4977
    %v6922 = vpack.c.b16 %v4986, %v4978
    %v6923 = vpack.c.b16 %v4987, %v4979
    %v6924 = vpack.c.b16 %v4996, %v4988
    %v6925 = vpack.c.b16 %v4997, %v4989
    %v6926 = vpack.c.b16 %v4998, %v4990
    %v6927 = vpack.c.b16 %v4999, %v4991
    %v6928 = vpack.c.b16 %v5000, %v4992
    %v6929 = vpack.c.b16 %v5001, %v4993
    %v6930 = vpack.c.b16 %v5002, %v4994
    %v6931 = vpack.c.b16 %v5003, %v4995
    %v6932 = vpack.c.b16 %v5012, %v5004
    %v6933 = vpack.c.b16 %v5013, %v5005
    %v6934 = vpack.c.b16 %v5014, %v5006
    %v6935 = vpack.c.b16 %v5015, %v5007
    %v6936 = vpack.c.b16 %v5016, %v5008
    %v6937 = vpack.c.b16 %v5017, %v5009
    %v6938 = vpack.c.b16 %v5018, %v5010
    %v6939 = vpack.c.b16 %v5019, %v5011
    %v6940 = vpack.c.b16 %v5028, %v5020
    %v6941 = vpack.c.b16 %v5029, %v5021
    %v6942 = vpack.c.b16 %v5030, %v5022
    %v6943 = vpack.c.b16 %v5031, %v5023
    %v6944 = vpack.c.b16 %v5032, %v5024
    %v6945 = vpack.c.b16 %v5033, %v5025
    %v6946 = vpack.c.b16 %v5034, %v5026
    %v6947 = vpack.c.b16 %v5035, %v5027
    %v6948 = vpack.c.b16 %v5044, %v5036
    %v6949 = vpack.c.b16 %v5045, %v5037
    %v6950 = vpack.c.b16 %v5046, %v5038
    %v6951 = vpack.c.b16 %v5047, %v5039
    %v6952 = vpack.c.b16 %v5048, %v5040
    %v6953 = vpack.c.b16 %v5049, %v5041
    %v6954 = vpack.c.b16 %v5050, %v5042
    %v6955 = vpack.c.b16 %v5051, %v5043
    %v6956 = vpack.c.b16 %v5060, %v5052
    %v6957 = vpack.c.b16 %v5061, %v5053
    %v6958 = vpack.c.b16 %v5062, %v5054
    %v6959 = vpack.c.b16 %v5063, %v5055
    %v6960 = vpack.c.b16 %v5064, %v5056
    %v6961 = vpack.c.b16 %v5065, %v5057
    %v6962 = vpack.c.b16 %v5066, %v5058
    %v6963 = vpack.c.b16 %v5067, %v5059
    %v6964 = vpack.c.b16 %v5076, %v5068
    %v6965 = vpack.c.b16 %v5077, %v5069
    %v6966 = vpack.c.b16 %v5078, %v5070
    %v6967 = vpack.c.b16 %v5079, %v5071
    %v6968 = vpack.c.b16 %v5080, %v5072
    %v6969 = vpack.c.b16 %v5081, %v5073
    %v6970 = vpack.c.b16 %v5082, %v5074
    %v6971 = vpack.c.b16 %v5083, %v5075
    %v6972 = vpack.c.b16 %v5092, %v5084
    %v6973 = vpack.c.b16 %v5093, %v5085
    %v6974 = vpack.c.b16 %v5094, %v5086
    %v6975 = vpack.c.b16 %v5095, %v5087
    %v6976 = vpack.c.b16 %v5096, %v5088
    %v6977 = vpack.c.b16 %v5097, %v5089
    %v6978 = vpack.c.b16 %v5098, %v5090
    %v6979 = vpack.c.b16 %v5099, %v5091
    %v6980 = vpack.c.b16 %v5108, %v5100
    %v6981 = vpack.c.b16 %v5109, %v5101
    %v6982 = vpack.c.b16 %v5110, %v5102
    %v6983 = vpack.c.b16 %v5111, %v5103
    %v6984 = vpack.c.b16 %v5112, %v5104
    %v6985 = vpack.c.b16 %v5113, %v5105
    %v6986 = vpack.c.b16 %v5114, %v5106
    %v6987 = vpack.c.b16 %v5115, %v5107
    %v6988 = vpack.c.b16 %v5124, %v5116
    %v6989 = vpack.c.b16 %v5125, %v5117
    %v6990 = vpack.c.b16 %v5126, %v5118
    %v6991 = vpack.c.b16 %v5127, %v5119
    %v6992 = vpack.c.b16 %v5128, %v5120
    %v6993 = vpack.c.b16 %v5129, %v5121
    %v6994 = vpack.c.b16 %v5130, %v5122
    %v6995 = vpack.c.b16 %v5131, %v5123
    %v6996 = vpack.c.b16 %v5140, %v5132
    %v6997 = vpack.c.b16 %v5141, %v5133
    %v6998 = vpack.c.b16 %v5142, %v5134
    %v6999 = vpack.c.b16 %v5143, %v5135
    %v7000 = vpack.c.b16 %v5144, %v5136
    %v7001 = vpack.c.b16 %v5145, %v5137
    %v7002 = vpack.c.b16 %v5146, %v5138
    %v7003 = vpack.c.b16 %v5147, %v5139
    %v7004 = vpack.c.b16 %v5156, %v5148
    %v7005 = vpack.c.b16 %v5157, %v5149
    %v7006 = vpack.c.b16 %v5158, %v5150
    %v7007 = vpack.c.b16 %v5159, %v5151
    %v7008 = vpack.c.b16 %v5160, %v5152
    %v7009 = vpack.c.b16 %v5161, %v5153
    %v7010 = vpack.c.b16 %v5162, %v5154
    %v7011 = vpack.c.b16 %v5163, %v5155
    %v7012 = vpack.c.b16 %v5172, %v5164
    %v7013 = vpack.c.b16 %v5173, %v5165
    %v7014 = vpack.c.b16 %v5174, %v5166
    %v7015 = vpack.c.b16 %v5175, %v5167
    %v7016 = vpack.c.b16 %v5176, %v5168
    %v7017 = vpack.c.b16 %v5177, %v5169
    %v7018 = vpack.c.b16 %v5178, %v5170
    %v7019 = vpack.c.b16 %v5179, %v5171
    %v7020 = vpack.c.b16 %v5188, %v5180
    %v7021 = vpack.c.b16 %v5189, %v5181
    %v7022 = vpack.c.b16 %v5190, %v5182
    %v7023 = vpack.c.b16 %v5191, %v5183
    %v7024 = vpack.c.b16 %v5192, %v5184
    %v7025 = vpack.c.b16 %v5193, %v5185
    %v7026 = vpack.c.b16 %v5194, %v5186
    %v7027 = vpack.c.b16 %v5195, %v5187
    %v7028 = vpack.c.b16 %v5204, %v5196
    %v7029 = vpack.c.b16 %v5205, %v5197
    %v7030 = vpack.c.b16 %v5206, %v5198
    %v7031 = vpack.c.b16 %v5207, %v5199
    %v7032 = vpack.c.b16 %v5208, %v5200
    %v7033 = vpack.c.b16 %v5209, %v5201
    %v7034 = vpack.c.b16 %v5210, %v5202
    %v7035 = vpack.c.b16 %v5211, %v5203
    %v7036 = vpack.c.b16 %v5220, %v5212
    %v7037 = vpack.c.b16 %v5221, %v5213
    %v7038 = vpack.c.b16 %v5222, %v5214
    %v7039 = vpack.c.b16 %v5223, %v5215
    %v7040 = vpack.c.b16 %v5224, %v5216
    %v7041 = vpack.c.b16 %v5225, %v5217
    %v7042 = vpack.c.b16 %v5226, %v5218
    %v7043 = vpack.c.b16 %v5227, %v5219
    %v7044 = vpack.c.b16 %v5236, %v5228
    %v7045 = vpack.c.b16 %v5237, %v5229
    %v7046 = vpack.c.b16 %v5238, %v5230
    %v7047 = vpack.c.b16 %v5239, %v5231
    %v7048 = vpack.c.b16 %v5240, %v5232
    %v7049 = vpack.c.b16 %v5241, %v5233
    %v7050 = vpack.c.b16 %v5242, %v5234
    %v7051 = vpack.c.b16 %v5243, %v5235
    %v7052 = vpack.c.b16 %v5252, %v5244
    %v7053 = vpack.c.b16 %v5253, %v5245
    %v7054 = vpack.c.b16 %v5254, %v5246
    %v7055 = vpack.c.b16 %v5255, %v5247
    %v7056 = vpack.c.b16 %v5256, %v5248
    %v7057 = vpack.c.b16 %v5257, %v5249
    %v7058 = vpack.c.b16 %v5258, %v5250
    %v7059 = vpack.c.b16 %v5259, %v5251
    %v7060 = vpack.c.b16 %v5268, %v5260
    %v7061 = vpack.c.b16 %v5269, %v5261
    %v7062 = vpack.c.b16 %v5270, %v5262
    %v7063 = vpack.c.b16 %v5271, %v5263
    %v7064 = vpack.c.b16 %v5272, %v5264
    %v7065 = vpack.c.b16 %v5273, %v5265
    %v7066 = vpack.c.b16 %v5274, %v5266
    %v7067 = vpack.c.b16 %v5275, %v5267
    %v7068 = vpack.c.b16 %v5284, %v5276
    %v7069 = vpack.c.b16 %v5285, %v5277
    %v7070 = vpack.c.b16 %v5286, %v5278
    %v7071 = vpack.c.b16 %v5287, %v5279
    %v7072 = vpack.c.b16 %v5288, %v5280
    %v7073 = vpack.c.b16 %v5289, %v5281
    %v7074 = vpack.c.b16 %v5290, %v5282
    %v7075 = vpack.c.b16 %v5291, %v5283
    %v7076 = vpack.c.b16 %v5300, %v5292
    %v7077 = vpack.c.b16 %v5301, %v5293
    %v7078 = vpack.c.b16 %v5302, %v5294
    %v7079 = vpack.c.b16 %v5303, %v5295
    %v7080 = vpack.c.b16 %v5304, %v5296
    %v7081 = vpack.c.b16 %v5305, %v5297
    %v7082 = vpack.c.b16 %v5306, %v5298
    %v7083 = vpack.c.b16 %v5307, %v5299
    %v7084 = vpack.c.b16 %v5316, %v5308
    %v7085 = vpack.c.b16 %v5317, %v5309
    %v7086 = vpack.c.b16 %v5318, %v5310
    %v7087 = vpack.c.b16 %v5319, %v5311
    %v7088 = vpack.c.b16 %v5320, %v5312
    %v7089 = vpack.c.b16 %v5321, %v5313
    %v7090 = vpack.c.b16 %v5322, %v5314
    %v7091 = vpack.c.b16 %v5323, %v5315
    %v7092 = vpack.c.b16 %v5332, %v5324
    %v7093 = vpack.c.b16 %v5333, %v5325
    %v7094 = vpack.c.b16 %v5334, %v5326
    %v7095 = vpack.c.b16 %v5335, %v5327
    %v7096 = vpack.c.b16 %v5336, %v5328
    %v7097 = vpack.c.b16 %v5337, %v5329
    %v7098 = vpack.c.b16 %v5338, %v5330
    %v7099 = vpack.c.b16 %v5339, %v5331
    %v7100 = vpack.c.b16 %v5348, %v5340
    %v7101 = vpack.c.b16 %v5349, %v5341
    %v7102 = vpack.c.b16 %v5350, %v5342
    %v7103 = vpack.c.b16 %v5351, %v5343
    %v7104 = vpack.c.b16 %v5352, %v5344
    %v7105 = vpack.c.b16 %v5353, %v5345
    %v7106 = vpack.c.b16 %v5354, %v5346
    %v7107 = vpack.c.b16 %v5355, %v5347
    %v7108 = vpack.c.b16 %v5364, %v5356
    %v7109 = vpack.c.b16 %v5365, %v5357
    %v7110 = vpack.c.b16 %v5366, %v5358
    %v7111 = vpack.c.b16 %v5367, %v5359
    %v7112 = vpack.c.b16 %v5368, %v5360
    %v7113 = vpack.c.b16 %v5369, %v5361
    %v7114 = vpack.c.b16 %v5370, %v5362
    %v7115 = vpack.c.b16 %v5371, %v5363
    %v7116 = vpack.c.b16 %v5380, %v5372
    %v7117 = vpack.c.b16 %v5381, %v5373
    %v7118 = vpack.c.b16 %v5382, %v5374
    %v7119 = vpack.c.b16 %v5383, %v5375
    %v7120 = vpack.c.b16 %v5384, %v5376
    %v7121 = vpack.c.b16 %v5385, %v5377
    %v7122 = vpack.c.b16 %v5386, %v5378
    %v7123 = vpack.c.b16 %v5387, %v5379
    %v7124 = vpack.c.b16 %v5396, %v5388
    %v7125 = vpack.c.b16 %v5397, %v5389
    %v7126 = vpack.c.b16 %v5398, %v5390
    %v7127 = vpack.c.b16 %v5399, %v5391
    %v7128 = vpack.c.b16 %v5400, %v5392
    %v7129 = vpack.c.b16 %v5401, %v5393
    %v7130 = vpack.c.b16 %v5402, %v5394
    %v7131 = vpack.c.b16 %v5403, %v5395
    %v7132 = vpack.c.b16 %v5412, %v5404
    %v7133 = vpack.c.b16 %v5413, %v5405
    %v7134 = vpack.c.b16 %v5414, %v5406
    %v7135 = vpack.c.b16 %v5415, %v5407
    %v7136 = vpack.c.b16 %v5416, %v5408
    %v7137 = vpack.c.b16 %v5417, %v5409
    %v7138 = vpack.c.b16 %v5418, %v5410
    %v7139 = vpack.c.b16 %v5419, %v5411
    %v7140 = vpack.c.b16 %v5428, %v5420
    %v7141 = vpack.c.b16 %v5429, %v5421
    %v7142 = vpack.c.b16 %v5430, %v5422
    %v7143 = vpack.c.b16 %v5431, %v5423
    %v7144 = vpack.c.b16 %v5432, %v5424
    %v7145 = vpack.c.b16 %v5433, %v5425
    %v7146 = vpack.c.b16 %v5434, %v5426
    %v7147 = vpack.c.b16 %v5435, %v5427
    %v7148 = vpack.c.b16 %v5444, %v5436
    %v7149 = vpack.c.b16 %v5445, %v5437
    %v7150 = vpack.c.b16 %v5446, %v5438
    %v7151 = vpack.c.b16 %v5447, %v5439
    %v7152 = vpack.c.b16 %v5448, %v5440
    %v7153 = vpack.c.b16 %v5449, %v5441
    %v7154 = vpack.c.b16 %v5450, %v5442
    %v7155 = vpack.c.b16 %v5451, %v5443
    %v7156 = vpack.c.b16 %v5460, %v5452
    %v7157 = vpack.c.b16 %v5461, %v5453
    %v7158 = vpack.c.b16 %v5462, %v5454
    %v7159 = vpack.c.b16 %v5463, %v5455
    %v7160 = vpack.c.b16 %v5464, %v5456
    %v7161 = vpack.c.b16 %v5465, %v5457
    %v7162 = vpack.c.b16 %v5466, %v5458
    %v7163 = vpack.c.b16 %v5467, %v5459
    %v7164 = vpack.c.b16 %v5476, %v5468
    %v7165 = vpack.c.b16 %v5477, %v5469
    %v7166 = vpack.c.b16 %v5478, %v5470
    %v7167 = vpack.c.b16 %v5479, %v5471
    %v7168 = vpack.c.b16 %v5480, %v5472
    %v7169 = vpack.c.b16 %v5481, %v5473
    %v7170 = vpack.c.b16 %v5482, %v5474
    %v7171 = vpack.c.b16 %v5483, %v5475
    %v7172 = vpack.c.b16 %v5492, %v5484
    %v7173 = vpack.c.b16 %v5493, %v5485
    %v7174 = vpack.c.b16 %v5494, %v5486
    %v7175 = vpack.c.b16 %v5495, %v5487
    %v7176 = vpack.c.b16 %v5496, %v5488
    %v7177 = vpack.c.b16 %v5497, %v5489
    %v7178 = vpack.c.b16 %v5498, %v5490
    %v7179 = vpack.c.b16 %v5499, %v5491
    %v7180 = vpack.c.b16 %v5508, %v5500
    %v7181 = vpack.c.b16 %v5509, %v5501
    %v7182 = vpack.c.b16 %v5510, %v5502
    %v7183 = vpack.c.b16 %v5511, %v5503
    %v7184 = vpack.c.b16 %v5512, %v5504
    %v7185 = vpack.c.b16 %v5513, %v5505
    %v7186 = vpack.c.b16 %v5514, %v5506
    %v7187 = vpack.c.b16 %v5515, %v5507
    %v7188 = vpack.c.b16 %v5524, %v5516
    %v7189 = vpack.c.b16 %v5525, %v5517
    %v7190 = vpack.c.b16 %v5526, %v5518
    %v7191 = vpack.c.b16 %v5527, %v5519
    %v7192 = vpack.c.b16 %v5528, %v5520
    %v7193 = vpack.c.b16 %v5529, %v5521
    %v7194 = vpack.c.b16 %v5530, %v5522
    %v7195 = vpack.c.b16 %v5531, %v5523
    %v7196 = vpack.c.b16 %v5540, %v5532
    %v7197 = vpack.c.b16 %v5541, %v5533
    %v7198 = vpack.c.b16 %v5542, %v5534
    %v7199 = vpack.c.b16 %v5543, %v5535
    %v7200 = vpack.c.b16 %v5544, %v5536
    %v7201 = vpack.c.b16 %v5545, %v5537
    %v7202 = vpack.c.b16 %v5546, %v5538
    %v7203 = vpack.c.b16 %v5547, %v5539
    %v7204 = vpack.c.b16 %v5556, %v5548
    %v7205 = vpack.c.b16 %v5557, %v5549
    %v7206 = vpack.c.b16 %v5558, %v5550
    %v7207 = vpack.c.b16 %v5559, %v5551
    %v7208 = vpack.c.b16 %v5560, %v5552
    %v7209 = vpack.c.b16 %v5561, %v5553
    %v7210 = vpack.c.b16 %v5562, %v5554
    %v7211 = vpack.c.b16 %v5563, %v5555
    %v7212 = vpack.c.b16 %v5572, %v5564
    %v7213 = vpack.c.b16 %v5573, %v5565
    %v7214 = vpack.c.b16 %v5574, %v5566
    %v7215 = vpack.c.b16 %v5575, %v5567
    %v7216 = vpack.c.b16 %v5576, %v5568
    %v7217 = vpack.c.b16 %v5577, %v5569
    %v7218 = vpack.c.b16 %v5578, %v5570
    %v7219 = vpack.c.b16 %v5579, %v5571
    %v7220 = vpack.c.b16 %v5588, %v5580
    %v7221 = vpack.c.b16 %v5589, %v5581
    %v7222 = vpack.c.b16 %v5590, %v5582
    %v7223 = vpack.c.b16 %v5591, %v5583
    %v7224 = vpack.c.b16 %v5592, %v5584
    %v7225 = vpack.c.b16 %v5593, %v5585
    %v7226 = vpack.c.b16 %v5594, %v5586
    %v7227 = vpack.c.b16 %v5595, %v5587
    %v7228 = vpack.c.b16 %v5604, %v5596
    %v7229 = vpack.c.b16 %v5605, %v5597
    %v7230 = vpack.c.b16 %v5606, %v5598
    %v7231 = vpack.c.b16 %v5607, %v5599
    %v7232 = vpack.c.b16 %v5608, %v5600
    %v7233 = vpack.c.b16 %v5609, %v5601
    %v7234 = vpack.c.b16 %v5610, %v5602
    %v7235 = vpack.c.b16 %v5611, %v5603
    %v7236 = vpack.c.b16 %v5620, %v5612
    %v7237 = vpack.c.b16 %v5621, %v5613
    %v7238 = vpack.c.b16 %v5622, %v5614
    %v7239 = vpack.c.b16 %v5623, %v5615
    %v7240 = vpack.c.b16 %v5624, %v5616
    %v7241 = vpack.c.b16 %v5625, %v5617
    %v7242 = vpack.c.b16 %v5626, %v5618
    %v7243 = vpack.c.b16 %v5627, %v5619
    %v7244 = vpack.c.b16 %v5636, %v5628
    %v7245 = vpack.c.b16 %v5637, %v5629
    %v7246 = vpack.c.b16 %v5638, %v5630
    %v7247 = vpack.c.b16 %v5639, %v5631
    %v7248 = vpack.c.b16 %v5640, %v5632
    %v7249 = vpack.c.b16 %v5641, %v5633
    %v7250 = vpack.c.b16 %v5642, %v5634
    %v7251 = vpack.c.b16 %v5643, %v5635
    %v7252 = vpack.c.b16 %v5652, %v5644
    %v7253 = vpack.c.b16 %v5653, %v5645
    %v7254 = vpack.c.b16 %v5654, %v5646
    %v7255 = vpack.c.b16 %v5655, %v5647
    %v7256 = vpack.c.b16 %v5656, %v5648
    %v7257 = vpack.c.b16 %v5657, %v5649
    %v7258 = vpack.c.b16 %v5658, %v5650
    %v7259 = vpack.c.b16 %v5659, %v5651
    %v7260 = vpack.c.b16 %v5668, %v5660
    %v7261 = vpack.c.b16 %v5669, %v5661
    %v7262 = vpack.c.b16 %v5670, %v5662
    %v7263 = vpack.c.b16 %v5671, %v5663
    %v7264 = vpack.c.b16 %v5672, %v5664
    %v7265 = vpack.c.b16 %v5673, %v5665
    %v7266 = vpack.c.b16 %v5674, %v5666
    %v7267 = vpack.c.b16 %v5675, %v5667
    %v7268 = vpack.c.b16 %v5684, %v5676
    %v7269 = vpack.c.b16 %v5685, %v5677
    %v7270 = vpack.c.b16 %v5686, %v5678
    %v7271 = vpack.c.b16 %v5687, %v5679
    %v7272 = vpack.c.b16 %v5688, %v5680
    %v7273 = vpack.c.b16 %v5689, %v5681
    %v7274 = vpack.c.b16 %v5690, %v5682
    %v7275 = vpack.c.b16 %v5691, %v5683
    %v7276 = vpack.c.b16 %v5700, %v5692
    %v7277 = vpack.c.b16 %v5701, %v5693
    %v7278 = vpack.c.b16 %v5702, %v5694
    %v7279 = vpack.c.b16 %v5703, %v5695
    %v7280 = vpack.c.b16 %v5704, %v5696
    %v7281 = vpack.c.b16 %v5705, %v5697
    %v7282 = vpack.c.b16 %v5706, %v5698
    %v7283 = vpack.c.b16 %v5707, %v5699
    %v7284 = vpack.c.b16 %v5716, %v5708
    %v7285 = vpack.c.b16 %v5717, %v5709
    %v7286 = vpack.c.b16 %v5718, %v5710
    %v7287 = vpack.c.b16 %v5719, %v5711
    %v7288 = vpack.c.b16 %v5720, %v5712
    %v7289 = vpack.c.b16 %v5721, %v5713
    %v7290 = vpack.c.b16 %v5722, %v5714
    %v7291 = vpack.c.b16 %v5723, %v5715
    %v7292 = vpack.c.b16 %v5732, %v5724
    %v7293 = vpack.c.b16 %v5733, %v5725
    %v7294 = vpack.c.b16 %v5734, %v5726
    %v7295 = vpack.c.b16 %v5735, %v5727
    %v7296 = vpack.c.b16 %v5736, %v5728
    %v7297 = vpack.c.b16 %v5737, %v5729
    %v7298 = vpack.c.b16 %v5738, %v5730
    %v7299 = vpack.c.b16 %v5739, %v5731
    %v7300 = vpack.c.b16 %v5748, %v5740
    %v7301 = vpack.c.b16 %v5749, %v5741
    %v7302 = vpack.c.b16 %v5750, %v5742
    %v7303 = vpack.c.b16 %v5751, %v5743
    %v7304 = vpack.c.b16 %v5752, %v5744
    %v7305 = vpack.c.b16 %v5753, %v5745
    %v7306 = vpack.c.b16 %v5754, %v5746
    %v7307 = vpack.c.b16 %v5755, %v5747
    %v7308 = vpack.c.b16 %v5764, %v5756
    %v7309 = vpack.c.b16 %v5765, %v5757
    %v7310 = vpack.c.b16 %v5766, %v5758
    %v7311 = vpack.c.b16 %v5767, %v5759
    %v7312 = vpack.c.b16 %v5768, %v5760
    %v7313 = vpack.c.b16 %v5769, %v5761
    %v7314 = vpack.c.b16 %v5770, %v5762
    %v7315 = vpack.c.b16 %v5771, %v5763
    %v7316 = vpack.c.b16 %v5780, %v5772
    %v7317 = vpack.c.b16 %v5781, %v5773
    %v7318 = vpack.c.b16 %v5782, %v5774
    %v7319 = vpack.c.b16 %v5783, %v5775
    %v7320 = vpack.c.b16 %v5784, %v5776
    %v7321 = vpack.c.b16 %v5785, %v5777
    %v7322 = vpack.c.b16 %v5786, %v5778
    %v7323 = vpack.c.b16 %v5787, %v5779
    %v7324 = vpack.c.b16 %v5796, %v5788
    %v7325 = vpack.c.b16 %v5797, %v5789
    %v7326 = vpack.c.b16 %v5798, %v5790
    %v7327 = vpack.c.b16 %v5799, %v5791
    %v7328 = vpack.c.b16 %v5800, %v5792
    %v7329 = vpack.c.b16 %v5801, %v5793
    %v7330 = vpack.c.b16 %v5802, %v5794
    %v7331 = vpack.c.b16 %v5803, %v5795
    %v7332 = vpack.c.b16 %v5812, %v5804
    %v7333 = vpack.c.b16 %v5813, %v5805
    %v7334 = vpack.c.b16 %v5814, %v5806
    %v7335 = vpack.c.b16 %v5815, %v5807
    %v7336 = vpack.c.b16 %v5816, %v5808
    %v7337 = vpack.c.b16 %v5817, %v5809
    %v7338 = vpack.c.b16 %v5818, %v5810
    %v7339 = vpack.c.b16 %v5819, %v5811
    %v7340 = vpack.c.b16 %v5828, %v5820
    %v7341 = vpack.c.b16 %v5829, %v5821
    %v7342 = vpack.c.b16 %v5830, %v5822
    %v7343 = vpack.c.b16 %v5831, %v5823
    %v7344 = vpack.c.b16 %v5832, %v5824
    %v7345 = vpack.c.b16 %v5833, %v5825
    %v7346 = vpack.c.b16 %v5834, %v5826
    %v7347 = vpack.c.b16 %v5835, %v5827
    %v7348 = vpack.c.b16 %v5844, %v5836
    %v7349 = vpack.c.b16 %v5845, %v5837
    %v7350 = vpack.c.b16 %v5846, %v5838
    %v7351 = vpack.c.b16 %v5847, %v5839
    %v7352 = vpack.c.b16 %v5848, %v5840
    %v7353 = vpack.c.b16 %v5849, %v5841
    %v7354 = vpack.c.b16 %v5850, %v5842
    %v7355 = vpack.c.b16 %v5851, %v5843
    %v7356 = vpack.c.b16 %v5860, %v5852
    %v7357 = vpack.c.b16 %v5861, %v5853
    %v7358 = vpack.c.b16 %v5862, %v5854
    %v7359 = vpack.c.b16 %v5863, %v5855
    %v7360 = vpack.c.b16 %v5864, %v5856
    %v7361 = vpack.c.b16 %v5865, %v5857
    %v7362 = vpack.c.b16 %v5866, %v5858
    %v7363 = vpack.c.b16 %v5867, %v5859
    %v7364 = vpack.c.b16 %v5876, %v5868
    %v7365 = vpack.c.b16 %v5877, %v5869
    %v7366 = vpack.c.b16 %v5878, %v5870
    %v7367 = vpack.c.b16 %v5879, %v5871
    %v7368 = vpack.c.b16 %v5880, %v5872
    %v7369 = vpack.c.b16 %v5881, %v5873
    %v7370 = vpack.c.b16 %v5882, %v5874
    %v7371 = vpack.c.b16 %v5883, %v5875
    %v7372 = vpack.c.b16 %v5892, %v5884
    %v7373 = vpack.c.b16 %v5893, %v5885
    %v7374 = vpack.c.b16 %v5894, %v5886
    %v7375 = vpack.c.b16 %v5895, %v5887
    %v7376 = vpack.c.b16 %v5896, %v5888
    %v7377 = vpack.c.b16 %v5897, %v5889
    %v7378 = vpack.c.b16 %v5898, %v5890
    %v7379 = vpack.c.b16 %v5899, %v5891
    %v7380 = vpack.c.b16 %v5908, %v5900
    %v7381 = vpack.c.b16 %v5909, %v5901
    %v7382 = vpack.c.b16 %v5910, %v5902
    %v7383 = vpack.c.b16 %v5911, %v5903
    %v7384 = vpack.c.b16 %v5912, %v5904
    %v7385 = vpack.c.b16 %v5913, %v5905
    %v7386 = vpack.c.b16 %v5914, %v5906
    %v7387 = vpack.c.b16 %v5915, %v5907
    %v7388 = vpack.c.b16 %v5924, %v5916
    %v7389 = vpack.c.b16 %v5925, %v5917
    %v7390 = vpack.c.b16 %v5926, %v5918
    %v7391 = vpack.c.b16 %v5927, %v5919
    %v7392 = vpack.c.b16 %v5928, %v5920
    %v7393 = vpack.c.b16 %v5929, %v5921
    %v7394 = vpack.c.b16 %v5930, %v5922
    %v7395 = vpack.c.b16 %v5931, %v5923
    %v7396 = vpack.c.b16 %v5940, %v5932
    %v7397 = vpack.c.b16 %v5941, %v5933
    %v7398 = vpack.c.b16 %v5942, %v5934
    %v7399 = vpack.c.b16 %v5943, %v5935
    %v7400 = vpack.c.b16 %v5944, %v5936
    %v7401 = vpack.c.b16 %v5945, %v5937
    %v7402 = vpack.c.b16 %v5946, %v5938
    %v7403 = vpack.c.b16 %v5947, %v5939
    %v7404 = vpack.c.b16 %v5956, %v5948
    %v7405 = vpack.c.b16 %v5957, %v5949
    %v7406 = vpack.c.b16 %v5958, %v5950
    %v7407 = vpack.c.b16 %v5959, %v5951
    %v7408 = vpack.c.b16 %v5960, %v5952
    %v7409 = vpack.c.b16 %v5961, %v5953
    %v7410 = vpack.c.b16 %v5962, %v5954
    %v7411 = vpack.c.b16 %v5963, %v5955
    %v7412 = vpack.c.b16 %v5972, %v5964
    %v7413 = vpack.c.b16 %v5973, %v5965
    %v7414 = vpack.c.b16 %v5974, %v5966
    %v7415 = vpack.c.b16 %v5975, %v5967
    %v7416 = vpack.c.b16 %v5976, %v5968
    %v7417 = vpack.c.b16 %v5977, %v5969
    %v7418 = vpack.c.b16 %v5978, %v5970
    %v7419 = vpack.c.b16 %v5979, %v5971
    %v7420 = vpack.c.b16 %v5988, %v5980
    %v7421 = vpack.c.b16 %v5989, %v5981
    %v7422 = vpack.c.b16 %v5990, %v5982
    %v7423 = vpack.c.b16 %v5991, %v5983
    %v7424 = vpack.c.b16 %v5992, %v5984
    %v7425 = vpack.c.b16 %v5993, %v5985
    %v7426 = vpack.c.b16 %v5994, %v5986
    %v7427 = vpack.c.b16 %v5995, %v5987
    %v7428 = vpack.c.b16 %v6004, %v5996
    %v7429 = vpack.c.b16 %v6005, %v5997
    %v7430 = vpack.c.b16 %v6006, %v5998
    %v7431 = vpack.c.b16 %v6007, %v5999
    %v7432 = vpack.c.b16 %v6008, %v6000
    %v7433 = vpack.c.b16 %v6009, %v6001
    %v7434 = vpack.c.b16 %v6010, %v6002
    %v7435 = vpack.c.b16 %v6011, %v6003
    %v7436 = vpack.c.b16 %v6020, %v6012
    %v7437 = vpack.c.b16 %v6021, %v6013
    %v7438 = vpack.c.b16 %v6022, %v6014
    %v7439 = vpack.c.b16 %v6023, %v6015
    %v7440 = vpack.c.b16 %v6024, %v6016
    %v7441 = vpack.c.b16 %v6025, %v6017
    %v7442 = vpack.c.b16 %v6026, %v6018
    %v7443 = vpack.c.b16 %v6027, %v6019
    %v7444 = vpack.c.b16 %v6036, %v6028
    %v7445 = vpack.c.b16 %v6037, %v6029
    %v7446 = vpack.c.b16 %v6038, %v6030
    %v7447 = vpack.c.b16 %v6039, %v6031
    %v7448 = vpack.c.b16 %v6040, %v6032
    %v7449 = vpack.c.b16 %v6041, %v6033
    %v7450 = vpack.c.b16 %v6042, %v6034
    %v7451 = vpack.c.b16 %v6043, %v6035
    %v7452 = vpack.c.b16 %v6052, %v6044
    %v7453 = vpack.c.b16 %v6053, %v6045
    %v7454 = vpack.c.b16 %v6054, %v6046
    %v7455 = vpack.c.b16 %v6055, %v6047
    %v7456 = vpack.c.b16 %v6056, %v6048
    %v7457 = vpack.c.b16 %v6057, %v6049
    %v7458 = vpack.c.b16 %v6058, %v6050
    %v7459 = vpack.c.b16 %v6059, %v6051
    %v7460 = vpack.c.b16 %v6068, %v6060
    %v7461 = vpack.c.b16 %v6069, %v6061
    %v7462 = vpack.c.b16 %v6070, %v6062
    %v7463 = vpack.c.b16 %v6071, %v6063
    %v7464 = vpack.c.b16 %v6072, %v6064
    %v7465 = vpack.c.b16 %v6073, %v6065
    %v7466 = vpack.c.b16 %v6074, %v6066
    %v7467 = vpack.c.b16 %v6075, %v6067
    %v7468 = vpack.c.b16 %v6084, %v6076
    %v7469 = vpack.c.b16 %v6085, %v6077
    %v7470 = vpack.c.b16 %v6086, %v6078
    %v7471 = vpack.c.b16 %v6087, %v6079
    %v7472 = vpack.c.b16 %v6088, %v6080
    %v7473 = vpack.c.b16 %v6089, %v6081
    %v7474 = vpack.c.b16 %v6090, %v6082
    %v7475 = vpack.c.b16 %v6091, %v6083
    %v7476 = vpack.c.b16 %v6100, %v6092
    %v7477 = vpack.c.b16 %v6101, %v6093
    %v7478 = vpack.c.b16 %v6102, %v6094
    %v7479 = vpack.c.b16 %v6103, %v6095
    %v7480 = vpack.c.b16 %v6104, %v6096
    %v7481 = vpack.c.b16 %v6105, %v6097
    %v7482 = vpack.c.b16 %v6106, %v6098
    %v7483 = vpack.c.b16 %v6107, %v6099
    %v7484 = vpack.c.b16 %v6116, %v6108
    %v7485 = vpack.c.b16 %v6117, %v6109
    %v7486 = vpack.c.b16 %v6118, %v6110
    %v7487 = vpack.c.b16 %v6119, %v6111
    %v7488 = vpack.c.b16 %v6120, %v6112
    %v7489 = vpack.c.b16 %v6121, %v6113
    %v7490 = vpack.c.b16 %v6122, %v6114
    %v7491 = vpack.c.b16 %v6123, %v6115
    %v7492 = vpack.c.b16 %v6132, %v6124
    %v7493 = vpack.c.b16 %v6133, %v6125
    %v7494 = vpack.c.b16 %v6134, %v6126
    %v7495 = vpack.c.b16 %v6135, %v6127
    %v7496 = vpack.c.b16 %v6136, %v6128
    %v7497 = vpack.c.b16 %v6137, %v6129
    %v7498 = vpack.c.b16 %v6138, %v6130
    %v7499 = vpack.c.b16 %v6139, %v6131
    %v7500 = vpack.c.b16 %v6148, %v6140
    %v7501 = vpack.c.b16 %v6149, %v6141
    %v7502 = vpack.c.b16 %v6150, %v6142
    %v7503 = vpack.c.b16 %v6151, %v6143
    %v7504 = vpack.c.b16 %v6152, %v6144
    %v7505 = vpack.c.b16 %v6153, %v6145
    %v7506 = vpack.c.b16 %v6154, %v6146
    %v7507 = vpack.c.b16 %v6155, %v6147
    %v7508 = vpack.c.b16 %v6164, %v6156
    %v7509 = vpack.c.b16 %v6165, %v6157
    %v7510 = vpack.c.b16 %v6166, %v6158
    %v7511 = vpack.c.b16 %v6167, %v6159
    %v7512 = vpack.c.b16 %v6168, %v6160
    %v7513 = vpack.c.b16 %v6169, %v6161
    %v7514 = vpack.c.b16 %v6170, %v6162
    %v7515 = vpack.c.b16 %v6171, %v6163
    %v7516 = vpack.c.b16 %v6180, %v6172
    %v7517 = vpack.c.b16 %v6181, %v6173
    %v7518 = vpack.c.b16 %v6182, %v6174
    %v7519 = vpack.c.b16 %v6183, %v6175
    %v7520 = vpack.c.b16 %v6184, %v6176
    %v7521 = vpack.c.b16 %v6185, %v6177
    %v7522 = vpack.c.b16 %v6186, %v6178
    %v7523 = vpack.c.b16 %v6187, %v6179
    %v7524 = vpack.c.b16 %v6196, %v6188
    %v7525 = vpack.c.b16 %v6197, %v6189
    %v7526 = vpack.c.b16 %v6198, %v6190
    %v7527 = vpack.c.b16 %v6199, %v6191
    %v7528 = vpack.c.b16 %v6200, %v6192
    %v7529 = vpack.c.b16 %v6201, %v6193
    %v7530 = vpack.c.b16 %v6202, %v6194
    %v7531 = vpack.c.b16 %v6203, %v6195
    %v7532 = vpack.c.b16 %v6212, %v6204
    %v7533 = vpack.c.b16 %v6213, %v6205
    %v7534 = vpack.c.b16 %v6214, %v6206
    %v7535 = vpack.c.b16 %v6215, %v6207
    %v7536 = vpack.c.b16 %v6216, %v6208
    %v7537 = vpack.c.b16 %v6217, %v6209
    %v7538 = vpack.c.b16 %v6218, %v6210
    %v7539 = vpack.c.b16 %v6219, %v6211
    %v7540 = vpack.c.b16 %v6228, %v6220
    %v7541 = vpack.c.b16 %v6229, %v6221
    %v7542 = vpack.c.b16 %v6230, %v6222
    %v7543 = vpack.c.b16 %v6231, %v6223
    %v7544 = vpack.c.b16 %v6232, %v6224
    %v7545 = vpack.c.b16 %v6233, %v6225
    %v7546 = vpack.c.b16 %v6234, %v6226
    %v7547 = vpack.c.b16 %v6235, %v6227
    %v7548 = vpack.c.b16 %v6244, %v6236
    %v7549 = vpack.c.b16 %v6245, %v6237
    %v7550 = vpack.c.b16 %v6246, %v6238
    %v7551 = vpack.c.b16 %v6247, %v6239
    %v7552 = vpack.c.b16 %v6248, %v6240
    %v7553 = vpack.c.b16 %v6249, %v6241
    %v7554 = vpack.c.b16 %v6250, %v6242
    %v7555 = vpack.c.b16 %v6251, %v6243
    %v7556 = vpack.c.b16 %v6260, %v6252
    %v7557 = vpack.c.b16 %v6261, %v6253
    %v7558 = vpack.c.b16 %v6262, %v6254
    %v7559 = vpack.c.b16 %v6263, %v6255
    %v7560 = vpack.c.b16 %v6264, %v6256
    %v7561 = vpack.c.b16 %v6265, %v6257
    %v7562 = vpack.c.b16 %v6266, %v6258
    %v7563 = vpack.c.b16 %v6267, %v6259
    %v7564 = vpack.c.b16 %v6276, %v6268
    %v7565 = vpack.c.b16 %v6277, %v6269
    %v7566 = vpack.c.b16 %v6278, %v6270
    %v7567 = vpack.c.b16 %v6279, %v6271
    %v7568 = vpack.c.b16 %v6280, %v6272
    %v7569 = vpack.c.b16 %v6281, %v6273
    %v7570 = vpack.c.b16 %v6282, %v6274
    %v7571 = vpack.c.b16 %v6283, %v6275
    %v7572 = vpack.c.b16 %v6292, %v6284
    %v7573 = vpack.c.b16 %v6293, %v6285
    %v7574 = vpack.c.b16 %v6294, %v6286
    %v7575 = vpack.c.b16 %v6295, %v6287
    %v7576 = vpack.c.b16 %v6296, %v6288
    %v7577 = vpack.c.b16 %v6297, %v6289
    %v7578 = vpack.c.b16 %v6298, %v6290
    %v7579 = vpack.c.b16 %v6299, %v6291
    %8860 = vmatpush.bf16.msra.mxu0 %v6356
    %8861 = vmatpush.bf16.msra.mxu0 %v6348
    %8862 = vmatpush.bf16.msra.mxu0 %v6340
    %8863 = vmatpush.bf16.msra.mxu0 %v6332
    %8864 = vmatpush.bf16.msra.mxu0 %v6324
    %8865 = vmatpush.bf16.msra.mxu0 %v6316
    %8866 = vmatpush.bf16.msra.mxu0 %v6308
    %8867 = vmatpush.bf16.msra.mxu0 %v6300
    %8868 = vmatmul.bf16.gmra.mxu0 %v2420
    %v8869 = vpop.f32.mrf.mxu0
    %v8870 = vadd.f32 %v2205, %v8869
    %v8871 = vpop.f32.mrf.mxu0
    %8872 = vdwg.mxu0
    %8873 = vmatpush.bf16.msra.mxu0 %v6420
    %8874 = vmatpush.bf16.msra.mxu0 %v6412
    %8875 = vmatpush.bf16.msra.mxu0 %v6404
    %8876 = vmatpush.bf16.msra.mxu0 %v6396
    %8877 = vmatpush.bf16.msra.mxu0 %v6388
    %8878 = vmatpush.bf16.msra.mxu0 %v6380
    %8879 = vmatpush.bf16.msra.mxu0 %v6372
    %8880 = vmatpush.bf16.msra.mxu0 %v6364
    %8881 = vmatmul.bf16.gmra.mxu0 %v2421
    %v8882 = vpop.f32.mrf.mxu0
    %v8883 = vadd.f32 %v8870, %v8882
    %v8884 = vpop.f32.mrf.mxu0
    %8885 = vdwg.mxu0
    %8886 = vmatpush.bf16.msra.mxu0 %v6484
    %8887 = vmatpush.bf16.msra.mxu0 %v6476
    %8888 = vmatpush.bf16.msra.mxu0 %v6468
    %8889 = vmatpush.bf16.msra.mxu0 %v6460
    %8890 = vmatpush.bf16.msra.mxu0 %v6452
    %8891 = vmatpush.bf16.msra.mxu0 %v6444
    %8892 = vmatpush.bf16.msra.mxu0 %v6436
    %8893 = vmatpush.bf16.msra.mxu0 %v6428
    %8894 = vmatmul.bf16.gmra.mxu0 %v2422
    %v8895 = vpop.f32.mrf.mxu0
    %v8896 = vadd.f32 %v8883, %v8895
    %v8897 = vpop.f32.mrf.mxu0
    %8898 = vdwg.mxu0
    %8899 = vmatpush.bf16.msra.mxu0 %v6548
    %8900 = vmatpush.bf16.msra.mxu0 %v6540
    %8901 = vmatpush.bf16.msra.mxu0 %v6532
    %8902 = vmatpush.bf16.msra.mxu0 %v6524
    %8903 = vmatpush.bf16.msra.mxu0 %v6516
    %8904 = vmatpush.bf16.msra.mxu0 %v6508
    %8905 = vmatpush.bf16.msra.mxu0 %v6500
    %8906 = vmatpush.bf16.msra.mxu0 %v6492
    %8907 = vmatmul.bf16.gmra.mxu0 %v2423
    %v8908 = vpop.f32.mrf.mxu0
    %v8909 = vadd.f32 %v8896, %v8908
    %v8910 = vpop.f32.mrf.mxu0
    %8911 = vdwg.mxu0
    %8912 = vmatpush.bf16.msra.mxu0 %v6612
    %8913 = vmatpush.bf16.msra.mxu0 %v6604
    %8914 = vmatpush.bf16.msra.mxu0 %v6596
    %8915 = vmatpush.bf16.msra.mxu0 %v6588
    %8916 = vmatpush.bf16.msra.mxu0 %v6580
    %8917 = vmatpush.bf16.msra.mxu0 %v6572
    %8918 = vmatpush.bf16.msra.mxu0 %v6564
    %8919 = vmatpush.bf16.msra.mxu0 %v6556
    %8920 = vmatmul.bf16.gmra.mxu0 %v2424
    %v8921 = vpop.f32.mrf.mxu0
    %v8922 = vadd.f32 %v8909, %v8921
    %v8923 = vpop.f32.mrf.mxu0
    %8924 = vdwg.mxu0
    %8925 = vmatpush.bf16.msra.mxu0 %v6676
    %8926 = vmatpush.bf16.msra.mxu0 %v6668
    %8927 = vmatpush.bf16.msra.mxu0 %v6660
    %8928 = vmatpush.bf16.msra.mxu0 %v6652
    %8929 = vmatpush.bf16.msra.mxu0 %v6644
    %8930 = vmatpush.bf16.msra.mxu0 %v6636
    %8931 = vmatpush.bf16.msra.mxu0 %v6628
    %8932 = vmatpush.bf16.msra.mxu0 %v6620
    %8933 = vmatmul.bf16.gmra.mxu0 %v2425
    %v8934 = vpop.f32.mrf.mxu0
    %v8935 = vadd.f32 %v8922, %v8934
    %v8936 = vpop.f32.mrf.mxu0
    %8937 = vdwg.mxu0
    %8938 = vmatpush.bf16.msra.mxu0 %v6740
    %8939 = vmatpush.bf16.msra.mxu0 %v6732
    %8940 = vmatpush.bf16.msra.mxu0 %v6724
    %8941 = vmatpush.bf16.msra.mxu0 %v6716
    %8942 = vmatpush.bf16.msra.mxu0 %v6708
    %8943 = vmatpush.bf16.msra.mxu0 %v6700
    %8944 = vmatpush.bf16.msra.mxu0 %v6692
    %8945 = vmatpush.bf16.msra.mxu0 %v6684
    %8946 = vmatmul.bf16.gmra.mxu0 %v2426
    %v8947 = vpop.f32.mrf.mxu0
    %v8948 = vadd.f32 %v8935, %v8947
    %v8949 = vpop.f32.mrf.mxu0
    %8950 = vdwg.mxu0
    %8951 = vmatpush.bf16.msra.mxu0 %v6804
    %8952 = vmatpush.bf16.msra.mxu0 %v6796
    %8953 = vmatpush.bf16.msra.mxu0 %v6788
    %8954 = vmatpush.bf16.msra.mxu0 %v6780
    %8955 = vmatpush.bf16.msra.mxu0 %v6772
    %8956 = vmatpush.bf16.msra.mxu0 %v6764
    %8957 = vmatpush.bf16.msra.mxu0 %v6756
    %8958 = vmatpush.bf16.msra.mxu0 %v6748
    %8959 = vmatmul.bf16.gmra.mxu0 %v2427
    %v8960 = vpop.f32.mrf.mxu0
    %v8961 = vadd.f32 %v8948, %v8960
    %v8962 = vpop.f32.mrf.mxu0
    %8963 = vdwg.mxu0
    %8964 = vmatpush.bf16.msra.mxu0 %v6868
    %8965 = vmatpush.bf16.msra.mxu0 %v6860
    %8966 = vmatpush.bf16.msra.mxu0 %v6852
    %8967 = vmatpush.bf16.msra.mxu0 %v6844
    %8968 = vmatpush.bf16.msra.mxu0 %v6836
    %8969 = vmatpush.bf16.msra.mxu0 %v6828
    %8970 = vmatpush.bf16.msra.mxu0 %v6820
    %8971 = vmatpush.bf16.msra.mxu0 %v6812
    %8972 = vmatmul.bf16.gmra.mxu0 %v2428
    %v8973 = vpop.f32.mrf.mxu0
    %v8974 = vadd.f32 %v8961, %v8973
    %v8975 = vpop.f32.mrf.mxu0
    %8976 = vdwg.mxu0
    %8977 = vmatpush.bf16.msra.mxu0 %v6932
    %8978 = vmatpush.bf16.msra.mxu0 %v6924
    %8979 = vmatpush.bf16.msra.mxu0 %v6916
    %8980 = vmatpush.bf16.msra.mxu0 %v6908
    %8981 = vmatpush.bf16.msra.mxu0 %v6900
    %8982 = vmatpush.bf16.msra.mxu0 %v6892
    %8983 = vmatpush.bf16.msra.mxu0 %v6884
    %8984 = vmatpush.bf16.msra.mxu0 %v6876
    %8985 = vmatmul.bf16.gmra.mxu0 %v2429
    %v8986 = vpop.f32.mrf.mxu0
    %v8987 = vadd.f32 %v8974, %v8986
    %v8988 = vpop.f32.mrf.mxu0
    %8989 = vdwg.mxu0
    %8990 = vmatpush.bf16.msra.mxu0 %v6996
    %8991 = vmatpush.bf16.msra.mxu0 %v6988
    %8992 = vmatpush.bf16.msra.mxu0 %v6980
    %8993 = vmatpush.bf16.msra.mxu0 %v6972
    %8994 = vmatpush.bf16.msra.mxu0 %v6964
    %8995 = vmatpush.bf16.msra.mxu0 %v6956
    %8996 = vmatpush.bf16.msra.mxu0 %v6948
    %8997 = vmatpush.bf16.msra.mxu0 %v6940
    %8998 = vmatmul.bf16.gmra.mxu0 %v2430
    %v8999 = vpop.f32.mrf.mxu0
    %v9000 = vadd.f32 %v8987, %v8999
    %v9001 = vpop.f32.mrf.mxu0
    %9002 = vdwg.mxu0
    %9003 = vmatpush.bf16.msra.mxu0 %v7060
    %9004 = vmatpush.bf16.msra.mxu0 %v7052
    %9005 = vmatpush.bf16.msra.mxu0 %v7044
    %9006 = vmatpush.bf16.msra.mxu0 %v7036
    %9007 = vmatpush.bf16.msra.mxu0 %v7028
    %9008 = vmatpush.bf16.msra.mxu0 %v7020
    %9009 = vmatpush.bf16.msra.mxu0 %v7012
    %9010 = vmatpush.bf16.msra.mxu0 %v7004
    %9011 = vmatmul.bf16.gmra.mxu0 %v2431
    %v9012 = vpop.f32.mrf.mxu0
    %v9013 = vadd.f32 %v9000, %v9012
    %v9014 = vpop.f32.mrf.mxu0
    %9015 = vdwg.mxu0
    %9016 = vmatpush.bf16.msra.mxu0 %v7124
    %9017 = vmatpush.bf16.msra.mxu0 %v7116
    %9018 = vmatpush.bf16.msra.mxu0 %v7108
    %9019 = vmatpush.bf16.msra.mxu0 %v7100
    %9020 = vmatpush.bf16.msra.mxu0 %v7092
    %9021 = vmatpush.bf16.msra.mxu0 %v7084
    %9022 = vmatpush.bf16.msra.mxu0 %v7076
    %9023 = vmatpush.bf16.msra.mxu0 %v7068
    %9024 = vmatmul.bf16.gmra.mxu0 %v2432
    %v9025 = vpop.f32.mrf.mxu0
    %v9026 = vadd.f32 %v9013, %v9025
    %v9027 = vpop.f32.mrf.mxu0
    %9028 = vdwg.mxu0
    %9029 = vmatpush.bf16.msra.mxu0 %v7188
    %9030 = vmatpush.bf16.msra.mxu0 %v7180
    %9031 = vmatpush.bf16.msra.mxu0 %v7172
    %9032 = vmatpush.bf16.msra.mxu0 %v7164
    %9033 = vmatpush.bf16.msra.mxu0 %v7156
    %9034 = vmatpush.bf16.msra.mxu0 %v7148
    %9035 = vmatpush.bf16.msra.mxu0 %v7140
    %9036 = vmatpush.bf16.msra.mxu0 %v7132
    %9037 = vmatmul.bf16.gmra.mxu0 %v2433
    %v9038 = vpop.f32.mrf.mxu0
    %v9039 = vadd.f32 %v9026, %v9038
    %v9040 = vpop.f32.mrf.mxu0
    %9041 = vdwg.mxu0
    %9042 = vmatpush.bf16.msra.mxu0 %v7252
    %9043 = vmatpush.bf16.msra.mxu0 %v7244
    %9044 = vmatpush.bf16.msra.mxu0 %v7236
    %9045 = vmatpush.bf16.msra.mxu0 %v7228
    %9046 = vmatpush.bf16.msra.mxu0 %v7220
    %9047 = vmatpush.bf16.msra.mxu0 %v7212
    %9048 = vmatpush.bf16.msra.mxu0 %v7204
    %9049 = vmatpush.bf16.msra.mxu0 %v7196
    %9050 = vmatmul.bf16.gmra.mxu0 %v2434
    %v9051 = vpop.f32.mrf.mxu0
    %v9052 = vadd.f32 %v9039, %v9051
    %v9053 = vpop.f32.mrf.mxu0
    %9054 = vdwg.mxu0
    %9055 = vmatpush.bf16.msra.mxu0 %v7316
    %9056 = vmatpush.bf16.msra.mxu0 %v7308
    %9057 = vmatpush.bf16.msra.mxu0 %v7300
    %9058 = vmatpush.bf16.msra.mxu0 %v7292
    %9059 = vmatpush.bf16.msra.mxu0 %v7284
    %9060 = vmatpush.bf16.msra.mxu0 %v7276
    %9061 = vmatpush.bf16.msra.mxu0 %v7268
    %9062 = vmatpush.bf16.msra.mxu0 %v7260
    %9063 = vmatmul.bf16.gmra.mxu0 %v2435
    %v9064 = vpop.f32.mrf.mxu0
    %v9065 = vadd.f32 %v9052, %v9064
    %v9066 = vpop.f32.mrf.mxu0
    %9067 = vdwg.mxu0
    %9068 = vmatpush.bf16.msra.mxu0 %v7380
    %9069 = vmatpush.bf16.msra.mxu0 %v7372
    %9070 = vmatpush.bf16.msra.mxu0 %v7364
    %9071 = vmatpush.bf16.msra.mxu0 %v7356
    %9072 = vmatpush.bf16.msra.mxu0 %v7348
    %9073 = vmatpush.bf16.msra.mxu0 %v7340
    %9074 = vmatpush.bf16.msra.mxu0 %v7332
    %9075 = vmatpush.bf16.msra.mxu0 %v7324
    %9076 = vmatmul.bf16.gmra.mxu0 %v2436
    %v9077 = vpop.f32.mrf.mxu0
    %v9078 = vadd.f32 %v9065, %v9077
    %v9079 = vpop.f32.mrf.mxu0
    %9080 = vdwg.mxu0
    %9081 = vmatpush.bf16.msra.mxu0 %v7444
    %9082 = vmatpush.bf16.msra.mxu0 %v7436
    %9083 = vmatpush.bf16.msra.mxu0 %v7428
    %9084 = vmatpush.bf16.msra.mxu0 %v7420
    %9085 = vmatpush.bf16.msra.mxu0 %v7412
    %9086 = vmatpush.bf16.msra.mxu0 %v7404
    %9087 = vmatpush.bf16.msra.mxu0 %v7396
    %9088 = vmatpush.bf16.msra.mxu0 %v7388
    %9089 = vmatmul.bf16.gmra.mxu0 %v2437
    %v9090 = vpop.f32.mrf.mxu0
    %v9091 = vadd.f32 %v9078, %v9090
    %v9092 = vpop.f32.mrf.mxu0
    %9093 = vdwg.mxu0
    %9094 = vmatpush.bf16.msra.mxu0 %v7508
    %9095 = vmatpush.bf16.msra.mxu0 %v7500
    %9096 = vmatpush.bf16.msra.mxu0 %v7492
    %9097 = vmatpush.bf16.msra.mxu0 %v7484
    %9098 = vmatpush.bf16.msra.mxu0 %v7476
    %9099 = vmatpush.bf16.msra.mxu0 %v7468
    %9100 = vmatpush.bf16.msra.mxu0 %v7460
    %9101 = vmatpush.bf16.msra.mxu0 %v7452
    %9102 = vmatmul.bf16.gmra.mxu0 %v2438
    %v9103 = vpop.f32.mrf.mxu0
    %v9104 = vadd.f32 %v9091, %v9103
    %v9105 = vpop.f32.mrf.mxu0
    %9106 = vdwg.mxu0
    %9107 = vmatpush.bf16.msra.mxu0 %v7572
    %9108 = vmatpush.bf16.msra.mxu0 %v7564
    %9109 = vmatpush.bf16.msra.mxu0 %v7556
    %9110 = vmatpush.bf16.msra.mxu0 %v7548
    %9111 = vmatpush.bf16.msra.mxu0 %v7540
    %9112 = vmatpush.bf16.msra.mxu0 %v7532
    %9113 = vmatpush.bf16.msra.mxu0 %v7524
    %9114 = vmatpush.bf16.msra.mxu0 %v7516
    %9115 = vmatmul.bf16.gmra.mxu0 %v2439
    %v9116 = vpop.f32.mrf.mxu0
    %v9117 = vadd.f32 %v9104, %v9116
    %v9118 = vpop.f32.mrf.mxu0
    %9119 = vdwg.mxu0
    %9120 = vmatpush.bf16.msra.mxu0 %v6357
    %9121 = vmatpush.bf16.msra.mxu0 %v6349
    %9122 = vmatpush.bf16.msra.mxu0 %v6341
    %9123 = vmatpush.bf16.msra.mxu0 %v6333
    %9124 = vmatpush.bf16.msra.mxu0 %v6325
    %9125 = vmatpush.bf16.msra.mxu0 %v6317
    %9126 = vmatpush.bf16.msra.mxu0 %v6309
    %9127 = vmatpush.bf16.msra.mxu0 %v6301
    %9128 = vmatmul.bf16.gmra.mxu0 %v2420
    %v9129 = vpop.f32.mrf.mxu0
    %v9130 = vadd.f32 %v2231, %v9129
    %v9131 = vpop.f32.mrf.mxu0
    %9132 = vdwg.mxu0
    %9133 = vmatpush.bf16.msra.mxu0 %v6421
    %9134 = vmatpush.bf16.msra.mxu0 %v6413
    %9135 = vmatpush.bf16.msra.mxu0 %v6405
    %9136 = vmatpush.bf16.msra.mxu0 %v6397
    %9137 = vmatpush.bf16.msra.mxu0 %v6389
    %9138 = vmatpush.bf16.msra.mxu0 %v6381
    %9139 = vmatpush.bf16.msra.mxu0 %v6373
    %9140 = vmatpush.bf16.msra.mxu0 %v6365
    %9141 = vmatmul.bf16.gmra.mxu0 %v2421
    %v9142 = vpop.f32.mrf.mxu0
    %v9143 = vadd.f32 %v9130, %v9142
    %v9144 = vpop.f32.mrf.mxu0
    %9145 = vdwg.mxu0
    %9146 = vmatpush.bf16.msra.mxu0 %v6485
    %9147 = vmatpush.bf16.msra.mxu0 %v6477
    %9148 = vmatpush.bf16.msra.mxu0 %v6469
    %9149 = vmatpush.bf16.msra.mxu0 %v6461
    %9150 = vmatpush.bf16.msra.mxu0 %v6453
    %9151 = vmatpush.bf16.msra.mxu0 %v6445
    %9152 = vmatpush.bf16.msra.mxu0 %v6437
    %9153 = vmatpush.bf16.msra.mxu0 %v6429
    %9154 = vmatmul.bf16.gmra.mxu0 %v2422
    %v9155 = vpop.f32.mrf.mxu0
    %v9156 = vadd.f32 %v9143, %v9155
    %v9157 = vpop.f32.mrf.mxu0
    %9158 = vdwg.mxu0
    %9159 = vmatpush.bf16.msra.mxu0 %v6549
    %9160 = vmatpush.bf16.msra.mxu0 %v6541
    %9161 = vmatpush.bf16.msra.mxu0 %v6533
    %9162 = vmatpush.bf16.msra.mxu0 %v6525
    %9163 = vmatpush.bf16.msra.mxu0 %v6517
    %9164 = vmatpush.bf16.msra.mxu0 %v6509
    %9165 = vmatpush.bf16.msra.mxu0 %v6501
    %9166 = vmatpush.bf16.msra.mxu0 %v6493
    %9167 = vmatmul.bf16.gmra.mxu0 %v2423
    %v9168 = vpop.f32.mrf.mxu0
    %v9169 = vadd.f32 %v9156, %v9168
    %v9170 = vpop.f32.mrf.mxu0
    %9171 = vdwg.mxu0
    %9172 = vmatpush.bf16.msra.mxu0 %v6613
    %9173 = vmatpush.bf16.msra.mxu0 %v6605
    %9174 = vmatpush.bf16.msra.mxu0 %v6597
    %9175 = vmatpush.bf16.msra.mxu0 %v6589
    %9176 = vmatpush.bf16.msra.mxu0 %v6581
    %9177 = vmatpush.bf16.msra.mxu0 %v6573
    %9178 = vmatpush.bf16.msra.mxu0 %v6565
    %9179 = vmatpush.bf16.msra.mxu0 %v6557
    %9180 = vmatmul.bf16.gmra.mxu0 %v2424
    %v9181 = vpop.f32.mrf.mxu0
    %v9182 = vadd.f32 %v9169, %v9181
    %v9183 = vpop.f32.mrf.mxu0
    %9184 = vdwg.mxu0
    %9185 = vmatpush.bf16.msra.mxu0 %v6677
    %9186 = vmatpush.bf16.msra.mxu0 %v6669
    %9187 = vmatpush.bf16.msra.mxu0 %v6661
    %9188 = vmatpush.bf16.msra.mxu0 %v6653
    %9189 = vmatpush.bf16.msra.mxu0 %v6645
    %9190 = vmatpush.bf16.msra.mxu0 %v6637
    %9191 = vmatpush.bf16.msra.mxu0 %v6629
    %9192 = vmatpush.bf16.msra.mxu0 %v6621
    %9193 = vmatmul.bf16.gmra.mxu0 %v2425
    %v9194 = vpop.f32.mrf.mxu0
    %v9195 = vadd.f32 %v9182, %v9194
    %v9196 = vpop.f32.mrf.mxu0
    %9197 = vdwg.mxu0
    %9198 = vmatpush.bf16.msra.mxu0 %v6741
    %9199 = vmatpush.bf16.msra.mxu0 %v6733
    %9200 = vmatpush.bf16.msra.mxu0 %v6725
    %9201 = vmatpush.bf16.msra.mxu0 %v6717
    %9202 = vmatpush.bf16.msra.mxu0 %v6709
    %9203 = vmatpush.bf16.msra.mxu0 %v6701
    %9204 = vmatpush.bf16.msra.mxu0 %v6693
    %9205 = vmatpush.bf16.msra.mxu0 %v6685
    %9206 = vmatmul.bf16.gmra.mxu0 %v2426
    %v9207 = vpop.f32.mrf.mxu0
    %v9208 = vadd.f32 %v9195, %v9207
    %v9209 = vpop.f32.mrf.mxu0
    %9210 = vdwg.mxu0
    %9211 = vmatpush.bf16.msra.mxu0 %v6805
    %9212 = vmatpush.bf16.msra.mxu0 %v6797
    %9213 = vmatpush.bf16.msra.mxu0 %v6789
    %9214 = vmatpush.bf16.msra.mxu0 %v6781
    %9215 = vmatpush.bf16.msra.mxu0 %v6773
    %9216 = vmatpush.bf16.msra.mxu0 %v6765
    %9217 = vmatpush.bf16.msra.mxu0 %v6757
    %9218 = vmatpush.bf16.msra.mxu0 %v6749
    %9219 = vmatmul.bf16.gmra.mxu0 %v2427
    %v9220 = vpop.f32.mrf.mxu0
    %v9221 = vadd.f32 %v9208, %v9220
    %v9222 = vpop.f32.mrf.mxu0
    %9223 = vdwg.mxu0
    %9224 = vmatpush.bf16.msra.mxu0 %v6869
    %9225 = vmatpush.bf16.msra.mxu0 %v6861
    %9226 = vmatpush.bf16.msra.mxu0 %v6853
    %9227 = vmatpush.bf16.msra.mxu0 %v6845
    %9228 = vmatpush.bf16.msra.mxu0 %v6837
    %9229 = vmatpush.bf16.msra.mxu0 %v6829
    %9230 = vmatpush.bf16.msra.mxu0 %v6821
    %9231 = vmatpush.bf16.msra.mxu0 %v6813
    %9232 = vmatmul.bf16.gmra.mxu0 %v2428
    %v9233 = vpop.f32.mrf.mxu0
    %v9234 = vadd.f32 %v9221, %v9233
    %v9235 = vpop.f32.mrf.mxu0
    %9236 = vdwg.mxu0
    %9237 = vmatpush.bf16.msra.mxu0 %v6933
    %9238 = vmatpush.bf16.msra.mxu0 %v6925
    %9239 = vmatpush.bf16.msra.mxu0 %v6917
    %9240 = vmatpush.bf16.msra.mxu0 %v6909
    %9241 = vmatpush.bf16.msra.mxu0 %v6901
    %9242 = vmatpush.bf16.msra.mxu0 %v6893
    %9243 = vmatpush.bf16.msra.mxu0 %v6885
    %9244 = vmatpush.bf16.msra.mxu0 %v6877
    %9245 = vmatmul.bf16.gmra.mxu0 %v2429
    %v9246 = vpop.f32.mrf.mxu0
    %v9247 = vadd.f32 %v9234, %v9246
    %v9248 = vpop.f32.mrf.mxu0
    %9249 = vdwg.mxu0
    %9250 = vmatpush.bf16.msra.mxu0 %v6997
    %9251 = vmatpush.bf16.msra.mxu0 %v6989
    %9252 = vmatpush.bf16.msra.mxu0 %v6981
    %9253 = vmatpush.bf16.msra.mxu0 %v6973
    %9254 = vmatpush.bf16.msra.mxu0 %v6965
    %9255 = vmatpush.bf16.msra.mxu0 %v6957
    %9256 = vmatpush.bf16.msra.mxu0 %v6949
    %9257 = vmatpush.bf16.msra.mxu0 %v6941
    %9258 = vmatmul.bf16.gmra.mxu0 %v2430
    %v9259 = vpop.f32.mrf.mxu0
    %v9260 = vadd.f32 %v9247, %v9259
    %v9261 = vpop.f32.mrf.mxu0
    %9262 = vdwg.mxu0
    %9263 = vmatpush.bf16.msra.mxu0 %v7061
    %9264 = vmatpush.bf16.msra.mxu0 %v7053
    %9265 = vmatpush.bf16.msra.mxu0 %v7045
    %9266 = vmatpush.bf16.msra.mxu0 %v7037
    %9267 = vmatpush.bf16.msra.mxu0 %v7029
    %9268 = vmatpush.bf16.msra.mxu0 %v7021
    %9269 = vmatpush.bf16.msra.mxu0 %v7013
    %9270 = vmatpush.bf16.msra.mxu0 %v7005
    %9271 = vmatmul.bf16.gmra.mxu0 %v2431
    %v9272 = vpop.f32.mrf.mxu0
    %v9273 = vadd.f32 %v9260, %v9272
    %v9274 = vpop.f32.mrf.mxu0
    %9275 = vdwg.mxu0
    %9276 = vmatpush.bf16.msra.mxu0 %v7125
    %9277 = vmatpush.bf16.msra.mxu0 %v7117
    %9278 = vmatpush.bf16.msra.mxu0 %v7109
    %9279 = vmatpush.bf16.msra.mxu0 %v7101
    %9280 = vmatpush.bf16.msra.mxu0 %v7093
    %9281 = vmatpush.bf16.msra.mxu0 %v7085
    %9282 = vmatpush.bf16.msra.mxu0 %v7077
    %9283 = vmatpush.bf16.msra.mxu0 %v7069
    %9284 = vmatmul.bf16.gmra.mxu0 %v2432
    %v9285 = vpop.f32.mrf.mxu0
    %v9286 = vadd.f32 %v9273, %v9285
    %v9287 = vpop.f32.mrf.mxu0
    %9288 = vdwg.mxu0
    %9289 = vmatpush.bf16.msra.mxu0 %v7189
    %9290 = vmatpush.bf16.msra.mxu0 %v7181
    %9291 = vmatpush.bf16.msra.mxu0 %v7173
    %9292 = vmatpush.bf16.msra.mxu0 %v7165
    %9293 = vmatpush.bf16.msra.mxu0 %v7157
    %9294 = vmatpush.bf16.msra.mxu0 %v7149
    %9295 = vmatpush.bf16.msra.mxu0 %v7141
    %9296 = vmatpush.bf16.msra.mxu0 %v7133
    %9297 = vmatmul.bf16.gmra.mxu0 %v2433
    %v9298 = vpop.f32.mrf.mxu0
    %v9299 = vadd.f32 %v9286, %v9298
    %v9300 = vpop.f32.mrf.mxu0
    %9301 = vdwg.mxu0
    %9302 = vmatpush.bf16.msra.mxu0 %v7253
    %9303 = vmatpush.bf16.msra.mxu0 %v7245
    %9304 = vmatpush.bf16.msra.mxu0 %v7237
    %9305 = vmatpush.bf16.msra.mxu0 %v7229
    %9306 = vmatpush.bf16.msra.mxu0 %v7221
    %9307 = vmatpush.bf16.msra.mxu0 %v7213
    %9308 = vmatpush.bf16.msra.mxu0 %v7205
    %9309 = vmatpush.bf16.msra.mxu0 %v7197
    %9310 = vmatmul.bf16.gmra.mxu0 %v2434
    %v9311 = vpop.f32.mrf.mxu0
    %v9312 = vadd.f32 %v9299, %v9311
    %v9313 = vpop.f32.mrf.mxu0
    %9314 = vdwg.mxu0
    %9315 = vmatpush.bf16.msra.mxu0 %v7317
    %9316 = vmatpush.bf16.msra.mxu0 %v7309
    %9317 = vmatpush.bf16.msra.mxu0 %v7301
    %9318 = vmatpush.bf16.msra.mxu0 %v7293
    %9319 = vmatpush.bf16.msra.mxu0 %v7285
    %9320 = vmatpush.bf16.msra.mxu0 %v7277
    %9321 = vmatpush.bf16.msra.mxu0 %v7269
    %9322 = vmatpush.bf16.msra.mxu0 %v7261
    %9323 = vmatmul.bf16.gmra.mxu0 %v2435
    %v9324 = vpop.f32.mrf.mxu0
    %v9325 = vadd.f32 %v9312, %v9324
    %v9326 = vpop.f32.mrf.mxu0
    %9327 = vdwg.mxu0
    %9328 = vmatpush.bf16.msra.mxu0 %v7381
    %9329 = vmatpush.bf16.msra.mxu0 %v7373
    %9330 = vmatpush.bf16.msra.mxu0 %v7365
    %9331 = vmatpush.bf16.msra.mxu0 %v7357
    %9332 = vmatpush.bf16.msra.mxu0 %v7349
    %9333 = vmatpush.bf16.msra.mxu0 %v7341
    %9334 = vmatpush.bf16.msra.mxu0 %v7333
    %9335 = vmatpush.bf16.msra.mxu0 %v7325
    %9336 = vmatmul.bf16.gmra.mxu0 %v2436
    %v9337 = vpop.f32.mrf.mxu0
    %v9338 = vadd.f32 %v9325, %v9337
    %v9339 = vpop.f32.mrf.mxu0
    %9340 = vdwg.mxu0
    %9341 = vmatpush.bf16.msra.mxu0 %v7445
    %9342 = vmatpush.bf16.msra.mxu0 %v7437
    %9343 = vmatpush.bf16.msra.mxu0 %v7429
    %9344 = vmatpush.bf16.msra.mxu0 %v7421
    %9345 = vmatpush.bf16.msra.mxu0 %v7413
    %9346 = vmatpush.bf16.msra.mxu0 %v7405
    %9347 = vmatpush.bf16.msra.mxu0 %v7397
    %9348 = vmatpush.bf16.msra.mxu0 %v7389
    %9349 = vmatmul.bf16.gmra.mxu0 %v2437
    %v9350 = vpop.f32.mrf.mxu0
    %v9351 = vadd.f32 %v9338, %v9350
    %v9352 = vpop.f32.mrf.mxu0
    %9353 = vdwg.mxu0
    %9354 = vmatpush.bf16.msra.mxu0 %v7509
    %9355 = vmatpush.bf16.msra.mxu0 %v7501
    %9356 = vmatpush.bf16.msra.mxu0 %v7493
    %9357 = vmatpush.bf16.msra.mxu0 %v7485
    %9358 = vmatpush.bf16.msra.mxu0 %v7477
    %9359 = vmatpush.bf16.msra.mxu0 %v7469
    %9360 = vmatpush.bf16.msra.mxu0 %v7461
    %9361 = vmatpush.bf16.msra.mxu0 %v7453
    %9362 = vmatmul.bf16.gmra.mxu0 %v2438
    %v9363 = vpop.f32.mrf.mxu0
    %v9364 = vadd.f32 %v9351, %v9363
    %v9365 = vpop.f32.mrf.mxu0
    %9366 = vdwg.mxu0
    %9367 = vmatpush.bf16.msra.mxu0 %v7573
    %9368 = vmatpush.bf16.msra.mxu0 %v7565
    %9369 = vmatpush.bf16.msra.mxu0 %v7557
    %9370 = vmatpush.bf16.msra.mxu0 %v7549
    %9371 = vmatpush.bf16.msra.mxu0 %v7541
    %9372 = vmatpush.bf16.msra.mxu0 %v7533
    %9373 = vmatpush.bf16.msra.mxu0 %v7525
    %9374 = vmatpush.bf16.msra.mxu0 %v7517
    %9375 = vmatmul.bf16.gmra.mxu0 %v2439
    %v9376 = vpop.f32.mrf.mxu0
    %v9377 = vadd.f32 %v9364, %v9376
    %v9378 = vpop.f32.mrf.mxu0
    %9379 = vdwg.mxu0
    %9380 = vmatpush.bf16.msra.mxu0 %v6358
    %9381 = vmatpush.bf16.msra.mxu0 %v6350
    %9382 = vmatpush.bf16.msra.mxu0 %v6342
    %9383 = vmatpush.bf16.msra.mxu0 %v6334
    %9384 = vmatpush.bf16.msra.mxu0 %v6326
    %9385 = vmatpush.bf16.msra.mxu0 %v6318
    %9386 = vmatpush.bf16.msra.mxu0 %v6310
    %9387 = vmatpush.bf16.msra.mxu0 %v6302
    %9388 = vmatmul.bf16.gmra.mxu0 %v2420
    %v9389 = vpop.f32.mrf.mxu0
    %v9390 = vadd.f32 %v2257, %v9389
    %v9391 = vpop.f32.mrf.mxu0
    %9392 = vdwg.mxu0
    %9393 = vmatpush.bf16.msra.mxu0 %v6422
    %9394 = vmatpush.bf16.msra.mxu0 %v6414
    %9395 = vmatpush.bf16.msra.mxu0 %v6406
    %9396 = vmatpush.bf16.msra.mxu0 %v6398
    %9397 = vmatpush.bf16.msra.mxu0 %v6390
    %9398 = vmatpush.bf16.msra.mxu0 %v6382
    %9399 = vmatpush.bf16.msra.mxu0 %v6374
    %9400 = vmatpush.bf16.msra.mxu0 %v6366
    %9401 = vmatmul.bf16.gmra.mxu0 %v2421
    %v9402 = vpop.f32.mrf.mxu0
    %v9403 = vadd.f32 %v9390, %v9402
    %v9404 = vpop.f32.mrf.mxu0
    %9405 = vdwg.mxu0
    %9406 = vmatpush.bf16.msra.mxu0 %v6486
    %9407 = vmatpush.bf16.msra.mxu0 %v6478
    %9408 = vmatpush.bf16.msra.mxu0 %v6470
    %9409 = vmatpush.bf16.msra.mxu0 %v6462
    %9410 = vmatpush.bf16.msra.mxu0 %v6454
    %9411 = vmatpush.bf16.msra.mxu0 %v6446
    %9412 = vmatpush.bf16.msra.mxu0 %v6438
    %9413 = vmatpush.bf16.msra.mxu0 %v6430
    %9414 = vmatmul.bf16.gmra.mxu0 %v2422
    %v9415 = vpop.f32.mrf.mxu0
    %v9416 = vadd.f32 %v9403, %v9415
    %v9417 = vpop.f32.mrf.mxu0
    %9418 = vdwg.mxu0
    %9419 = vmatpush.bf16.msra.mxu0 %v6550
    %9420 = vmatpush.bf16.msra.mxu0 %v6542
    %9421 = vmatpush.bf16.msra.mxu0 %v6534
    %9422 = vmatpush.bf16.msra.mxu0 %v6526
    %9423 = vmatpush.bf16.msra.mxu0 %v6518
    %9424 = vmatpush.bf16.msra.mxu0 %v6510
    %9425 = vmatpush.bf16.msra.mxu0 %v6502
    %9426 = vmatpush.bf16.msra.mxu0 %v6494
    %9427 = vmatmul.bf16.gmra.mxu0 %v2423
    %v9428 = vpop.f32.mrf.mxu0
    %v9429 = vadd.f32 %v9416, %v9428
    %v9430 = vpop.f32.mrf.mxu0
    %9431 = vdwg.mxu0
    %9432 = vmatpush.bf16.msra.mxu0 %v6614
    %9433 = vmatpush.bf16.msra.mxu0 %v6606
    %9434 = vmatpush.bf16.msra.mxu0 %v6598
    %9435 = vmatpush.bf16.msra.mxu0 %v6590
    %9436 = vmatpush.bf16.msra.mxu0 %v6582
    %9437 = vmatpush.bf16.msra.mxu0 %v6574
    %9438 = vmatpush.bf16.msra.mxu0 %v6566
    %9439 = vmatpush.bf16.msra.mxu0 %v6558
    %9440 = vmatmul.bf16.gmra.mxu0 %v2424
    %v9441 = vpop.f32.mrf.mxu0
    %v9442 = vadd.f32 %v9429, %v9441
    %v9443 = vpop.f32.mrf.mxu0
    %9444 = vdwg.mxu0
    %9445 = vmatpush.bf16.msra.mxu0 %v6678
    %9446 = vmatpush.bf16.msra.mxu0 %v6670
    %9447 = vmatpush.bf16.msra.mxu0 %v6662
    %9448 = vmatpush.bf16.msra.mxu0 %v6654
    %9449 = vmatpush.bf16.msra.mxu0 %v6646
    %9450 = vmatpush.bf16.msra.mxu0 %v6638
    %9451 = vmatpush.bf16.msra.mxu0 %v6630
    %9452 = vmatpush.bf16.msra.mxu0 %v6622
    %9453 = vmatmul.bf16.gmra.mxu0 %v2425
    %v9454 = vpop.f32.mrf.mxu0
    %v9455 = vadd.f32 %v9442, %v9454
    %v9456 = vpop.f32.mrf.mxu0
    %9457 = vdwg.mxu0
    %9458 = vmatpush.bf16.msra.mxu0 %v6742
    %9459 = vmatpush.bf16.msra.mxu0 %v6734
    %9460 = vmatpush.bf16.msra.mxu0 %v6726
    %9461 = vmatpush.bf16.msra.mxu0 %v6718
    %9462 = vmatpush.bf16.msra.mxu0 %v6710
    %9463 = vmatpush.bf16.msra.mxu0 %v6702
    %9464 = vmatpush.bf16.msra.mxu0 %v6694
    %9465 = vmatpush.bf16.msra.mxu0 %v6686
    %9466 = vmatmul.bf16.gmra.mxu0 %v2426
    %v9467 = vpop.f32.mrf.mxu0
    %v9468 = vadd.f32 %v9455, %v9467
    %v9469 = vpop.f32.mrf.mxu0
    %9470 = vdwg.mxu0
    %9471 = vmatpush.bf16.msra.mxu0 %v6806
    %9472 = vmatpush.bf16.msra.mxu0 %v6798
    %9473 = vmatpush.bf16.msra.mxu0 %v6790
    %9474 = vmatpush.bf16.msra.mxu0 %v6782
    %9475 = vmatpush.bf16.msra.mxu0 %v6774
    %9476 = vmatpush.bf16.msra.mxu0 %v6766
    %9477 = vmatpush.bf16.msra.mxu0 %v6758
    %9478 = vmatpush.bf16.msra.mxu0 %v6750
    %9479 = vmatmul.bf16.gmra.mxu0 %v2427
    %v9480 = vpop.f32.mrf.mxu0
    %v9481 = vadd.f32 %v9468, %v9480
    %v9482 = vpop.f32.mrf.mxu0
    %9483 = vdwg.mxu0
    %9484 = vmatpush.bf16.msra.mxu0 %v6870
    %9485 = vmatpush.bf16.msra.mxu0 %v6862
    %9486 = vmatpush.bf16.msra.mxu0 %v6854
    %9487 = vmatpush.bf16.msra.mxu0 %v6846
    %9488 = vmatpush.bf16.msra.mxu0 %v6838
    %9489 = vmatpush.bf16.msra.mxu0 %v6830
    %9490 = vmatpush.bf16.msra.mxu0 %v6822
    %9491 = vmatpush.bf16.msra.mxu0 %v6814
    %9492 = vmatmul.bf16.gmra.mxu0 %v2428
    %v9493 = vpop.f32.mrf.mxu0
    %v9494 = vadd.f32 %v9481, %v9493
    %v9495 = vpop.f32.mrf.mxu0
    %9496 = vdwg.mxu0
    %9497 = vmatpush.bf16.msra.mxu0 %v6934
    %9498 = vmatpush.bf16.msra.mxu0 %v6926
    %9499 = vmatpush.bf16.msra.mxu0 %v6918
    %9500 = vmatpush.bf16.msra.mxu0 %v6910
    %9501 = vmatpush.bf16.msra.mxu0 %v6902
    %9502 = vmatpush.bf16.msra.mxu0 %v6894
    %9503 = vmatpush.bf16.msra.mxu0 %v6886
    %9504 = vmatpush.bf16.msra.mxu0 %v6878
    %9505 = vmatmul.bf16.gmra.mxu0 %v2429
    %v9506 = vpop.f32.mrf.mxu0
    %v9507 = vadd.f32 %v9494, %v9506
    %v9508 = vpop.f32.mrf.mxu0
    %9509 = vdwg.mxu0
    %9510 = vmatpush.bf16.msra.mxu0 %v6998
    %9511 = vmatpush.bf16.msra.mxu0 %v6990
    %9512 = vmatpush.bf16.msra.mxu0 %v6982
    %9513 = vmatpush.bf16.msra.mxu0 %v6974
    %9514 = vmatpush.bf16.msra.mxu0 %v6966
    %9515 = vmatpush.bf16.msra.mxu0 %v6958
    %9516 = vmatpush.bf16.msra.mxu0 %v6950
    %9517 = vmatpush.bf16.msra.mxu0 %v6942
    %9518 = vmatmul.bf16.gmra.mxu0 %v2430
    %v9519 = vpop.f32.mrf.mxu0
    %v9520 = vadd.f32 %v9507, %v9519
    %v9521 = vpop.f32.mrf.mxu0
    %9522 = vdwg.mxu0
    %9523 = vmatpush.bf16.msra.mxu0 %v7062
    %9524 = vmatpush.bf16.msra.mxu0 %v7054
    %9525 = vmatpush.bf16.msra.mxu0 %v7046
    %9526 = vmatpush.bf16.msra.mxu0 %v7038
    %9527 = vmatpush.bf16.msra.mxu0 %v7030
    %9528 = vmatpush.bf16.msra.mxu0 %v7022
    %9529 = vmatpush.bf16.msra.mxu0 %v7014
    %9530 = vmatpush.bf16.msra.mxu0 %v7006
    %9531 = vmatmul.bf16.gmra.mxu0 %v2431
    %v9532 = vpop.f32.mrf.mxu0
    %v9533 = vadd.f32 %v9520, %v9532
    %v9534 = vpop.f32.mrf.mxu0
    %9535 = vdwg.mxu0
    %9536 = vmatpush.bf16.msra.mxu0 %v7126
    %9537 = vmatpush.bf16.msra.mxu0 %v7118
    %9538 = vmatpush.bf16.msra.mxu0 %v7110
    %9539 = vmatpush.bf16.msra.mxu0 %v7102
    %9540 = vmatpush.bf16.msra.mxu0 %v7094
    %9541 = vmatpush.bf16.msra.mxu0 %v7086
    %9542 = vmatpush.bf16.msra.mxu0 %v7078
    %9543 = vmatpush.bf16.msra.mxu0 %v7070
    %9544 = vmatmul.bf16.gmra.mxu0 %v2432
    %v9545 = vpop.f32.mrf.mxu0
    %v9546 = vadd.f32 %v9533, %v9545
    %v9547 = vpop.f32.mrf.mxu0
    %9548 = vdwg.mxu0
    %9549 = vmatpush.bf16.msra.mxu0 %v7190
    %9550 = vmatpush.bf16.msra.mxu0 %v7182
    %9551 = vmatpush.bf16.msra.mxu0 %v7174
    %9552 = vmatpush.bf16.msra.mxu0 %v7166
    %9553 = vmatpush.bf16.msra.mxu0 %v7158
    %9554 = vmatpush.bf16.msra.mxu0 %v7150
    %9555 = vmatpush.bf16.msra.mxu0 %v7142
    %9556 = vmatpush.bf16.msra.mxu0 %v7134
    %9557 = vmatmul.bf16.gmra.mxu0 %v2433
    %v9558 = vpop.f32.mrf.mxu0
    %v9559 = vadd.f32 %v9546, %v9558
    %v9560 = vpop.f32.mrf.mxu0
    %9561 = vdwg.mxu0
    %9562 = vmatpush.bf16.msra.mxu0 %v7254
    %9563 = vmatpush.bf16.msra.mxu0 %v7246
    %9564 = vmatpush.bf16.msra.mxu0 %v7238
    %9565 = vmatpush.bf16.msra.mxu0 %v7230
    %9566 = vmatpush.bf16.msra.mxu0 %v7222
    %9567 = vmatpush.bf16.msra.mxu0 %v7214
    %9568 = vmatpush.bf16.msra.mxu0 %v7206
    %9569 = vmatpush.bf16.msra.mxu0 %v7198
    %9570 = vmatmul.bf16.gmra.mxu0 %v2434
    %v9571 = vpop.f32.mrf.mxu0
    %v9572 = vadd.f32 %v9559, %v9571
    %v9573 = vpop.f32.mrf.mxu0
    %9574 = vdwg.mxu0
    %9575 = vmatpush.bf16.msra.mxu0 %v7318
    %9576 = vmatpush.bf16.msra.mxu0 %v7310
    %9577 = vmatpush.bf16.msra.mxu0 %v7302
    %9578 = vmatpush.bf16.msra.mxu0 %v7294
    %9579 = vmatpush.bf16.msra.mxu0 %v7286
    %9580 = vmatpush.bf16.msra.mxu0 %v7278
    %9581 = vmatpush.bf16.msra.mxu0 %v7270
    %9582 = vmatpush.bf16.msra.mxu0 %v7262
    %9583 = vmatmul.bf16.gmra.mxu0 %v2435
    %v9584 = vpop.f32.mrf.mxu0
    %v9585 = vadd.f32 %v9572, %v9584
    %v9586 = vpop.f32.mrf.mxu0
    %9587 = vdwg.mxu0
    %9588 = vmatpush.bf16.msra.mxu0 %v7382
    %9589 = vmatpush.bf16.msra.mxu0 %v7374
    %9590 = vmatpush.bf16.msra.mxu0 %v7366
    %9591 = vmatpush.bf16.msra.mxu0 %v7358
    %9592 = vmatpush.bf16.msra.mxu0 %v7350
    %9593 = vmatpush.bf16.msra.mxu0 %v7342
    %9594 = vmatpush.bf16.msra.mxu0 %v7334
    %9595 = vmatpush.bf16.msra.mxu0 %v7326
    %9596 = vmatmul.bf16.gmra.mxu0 %v2436
    %v9597 = vpop.f32.mrf.mxu0
    %v9598 = vadd.f32 %v9585, %v9597
    %v9599 = vpop.f32.mrf.mxu0
    %9600 = vdwg.mxu0
    %9601 = vmatpush.bf16.msra.mxu0 %v7446
    %9602 = vmatpush.bf16.msra.mxu0 %v7438
    %9603 = vmatpush.bf16.msra.mxu0 %v7430
    %9604 = vmatpush.bf16.msra.mxu0 %v7422
    %9605 = vmatpush.bf16.msra.mxu0 %v7414
    %9606 = vmatpush.bf16.msra.mxu0 %v7406
    %9607 = vmatpush.bf16.msra.mxu0 %v7398
    %9608 = vmatpush.bf16.msra.mxu0 %v7390
    %9609 = vmatmul.bf16.gmra.mxu0 %v2437
    %v9610 = vpop.f32.mrf.mxu0
    %v9611 = vadd.f32 %v9598, %v9610
    %v9612 = vpop.f32.mrf.mxu0
    %9613 = vdwg.mxu0
    %9614 = vmatpush.bf16.msra.mxu0 %v7510
    %9615 = vmatpush.bf16.msra.mxu0 %v7502
    %9616 = vmatpush.bf16.msra.mxu0 %v7494
    %9617 = vmatpush.bf16.msra.mxu0 %v7486
    %9618 = vmatpush.bf16.msra.mxu0 %v7478
    %9619 = vmatpush.bf16.msra.mxu0 %v7470
    %9620 = vmatpush.bf16.msra.mxu0 %v7462
    %9621 = vmatpush.bf16.msra.mxu0 %v7454
    %9622 = vmatmul.bf16.gmra.mxu0 %v2438
    %v9623 = vpop.f32.mrf.mxu0
    %v9624 = vadd.f32 %v9611, %v9623
    %v9625 = vpop.f32.mrf.mxu0
    %9626 = vdwg.mxu0
    %9627 = vmatpush.bf16.msra.mxu0 %v7574
    %9628 = vmatpush.bf16.msra.mxu0 %v7566
    %9629 = vmatpush.bf16.msra.mxu0 %v7558
    %9630 = vmatpush.bf16.msra.mxu0 %v7550
    %9631 = vmatpush.bf16.msra.mxu0 %v7542
    %9632 = vmatpush.bf16.msra.mxu0 %v7534
    %9633 = vmatpush.bf16.msra.mxu0 %v7526
    %9634 = vmatpush.bf16.msra.mxu0 %v7518
    %9635 = vmatmul.bf16.gmra.mxu0 %v2439
    %v9636 = vpop.f32.mrf.mxu0
    %v9637 = vadd.f32 %v9624, %v9636
    %v9638 = vpop.f32.mrf.mxu0
    %9639 = vdwg.mxu0
    %9640 = vmatpush.bf16.msra.mxu0 %v6359
    %9641 = vmatpush.bf16.msra.mxu0 %v6351
    %9642 = vmatpush.bf16.msra.mxu0 %v6343
    %9643 = vmatpush.bf16.msra.mxu0 %v6335
    %9644 = vmatpush.bf16.msra.mxu0 %v6327
    %9645 = vmatpush.bf16.msra.mxu0 %v6319
    %9646 = vmatpush.bf16.msra.mxu0 %v6311
    %9647 = vmatpush.bf16.msra.mxu0 %v6303
    %9648 = vmatmul.bf16.gmra.mxu0 %v2420
    %v9649 = vpop.f32.mrf.mxu0
    %v9650 = vadd.f32 %v2283, %v9649
    %v9651 = vpop.f32.mrf.mxu0
    %9652 = vdwg.mxu0
    %9653 = vmatpush.bf16.msra.mxu0 %v6423
    %9654 = vmatpush.bf16.msra.mxu0 %v6415
    %9655 = vmatpush.bf16.msra.mxu0 %v6407
    %9656 = vmatpush.bf16.msra.mxu0 %v6399
    %9657 = vmatpush.bf16.msra.mxu0 %v6391
    %9658 = vmatpush.bf16.msra.mxu0 %v6383
    %9659 = vmatpush.bf16.msra.mxu0 %v6375
    %9660 = vmatpush.bf16.msra.mxu0 %v6367
    %9661 = vmatmul.bf16.gmra.mxu0 %v2421
    %v9662 = vpop.f32.mrf.mxu0
    %v9663 = vadd.f32 %v9650, %v9662
    %v9664 = vpop.f32.mrf.mxu0
    %9665 = vdwg.mxu0
    %9666 = vmatpush.bf16.msra.mxu0 %v6487
    %9667 = vmatpush.bf16.msra.mxu0 %v6479
    %9668 = vmatpush.bf16.msra.mxu0 %v6471
    %9669 = vmatpush.bf16.msra.mxu0 %v6463
    %9670 = vmatpush.bf16.msra.mxu0 %v6455
    %9671 = vmatpush.bf16.msra.mxu0 %v6447
    %9672 = vmatpush.bf16.msra.mxu0 %v6439
    %9673 = vmatpush.bf16.msra.mxu0 %v6431
    %9674 = vmatmul.bf16.gmra.mxu0 %v2422
    %v9675 = vpop.f32.mrf.mxu0
    %v9676 = vadd.f32 %v9663, %v9675
    %v9677 = vpop.f32.mrf.mxu0
    %9678 = vdwg.mxu0
    %9679 = vmatpush.bf16.msra.mxu0 %v6551
    %9680 = vmatpush.bf16.msra.mxu0 %v6543
    %9681 = vmatpush.bf16.msra.mxu0 %v6535
    %9682 = vmatpush.bf16.msra.mxu0 %v6527
    %9683 = vmatpush.bf16.msra.mxu0 %v6519
    %9684 = vmatpush.bf16.msra.mxu0 %v6511
    %9685 = vmatpush.bf16.msra.mxu0 %v6503
    %9686 = vmatpush.bf16.msra.mxu0 %v6495
    %9687 = vmatmul.bf16.gmra.mxu0 %v2423
    %v9688 = vpop.f32.mrf.mxu0
    %v9689 = vadd.f32 %v9676, %v9688
    %v9690 = vpop.f32.mrf.mxu0
    %9691 = vdwg.mxu0
    %9692 = vmatpush.bf16.msra.mxu0 %v6615
    %9693 = vmatpush.bf16.msra.mxu0 %v6607
    %9694 = vmatpush.bf16.msra.mxu0 %v6599
    %9695 = vmatpush.bf16.msra.mxu0 %v6591
    %9696 = vmatpush.bf16.msra.mxu0 %v6583
    %9697 = vmatpush.bf16.msra.mxu0 %v6575
    %9698 = vmatpush.bf16.msra.mxu0 %v6567
    %9699 = vmatpush.bf16.msra.mxu0 %v6559
    %9700 = vmatmul.bf16.gmra.mxu0 %v2424
    %v9701 = vpop.f32.mrf.mxu0
    %v9702 = vadd.f32 %v9689, %v9701
    %v9703 = vpop.f32.mrf.mxu0
    %9704 = vdwg.mxu0
    %9705 = vmatpush.bf16.msra.mxu0 %v6679
    %9706 = vmatpush.bf16.msra.mxu0 %v6671
    %9707 = vmatpush.bf16.msra.mxu0 %v6663
    %9708 = vmatpush.bf16.msra.mxu0 %v6655
    %9709 = vmatpush.bf16.msra.mxu0 %v6647
    %9710 = vmatpush.bf16.msra.mxu0 %v6639
    %9711 = vmatpush.bf16.msra.mxu0 %v6631
    %9712 = vmatpush.bf16.msra.mxu0 %v6623
    %9713 = vmatmul.bf16.gmra.mxu0 %v2425
    %v9714 = vpop.f32.mrf.mxu0
    %v9715 = vadd.f32 %v9702, %v9714
    %v9716 = vpop.f32.mrf.mxu0
    %9717 = vdwg.mxu0
    %9718 = vmatpush.bf16.msra.mxu0 %v6743
    %9719 = vmatpush.bf16.msra.mxu0 %v6735
    %9720 = vmatpush.bf16.msra.mxu0 %v6727
    %9721 = vmatpush.bf16.msra.mxu0 %v6719
    %9722 = vmatpush.bf16.msra.mxu0 %v6711
    %9723 = vmatpush.bf16.msra.mxu0 %v6703
    %9724 = vmatpush.bf16.msra.mxu0 %v6695
    %9725 = vmatpush.bf16.msra.mxu0 %v6687
    %9726 = vmatmul.bf16.gmra.mxu0 %v2426
    %v9727 = vpop.f32.mrf.mxu0
    %v9728 = vadd.f32 %v9715, %v9727
    %v9729 = vpop.f32.mrf.mxu0
    %9730 = vdwg.mxu0
    %9731 = vmatpush.bf16.msra.mxu0 %v6807
    %9732 = vmatpush.bf16.msra.mxu0 %v6799
    %9733 = vmatpush.bf16.msra.mxu0 %v6791
    %9734 = vmatpush.bf16.msra.mxu0 %v6783
    %9735 = vmatpush.bf16.msra.mxu0 %v6775
    %9736 = vmatpush.bf16.msra.mxu0 %v6767
    %9737 = vmatpush.bf16.msra.mxu0 %v6759
    %9738 = vmatpush.bf16.msra.mxu0 %v6751
    %9739 = vmatmul.bf16.gmra.mxu0 %v2427
    %v9740 = vpop.f32.mrf.mxu0
    %v9741 = vadd.f32 %v9728, %v9740
    %v9742 = vpop.f32.mrf.mxu0
    %9743 = vdwg.mxu0
    %9744 = vmatpush.bf16.msra.mxu0 %v6871
    %9745 = vmatpush.bf16.msra.mxu0 %v6863
    %9746 = vmatpush.bf16.msra.mxu0 %v6855
    %9747 = vmatpush.bf16.msra.mxu0 %v6847
    %9748 = vmatpush.bf16.msra.mxu0 %v6839
    %9749 = vmatpush.bf16.msra.mxu0 %v6831
    %9750 = vmatpush.bf16.msra.mxu0 %v6823
    %9751 = vmatpush.bf16.msra.mxu0 %v6815
    %9752 = vmatmul.bf16.gmra.mxu0 %v2428
    %v9753 = vpop.f32.mrf.mxu0
    %v9754 = vadd.f32 %v9741, %v9753
    %v9755 = vpop.f32.mrf.mxu0
    %9756 = vdwg.mxu0
    %9757 = vmatpush.bf16.msra.mxu0 %v6935
    %9758 = vmatpush.bf16.msra.mxu0 %v6927
    %9759 = vmatpush.bf16.msra.mxu0 %v6919
    %9760 = vmatpush.bf16.msra.mxu0 %v6911
    %9761 = vmatpush.bf16.msra.mxu0 %v6903
    %9762 = vmatpush.bf16.msra.mxu0 %v6895
    %9763 = vmatpush.bf16.msra.mxu0 %v6887
    %9764 = vmatpush.bf16.msra.mxu0 %v6879
    %9765 = vmatmul.bf16.gmra.mxu0 %v2429
    %v9766 = vpop.f32.mrf.mxu0
    %v9767 = vadd.f32 %v9754, %v9766
    %v9768 = vpop.f32.mrf.mxu0
    %9769 = vdwg.mxu0
    %9770 = vmatpush.bf16.msra.mxu0 %v6999
    %9771 = vmatpush.bf16.msra.mxu0 %v6991
    %9772 = vmatpush.bf16.msra.mxu0 %v6983
    %9773 = vmatpush.bf16.msra.mxu0 %v6975
    %9774 = vmatpush.bf16.msra.mxu0 %v6967
    %9775 = vmatpush.bf16.msra.mxu0 %v6959
    %9776 = vmatpush.bf16.msra.mxu0 %v6951
    %9777 = vmatpush.bf16.msra.mxu0 %v6943
    %9778 = vmatmul.bf16.gmra.mxu0 %v2430
    %v9779 = vpop.f32.mrf.mxu0
    %v9780 = vadd.f32 %v9767, %v9779
    %v9781 = vpop.f32.mrf.mxu0
    %9782 = vdwg.mxu0
    %9783 = vmatpush.bf16.msra.mxu0 %v7063
    %9784 = vmatpush.bf16.msra.mxu0 %v7055
    %9785 = vmatpush.bf16.msra.mxu0 %v7047
    %9786 = vmatpush.bf16.msra.mxu0 %v7039
    %9787 = vmatpush.bf16.msra.mxu0 %v7031
    %9788 = vmatpush.bf16.msra.mxu0 %v7023
    %9789 = vmatpush.bf16.msra.mxu0 %v7015
    %9790 = vmatpush.bf16.msra.mxu0 %v7007
    %9791 = vmatmul.bf16.gmra.mxu0 %v2431
    %v9792 = vpop.f32.mrf.mxu0
    %v9793 = vadd.f32 %v9780, %v9792
    %v9794 = vpop.f32.mrf.mxu0
    %9795 = vdwg.mxu0
    %9796 = vmatpush.bf16.msra.mxu0 %v7127
    %9797 = vmatpush.bf16.msra.mxu0 %v7119
    %9798 = vmatpush.bf16.msra.mxu0 %v7111
    %9799 = vmatpush.bf16.msra.mxu0 %v7103
    %9800 = vmatpush.bf16.msra.mxu0 %v7095
    %9801 = vmatpush.bf16.msra.mxu0 %v7087
    %9802 = vmatpush.bf16.msra.mxu0 %v7079
    %9803 = vmatpush.bf16.msra.mxu0 %v7071
    %9804 = vmatmul.bf16.gmra.mxu0 %v2432
    %v9805 = vpop.f32.mrf.mxu0
    %v9806 = vadd.f32 %v9793, %v9805
    %v9807 = vpop.f32.mrf.mxu0
    %9808 = vdwg.mxu0
    %9809 = vmatpush.bf16.msra.mxu0 %v7191
    %9810 = vmatpush.bf16.msra.mxu0 %v7183
    %9811 = vmatpush.bf16.msra.mxu0 %v7175
    %9812 = vmatpush.bf16.msra.mxu0 %v7167
    %9813 = vmatpush.bf16.msra.mxu0 %v7159
    %9814 = vmatpush.bf16.msra.mxu0 %v7151
    %9815 = vmatpush.bf16.msra.mxu0 %v7143
    %9816 = vmatpush.bf16.msra.mxu0 %v7135
    %9817 = vmatmul.bf16.gmra.mxu0 %v2433
    %v9818 = vpop.f32.mrf.mxu0
    %v9819 = vadd.f32 %v9806, %v9818
    %v9820 = vpop.f32.mrf.mxu0
    %9821 = vdwg.mxu0
    %9822 = vmatpush.bf16.msra.mxu0 %v7255
    %9823 = vmatpush.bf16.msra.mxu0 %v7247
    %9824 = vmatpush.bf16.msra.mxu0 %v7239
    %9825 = vmatpush.bf16.msra.mxu0 %v7231
    %9826 = vmatpush.bf16.msra.mxu0 %v7223
    %9827 = vmatpush.bf16.msra.mxu0 %v7215
    %9828 = vmatpush.bf16.msra.mxu0 %v7207
    %9829 = vmatpush.bf16.msra.mxu0 %v7199
    %9830 = vmatmul.bf16.gmra.mxu0 %v2434
    %v9831 = vpop.f32.mrf.mxu0
    %v9832 = vadd.f32 %v9819, %v9831
    %v9833 = vpop.f32.mrf.mxu0
    %9834 = vdwg.mxu0
    %9835 = vmatpush.bf16.msra.mxu0 %v7319
    %9836 = vmatpush.bf16.msra.mxu0 %v7311
    %9837 = vmatpush.bf16.msra.mxu0 %v7303
    %9838 = vmatpush.bf16.msra.mxu0 %v7295
    %9839 = vmatpush.bf16.msra.mxu0 %v7287
    %9840 = vmatpush.bf16.msra.mxu0 %v7279
    %9841 = vmatpush.bf16.msra.mxu0 %v7271
    %9842 = vmatpush.bf16.msra.mxu0 %v7263
    %9843 = vmatmul.bf16.gmra.mxu0 %v2435
    %v9844 = vpop.f32.mrf.mxu0
    %v9845 = vadd.f32 %v9832, %v9844
    %v9846 = vpop.f32.mrf.mxu0
    %9847 = vdwg.mxu0
    %9848 = vmatpush.bf16.msra.mxu0 %v7383
    %9849 = vmatpush.bf16.msra.mxu0 %v7375
    %9850 = vmatpush.bf16.msra.mxu0 %v7367
    %9851 = vmatpush.bf16.msra.mxu0 %v7359
    %9852 = vmatpush.bf16.msra.mxu0 %v7351
    %9853 = vmatpush.bf16.msra.mxu0 %v7343
    %9854 = vmatpush.bf16.msra.mxu0 %v7335
    %9855 = vmatpush.bf16.msra.mxu0 %v7327
    %9856 = vmatmul.bf16.gmra.mxu0 %v2436
    %v9857 = vpop.f32.mrf.mxu0
    %v9858 = vadd.f32 %v9845, %v9857
    %v9859 = vpop.f32.mrf.mxu0
    %9860 = vdwg.mxu0
    %9861 = vmatpush.bf16.msra.mxu0 %v7447
    %9862 = vmatpush.bf16.msra.mxu0 %v7439
    %9863 = vmatpush.bf16.msra.mxu0 %v7431
    %9864 = vmatpush.bf16.msra.mxu0 %v7423
    %9865 = vmatpush.bf16.msra.mxu0 %v7415
    %9866 = vmatpush.bf16.msra.mxu0 %v7407
    %9867 = vmatpush.bf16.msra.mxu0 %v7399
    %9868 = vmatpush.bf16.msra.mxu0 %v7391
    %9869 = vmatmul.bf16.gmra.mxu0 %v2437
    %v9870 = vpop.f32.mrf.mxu0
    %v9871 = vadd.f32 %v9858, %v9870
    %v9872 = vpop.f32.mrf.mxu0
    %9873 = vdwg.mxu0
    %9874 = vmatpush.bf16.msra.mxu0 %v7511
    %9875 = vmatpush.bf16.msra.mxu0 %v7503
    %9876 = vmatpush.bf16.msra.mxu0 %v7495
    %9877 = vmatpush.bf16.msra.mxu0 %v7487
    %9878 = vmatpush.bf16.msra.mxu0 %v7479
    %9879 = vmatpush.bf16.msra.mxu0 %v7471
    %9880 = vmatpush.bf16.msra.mxu0 %v7463
    %9881 = vmatpush.bf16.msra.mxu0 %v7455
    %9882 = vmatmul.bf16.gmra.mxu0 %v2438
    %v9883 = vpop.f32.mrf.mxu0
    %v9884 = vadd.f32 %v9871, %v9883
    %v9885 = vpop.f32.mrf.mxu0
    %9886 = vdwg.mxu0
    %9887 = vmatpush.bf16.msra.mxu0 %v7575
    %9888 = vmatpush.bf16.msra.mxu0 %v7567
    %9889 = vmatpush.bf16.msra.mxu0 %v7559
    %9890 = vmatpush.bf16.msra.mxu0 %v7551
    %9891 = vmatpush.bf16.msra.mxu0 %v7543
    %9892 = vmatpush.bf16.msra.mxu0 %v7535
    %9893 = vmatpush.bf16.msra.mxu0 %v7527
    %9894 = vmatpush.bf16.msra.mxu0 %v7519
    %9895 = vmatmul.bf16.gmra.mxu0 %v2439
    %v9896 = vpop.f32.mrf.mxu0
    %v9897 = vadd.f32 %v9884, %v9896
    %v9898 = vpop.f32.mrf.mxu0
    %9899 = vdwg.mxu0
    %9900 = vmatpush.bf16.msra.mxu0 %v6360
    %9901 = vmatpush.bf16.msra.mxu0 %v6352
    %9902 = vmatpush.bf16.msra.mxu0 %v6344
    %9903 = vmatpush.bf16.msra.mxu0 %v6336
    %9904 = vmatpush.bf16.msra.mxu0 %v6328
    %9905 = vmatpush.bf16.msra.mxu0 %v6320
    %9906 = vmatpush.bf16.msra.mxu0 %v6312
    %9907 = vmatpush.bf16.msra.mxu0 %v6304
    %9908 = vmatmul.bf16.gmra.mxu0 %v2420
    %v9909 = vpop.f32.mrf.mxu0
    %v9910 = vadd.f32 %v2309, %v9909
    %v9911 = vpop.f32.mrf.mxu0
    %9912 = vdwg.mxu0
    %9913 = vmatpush.bf16.msra.mxu0 %v6424
    %9914 = vmatpush.bf16.msra.mxu0 %v6416
    %9915 = vmatpush.bf16.msra.mxu0 %v6408
    %9916 = vmatpush.bf16.msra.mxu0 %v6400
    %9917 = vmatpush.bf16.msra.mxu0 %v6392
    %9918 = vmatpush.bf16.msra.mxu0 %v6384
    %9919 = vmatpush.bf16.msra.mxu0 %v6376
    %9920 = vmatpush.bf16.msra.mxu0 %v6368
    %9921 = vmatmul.bf16.gmra.mxu0 %v2421
    %v9922 = vpop.f32.mrf.mxu0
    %v9923 = vadd.f32 %v9910, %v9922
    %v9924 = vpop.f32.mrf.mxu0
    %9925 = vdwg.mxu0
    %9926 = vmatpush.bf16.msra.mxu0 %v6488
    %9927 = vmatpush.bf16.msra.mxu0 %v6480
    %9928 = vmatpush.bf16.msra.mxu0 %v6472
    %9929 = vmatpush.bf16.msra.mxu0 %v6464
    %9930 = vmatpush.bf16.msra.mxu0 %v6456
    %9931 = vmatpush.bf16.msra.mxu0 %v6448
    %9932 = vmatpush.bf16.msra.mxu0 %v6440
    %9933 = vmatpush.bf16.msra.mxu0 %v6432
    %9934 = vmatmul.bf16.gmra.mxu0 %v2422
    %v9935 = vpop.f32.mrf.mxu0
    %v9936 = vadd.f32 %v9923, %v9935
    %v9937 = vpop.f32.mrf.mxu0
    %9938 = vdwg.mxu0
    %9939 = vmatpush.bf16.msra.mxu0 %v6552
    %9940 = vmatpush.bf16.msra.mxu0 %v6544
    %9941 = vmatpush.bf16.msra.mxu0 %v6536
    %9942 = vmatpush.bf16.msra.mxu0 %v6528
    %9943 = vmatpush.bf16.msra.mxu0 %v6520
    %9944 = vmatpush.bf16.msra.mxu0 %v6512
    %9945 = vmatpush.bf16.msra.mxu0 %v6504
    %9946 = vmatpush.bf16.msra.mxu0 %v6496
    %9947 = vmatmul.bf16.gmra.mxu0 %v2423
    %v9948 = vpop.f32.mrf.mxu0
    %v9949 = vadd.f32 %v9936, %v9948
    %v9950 = vpop.f32.mrf.mxu0
    %9951 = vdwg.mxu0
    %9952 = vmatpush.bf16.msra.mxu0 %v6616
    %9953 = vmatpush.bf16.msra.mxu0 %v6608
    %9954 = vmatpush.bf16.msra.mxu0 %v6600
    %9955 = vmatpush.bf16.msra.mxu0 %v6592
    %9956 = vmatpush.bf16.msra.mxu0 %v6584
    %9957 = vmatpush.bf16.msra.mxu0 %v6576
    %9958 = vmatpush.bf16.msra.mxu0 %v6568
    %9959 = vmatpush.bf16.msra.mxu0 %v6560
    %9960 = vmatmul.bf16.gmra.mxu0 %v2424
    %v9961 = vpop.f32.mrf.mxu0
    %v9962 = vadd.f32 %v9949, %v9961
    %v9963 = vpop.f32.mrf.mxu0
    %9964 = vdwg.mxu0
    %9965 = vmatpush.bf16.msra.mxu0 %v6680
    %9966 = vmatpush.bf16.msra.mxu0 %v6672
    %9967 = vmatpush.bf16.msra.mxu0 %v6664
    %9968 = vmatpush.bf16.msra.mxu0 %v6656
    %9969 = vmatpush.bf16.msra.mxu0 %v6648
    %9970 = vmatpush.bf16.msra.mxu0 %v6640
    %9971 = vmatpush.bf16.msra.mxu0 %v6632
    %9972 = vmatpush.bf16.msra.mxu0 %v6624
    %9973 = vmatmul.bf16.gmra.mxu0 %v2425
    %v9974 = vpop.f32.mrf.mxu0
    %v9975 = vadd.f32 %v9962, %v9974
    %v9976 = vpop.f32.mrf.mxu0
    %9977 = vdwg.mxu0
    %9978 = vmatpush.bf16.msra.mxu0 %v6744
    %9979 = vmatpush.bf16.msra.mxu0 %v6736
    %9980 = vmatpush.bf16.msra.mxu0 %v6728
    %9981 = vmatpush.bf16.msra.mxu0 %v6720
    %9982 = vmatpush.bf16.msra.mxu0 %v6712
    %9983 = vmatpush.bf16.msra.mxu0 %v6704
    %9984 = vmatpush.bf16.msra.mxu0 %v6696
    %9985 = vmatpush.bf16.msra.mxu0 %v6688
    %9986 = vmatmul.bf16.gmra.mxu0 %v2426
    %v9987 = vpop.f32.mrf.mxu0
    %v9988 = vadd.f32 %v9975, %v9987
    %v9989 = vpop.f32.mrf.mxu0
    %9990 = vdwg.mxu0
    %9991 = vmatpush.bf16.msra.mxu0 %v6808
    %9992 = vmatpush.bf16.msra.mxu0 %v6800
    %9993 = vmatpush.bf16.msra.mxu0 %v6792
    %9994 = vmatpush.bf16.msra.mxu0 %v6784
    %9995 = vmatpush.bf16.msra.mxu0 %v6776
    %9996 = vmatpush.bf16.msra.mxu0 %v6768
    %9997 = vmatpush.bf16.msra.mxu0 %v6760
    %9998 = vmatpush.bf16.msra.mxu0 %v6752
    %9999 = vmatmul.bf16.gmra.mxu0 %v2427
    %v10000 = vpop.f32.mrf.mxu0
    %v10001 = vadd.f32 %v9988, %v10000
    %v10002 = vpop.f32.mrf.mxu0
    %10003 = vdwg.mxu0
    %10004 = vmatpush.bf16.msra.mxu0 %v6872
    %10005 = vmatpush.bf16.msra.mxu0 %v6864
    %10006 = vmatpush.bf16.msra.mxu0 %v6856
    %10007 = vmatpush.bf16.msra.mxu0 %v6848
    %10008 = vmatpush.bf16.msra.mxu0 %v6840
    %10009 = vmatpush.bf16.msra.mxu0 %v6832
    %10010 = vmatpush.bf16.msra.mxu0 %v6824
    %10011 = vmatpush.bf16.msra.mxu0 %v6816
    %10012 = vmatmul.bf16.gmra.mxu0 %v2428
    %v10013 = vpop.f32.mrf.mxu0
    %v10014 = vadd.f32 %v10001, %v10013
    %v10015 = vpop.f32.mrf.mxu0
    %10016 = vdwg.mxu0
    %10017 = vmatpush.bf16.msra.mxu0 %v6936
    %10018 = vmatpush.bf16.msra.mxu0 %v6928
    %10019 = vmatpush.bf16.msra.mxu0 %v6920
    %10020 = vmatpush.bf16.msra.mxu0 %v6912
    %10021 = vmatpush.bf16.msra.mxu0 %v6904
    %10022 = vmatpush.bf16.msra.mxu0 %v6896
    %10023 = vmatpush.bf16.msra.mxu0 %v6888
    %10024 = vmatpush.bf16.msra.mxu0 %v6880
    %10025 = vmatmul.bf16.gmra.mxu0 %v2429
    %v10026 = vpop.f32.mrf.mxu0
    %v10027 = vadd.f32 %v10014, %v10026
    %v10028 = vpop.f32.mrf.mxu0
    %10029 = vdwg.mxu0
    %10030 = vmatpush.bf16.msra.mxu0 %v7000
    %10031 = vmatpush.bf16.msra.mxu0 %v6992
    %10032 = vmatpush.bf16.msra.mxu0 %v6984
    %10033 = vmatpush.bf16.msra.mxu0 %v6976
    %10034 = vmatpush.bf16.msra.mxu0 %v6968
    %10035 = vmatpush.bf16.msra.mxu0 %v6960
    %10036 = vmatpush.bf16.msra.mxu0 %v6952
    %10037 = vmatpush.bf16.msra.mxu0 %v6944
    %10038 = vmatmul.bf16.gmra.mxu0 %v2430
    %v10039 = vpop.f32.mrf.mxu0
    %v10040 = vadd.f32 %v10027, %v10039
    %v10041 = vpop.f32.mrf.mxu0
    %10042 = vdwg.mxu0
    %10043 = vmatpush.bf16.msra.mxu0 %v7064
    %10044 = vmatpush.bf16.msra.mxu0 %v7056
    %10045 = vmatpush.bf16.msra.mxu0 %v7048
    %10046 = vmatpush.bf16.msra.mxu0 %v7040
    %10047 = vmatpush.bf16.msra.mxu0 %v7032
    %10048 = vmatpush.bf16.msra.mxu0 %v7024
    %10049 = vmatpush.bf16.msra.mxu0 %v7016
    %10050 = vmatpush.bf16.msra.mxu0 %v7008
    %10051 = vmatmul.bf16.gmra.mxu0 %v2431
    %v10052 = vpop.f32.mrf.mxu0
    %v10053 = vadd.f32 %v10040, %v10052
    %v10054 = vpop.f32.mrf.mxu0
    %10055 = vdwg.mxu0
    %10056 = vmatpush.bf16.msra.mxu0 %v7128
    %10057 = vmatpush.bf16.msra.mxu0 %v7120
    %10058 = vmatpush.bf16.msra.mxu0 %v7112
    %10059 = vmatpush.bf16.msra.mxu0 %v7104
    %10060 = vmatpush.bf16.msra.mxu0 %v7096
    %10061 = vmatpush.bf16.msra.mxu0 %v7088
    %10062 = vmatpush.bf16.msra.mxu0 %v7080
    %10063 = vmatpush.bf16.msra.mxu0 %v7072
    %10064 = vmatmul.bf16.gmra.mxu0 %v2432
    %v10065 = vpop.f32.mrf.mxu0
    %v10066 = vadd.f32 %v10053, %v10065
    %v10067 = vpop.f32.mrf.mxu0
    %10068 = vdwg.mxu0
    %10069 = vmatpush.bf16.msra.mxu0 %v7192
    %10070 = vmatpush.bf16.msra.mxu0 %v7184
    %10071 = vmatpush.bf16.msra.mxu0 %v7176
    %10072 = vmatpush.bf16.msra.mxu0 %v7168
    %10073 = vmatpush.bf16.msra.mxu0 %v7160
    %10074 = vmatpush.bf16.msra.mxu0 %v7152
    %10075 = vmatpush.bf16.msra.mxu0 %v7144
    %10076 = vmatpush.bf16.msra.mxu0 %v7136
    %10077 = vmatmul.bf16.gmra.mxu0 %v2433
    %v10078 = vpop.f32.mrf.mxu0
    %v10079 = vadd.f32 %v10066, %v10078
    %v10080 = vpop.f32.mrf.mxu0
    %10081 = vdwg.mxu0
    %10082 = vmatpush.bf16.msra.mxu0 %v7256
    %10083 = vmatpush.bf16.msra.mxu0 %v7248
    %10084 = vmatpush.bf16.msra.mxu0 %v7240
    %10085 = vmatpush.bf16.msra.mxu0 %v7232
    %10086 = vmatpush.bf16.msra.mxu0 %v7224
    %10087 = vmatpush.bf16.msra.mxu0 %v7216
    %10088 = vmatpush.bf16.msra.mxu0 %v7208
    %10089 = vmatpush.bf16.msra.mxu0 %v7200
    %10090 = vmatmul.bf16.gmra.mxu0 %v2434
    %v10091 = vpop.f32.mrf.mxu0
    %v10092 = vadd.f32 %v10079, %v10091
    %v10093 = vpop.f32.mrf.mxu0
    %10094 = vdwg.mxu0
    %10095 = vmatpush.bf16.msra.mxu0 %v7320
    %10096 = vmatpush.bf16.msra.mxu0 %v7312
    %10097 = vmatpush.bf16.msra.mxu0 %v7304
    %10098 = vmatpush.bf16.msra.mxu0 %v7296
    %10099 = vmatpush.bf16.msra.mxu0 %v7288
    %10100 = vmatpush.bf16.msra.mxu0 %v7280
    %10101 = vmatpush.bf16.msra.mxu0 %v7272
    %10102 = vmatpush.bf16.msra.mxu0 %v7264
    %10103 = vmatmul.bf16.gmra.mxu0 %v2435
    %v10104 = vpop.f32.mrf.mxu0
    %v10105 = vadd.f32 %v10092, %v10104
    %v10106 = vpop.f32.mrf.mxu0
    %10107 = vdwg.mxu0
    %10108 = vmatpush.bf16.msra.mxu0 %v7384
    %10109 = vmatpush.bf16.msra.mxu0 %v7376
    %10110 = vmatpush.bf16.msra.mxu0 %v7368
    %10111 = vmatpush.bf16.msra.mxu0 %v7360
    %10112 = vmatpush.bf16.msra.mxu0 %v7352
    %10113 = vmatpush.bf16.msra.mxu0 %v7344
    %10114 = vmatpush.bf16.msra.mxu0 %v7336
    %10115 = vmatpush.bf16.msra.mxu0 %v7328
    %10116 = vmatmul.bf16.gmra.mxu0 %v2436
    %v10117 = vpop.f32.mrf.mxu0
    %v10118 = vadd.f32 %v10105, %v10117
    %v10119 = vpop.f32.mrf.mxu0
    %10120 = vdwg.mxu0
    %10121 = vmatpush.bf16.msra.mxu0 %v7448
    %10122 = vmatpush.bf16.msra.mxu0 %v7440
    %10123 = vmatpush.bf16.msra.mxu0 %v7432
    %10124 = vmatpush.bf16.msra.mxu0 %v7424
    %10125 = vmatpush.bf16.msra.mxu0 %v7416
    %10126 = vmatpush.bf16.msra.mxu0 %v7408
    %10127 = vmatpush.bf16.msra.mxu0 %v7400
    %10128 = vmatpush.bf16.msra.mxu0 %v7392
    %10129 = vmatmul.bf16.gmra.mxu0 %v2437
    %v10130 = vpop.f32.mrf.mxu0
    %v10131 = vadd.f32 %v10118, %v10130
    %v10132 = vpop.f32.mrf.mxu0
    %10133 = vdwg.mxu0
    %10134 = vmatpush.bf16.msra.mxu0 %v7512
    %10135 = vmatpush.bf16.msra.mxu0 %v7504
    %10136 = vmatpush.bf16.msra.mxu0 %v7496
    %10137 = vmatpush.bf16.msra.mxu0 %v7488
    %10138 = vmatpush.bf16.msra.mxu0 %v7480
    %10139 = vmatpush.bf16.msra.mxu0 %v7472
    %10140 = vmatpush.bf16.msra.mxu0 %v7464
    %10141 = vmatpush.bf16.msra.mxu0 %v7456
    %10142 = vmatmul.bf16.gmra.mxu0 %v2438
    %v10143 = vpop.f32.mrf.mxu0
    %v10144 = vadd.f32 %v10131, %v10143
    %v10145 = vpop.f32.mrf.mxu0
    %10146 = vdwg.mxu0
    %10147 = vmatpush.bf16.msra.mxu0 %v7576
    %10148 = vmatpush.bf16.msra.mxu0 %v7568
    %10149 = vmatpush.bf16.msra.mxu0 %v7560
    %10150 = vmatpush.bf16.msra.mxu0 %v7552
    %10151 = vmatpush.bf16.msra.mxu0 %v7544
    %10152 = vmatpush.bf16.msra.mxu0 %v7536
    %10153 = vmatpush.bf16.msra.mxu0 %v7528
    %10154 = vmatpush.bf16.msra.mxu0 %v7520
    %10155 = vmatmul.bf16.gmra.mxu0 %v2439
    %v10156 = vpop.f32.mrf.mxu0
    %v10157 = vadd.f32 %v10144, %v10156
    %v10158 = vpop.f32.mrf.mxu0
    %10159 = vdwg.mxu0
    %10160 = vmatpush.bf16.msra.mxu0 %v6361
    %10161 = vmatpush.bf16.msra.mxu0 %v6353
    %10162 = vmatpush.bf16.msra.mxu0 %v6345
    %10163 = vmatpush.bf16.msra.mxu0 %v6337
    %10164 = vmatpush.bf16.msra.mxu0 %v6329
    %10165 = vmatpush.bf16.msra.mxu0 %v6321
    %10166 = vmatpush.bf16.msra.mxu0 %v6313
    %10167 = vmatpush.bf16.msra.mxu0 %v6305
    %10168 = vmatmul.bf16.gmra.mxu0 %v2420
    %v10169 = vpop.f32.mrf.mxu0
    %v10170 = vadd.f32 %v2335, %v10169
    %v10171 = vpop.f32.mrf.mxu0
    %10172 = vdwg.mxu0
    %10173 = vmatpush.bf16.msra.mxu0 %v6425
    %10174 = vmatpush.bf16.msra.mxu0 %v6417
    %10175 = vmatpush.bf16.msra.mxu0 %v6409
    %10176 = vmatpush.bf16.msra.mxu0 %v6401
    %10177 = vmatpush.bf16.msra.mxu0 %v6393
    %10178 = vmatpush.bf16.msra.mxu0 %v6385
    %10179 = vmatpush.bf16.msra.mxu0 %v6377
    %10180 = vmatpush.bf16.msra.mxu0 %v6369
    %10181 = vmatmul.bf16.gmra.mxu0 %v2421
    %v10182 = vpop.f32.mrf.mxu0
    %v10183 = vadd.f32 %v10170, %v10182
    %v10184 = vpop.f32.mrf.mxu0
    %10185 = vdwg.mxu0
    %10186 = vmatpush.bf16.msra.mxu0 %v6489
    %10187 = vmatpush.bf16.msra.mxu0 %v6481
    %10188 = vmatpush.bf16.msra.mxu0 %v6473
    %10189 = vmatpush.bf16.msra.mxu0 %v6465
    %10190 = vmatpush.bf16.msra.mxu0 %v6457
    %10191 = vmatpush.bf16.msra.mxu0 %v6449
    %10192 = vmatpush.bf16.msra.mxu0 %v6441
    %10193 = vmatpush.bf16.msra.mxu0 %v6433
    %10194 = vmatmul.bf16.gmra.mxu0 %v2422
    %v10195 = vpop.f32.mrf.mxu0
    %v10196 = vadd.f32 %v10183, %v10195
    %v10197 = vpop.f32.mrf.mxu0
    %10198 = vdwg.mxu0
    %10199 = vmatpush.bf16.msra.mxu0 %v6553
    %10200 = vmatpush.bf16.msra.mxu0 %v6545
    %10201 = vmatpush.bf16.msra.mxu0 %v6537
    %10202 = vmatpush.bf16.msra.mxu0 %v6529
    %10203 = vmatpush.bf16.msra.mxu0 %v6521
    %10204 = vmatpush.bf16.msra.mxu0 %v6513
    %10205 = vmatpush.bf16.msra.mxu0 %v6505
    %10206 = vmatpush.bf16.msra.mxu0 %v6497
    %10207 = vmatmul.bf16.gmra.mxu0 %v2423
    %v10208 = vpop.f32.mrf.mxu0
    %v10209 = vadd.f32 %v10196, %v10208
    %v10210 = vpop.f32.mrf.mxu0
    %10211 = vdwg.mxu0
    %10212 = vmatpush.bf16.msra.mxu0 %v6617
    %10213 = vmatpush.bf16.msra.mxu0 %v6609
    %10214 = vmatpush.bf16.msra.mxu0 %v6601
    %10215 = vmatpush.bf16.msra.mxu0 %v6593
    %10216 = vmatpush.bf16.msra.mxu0 %v6585
    %10217 = vmatpush.bf16.msra.mxu0 %v6577
    %10218 = vmatpush.bf16.msra.mxu0 %v6569
    %10219 = vmatpush.bf16.msra.mxu0 %v6561
    %10220 = vmatmul.bf16.gmra.mxu0 %v2424
    %v10221 = vpop.f32.mrf.mxu0
    %v10222 = vadd.f32 %v10209, %v10221
    %v10223 = vpop.f32.mrf.mxu0
    %10224 = vdwg.mxu0
    %10225 = vmatpush.bf16.msra.mxu0 %v6681
    %10226 = vmatpush.bf16.msra.mxu0 %v6673
    %10227 = vmatpush.bf16.msra.mxu0 %v6665
    %10228 = vmatpush.bf16.msra.mxu0 %v6657
    %10229 = vmatpush.bf16.msra.mxu0 %v6649
    %10230 = vmatpush.bf16.msra.mxu0 %v6641
    %10231 = vmatpush.bf16.msra.mxu0 %v6633
    %10232 = vmatpush.bf16.msra.mxu0 %v6625
    %10233 = vmatmul.bf16.gmra.mxu0 %v2425
    %v10234 = vpop.f32.mrf.mxu0
    %v10235 = vadd.f32 %v10222, %v10234
    %v10236 = vpop.f32.mrf.mxu0
    %10237 = vdwg.mxu0
    %10238 = vmatpush.bf16.msra.mxu0 %v6745
    %10239 = vmatpush.bf16.msra.mxu0 %v6737
    %10240 = vmatpush.bf16.msra.mxu0 %v6729
    %10241 = vmatpush.bf16.msra.mxu0 %v6721
    %10242 = vmatpush.bf16.msra.mxu0 %v6713
    %10243 = vmatpush.bf16.msra.mxu0 %v6705
    %10244 = vmatpush.bf16.msra.mxu0 %v6697
    %10245 = vmatpush.bf16.msra.mxu0 %v6689
    %10246 = vmatmul.bf16.gmra.mxu0 %v2426
    %v10247 = vpop.f32.mrf.mxu0
    %v10248 = vadd.f32 %v10235, %v10247
    %v10249 = vpop.f32.mrf.mxu0
    %10250 = vdwg.mxu0
    %10251 = vmatpush.bf16.msra.mxu0 %v6809
    %10252 = vmatpush.bf16.msra.mxu0 %v6801
    %10253 = vmatpush.bf16.msra.mxu0 %v6793
    %10254 = vmatpush.bf16.msra.mxu0 %v6785
    %10255 = vmatpush.bf16.msra.mxu0 %v6777
    %10256 = vmatpush.bf16.msra.mxu0 %v6769
    %10257 = vmatpush.bf16.msra.mxu0 %v6761
    %10258 = vmatpush.bf16.msra.mxu0 %v6753
    %10259 = vmatmul.bf16.gmra.mxu0 %v2427
    %v10260 = vpop.f32.mrf.mxu0
    %v10261 = vadd.f32 %v10248, %v10260
    %v10262 = vpop.f32.mrf.mxu0
    %10263 = vdwg.mxu0
    %10264 = vmatpush.bf16.msra.mxu0 %v6873
    %10265 = vmatpush.bf16.msra.mxu0 %v6865
    %10266 = vmatpush.bf16.msra.mxu0 %v6857
    %10267 = vmatpush.bf16.msra.mxu0 %v6849
    %10268 = vmatpush.bf16.msra.mxu0 %v6841
    %10269 = vmatpush.bf16.msra.mxu0 %v6833
    %10270 = vmatpush.bf16.msra.mxu0 %v6825
    %10271 = vmatpush.bf16.msra.mxu0 %v6817
    %10272 = vmatmul.bf16.gmra.mxu0 %v2428
    %v10273 = vpop.f32.mrf.mxu0
    %v10274 = vadd.f32 %v10261, %v10273
    %v10275 = vpop.f32.mrf.mxu0
    %10276 = vdwg.mxu0
    %10277 = vmatpush.bf16.msra.mxu0 %v6937
    %10278 = vmatpush.bf16.msra.mxu0 %v6929
    %10279 = vmatpush.bf16.msra.mxu0 %v6921
    %10280 = vmatpush.bf16.msra.mxu0 %v6913
    %10281 = vmatpush.bf16.msra.mxu0 %v6905
    %10282 = vmatpush.bf16.msra.mxu0 %v6897
    %10283 = vmatpush.bf16.msra.mxu0 %v6889
    %10284 = vmatpush.bf16.msra.mxu0 %v6881
    %10285 = vmatmul.bf16.gmra.mxu0 %v2429
    %v10286 = vpop.f32.mrf.mxu0
    %v10287 = vadd.f32 %v10274, %v10286
    %v10288 = vpop.f32.mrf.mxu0
    %10289 = vdwg.mxu0
    %10290 = vmatpush.bf16.msra.mxu0 %v7001
    %10291 = vmatpush.bf16.msra.mxu0 %v6993
    %10292 = vmatpush.bf16.msra.mxu0 %v6985
    %10293 = vmatpush.bf16.msra.mxu0 %v6977
    %10294 = vmatpush.bf16.msra.mxu0 %v6969
    %10295 = vmatpush.bf16.msra.mxu0 %v6961
    %10296 = vmatpush.bf16.msra.mxu0 %v6953
    %10297 = vmatpush.bf16.msra.mxu0 %v6945
    %10298 = vmatmul.bf16.gmra.mxu0 %v2430
    %v10299 = vpop.f32.mrf.mxu0
    %v10300 = vadd.f32 %v10287, %v10299
    %v10301 = vpop.f32.mrf.mxu0
    %10302 = vdwg.mxu0
    %10303 = vmatpush.bf16.msra.mxu0 %v7065
    %10304 = vmatpush.bf16.msra.mxu0 %v7057
    %10305 = vmatpush.bf16.msra.mxu0 %v7049
    %10306 = vmatpush.bf16.msra.mxu0 %v7041
    %10307 = vmatpush.bf16.msra.mxu0 %v7033
    %10308 = vmatpush.bf16.msra.mxu0 %v7025
    %10309 = vmatpush.bf16.msra.mxu0 %v7017
    %10310 = vmatpush.bf16.msra.mxu0 %v7009
    %10311 = vmatmul.bf16.gmra.mxu0 %v2431
    %v10312 = vpop.f32.mrf.mxu0
    %v10313 = vadd.f32 %v10300, %v10312
    %v10314 = vpop.f32.mrf.mxu0
    %10315 = vdwg.mxu0
    %10316 = vmatpush.bf16.msra.mxu0 %v7129
    %10317 = vmatpush.bf16.msra.mxu0 %v7121
    %10318 = vmatpush.bf16.msra.mxu0 %v7113
    %10319 = vmatpush.bf16.msra.mxu0 %v7105
    %10320 = vmatpush.bf16.msra.mxu0 %v7097
    %10321 = vmatpush.bf16.msra.mxu0 %v7089
    %10322 = vmatpush.bf16.msra.mxu0 %v7081
    %10323 = vmatpush.bf16.msra.mxu0 %v7073
    %10324 = vmatmul.bf16.gmra.mxu0 %v2432
    %v10325 = vpop.f32.mrf.mxu0
    %v10326 = vadd.f32 %v10313, %v10325
    %v10327 = vpop.f32.mrf.mxu0
    %10328 = vdwg.mxu0
    %10329 = vmatpush.bf16.msra.mxu0 %v7193
    %10330 = vmatpush.bf16.msra.mxu0 %v7185
    %10331 = vmatpush.bf16.msra.mxu0 %v7177
    %10332 = vmatpush.bf16.msra.mxu0 %v7169
    %10333 = vmatpush.bf16.msra.mxu0 %v7161
    %10334 = vmatpush.bf16.msra.mxu0 %v7153
    %10335 = vmatpush.bf16.msra.mxu0 %v7145
    %10336 = vmatpush.bf16.msra.mxu0 %v7137
    %10337 = vmatmul.bf16.gmra.mxu0 %v2433
    %v10338 = vpop.f32.mrf.mxu0
    %v10339 = vadd.f32 %v10326, %v10338
    %v10340 = vpop.f32.mrf.mxu0
    %10341 = vdwg.mxu0
    %10342 = vmatpush.bf16.msra.mxu0 %v7257
    %10343 = vmatpush.bf16.msra.mxu0 %v7249
    %10344 = vmatpush.bf16.msra.mxu0 %v7241
    %10345 = vmatpush.bf16.msra.mxu0 %v7233
    %10346 = vmatpush.bf16.msra.mxu0 %v7225
    %10347 = vmatpush.bf16.msra.mxu0 %v7217
    %10348 = vmatpush.bf16.msra.mxu0 %v7209
    %10349 = vmatpush.bf16.msra.mxu0 %v7201
    %10350 = vmatmul.bf16.gmra.mxu0 %v2434
    %v10351 = vpop.f32.mrf.mxu0
    %v10352 = vadd.f32 %v10339, %v10351
    %v10353 = vpop.f32.mrf.mxu0
    %10354 = vdwg.mxu0
    %10355 = vmatpush.bf16.msra.mxu0 %v7321
    %10356 = vmatpush.bf16.msra.mxu0 %v7313
    %10357 = vmatpush.bf16.msra.mxu0 %v7305
    %10358 = vmatpush.bf16.msra.mxu0 %v7297
    %10359 = vmatpush.bf16.msra.mxu0 %v7289
    %10360 = vmatpush.bf16.msra.mxu0 %v7281
    %10361 = vmatpush.bf16.msra.mxu0 %v7273
    %10362 = vmatpush.bf16.msra.mxu0 %v7265
    %10363 = vmatmul.bf16.gmra.mxu0 %v2435
    %v10364 = vpop.f32.mrf.mxu0
    %v10365 = vadd.f32 %v10352, %v10364
    %v10366 = vpop.f32.mrf.mxu0
    %10367 = vdwg.mxu0
    %10368 = vmatpush.bf16.msra.mxu0 %v7385
    %10369 = vmatpush.bf16.msra.mxu0 %v7377
    %10370 = vmatpush.bf16.msra.mxu0 %v7369
    %10371 = vmatpush.bf16.msra.mxu0 %v7361
    %10372 = vmatpush.bf16.msra.mxu0 %v7353
    %10373 = vmatpush.bf16.msra.mxu0 %v7345
    %10374 = vmatpush.bf16.msra.mxu0 %v7337
    %10375 = vmatpush.bf16.msra.mxu0 %v7329
    %10376 = vmatmul.bf16.gmra.mxu0 %v2436
    %v10377 = vpop.f32.mrf.mxu0
    %v10378 = vadd.f32 %v10365, %v10377
    %v10379 = vpop.f32.mrf.mxu0
    %10380 = vdwg.mxu0
    %10381 = vmatpush.bf16.msra.mxu0 %v7449
    %10382 = vmatpush.bf16.msra.mxu0 %v7441
    %10383 = vmatpush.bf16.msra.mxu0 %v7433
    %10384 = vmatpush.bf16.msra.mxu0 %v7425
    %10385 = vmatpush.bf16.msra.mxu0 %v7417
    %10386 = vmatpush.bf16.msra.mxu0 %v7409
    %10387 = vmatpush.bf16.msra.mxu0 %v7401
    %10388 = vmatpush.bf16.msra.mxu0 %v7393
    %10389 = vmatmul.bf16.gmra.mxu0 %v2437
    %v10390 = vpop.f32.mrf.mxu0
    %v10391 = vadd.f32 %v10378, %v10390
    %v10392 = vpop.f32.mrf.mxu0
    %10393 = vdwg.mxu0
    %10394 = vmatpush.bf16.msra.mxu0 %v7513
    %10395 = vmatpush.bf16.msra.mxu0 %v7505
    %10396 = vmatpush.bf16.msra.mxu0 %v7497
    %10397 = vmatpush.bf16.msra.mxu0 %v7489
    %10398 = vmatpush.bf16.msra.mxu0 %v7481
    %10399 = vmatpush.bf16.msra.mxu0 %v7473
    %10400 = vmatpush.bf16.msra.mxu0 %v7465
    %10401 = vmatpush.bf16.msra.mxu0 %v7457
    %10402 = vmatmul.bf16.gmra.mxu0 %v2438
    %v10403 = vpop.f32.mrf.mxu0
    %v10404 = vadd.f32 %v10391, %v10403
    %v10405 = vpop.f32.mrf.mxu0
    %10406 = vdwg.mxu0
    %10407 = vmatpush.bf16.msra.mxu0 %v7577
    %10408 = vmatpush.bf16.msra.mxu0 %v7569
    %10409 = vmatpush.bf16.msra.mxu0 %v7561
    %10410 = vmatpush.bf16.msra.mxu0 %v7553
    %10411 = vmatpush.bf16.msra.mxu0 %v7545
    %10412 = vmatpush.bf16.msra.mxu0 %v7537
    %10413 = vmatpush.bf16.msra.mxu0 %v7529
    %10414 = vmatpush.bf16.msra.mxu0 %v7521
    %10415 = vmatmul.bf16.gmra.mxu0 %v2439
    %v10416 = vpop.f32.mrf.mxu0
    %v10417 = vadd.f32 %v10404, %v10416
    %v10418 = vpop.f32.mrf.mxu0
    %10419 = vdwg.mxu0
    %10420 = vmatpush.bf16.msra.mxu0 %v6362
    %10421 = vmatpush.bf16.msra.mxu0 %v6354
    %10422 = vmatpush.bf16.msra.mxu0 %v6346
    %10423 = vmatpush.bf16.msra.mxu0 %v6338
    %10424 = vmatpush.bf16.msra.mxu0 %v6330
    %10425 = vmatpush.bf16.msra.mxu0 %v6322
    %10426 = vmatpush.bf16.msra.mxu0 %v6314
    %10427 = vmatpush.bf16.msra.mxu0 %v6306
    %10428 = vmatmul.bf16.gmra.mxu0 %v2420
    %v10429 = vpop.f32.mrf.mxu0
    %v10430 = vadd.f32 %v2361, %v10429
    %v10431 = vpop.f32.mrf.mxu0
    %10432 = vdwg.mxu0
    %10433 = vmatpush.bf16.msra.mxu0 %v6426
    %10434 = vmatpush.bf16.msra.mxu0 %v6418
    %10435 = vmatpush.bf16.msra.mxu0 %v6410
    %10436 = vmatpush.bf16.msra.mxu0 %v6402
    %10437 = vmatpush.bf16.msra.mxu0 %v6394
    %10438 = vmatpush.bf16.msra.mxu0 %v6386
    %10439 = vmatpush.bf16.msra.mxu0 %v6378
    %10440 = vmatpush.bf16.msra.mxu0 %v6370
    %10441 = vmatmul.bf16.gmra.mxu0 %v2421
    %v10442 = vpop.f32.mrf.mxu0
    %v10443 = vadd.f32 %v10430, %v10442
    %v10444 = vpop.f32.mrf.mxu0
    %10445 = vdwg.mxu0
    %10446 = vmatpush.bf16.msra.mxu0 %v6490
    %10447 = vmatpush.bf16.msra.mxu0 %v6482
    %10448 = vmatpush.bf16.msra.mxu0 %v6474
    %10449 = vmatpush.bf16.msra.mxu0 %v6466
    %10450 = vmatpush.bf16.msra.mxu0 %v6458
    %10451 = vmatpush.bf16.msra.mxu0 %v6450
    %10452 = vmatpush.bf16.msra.mxu0 %v6442
    %10453 = vmatpush.bf16.msra.mxu0 %v6434
    %10454 = vmatmul.bf16.gmra.mxu0 %v2422
    %v10455 = vpop.f32.mrf.mxu0
    %v10456 = vadd.f32 %v10443, %v10455
    %v10457 = vpop.f32.mrf.mxu0
    %10458 = vdwg.mxu0
    %10459 = vmatpush.bf16.msra.mxu0 %v6554
    %10460 = vmatpush.bf16.msra.mxu0 %v6546
    %10461 = vmatpush.bf16.msra.mxu0 %v6538
    %10462 = vmatpush.bf16.msra.mxu0 %v6530
    %10463 = vmatpush.bf16.msra.mxu0 %v6522
    %10464 = vmatpush.bf16.msra.mxu0 %v6514
    %10465 = vmatpush.bf16.msra.mxu0 %v6506
    %10466 = vmatpush.bf16.msra.mxu0 %v6498
    %10467 = vmatmul.bf16.gmra.mxu0 %v2423
    %v10468 = vpop.f32.mrf.mxu0
    %v10469 = vadd.f32 %v10456, %v10468
    %v10470 = vpop.f32.mrf.mxu0
    %10471 = vdwg.mxu0
    %10472 = vmatpush.bf16.msra.mxu0 %v6618
    %10473 = vmatpush.bf16.msra.mxu0 %v6610
    %10474 = vmatpush.bf16.msra.mxu0 %v6602
    %10475 = vmatpush.bf16.msra.mxu0 %v6594
    %10476 = vmatpush.bf16.msra.mxu0 %v6586
    %10477 = vmatpush.bf16.msra.mxu0 %v6578
    %10478 = vmatpush.bf16.msra.mxu0 %v6570
    %10479 = vmatpush.bf16.msra.mxu0 %v6562
    %10480 = vmatmul.bf16.gmra.mxu0 %v2424
    %v10481 = vpop.f32.mrf.mxu0
    %v10482 = vadd.f32 %v10469, %v10481
    %v10483 = vpop.f32.mrf.mxu0
    %10484 = vdwg.mxu0
    %10485 = vmatpush.bf16.msra.mxu0 %v6682
    %10486 = vmatpush.bf16.msra.mxu0 %v6674
    %10487 = vmatpush.bf16.msra.mxu0 %v6666
    %10488 = vmatpush.bf16.msra.mxu0 %v6658
    %10489 = vmatpush.bf16.msra.mxu0 %v6650
    %10490 = vmatpush.bf16.msra.mxu0 %v6642
    %10491 = vmatpush.bf16.msra.mxu0 %v6634
    %10492 = vmatpush.bf16.msra.mxu0 %v6626
    %10493 = vmatmul.bf16.gmra.mxu0 %v2425
    %v10494 = vpop.f32.mrf.mxu0
    %v10495 = vadd.f32 %v10482, %v10494
    %v10496 = vpop.f32.mrf.mxu0
    %10497 = vdwg.mxu0
    %10498 = vmatpush.bf16.msra.mxu0 %v6746
    %10499 = vmatpush.bf16.msra.mxu0 %v6738
    %10500 = vmatpush.bf16.msra.mxu0 %v6730
    %10501 = vmatpush.bf16.msra.mxu0 %v6722
    %10502 = vmatpush.bf16.msra.mxu0 %v6714
    %10503 = vmatpush.bf16.msra.mxu0 %v6706
    %10504 = vmatpush.bf16.msra.mxu0 %v6698
    %10505 = vmatpush.bf16.msra.mxu0 %v6690
    %10506 = vmatmul.bf16.gmra.mxu0 %v2426
    %v10507 = vpop.f32.mrf.mxu0
    %v10508 = vadd.f32 %v10495, %v10507
    %v10509 = vpop.f32.mrf.mxu0
    %10510 = vdwg.mxu0
    %10511 = vmatpush.bf16.msra.mxu0 %v6810
    %10512 = vmatpush.bf16.msra.mxu0 %v6802
    %10513 = vmatpush.bf16.msra.mxu0 %v6794
    %10514 = vmatpush.bf16.msra.mxu0 %v6786
    %10515 = vmatpush.bf16.msra.mxu0 %v6778
    %10516 = vmatpush.bf16.msra.mxu0 %v6770
    %10517 = vmatpush.bf16.msra.mxu0 %v6762
    %10518 = vmatpush.bf16.msra.mxu0 %v6754
    %10519 = vmatmul.bf16.gmra.mxu0 %v2427
    %v10520 = vpop.f32.mrf.mxu0
    %v10521 = vadd.f32 %v10508, %v10520
    %v10522 = vpop.f32.mrf.mxu0
    %10523 = vdwg.mxu0
    %10524 = vmatpush.bf16.msra.mxu0 %v6874
    %10525 = vmatpush.bf16.msra.mxu0 %v6866
    %10526 = vmatpush.bf16.msra.mxu0 %v6858
    %10527 = vmatpush.bf16.msra.mxu0 %v6850
    %10528 = vmatpush.bf16.msra.mxu0 %v6842
    %10529 = vmatpush.bf16.msra.mxu0 %v6834
    %10530 = vmatpush.bf16.msra.mxu0 %v6826
    %10531 = vmatpush.bf16.msra.mxu0 %v6818
    %10532 = vmatmul.bf16.gmra.mxu0 %v2428
    %v10533 = vpop.f32.mrf.mxu0
    %v10534 = vadd.f32 %v10521, %v10533
    %v10535 = vpop.f32.mrf.mxu0
    %10536 = vdwg.mxu0
    %10537 = vmatpush.bf16.msra.mxu0 %v6938
    %10538 = vmatpush.bf16.msra.mxu0 %v6930
    %10539 = vmatpush.bf16.msra.mxu0 %v6922
    %10540 = vmatpush.bf16.msra.mxu0 %v6914
    %10541 = vmatpush.bf16.msra.mxu0 %v6906
    %10542 = vmatpush.bf16.msra.mxu0 %v6898
    %10543 = vmatpush.bf16.msra.mxu0 %v6890
    %10544 = vmatpush.bf16.msra.mxu0 %v6882
    %10545 = vmatmul.bf16.gmra.mxu0 %v2429
    %v10546 = vpop.f32.mrf.mxu0
    %v10547 = vadd.f32 %v10534, %v10546
    %v10548 = vpop.f32.mrf.mxu0
    %10549 = vdwg.mxu0
    %10550 = vmatpush.bf16.msra.mxu0 %v7002
    %10551 = vmatpush.bf16.msra.mxu0 %v6994
    %10552 = vmatpush.bf16.msra.mxu0 %v6986
    %10553 = vmatpush.bf16.msra.mxu0 %v6978
    %10554 = vmatpush.bf16.msra.mxu0 %v6970
    %10555 = vmatpush.bf16.msra.mxu0 %v6962
    %10556 = vmatpush.bf16.msra.mxu0 %v6954
    %10557 = vmatpush.bf16.msra.mxu0 %v6946
    %10558 = vmatmul.bf16.gmra.mxu0 %v2430
    %v10559 = vpop.f32.mrf.mxu0
    %v10560 = vadd.f32 %v10547, %v10559
    %v10561 = vpop.f32.mrf.mxu0
    %10562 = vdwg.mxu0
    %10563 = vmatpush.bf16.msra.mxu0 %v7066
    %10564 = vmatpush.bf16.msra.mxu0 %v7058
    %10565 = vmatpush.bf16.msra.mxu0 %v7050
    %10566 = vmatpush.bf16.msra.mxu0 %v7042
    %10567 = vmatpush.bf16.msra.mxu0 %v7034
    %10568 = vmatpush.bf16.msra.mxu0 %v7026
    %10569 = vmatpush.bf16.msra.mxu0 %v7018
    %10570 = vmatpush.bf16.msra.mxu0 %v7010
    %10571 = vmatmul.bf16.gmra.mxu0 %v2431
    %v10572 = vpop.f32.mrf.mxu0
    %v10573 = vadd.f32 %v10560, %v10572
    %v10574 = vpop.f32.mrf.mxu0
    %10575 = vdwg.mxu0
    %10576 = vmatpush.bf16.msra.mxu0 %v7130
    %10577 = vmatpush.bf16.msra.mxu0 %v7122
    %10578 = vmatpush.bf16.msra.mxu0 %v7114
    %10579 = vmatpush.bf16.msra.mxu0 %v7106
    %10580 = vmatpush.bf16.msra.mxu0 %v7098
    %10581 = vmatpush.bf16.msra.mxu0 %v7090
    %10582 = vmatpush.bf16.msra.mxu0 %v7082
    %10583 = vmatpush.bf16.msra.mxu0 %v7074
    %10584 = vmatmul.bf16.gmra.mxu0 %v2432
    %v10585 = vpop.f32.mrf.mxu0
    %v10586 = vadd.f32 %v10573, %v10585
    %v10587 = vpop.f32.mrf.mxu0
    %10588 = vdwg.mxu0
    %10589 = vmatpush.bf16.msra.mxu0 %v7194
    %10590 = vmatpush.bf16.msra.mxu0 %v7186
    %10591 = vmatpush.bf16.msra.mxu0 %v7178
    %10592 = vmatpush.bf16.msra.mxu0 %v7170
    %10593 = vmatpush.bf16.msra.mxu0 %v7162
    %10594 = vmatpush.bf16.msra.mxu0 %v7154
    %10595 = vmatpush.bf16.msra.mxu0 %v7146
    %10596 = vmatpush.bf16.msra.mxu0 %v7138
    %10597 = vmatmul.bf16.gmra.mxu0 %v2433
    %v10598 = vpop.f32.mrf.mxu0
    %v10599 = vadd.f32 %v10586, %v10598
    %v10600 = vpop.f32.mrf.mxu0
    %10601 = vdwg.mxu0
    %10602 = vmatpush.bf16.msra.mxu0 %v7258
    %10603 = vmatpush.bf16.msra.mxu0 %v7250
    %10604 = vmatpush.bf16.msra.mxu0 %v7242
    %10605 = vmatpush.bf16.msra.mxu0 %v7234
    %10606 = vmatpush.bf16.msra.mxu0 %v7226
    %10607 = vmatpush.bf16.msra.mxu0 %v7218
    %10608 = vmatpush.bf16.msra.mxu0 %v7210
    %10609 = vmatpush.bf16.msra.mxu0 %v7202
    %10610 = vmatmul.bf16.gmra.mxu0 %v2434
    %v10611 = vpop.f32.mrf.mxu0
    %v10612 = vadd.f32 %v10599, %v10611
    %v10613 = vpop.f32.mrf.mxu0
    %10614 = vdwg.mxu0
    %10615 = vmatpush.bf16.msra.mxu0 %v7322
    %10616 = vmatpush.bf16.msra.mxu0 %v7314
    %10617 = vmatpush.bf16.msra.mxu0 %v7306
    %10618 = vmatpush.bf16.msra.mxu0 %v7298
    %10619 = vmatpush.bf16.msra.mxu0 %v7290
    %10620 = vmatpush.bf16.msra.mxu0 %v7282
    %10621 = vmatpush.bf16.msra.mxu0 %v7274
    %10622 = vmatpush.bf16.msra.mxu0 %v7266
    %10623 = vmatmul.bf16.gmra.mxu0 %v2435
    %v10624 = vpop.f32.mrf.mxu0
    %v10625 = vadd.f32 %v10612, %v10624
    %v10626 = vpop.f32.mrf.mxu0
    %10627 = vdwg.mxu0
    %10628 = vmatpush.bf16.msra.mxu0 %v7386
    %10629 = vmatpush.bf16.msra.mxu0 %v7378
    %10630 = vmatpush.bf16.msra.mxu0 %v7370
    %10631 = vmatpush.bf16.msra.mxu0 %v7362
    %10632 = vmatpush.bf16.msra.mxu0 %v7354
    %10633 = vmatpush.bf16.msra.mxu0 %v7346
    %10634 = vmatpush.bf16.msra.mxu0 %v7338
    %10635 = vmatpush.bf16.msra.mxu0 %v7330
    %10636 = vmatmul.bf16.gmra.mxu0 %v2436
    %v10637 = vpop.f32.mrf.mxu0
    %v10638 = vadd.f32 %v10625, %v10637
    %v10639 = vpop.f32.mrf.mxu0
    %10640 = vdwg.mxu0
    %10641 = vmatpush.bf16.msra.mxu0 %v7450
    %10642 = vmatpush.bf16.msra.mxu0 %v7442
    %10643 = vmatpush.bf16.msra.mxu0 %v7434
    %10644 = vmatpush.bf16.msra.mxu0 %v7426
    %10645 = vmatpush.bf16.msra.mxu0 %v7418
    %10646 = vmatpush.bf16.msra.mxu0 %v7410
    %10647 = vmatpush.bf16.msra.mxu0 %v7402
    %10648 = vmatpush.bf16.msra.mxu0 %v7394
    %10649 = vmatmul.bf16.gmra.mxu0 %v2437
    %v10650 = vpop.f32.mrf.mxu0
    %v10651 = vadd.f32 %v10638, %v10650
    %v10652 = vpop.f32.mrf.mxu0
    %10653 = vdwg.mxu0
    %10654 = vmatpush.bf16.msra.mxu0 %v7514
    %10655 = vmatpush.bf16.msra.mxu0 %v7506
    %10656 = vmatpush.bf16.msra.mxu0 %v7498
    %10657 = vmatpush.bf16.msra.mxu0 %v7490
    %10658 = vmatpush.bf16.msra.mxu0 %v7482
    %10659 = vmatpush.bf16.msra.mxu0 %v7474
    %10660 = vmatpush.bf16.msra.mxu0 %v7466
    %10661 = vmatpush.bf16.msra.mxu0 %v7458
    %10662 = vmatmul.bf16.gmra.mxu0 %v2438
    %v10663 = vpop.f32.mrf.mxu0
    %v10664 = vadd.f32 %v10651, %v10663
    %v10665 = vpop.f32.mrf.mxu0
    %10666 = vdwg.mxu0
    %10667 = vmatpush.bf16.msra.mxu0 %v7578
    %10668 = vmatpush.bf16.msra.mxu0 %v7570
    %10669 = vmatpush.bf16.msra.mxu0 %v7562
    %10670 = vmatpush.bf16.msra.mxu0 %v7554
    %10671 = vmatpush.bf16.msra.mxu0 %v7546
    %10672 = vmatpush.bf16.msra.mxu0 %v7538
    %10673 = vmatpush.bf16.msra.mxu0 %v7530
    %10674 = vmatpush.bf16.msra.mxu0 %v7522
    %10675 = vmatmul.bf16.gmra.mxu0 %v2439
    %v10676 = vpop.f32.mrf.mxu0
    %v10677 = vadd.f32 %v10664, %v10676
    %v10678 = vpop.f32.mrf.mxu0
    %10679 = vdwg.mxu0
    %10680 = vmatpush.bf16.msra.mxu0 %v6363
    %10681 = vmatpush.bf16.msra.mxu0 %v6355
    %10682 = vmatpush.bf16.msra.mxu0 %v6347
    %10683 = vmatpush.bf16.msra.mxu0 %v6339
    %10684 = vmatpush.bf16.msra.mxu0 %v6331
    %10685 = vmatpush.bf16.msra.mxu0 %v6323
    %10686 = vmatpush.bf16.msra.mxu0 %v6315
    %10687 = vmatpush.bf16.msra.mxu0 %v6307
    %10688 = vmatmul.bf16.gmra.mxu0 %v2420
    %v10689 = vpop.f32.mrf.mxu0
    %v10690 = vadd.f32 %v2387, %v10689
    %v10691 = vpop.f32.mrf.mxu0
    %10692 = vdwg.mxu0
    %10693 = vmatpush.bf16.msra.mxu0 %v6427
    %10694 = vmatpush.bf16.msra.mxu0 %v6419
    %10695 = vmatpush.bf16.msra.mxu0 %v6411
    %10696 = vmatpush.bf16.msra.mxu0 %v6403
    %10697 = vmatpush.bf16.msra.mxu0 %v6395
    %10698 = vmatpush.bf16.msra.mxu0 %v6387
    %10699 = vmatpush.bf16.msra.mxu0 %v6379
    %10700 = vmatpush.bf16.msra.mxu0 %v6371
    %10701 = vmatmul.bf16.gmra.mxu0 %v2421
    %v10702 = vpop.f32.mrf.mxu0
    %v10703 = vadd.f32 %v10690, %v10702
    %v10704 = vpop.f32.mrf.mxu0
    %10705 = vdwg.mxu0
    %10706 = vmatpush.bf16.msra.mxu0 %v6491
    %10707 = vmatpush.bf16.msra.mxu0 %v6483
    %10708 = vmatpush.bf16.msra.mxu0 %v6475
    %10709 = vmatpush.bf16.msra.mxu0 %v6467
    %10710 = vmatpush.bf16.msra.mxu0 %v6459
    %10711 = vmatpush.bf16.msra.mxu0 %v6451
    %10712 = vmatpush.bf16.msra.mxu0 %v6443
    %10713 = vmatpush.bf16.msra.mxu0 %v6435
    %10714 = vmatmul.bf16.gmra.mxu0 %v2422
    %v10715 = vpop.f32.mrf.mxu0
    %v10716 = vadd.f32 %v10703, %v10715
    %v10717 = vpop.f32.mrf.mxu0
    %10718 = vdwg.mxu0
    %10719 = vmatpush.bf16.msra.mxu0 %v6555
    %10720 = vmatpush.bf16.msra.mxu0 %v6547
    %10721 = vmatpush.bf16.msra.mxu0 %v6539
    %10722 = vmatpush.bf16.msra.mxu0 %v6531
    %10723 = vmatpush.bf16.msra.mxu0 %v6523
    %10724 = vmatpush.bf16.msra.mxu0 %v6515
    %10725 = vmatpush.bf16.msra.mxu0 %v6507
    %10726 = vmatpush.bf16.msra.mxu0 %v6499
    %10727 = vmatmul.bf16.gmra.mxu0 %v2423
    %v10728 = vpop.f32.mrf.mxu0
    %v10729 = vadd.f32 %v10716, %v10728
    %v10730 = vpop.f32.mrf.mxu0
    %10731 = vdwg.mxu0
    %10732 = vmatpush.bf16.msra.mxu0 %v6619
    %10733 = vmatpush.bf16.msra.mxu0 %v6611
    %10734 = vmatpush.bf16.msra.mxu0 %v6603
    %10735 = vmatpush.bf16.msra.mxu0 %v6595
    %10736 = vmatpush.bf16.msra.mxu0 %v6587
    %10737 = vmatpush.bf16.msra.mxu0 %v6579
    %10738 = vmatpush.bf16.msra.mxu0 %v6571
    %10739 = vmatpush.bf16.msra.mxu0 %v6563
    %10740 = vmatmul.bf16.gmra.mxu0 %v2424
    %v10741 = vpop.f32.mrf.mxu0
    %v10742 = vadd.f32 %v10729, %v10741
    %v10743 = vpop.f32.mrf.mxu0
    %10744 = vdwg.mxu0
    %10745 = vmatpush.bf16.msra.mxu0 %v6683
    %10746 = vmatpush.bf16.msra.mxu0 %v6675
    %10747 = vmatpush.bf16.msra.mxu0 %v6667
    %10748 = vmatpush.bf16.msra.mxu0 %v6659
    %10749 = vmatpush.bf16.msra.mxu0 %v6651
    %10750 = vmatpush.bf16.msra.mxu0 %v6643
    %10751 = vmatpush.bf16.msra.mxu0 %v6635
    %10752 = vmatpush.bf16.msra.mxu0 %v6627
    %10753 = vmatmul.bf16.gmra.mxu0 %v2425
    %v10754 = vpop.f32.mrf.mxu0
    %v10755 = vadd.f32 %v10742, %v10754
    %v10756 = vpop.f32.mrf.mxu0
    %10757 = vdwg.mxu0
    %10758 = vmatpush.bf16.msra.mxu0 %v6747
    %10759 = vmatpush.bf16.msra.mxu0 %v6739
    %10760 = vmatpush.bf16.msra.mxu0 %v6731
    %10761 = vmatpush.bf16.msra.mxu0 %v6723
    %10762 = vmatpush.bf16.msra.mxu0 %v6715
    %10763 = vmatpush.bf16.msra.mxu0 %v6707
    %10764 = vmatpush.bf16.msra.mxu0 %v6699
    %10765 = vmatpush.bf16.msra.mxu0 %v6691
    %10766 = vmatmul.bf16.gmra.mxu0 %v2426
    %v10767 = vpop.f32.mrf.mxu0
    %v10768 = vadd.f32 %v10755, %v10767
    %v10769 = vpop.f32.mrf.mxu0
    %10770 = vdwg.mxu0
    %10771 = vmatpush.bf16.msra.mxu0 %v6811
    %10772 = vmatpush.bf16.msra.mxu0 %v6803
    %10773 = vmatpush.bf16.msra.mxu0 %v6795
    %10774 = vmatpush.bf16.msra.mxu0 %v6787
    %10775 = vmatpush.bf16.msra.mxu0 %v6779
    %10776 = vmatpush.bf16.msra.mxu0 %v6771
    %10777 = vmatpush.bf16.msra.mxu0 %v6763
    %10778 = vmatpush.bf16.msra.mxu0 %v6755
    %10779 = vmatmul.bf16.gmra.mxu0 %v2427
    %v10780 = vpop.f32.mrf.mxu0
    %v10781 = vadd.f32 %v10768, %v10780
    %v10782 = vpop.f32.mrf.mxu0
    %10783 = vdwg.mxu0
    %10784 = vmatpush.bf16.msra.mxu0 %v6875
    %10785 = vmatpush.bf16.msra.mxu0 %v6867
    %10786 = vmatpush.bf16.msra.mxu0 %v6859
    %10787 = vmatpush.bf16.msra.mxu0 %v6851
    %10788 = vmatpush.bf16.msra.mxu0 %v6843
    %10789 = vmatpush.bf16.msra.mxu0 %v6835
    %10790 = vmatpush.bf16.msra.mxu0 %v6827
    %10791 = vmatpush.bf16.msra.mxu0 %v6819
    %10792 = vmatmul.bf16.gmra.mxu0 %v2428
    %v10793 = vpop.f32.mrf.mxu0
    %v10794 = vadd.f32 %v10781, %v10793
    %v10795 = vpop.f32.mrf.mxu0
    %10796 = vdwg.mxu0
    %10797 = vmatpush.bf16.msra.mxu0 %v6939
    %10798 = vmatpush.bf16.msra.mxu0 %v6931
    %10799 = vmatpush.bf16.msra.mxu0 %v6923
    %10800 = vmatpush.bf16.msra.mxu0 %v6915
    %10801 = vmatpush.bf16.msra.mxu0 %v6907
    %10802 = vmatpush.bf16.msra.mxu0 %v6899
    %10803 = vmatpush.bf16.msra.mxu0 %v6891
    %10804 = vmatpush.bf16.msra.mxu0 %v6883
    %10805 = vmatmul.bf16.gmra.mxu0 %v2429
    %v10806 = vpop.f32.mrf.mxu0
    %v10807 = vadd.f32 %v10794, %v10806
    %v10808 = vpop.f32.mrf.mxu0
    %10809 = vdwg.mxu0
    %10810 = vmatpush.bf16.msra.mxu0 %v7003
    %10811 = vmatpush.bf16.msra.mxu0 %v6995
    %10812 = vmatpush.bf16.msra.mxu0 %v6987
    %10813 = vmatpush.bf16.msra.mxu0 %v6979
    %10814 = vmatpush.bf16.msra.mxu0 %v6971
    %10815 = vmatpush.bf16.msra.mxu0 %v6963
    %10816 = vmatpush.bf16.msra.mxu0 %v6955
    %10817 = vmatpush.bf16.msra.mxu0 %v6947
    %10818 = vmatmul.bf16.gmra.mxu0 %v2430
    %v10819 = vpop.f32.mrf.mxu0
    %v10820 = vadd.f32 %v10807, %v10819
    %v10821 = vpop.f32.mrf.mxu0
    %10822 = vdwg.mxu0
    %10823 = vmatpush.bf16.msra.mxu0 %v7067
    %10824 = vmatpush.bf16.msra.mxu0 %v7059
    %10825 = vmatpush.bf16.msra.mxu0 %v7051
    %10826 = vmatpush.bf16.msra.mxu0 %v7043
    %10827 = vmatpush.bf16.msra.mxu0 %v7035
    %10828 = vmatpush.bf16.msra.mxu0 %v7027
    %10829 = vmatpush.bf16.msra.mxu0 %v7019
    %10830 = vmatpush.bf16.msra.mxu0 %v7011
    %10831 = vmatmul.bf16.gmra.mxu0 %v2431
    %v10832 = vpop.f32.mrf.mxu0
    %v10833 = vadd.f32 %v10820, %v10832
    %v10834 = vpop.f32.mrf.mxu0
    %10835 = vdwg.mxu0
    %10836 = vmatpush.bf16.msra.mxu0 %v7131
    %10837 = vmatpush.bf16.msra.mxu0 %v7123
    %10838 = vmatpush.bf16.msra.mxu0 %v7115
    %10839 = vmatpush.bf16.msra.mxu0 %v7107
    %10840 = vmatpush.bf16.msra.mxu0 %v7099
    %10841 = vmatpush.bf16.msra.mxu0 %v7091
    %10842 = vmatpush.bf16.msra.mxu0 %v7083
    %10843 = vmatpush.bf16.msra.mxu0 %v7075
    %10844 = vmatmul.bf16.gmra.mxu0 %v2432
    %v10845 = vpop.f32.mrf.mxu0
    %v10846 = vadd.f32 %v10833, %v10845
    %v10847 = vpop.f32.mrf.mxu0
    %10848 = vdwg.mxu0
    %10849 = vmatpush.bf16.msra.mxu0 %v7195
    %10850 = vmatpush.bf16.msra.mxu0 %v7187
    %10851 = vmatpush.bf16.msra.mxu0 %v7179
    %10852 = vmatpush.bf16.msra.mxu0 %v7171
    %10853 = vmatpush.bf16.msra.mxu0 %v7163
    %10854 = vmatpush.bf16.msra.mxu0 %v7155
    %10855 = vmatpush.bf16.msra.mxu0 %v7147
    %10856 = vmatpush.bf16.msra.mxu0 %v7139
    %10857 = vmatmul.bf16.gmra.mxu0 %v2433
    %v10858 = vpop.f32.mrf.mxu0
    %v10859 = vadd.f32 %v10846, %v10858
    %v10860 = vpop.f32.mrf.mxu0
    %10861 = vdwg.mxu0
    %10862 = vmatpush.bf16.msra.mxu0 %v7259
    %10863 = vmatpush.bf16.msra.mxu0 %v7251
    %10864 = vmatpush.bf16.msra.mxu0 %v7243
    %10865 = vmatpush.bf16.msra.mxu0 %v7235
    %10866 = vmatpush.bf16.msra.mxu0 %v7227
    %10867 = vmatpush.bf16.msra.mxu0 %v7219
    %10868 = vmatpush.bf16.msra.mxu0 %v7211
    %10869 = vmatpush.bf16.msra.mxu0 %v7203
    %10870 = vmatmul.bf16.gmra.mxu0 %v2434
    %v10871 = vpop.f32.mrf.mxu0
    %v10872 = vadd.f32 %v10859, %v10871
    %v10873 = vpop.f32.mrf.mxu0
    %10874 = vdwg.mxu0
    %10875 = vmatpush.bf16.msra.mxu0 %v7323
    %10876 = vmatpush.bf16.msra.mxu0 %v7315
    %10877 = vmatpush.bf16.msra.mxu0 %v7307
    %10878 = vmatpush.bf16.msra.mxu0 %v7299
    %10879 = vmatpush.bf16.msra.mxu0 %v7291
    %10880 = vmatpush.bf16.msra.mxu0 %v7283
    %10881 = vmatpush.bf16.msra.mxu0 %v7275
    %10882 = vmatpush.bf16.msra.mxu0 %v7267
    %10883 = vmatmul.bf16.gmra.mxu0 %v2435
    %v10884 = vpop.f32.mrf.mxu0
    %v10885 = vadd.f32 %v10872, %v10884
    %v10886 = vpop.f32.mrf.mxu0
    %10887 = vdwg.mxu0
    %10888 = vmatpush.bf16.msra.mxu0 %v7387
    %10889 = vmatpush.bf16.msra.mxu0 %v7379
    %10890 = vmatpush.bf16.msra.mxu0 %v7371
    %10891 = vmatpush.bf16.msra.mxu0 %v7363
    %10892 = vmatpush.bf16.msra.mxu0 %v7355
    %10893 = vmatpush.bf16.msra.mxu0 %v7347
    %10894 = vmatpush.bf16.msra.mxu0 %v7339
    %10895 = vmatpush.bf16.msra.mxu0 %v7331
    %10896 = vmatmul.bf16.gmra.mxu0 %v2436
    %v10897 = vpop.f32.mrf.mxu0
    %v10898 = vadd.f32 %v10885, %v10897
    %v10899 = vpop.f32.mrf.mxu0
    %10900 = vdwg.mxu0
    %10901 = vmatpush.bf16.msra.mxu0 %v7451
    %10902 = vmatpush.bf16.msra.mxu0 %v7443
    %10903 = vmatpush.bf16.msra.mxu0 %v7435
    %10904 = vmatpush.bf16.msra.mxu0 %v7427
    %10905 = vmatpush.bf16.msra.mxu0 %v7419
    %10906 = vmatpush.bf16.msra.mxu0 %v7411
    %10907 = vmatpush.bf16.msra.mxu0 %v7403
    %10908 = vmatpush.bf16.msra.mxu0 %v7395
    %10909 = vmatmul.bf16.gmra.mxu0 %v2437
    %v10910 = vpop.f32.mrf.mxu0
    %v10911 = vadd.f32 %v10898, %v10910
    %v10912 = vpop.f32.mrf.mxu0
    %10913 = vdwg.mxu0
    %10914 = vmatpush.bf16.msra.mxu0 %v7515
    %10915 = vmatpush.bf16.msra.mxu0 %v7507
    %10916 = vmatpush.bf16.msra.mxu0 %v7499
    %10917 = vmatpush.bf16.msra.mxu0 %v7491
    %10918 = vmatpush.bf16.msra.mxu0 %v7483
    %10919 = vmatpush.bf16.msra.mxu0 %v7475
    %10920 = vmatpush.bf16.msra.mxu0 %v7467
    %10921 = vmatpush.bf16.msra.mxu0 %v7459
    %10922 = vmatmul.bf16.gmra.mxu0 %v2438
    %v10923 = vpop.f32.mrf.mxu0
    %v10924 = vadd.f32 %v10911, %v10923
    %v10925 = vpop.f32.mrf.mxu0
    %10926 = vdwg.mxu0
    %10927 = vmatpush.bf16.msra.mxu0 %v7579
    %10928 = vmatpush.bf16.msra.mxu0 %v7571
    %10929 = vmatpush.bf16.msra.mxu0 %v7563
    %10930 = vmatpush.bf16.msra.mxu0 %v7555
    %10931 = vmatpush.bf16.msra.mxu0 %v7547
    %10932 = vmatpush.bf16.msra.mxu0 %v7539
    %10933 = vmatpush.bf16.msra.mxu0 %v7531
    %10934 = vmatpush.bf16.msra.mxu0 %v7523
    %10935 = vmatmul.bf16.gmra.mxu0 %v2439
    %v10936 = vpop.f32.mrf.mxu0
    %v10937 = vadd.f32 %v10924, %v10936
    %v10938 = vpop.f32.mrf.mxu0
    %10939 = vdwg.mxu0
    %v10940 = vld [vmem:[#allocation10] sm:$0xff]
    %v10942 = vperm.slane %v10940, 0
    %v10943 = vperm.slane %v10940, 1
    %v10944 = vperm.slane %v10940, 2
    %v10945 = vperm.slane %v10940, 3
    %v10946 = vperm.slane %v10940, 4
    %v10947 = vperm.slane %v10940, 5
    %v10948 = vperm.slane %v10940, 6
    %v10949 = vperm.slane %v10940, 7
    %v10958 = vadd.f32 %v9117, %v10942
    %v10959 = vadd.f32 %v9377, %v10943
    %v10960 = vadd.f32 %v9637, %v10944
    %v10961 = vadd.f32 %v9897, %v10945
    %v10962 = vadd.f32 %v10157, %v10946
    %v10963 = vadd.f32 %v10417, %v10947
    %v10964 = vadd.f32 %v10677, %v10948
    %v10965 = vadd.f32 %v10937, %v10949
    %v10966 = vxor.u32 %v10958, 2147483648
    %v10967 = vxor.u32 %v10959, 2147483648
    %v10968 = vmul.f32 %v10966, 1.442695
    %v10969 = vpow.pop %v10968
    %v10970 = vmul.f32 %v10967, 1.442695
    %v10971 = vpow.pop %v10970
    %v10972 = vadd.f32 %v10969, 1.0
    %v10973 = vadd.f32 %v10971, 1.0
    %v10974 = vrcp.pop %v10972
    %v10975 = vmul.f32 %v10972, %v10974
    %v10976 = vsub.f32 1.0, %v10975
    %v10977 = vmul.f32 %v10974, %v10976
    %v10978 = vadd.f32 %v10974, %v10977
    %vm10979 = vweird.f32 %v10972
    %vm10980 = vweird.f32 %v10974
    %vm10981 = vmor %vm10979, %vm10980
    %v10982 = vsel %vm10981, %v10974, %v10978
    %v10983 = vand.u32 2147483647, %v10972
    %vm10984 = vcmp.eq.f32.partialorder %v10983, 8.507059e+37
    %v10985 = vand.u32 %v10972, 2147483648
    %v10986 = vor.u32 1.1754944e-38, %v10985
    %v10987 = vsel %vm10984, %v10986, %v10982
    %v10988 = vmul.f32 1.0, %v10987
    %v10989 = vrcp.pop %v10973
    %v10990 = vmul.f32 %v10973, %v10989
    %v10991 = vsub.f32 1.0, %v10990
    %v10992 = vmul.f32 %v10989, %v10991
    %v10993 = vadd.f32 %v10989, %v10992
    %vm10994 = vweird.f32 %v10973
    %vm10995 = vweird.f32 %v10989
    %vm10996 = vmor %vm10994, %vm10995
    %v10997 = vsel %vm10996, %v10989, %v10993
    %v10998 = vand.u32 2147483647, %v10973
    %vm10999 = vcmp.eq.f32.partialorder %v10998, 8.507059e+37
    %v11000 = vand.u32 %v10973, 2147483648
    %v11001 = vor.u32 1.1754944e-38, %v11000
    %v11002 = vsel %vm10999, %v11001, %v10997
    %v11003 = vmul.f32 1.0, %v11002
    %v11004 = vxor.u32 %v10960, 2147483648
    %v11005 = vxor.u32 %v10961, 2147483648
    %v11006 = vmul.f32 %v11004, 1.442695
    %v11007 = vpow.pop %v11006
    %v11008 = vmul.f32 %v11005, 1.442695
    %v11009 = vpow.pop %v11008
    %v11010 = vadd.f32 %v11007, 1.0
    %v11011 = vadd.f32 %v11009, 1.0
    %v11012 = vrcp.pop %v11010
    %v11013 = vmul.f32 %v11010, %v11012
    %v11014 = vsub.f32 1.0, %v11013
    %v11015 = vmul.f32 %v11012, %v11014
    %v11016 = vadd.f32 %v11012, %v11015
    %vm11017 = vweird.f32 %v11010
    %vm11018 = vweird.f32 %v11012
    %vm11019 = vmor %vm11017, %vm11018
    %v11020 = vsel %vm11019, %v11012, %v11016
    %v11021 = vand.u32 2147483647, %v11010
    %vm11022 = vcmp.eq.f32.partialorder %v11021, 8.507059e+37
    %v11023 = vand.u32 %v11010, 2147483648
    %v11024 = vor.u32 1.1754944e-38, %v11023
    %v11025 = vsel %vm11022, %v11024, %v11020
    %v11026 = vmul.f32 1.0, %v11025
    %v11027 = vrcp.pop %v11011
    %v11028 = vmul.f32 %v11011, %v11027
    %v11029 = vsub.f32 1.0, %v11028
    %v11030 = vmul.f32 %v11027, %v11029
    %v11031 = vadd.f32 %v11027, %v11030
    %vm11032 = vweird.f32 %v11011
    %vm11033 = vweird.f32 %v11027
    %vm11034 = vmor %vm11032, %vm11033
    %v11035 = vsel %vm11034, %v11027, %v11031
    %v11036 = vand.u32 2147483647, %v11011
    %vm11037 = vcmp.eq.f32.partialorder %v11036, 8.507059e+37
    %v11038 = vand.u32 %v11011, 2147483648
    %v11039 = vor.u32 1.1754944e-38, %v11038
    %v11040 = vsel %vm11037, %v11039, %v11035
    %v11041 = vmul.f32 1.0, %v11040
    %v11042 = vtanh.pop %v10962
    %v11043 = vtanh.pop %v10963
    %v11044 = vxor.u32 %v10964, 2147483648
    %v11045 = vxor.u32 %v10965, 2147483648
    %v11046 = vmul.f32 %v11044, 1.442695
    %v11047 = vpow.pop %v11046
    %v11048 = vmul.f32 %v11045, 1.442695
    %v11049 = vpow.pop %v11048
    %v11050 = vadd.f32 %v11047, 1.0
    %v11051 = vadd.f32 %v11049, 1.0
    %v11052 = vrcp.pop %v11050
    %v11053 = vmul.f32 %v11050, %v11052
    %v11054 = vsub.f32 1.0, %v11053
    %v11055 = vmul.f32 %v11052, %v11054
    %v11056 = vadd.f32 %v11052, %v11055
    %vm11057 = vweird.f32 %v11050
    %vm11058 = vweird.f32 %v11052
    %vm11059 = vmor %vm11057, %vm11058
    %v11060 = vsel %vm11059, %v11052, %v11056
    %v11061 = vand.u32 2147483647, %v11050
    %vm11062 = vcmp.eq.f32.partialorder %v11061, 8.507059e+37
    %v11063 = vand.u32 %v11050, 2147483648
    %v11064 = vor.u32 1.1754944e-38, %v11063
    %v11065 = vsel %vm11062, %v11064, %v11060
    %v11066 = vmul.f32 1.0, %v11065
    %v11067 = vrcp.pop %v11051
    %v11068 = vmul.f32 %v11051, %v11067
    %v11069 = vsub.f32 1.0, %v11068
    %v11070 = vmul.f32 %v11067, %v11069
    %v11071 = vadd.f32 %v11067, %v11070
    %vm11072 = vweird.f32 %v11051
    %vm11073 = vweird.f32 %v11067
    %vm11074 = vmor %vm11072, %vm11073
    %v11075 = vsel %vm11074, %v11067, %v11071
    %v11076 = vand.u32 2147483647, %v11051
    %vm11077 = vcmp.eq.f32.partialorder %v11076, 8.507059e+37
    %v11078 = vand.u32 %v11051, 2147483648
    %v11079 = vor.u32 1.1754944e-38, %v11078
    %v11080 = vsel %vm11077, %v11079, %v11075
    %v11081 = vmul.f32 1.0, %v11080
    %v11082 = vld [vmem:[#allocation3] sm:$0xff]
    %v11083 = vld [vmem:[#allocation3 + $0x8] sm:$0xff]
    %v11084 = vmul.f32 %v11026, %v11082
    %v11085 = vmul.f32 %v11041, %v11083
    %v11086 = vmul.f32 %v10988, %v11042
    %v11087 = vmul.f32 %v11003, %v11043
    %v11088 = vadd.f32 %v11084, %v11086
    %v11089 = vadd.f32 %v11085, %v11087
    %v11090 = vtanh.pop %v11088
    %v11091 = vtanh.pop %v11089
    %v11092 = vmul.f32 %v11066, %v11090
    %v11093 = vmul.f32 %v11081, %v11091
    %11094 = vst [vmem:[#allocation3] sm:$0xff] %v11088
    %11095 = vst [vmem:[#allocation3 + $0x8] sm:$0xff] %v11089
    %11096 = vst [vmem:[#allocation2] sm:$0xff] %v11092
    %11097 = vst [vmem:[#allocation2 + $0x8] sm:$0xff] %v11093
    // Predicated region
    $region54: #{tpu_custom_call.1} parent=1 // pred_check
      %p11098 = pneg %p112
    $region55: #{tpu_custom_call.1} parent=1 // pred_check_branch
      %11100 = sbr.rel (%p11098) target = $region57
    $region56: #{tpu_custom_call.1} parent=1 // pred_region
      %v11101 = vld [vmem:[#allocation12] sm:$0xff]
      %v11102 = vld [vmem:[#allocation12 + $0x8] sm:$0xff]
      %v11103 = vld [vmem:[#allocation12 + $0x10] sm:$0xff]
      %v11104 = vld [vmem:[#allocation12 + $0x18] sm:$0xff]
      %v11105 = vld [vmem:[#allocation12 + $0x20] sm:$0xff]
      %v11106 = vld [vmem:[#allocation12 + $0x28] sm:$0xff]
      %v11107 = vld [vmem:[#allocation12 + $0x30] sm:$0xff]
      %v11108 = vld [vmem:[#allocation12 + $0x38] sm:$0xff]
      %v11109 = vld [vmem:[#allocation12 + $0x40] sm:$0xff]
      %v11110 = vld [vmem:[#allocation12 + $0x48] sm:$0xff]
      %v11111 = vld [vmem:[#allocation12 + $0x50] sm:$0xff]
      %v11112 = vld [vmem:[#allocation12 + $0x58] sm:$0xff]
      %v11113 = vld [vmem:[#allocation12 + $0x60] sm:$0xff]
      %v11114 = vld [vmem:[#allocation12 + $0x68] sm:$0xff]
      %v11115 = vld [vmem:[#allocation12 + $0x70] sm:$0xff]
      %v11116 = vld [vmem:[#allocation12 + $0x78] sm:$0xff]
      %v11117 = vld [vmem:[#allocation12 + $0x80] sm:$0xff]
      %v11118 = vld [vmem:[#allocation12 + $0x88] sm:$0xff]
      %v11119 = vld [vmem:[#allocation12 + $0x90] sm:$0xff]
      %v11120 = vld [vmem:[#allocation12 + $0x98] sm:$0xff]
      %v11121 = vld [vmem:[#allocation12 + $0xa0] sm:$0xff]
      %v11122 = vld [vmem:[#allocation12 + $0xa8] sm:$0xff]
      %v11123 = vld [vmem:[#allocation12 + $0xb0] sm:$0xff]
      %v11124 = vld [vmem:[#allocation12 + $0xb8] sm:$0xff]
      %v11125 = vld [vmem:[#allocation12 + $0xc0] sm:$0xff]
      %v11126 = vld [vmem:[#allocation12 + $0xc8] sm:$0xff]
      %v11127 = vld [vmem:[#allocation12 + $0xd0] sm:$0xff]
      %v11128 = vld [vmem:[#allocation12 + $0xd8] sm:$0xff]
      %v11129 = vld [vmem:[#allocation12 + $0xe0] sm:$0xff]
      %v11130 = vld [vmem:[#allocation12 + $0xe8] sm:$0xff]
      %v11131 = vld [vmem:[#allocation12 + $0xf0] sm:$0xff]
      %v11132 = vld [vmem:[#allocation12 + $0xf8] sm:$0xff]
      %v11133 = vld [vmem:[#allocation13] sm:$0x1]
      %v11135 = vperm.slane %v11133, 0
      %11137 = vmatpush.msra.mxu0 %v11116
      %11138 = vmatpush.msra.mxu0 %v11115
      %11139 = vmatpush.msra.mxu0 %v11114
      %11140 = vmatpush.msra.mxu0 %v11113
      %11141 = vmatpush.msra.mxu0 %v11112
      %11142 = vmatpush.msra.mxu0 %v11111
      %11143 = vmatpush.msra.mxu0 %v11110
      %11144 = vmatpush.msra.mxu0 %v11109
      %11145 = vmatpush.msra.mxu0 %v11108
      %11146 = vmatpush.msra.mxu0 %v11107
      %11147 = vmatpush.msra.mxu0 %v11106
      %11148 = vmatpush.msra.mxu0 %v11105
      %11149 = vmatpush.msra.mxu0 %v11104
      %11150 = vmatpush.msra.mxu0 %v11103
      %11151 = vmatpush.msra.mxu0 %v11102
      %11152 = vmatpush.msra.mxu0 %v11101
      %11153 = vmatmul.f32.gmra.mxu0 %v11092
      %v11154 = vpop.f32.mrf.mxu0
      %v11155 = vadd.f32 %v11135, %v11154
      %11156 = vdwg.mxu0
      %11157 = vmatpush.msra.mxu0 %v11132
      %11158 = vmatpush.msra.mxu0 %v11131
      %11159 = vmatpush.msra.mxu0 %v11130
      %11160 = vmatpush.msra.mxu0 %v11129
      %11161 = vmatpush.msra.mxu0 %v11128
      %11162 = vmatpush.msra.mxu0 %v11127
      %11163 = vmatpush.msra.mxu0 %v11126
      %11164 = vmatpush.msra.mxu0 %v11125
      %11165 = vmatpush.msra.mxu0 %v11124
      %11166 = vmatpush.msra.mxu0 %v11123
      %11167 = vmatpush.msra.mxu0 %v11122
      %11168 = vmatpush.msra.mxu0 %v11121
      %11169 = vmatpush.msra.mxu0 %v11120
      %11170 = vmatpush.msra.mxu0 %v11119
      %11171 = vmatpush.msra.mxu0 %v11118
      %11172 = vmatpush.msra.mxu0 %v11117
      %11173 = vmatmul.f32.gmra.mxu0 %v11093
      %v11174 = vpop.f32.mrf.mxu0
      %v11175 = vadd.f32 %v11155, %v11174
      %11176 = vdwg.mxu0
      %v11177 = vmax.f32 %v11175, 0.0
      %v11178 = vlaneseq
      %v11179 = vand.u32 %v11178, 127
      %vm11180 = vcmp.lt.s32.totalorder %v11179, 3
      %v11181 = vsel %vm11180, %v11177, -1e+30
      %11182 = vmax.xlane.f32.xlu0 %v11181
      %v11183 = vpop.xlane.xlu0 %11182
      %v11184 = vsub.f32 %v11181, %v11183
      %v11185 = vmul.f32 %v11184, 1.442695
      %v11186 = vpow.pop %v11185
      %11187 = vadd.xlane.f32.xlu0 %v11186
      %v11188 = vpop.xlane.xlu0 %11187
      %v11189 = vrcp.pop %v11188
      %v11190 = vmul.f32 %v11188, %v11189
      %v11191 = vsub.f32 1.0, %v11190
      %v11192 = vmul.f32 %v11189, %v11191
      %v11193 = vadd.f32 %v11189, %v11192
      %vm11194 = vweird.f32 %v11188
      %vm11195 = vweird.f32 %v11189
      %vm11196 = vmor %vm11194, %vm11195
      %v11197 = vsel %vm11196, %v11189, %v11193
      %v11198 = vand.u32 2147483647, %v11188
      %vm11199 = vcmp.eq.f32.partialorder %v11198, 8.507059e+37
      %v11200 = vand.u32 %v11188, 2147483648
      %v11201 = vor.u32 1.1754944e-38, %v11200
      %v11202 = vsel %vm11199, %v11201, %v11197
      %v11203 = vmul.f32 %v11186, %v11202
      %11204 = vst [vmem:[#allocation15] sm:$0xff] %v11203
    $region57: #{tpu_custom_call.1} parent=1 // pred_fallthru
      _
    // Predicated region
    $region58: #{tpu_custom_call.1} parent=1 // pred_check
      _
    $region59: #{tpu_custom_call.1} parent=1 // pred_check_branch
      %11206 = sbr.rel (0) target = $region61
    $region60: #{tpu_custom_call.1} parent=1 // pred_region
      %11208 = vsyncadd [#allocation6], 0
      %s11210 = sshll.u32 [#allocation15], 4
      %s11211 = int_to_ptr.vmem [resolvable:$true] %s11210
      %s11212 = sshll.u32 %s6, 4
      %s11213 = int_to_ptr.hbm [resolvable:$true] %s11212
      %11215 = dma.vmem_to_hbm [thread:$0]  %s11211, 128, %s11213, [#allocation6]
    $region61: #{tpu_custom_call.1} parent=1 // pred_fallthru
      _
    // Predicated region
    $region62: #{tpu_custom_call.1} parent=1 // pred_check
      _
    $region63: #{tpu_custom_call.1} parent=1 // pred_check_branch
      %11217 = sbr.rel (0) target = $region65
    $region64: #{tpu_custom_call.1} parent=1 // pred_region
      %11219 = dma.done [#allocation6], 128
    $region65: #{tpu_custom_call.1} parent=1 // pred_fallthru
      _
    %11220 = vsyncpa [#allocation5], 1
    %11221 = vsyncpa [#allocation8], 1
    %11222 = vsyncpa [#allocation11], 1
    %11223 = vsyncpa [#allocation14], 1
    %11224 = vsyncpa [#allocation6], 1

</llo_original>
